<compile_context>
chip_gen: v6e
topology: v6e:2x2x1
jax: 0.10.0
libtpu: 0.0.40
codegen_flags: <defaults>
</compile_context>

<pallas_src>
import jax
import jax.numpy as jnp
from jax.experimental import pallas as pl
from jax.experimental.pallas import tpu as pltpu

RRELU_NEG_SLOPE = (1.0 / 8.0 + 1.0 / 3.0) / 2.0  # PyTorch RReLU eval slope = 11/48
BN_EPS = 1e-5
MXU_DTYPE = jnp.float32  # see header: bf16 optional on v6e/v7x, not needed here


def _make_conv_kernel(d, h, wcin, wcout):
    """Fused conv3d(3x3x3, 'same') + BN(eval) + RReLU(eval) for one batch sample.

    x_ref : (1, D+2, H+2, W*Cin)   D/H zero-halo'd, (W, Cin) flattened into lanes
    g_ref : (9, W*Cin, W*Cout)     banded weights, index kd*3 + kh
    scale_ref, shift_ref : (1, W*Cout)
    o_ref : (1, D, H, W*Cout)      lane-dense output (W*Cout = 128 here)
    """
    m = d * h

    def kernel(x_ref, g_ref, scale_ref, shift_ref, o_ref):
        acc = jnp.zeros((m, wcout), jnp.float32)
        # 9 lane-dense MXU matmuls (kd, kh); kw + W-padding live inside G.
        for kd in range(3):
            for kh in range(3):
                lhs = x_ref[0, kd:kd + d, kh:kh + h, :].reshape(m, wcin)
                acc = acc + jnp.dot(lhs, g_ref[kd * 3 + kh],
                                    preferred_element_type=jnp.float32)
        # Folded BatchNorm affine + RReLU(eval) epilogue (f32, VPU, lane-dense).
        y = acc * scale_ref[...] + shift_ref[...]
        y = jnp.where(y >= 0.0, y, y * RRELU_NEG_SLOPE)
        o_ref[0] = y.reshape(d, h, wcout).astype(o_ref.dtype)

    return kernel


def _banded_weight(weight, w):
    """(Cout, Cin, 3, 3, 3) -> (9, W*Cin, W*Cout) block-Toeplitz over the W axis.

    G[kd*3+kh, w_in*Cin+ci, w_out*Cout+co] = weight[co, ci, kd, kh, w_in-w_out+1],
    zero where w_in - w_out + 1 is outside [0, 3) -- this implements the 'same'
    padding along W with no data-side halo.
    """
    cout, cin = weight.shape[0], weight.shape[1]
    wk = jnp.transpose(weight, (2, 3, 4, 1, 0))            # (3,3,3,Cin,Cout)
    wi = jnp.arange(w)[:, None]
    wo = jnp.arange(w)[None, :]
    kw = wi - wo + 1                                       # (W, W)
    valid = (kw >= 0) & (kw < 3)
    g = wk[:, :, jnp.clip(kw, 0, 2)]                       # (3,3,W,W,Cin,Cout)
    g = jnp.where(valid[None, None, :, :, None, None], g, 0.0)
    g = jnp.transpose(g, (0, 1, 2, 4, 3, 5))               # (3,3,W,Cin,W,Cout)
    return g.reshape(9, w * cin, w * cout)


def conv3d_bn_rrelu(x_flat, params, *, w):
    """One Conv3d(k=3,s=1,p=1) + BatchNorm3d(eval) + RReLU(eval) layer.

    x_flat: (N, D, H, W*Cin) f32 (channel-last flattened into the lane dim)
    returns: (N, D, H, W*Cout) f32 (same layout -> layers chain directly)
    """
    weight, bias, gamma, beta, run_mean, run_var = params
    n, d, h, wcin = x_flat.shape
    cin = wcin // w
    cout = weight.shape[0]
    wcout = w * cout

    # D/H halo only (W halo is folded into the banded weights).
    xp = jnp.pad(x_flat, ((0, 0), (1, 1), (1, 1), (0, 0))).astype(MXU_DTYPE)

    g = _banded_weight(weight, w).astype(MXU_DTYPE)        # (9, W*Cin, W*Cout)

    # Fold conv bias + BatchNorm(eval) into per-channel scale/shift, pre-tiled
    # across the W*Cout lane dimension for a lane-dense epilogue.
    scale = gamma / jnp.sqrt(run_var + BN_EPS)
    shift = (bias - run_mean) * scale + beta
    scale_t = jnp.tile(scale, w).reshape(1, wcout).astype(jnp.float32)
    shift_t = jnp.tile(shift, w).reshape(1, wcout).astype(jnp.float32)

    return pl.pallas_call(
        _make_conv_kernel(d, h, wcin, wcout),
        out_shape=jax.ShapeDtypeStruct((n, d, h, wcout), jnp.float32),
        grid_spec=pltpu.PrefetchScalarGridSpec(
            num_scalar_prefetch=0,
            grid=(n,),
            in_specs=[
                pl.BlockSpec((1, d + 2, h + 2, wcin), lambda ni: (ni, 0, 0, 0)),
                pl.BlockSpec((9, wcin, wcout), lambda ni: (0, 0, 0)),
                pl.BlockSpec((1, wcout), lambda ni: (0, 0)),
                pl.BlockSpec((1, wcout), lambda ni: (0, 0)),
            ],
            out_specs=pl.BlockSpec((1, d, h, wcout), lambda ni: (ni, 0, 0, 0)),
        ),
        compiler_params=pltpu.CompilerParams(
            dimension_semantics=("parallel",),       # v7x: 2 samples -> 2 TCs
            vmem_limit_bytes=32 * 1024 * 1024,
        ),
    )(xp, g, scale_t, shift_t)


def conv_block_forward(x_ncdhw, params):
    """ConvBlock.forward (eval mode): two fused (conv3d + bn + rrelu) stages."""
    n, cin, d, h, w = x_ncdhw.shape
    # NCDHW -> (N, D, H, W*Cin): channels packed into the lane dim; both layers
    # then chain in this layout with no intermediate transposes.
    x = jnp.transpose(x_ncdhw, (0, 2, 3, 4, 1)).reshape(n, d, h, w * cin)
    x = conv3d_bn_rrelu(x, params["layer1"], w=w)
    x = conv3d_bn_rrelu(x, params["layer2"], w=w)
    cout = x.shape[-1] // w
    x = x.reshape(n, d, h, w, cout)
    return jnp.transpose(x, (0, 4, 1, 2, 3))               # NDHWC -> NCDHW


def _init_layer(key, c_in, c_out):
    kw, kb, kg, kbeta, km, kv = jax.random.split(key, 6)
    fan_in = c_in * 27
    bound = 1.0 / jnp.sqrt(fan_in)
    weight = jax.random.uniform(kw, (c_out, c_in, 3, 3, 3), jnp.float32,
                                -bound, bound)
    bias = jax.random.uniform(kb, (c_out,), jnp.float32, -bound, bound)
    gamma = 1.0 + 0.1 * jax.random.normal(kg, (c_out,), jnp.float32)
    beta = 0.1 * jax.random.normal(kbeta, (c_out,), jnp.float32)
    run_mean = 0.1 * jax.random.normal(km, (c_out,), jnp.float32)
    run_var = 0.5 + jnp.abs(jax.random.normal(kv, (c_out,), jnp.float32))
    return (weight, bias, gamma, beta, run_mean, run_var)


def _reference_layer(x_ndhwc, weight, bias, gamma, beta, run_mean, run_var):
    """Pure-JAX reference for one layer (correctness check)."""
    w_dhwio = jnp.transpose(weight, (2, 3, 4, 1, 0))
    y = jax.lax.conv_general_dilated(
        x_ndhwc, w_dhwio, window_strides=(1, 1, 1), padding="SAME",
        dimension_numbers=("NDHWC", "DHWIO", "NDHWC"))
    y = y + bias
    y = (y - run_mean) / jnp.sqrt(run_var + BN_EPS) * gamma + beta
    return jnp.where(y >= 0.0, y, y * RRELU_NEG_SLOPE)


if __name__ == "__main__":
    key = jax.random.PRNGKey(0)
    k_x, k_l1, k_l2 = jax.random.split(key, 3)

    in_data, out_data = 4, 8
    N, D, H, W = 2, 16, 16, 16

    x = jax.random.normal(k_x, (N, in_data, D, H, W), jnp.float32)  # NCDHW
    params = {
        "layer1": _init_layer(k_l1, in_data, out_data),
        "layer2": _init_layer(k_l2, out_data, out_data),
    }

    out = jax.jit(conv_block_forward)(x, params)
    out = jax.block_until_ready(out)
    assert out.shape == (N, out_data, D, H, W)

    # Correctness check against a pure-JAX reference.
    x_ref = jnp.transpose(x, (0, 2, 3, 4, 1))
    x_ref = _reference_layer(x_ref, *params["layer1"])
    x_ref = _reference_layer(x_ref, *params["layer2"])
    ref = jnp.transpose(x_ref, (0, 4, 1, 2, 3))
    max_err = float(jnp.max(jnp.abs(out - ref)))
    assert jnp.allclose(out, ref, atol=2e-3, rtol=2e-3), max_err

    print("KERNEL_OK")
</pallas_src>

<mosaic_0001>
module attributes {stable_mosaic.version = 11 : i64} {
  func.func @kernel(%arg0: i32, %arg1: memref<1x18x18x64xf32, #tpu.memory_space<vmem>>, %arg2: memref<9x64x128xf32, #tpu.memory_space<vmem>>, %arg3: memref<1x128xf32, #tpu.memory_space<vmem>>, %arg4: memref<1x128xf32, #tpu.memory_space<vmem>>, %arg5: memref<1x16x16x128xf32, #tpu.memory_space<vmem>>) attributes {dimension_semantics = [#tpu.dimension_semantics<parallel>], iteration_bounds = array<i64: 2>, scalar_prefetch = 0 : i64, scratch_operands = 0 : i64, tpu.core_type = #tpu.core_type<tc>, window_params = [{transform_indices = @transform_0, window_bounds = array<i64: 1, 18, 18, 64>}, {pipeline_mode = #tpu.pipeline_mode<synchronous>, transform_indices = @transform_1, window_bounds = array<i64: 9, 64, 128>}, {pipeline_mode = #tpu.pipeline_mode<synchronous>, transform_indices = @transform_2, window_bounds = array<i64: 1, 128>}, {pipeline_mode = #tpu.pipeline_mode<synchronous>, transform_indices = @transform_3, window_bounds = array<i64: 1, 128>}, {transform_indices = @transform_4, window_bounds = array<i64: 1, 16, 16, 128>}]} {
    %cst = arith.constant 0.000000e+00 : f32
    %0 = vector.broadcast %cst : f32 to vector<256x128xf32>
    %c0 = arith.constant 0 : index
    %c0_0 = arith.constant 0 : index
    %c0_1 = arith.constant 0 : index
    %c0_2 = arith.constant 0 : index
    %1 = vector.load %arg1[%c0, %c0_0, %c0_1, %c0_2] : memref<1x18x18x64xf32, #tpu.memory_space<vmem>>, vector<1x16x16x64xf32>
    %2 = vector.shape_cast %1 : vector<1x16x16x64xf32> to vector<16x16x64xf32>
    %3 = vector.shape_cast %2 : vector<16x16x64xf32> to vector<256x64xf32>
    %c0_3 = arith.constant 0 : index
    %c0_4 = arith.constant 0 : index
    %c0_5 = arith.constant 0 : index
    %4 = vector.load %arg2[%c0_3, %c0_4, %c0_5] : memref<9x64x128xf32, #tpu.memory_space<vmem>>, vector<1x64x128xf32>
    %5 = vector.shape_cast %4 : vector<1x64x128xf32> to vector<64x128xf32>
    %cst_6 = arith.constant dense<0.000000e+00> : vector<256x128xf32>
    %6 = tpu.matmul %3, %5, %cst_6 {dimension_numbers = #tpu.dot_dimension_numbers<[1], [0], [0], [1], [0, 0, 1, 1], [], []>} : vector<256x64xf32>, vector<64x128xf32>, vector<256x128xf32> -> vector<256x128xf32>
    %7 = arith.addf %0, %6 : vector<256x128xf32>
    %c0_7 = arith.constant 0 : index
    %c0_8 = arith.constant 0 : index
    %c1 = arith.constant 1 : index
    %c0_9 = arith.constant 0 : index
    %8 = vector.load %arg1[%c0_7, %c0_8, %c1, %c0_9] : memref<1x18x18x64xf32, #tpu.memory_space<vmem>>, vector<1x16x16x64xf32>
    %9 = vector.shape_cast %8 : vector<1x16x16x64xf32> to vector<16x16x64xf32>
    %10 = vector.shape_cast %9 : vector<16x16x64xf32> to vector<256x64xf32>
    %c1_10 = arith.constant 1 : index
    %c0_11 = arith.constant 0 : index
    %c0_12 = arith.constant 0 : index
    %11 = vector.load %arg2[%c1_10, %c0_11, %c0_12] : memref<9x64x128xf32, #tpu.memory_space<vmem>>, vector<1x64x128xf32>
    %12 = vector.shape_cast %11 : vector<1x64x128xf32> to vector<64x128xf32>
    %cst_13 = arith.constant dense<0.000000e+00> : vector<256x128xf32>
    %13 = tpu.matmul %10, %12, %cst_13 {dimension_numbers = #tpu.dot_dimension_numbers<[1], [0], [0], [1], [0, 0, 1, 1], [], []>} : vector<256x64xf32>, vector<64x128xf32>, vector<256x128xf32> -> vector<256x128xf32>
    %14 = arith.addf %7, %13 : vector<256x128xf32>
    %c0_14 = arith.constant 0 : index
    %c0_15 = arith.constant 0 : index
    %c2 = arith.constant 2 : index
    %c0_16 = arith.constant 0 : index
    %15 = vector.load %arg1[%c0_14, %c0_15, %c2, %c0_16] : memref<1x18x18x64xf32, #tpu.memory_space<vmem>>, vector<1x16x16x64xf32>
    %16 = vector.shape_cast %15 : vector<1x16x16x64xf32> to vector<16x16x64xf32>
    %17 = vector.shape_cast %16 : vector<16x16x64xf32> to vector<256x64xf32>
    %c2_17 = arith.constant 2 : index
    %c0_18 = arith.constant 0 : index
    %c0_19 = arith.constant 0 : index
    %18 = vector.load %arg2[%c2_17, %c0_18, %c0_19] : memref<9x64x128xf32, #tpu.memory_space<vmem>>, vector<1x64x128xf32>
    %19 = vector.shape_cast %18 : vector<1x64x128xf32> to vector<64x128xf32>
    %cst_20 = arith.constant dense<0.000000e+00> : vector<256x128xf32>
    %20 = tpu.matmul %17, %19, %cst_20 {dimension_numbers = #tpu.dot_dimension_numbers<[1], [0], [0], [1], [0, 0, 1, 1], [], []>} : vector<256x64xf32>, vector<64x128xf32>, vector<256x128xf32> -> vector<256x128xf32>
    %21 = arith.addf %14, %20 : vector<256x128xf32>
    %c0_21 = arith.constant 0 : index
    %c1_22 = arith.constant 1 : index
    %c0_23 = arith.constant 0 : index
    %c0_24 = arith.constant 0 : index
    %22 = vector.load %arg1[%c0_21, %c1_22, %c0_23, %c0_24] : memref<1x18x18x64xf32, #tpu.memory_space<vmem>>, vector<1x16x16x64xf32>
    %23 = vector.shape_cast %22 : vector<1x16x16x64xf32> to vector<16x16x64xf32>
    %24 = vector.shape_cast %23 : vector<16x16x64xf32> to vector<256x64xf32>
    %c3 = arith.constant 3 : index
    %c0_25 = arith.constant 0 : index
    %c0_26 = arith.constant 0 : index
    %25 = vector.load %arg2[%c3, %c0_25, %c0_26] : memref<9x64x128xf32, #tpu.memory_space<vmem>>, vector<1x64x128xf32>
    %26 = vector.shape_cast %25 : vector<1x64x128xf32> to vector<64x128xf32>
    %cst_27 = arith.constant dense<0.000000e+00> : vector<256x128xf32>
    %27 = tpu.matmul %24, %26, %cst_27 {dimension_numbers = #tpu.dot_dimension_numbers<[1], [0], [0], [1], [0, 0, 1, 1], [], []>} : vector<256x64xf32>, vector<64x128xf32>, vector<256x128xf32> -> vector<256x128xf32>
    %28 = arith.addf %21, %27 : vector<256x128xf32>
    %c0_28 = arith.constant 0 : index
    %c1_29 = arith.constant 1 : index
    %c1_30 = arith.constant 1 : index
    %c0_31 = arith.constant 0 : index
    %29 = vector.load %arg1[%c0_28, %c1_29, %c1_30, %c0_31] : memref<1x18x18x64xf32, #tpu.memory_space<vmem>>, vector<1x16x16x64xf32>
    %30 = vector.shape_cast %29 : vector<1x16x16x64xf32> to vector<16x16x64xf32>
    %31 = vector.shape_cast %30 : vector<16x16x64xf32> to vector<256x64xf32>
    %c4 = arith.constant 4 : index
    %c0_32 = arith.constant 0 : index
    %c0_33 = arith.constant 0 : index
    %32 = vector.load %arg2[%c4, %c0_32, %c0_33] : memref<9x64x128xf32, #tpu.memory_space<vmem>>, vector<1x64x128xf32>
    %33 = vector.shape_cast %32 : vector<1x64x128xf32> to vector<64x128xf32>
    %cst_34 = arith.constant dense<0.000000e+00> : vector<256x128xf32>
    %34 = tpu.matmul %31, %33, %cst_34 {dimension_numbers = #tpu.dot_dimension_numbers<[1], [0], [0], [1], [0, 0, 1, 1], [], []>} : vector<256x64xf32>, vector<64x128xf32>, vector<256x128xf32> -> vector<256x128xf32>
    %35 = arith.addf %28, %34 : vector<256x128xf32>
    %c0_35 = arith.constant 0 : index
    %c1_36 = arith.constant 1 : index
    %c2_37 = arith.constant 2 : index
    %c0_38 = arith.constant 0 : index
    %36 = vector.load %arg1[%c0_35, %c1_36, %c2_37, %c0_38] : memref<1x18x18x64xf32, #tpu.memory_space<vmem>>, vector<1x16x16x64xf32>
    %37 = vector.shape_cast %36 : vector<1x16x16x64xf32> to vector<16x16x64xf32>
    %38 = vector.shape_cast %37 : vector<16x16x64xf32> to vector<256x64xf32>
    %c5 = arith.constant 5 : index
    %c0_39 = arith.constant 0 : index
    %c0_40 = arith.constant 0 : index
    %39 = vector.load %arg2[%c5, %c0_39, %c0_40] : memref<9x64x128xf32, #tpu.memory_space<vmem>>, vector<1x64x128xf32>
    %40 = vector.shape_cast %39 : vector<1x64x128xf32> to vector<64x128xf32>
    %cst_41 = arith.constant dense<0.000000e+00> : vector<256x128xf32>
    %41 = tpu.matmul %38, %40, %cst_41 {dimension_numbers = #tpu.dot_dimension_numbers<[1], [0], [0], [1], [0, 0, 1, 1], [], []>} : vector<256x64xf32>, vector<64x128xf32>, vector<256x128xf32> -> vector<256x128xf32>
    %42 = arith.addf %35, %41 : vector<256x128xf32>
    %c0_42 = arith.constant 0 : index
    %c2_43 = arith.constant 2 : index
    %c0_44 = arith.constant 0 : index
    %c0_45 = arith.constant 0 : index
    %43 = vector.load %arg1[%c0_42, %c2_43, %c0_44, %c0_45] : memref<1x18x18x64xf32, #tpu.memory_space<vmem>>, vector<1x16x16x64xf32>
    %44 = vector.shape_cast %43 : vector<1x16x16x64xf32> to vector<16x16x64xf32>
    %45 = vector.shape_cast %44 : vector<16x16x64xf32> to vector<256x64xf32>
    %c6 = arith.constant 6 : index
    %c0_46 = arith.constant 0 : index
    %c0_47 = arith.constant 0 : index
    %46 = vector.load %arg2[%c6, %c0_46, %c0_47] : memref<9x64x128xf32, #tpu.memory_space<vmem>>, vector<1x64x128xf32>
    %47 = vector.shape_cast %46 : vector<1x64x128xf32> to vector<64x128xf32>
    %cst_48 = arith.constant dense<0.000000e+00> : vector<256x128xf32>
    %48 = tpu.matmul %45, %47, %cst_48 {dimension_numbers = #tpu.dot_dimension_numbers<[1], [0], [0], [1], [0, 0, 1, 1], [], []>} : vector<256x64xf32>, vector<64x128xf32>, vector<256x128xf32> -> vector<256x128xf32>
    %49 = arith.addf %42, %48 : vector<256x128xf32>
    %c0_49 = arith.constant 0 : index
    %c2_50 = arith.constant 2 : index
    %c1_51 = arith.constant 1 : index
    %c0_52 = arith.constant 0 : index
    %50 = vector.load %arg1[%c0_49, %c2_50, %c1_51, %c0_52] : memref<1x18x18x64xf32, #tpu.memory_space<vmem>>, vector<1x16x16x64xf32>
    %51 = vector.shape_cast %50 : vector<1x16x16x64xf32> to vector<16x16x64xf32>
    %52 = vector.shape_cast %51 : vector<16x16x64xf32> to vector<256x64xf32>
    %c7 = arith.constant 7 : index
    %c0_53 = arith.constant 0 : index
    %c0_54 = arith.constant 0 : index
    %53 = vector.load %arg2[%c7, %c0_53, %c0_54] : memref<9x64x128xf32, #tpu.memory_space<vmem>>, vector<1x64x128xf32>
    %54 = vector.shape_cast %53 : vector<1x64x128xf32> to vector<64x128xf32>
    %cst_55 = arith.constant dense<0.000000e+00> : vector<256x128xf32>
    %55 = tpu.matmul %52, %54, %cst_55 {dimension_numbers = #tpu.dot_dimension_numbers<[1], [0], [0], [1], [0, 0, 1, 1], [], []>} : vector<256x64xf32>, vector<64x128xf32>, vector<256x128xf32> -> vector<256x128xf32>
    %56 = arith.addf %49, %55 : vector<256x128xf32>
    %c0_56 = arith.constant 0 : index
    %c2_57 = arith.constant 2 : index
    %c2_58 = arith.constant 2 : index
    %c0_59 = arith.constant 0 : index
    %57 = vector.load %arg1[%c0_56, %c2_57, %c2_58, %c0_59] : memref<1x18x18x64xf32, #tpu.memory_space<vmem>>, vector<1x16x16x64xf32>
    %58 = vector.shape_cast %57 : vector<1x16x16x64xf32> to vector<16x16x64xf32>
    %59 = vector.shape_cast %58 : vector<16x16x64xf32> to vector<256x64xf32>
    %c8 = arith.constant 8 : index
    %c0_60 = arith.constant 0 : index
    %c0_61 = arith.constant 0 : index
    %60 = vector.load %arg2[%c8, %c0_60, %c0_61] : memref<9x64x128xf32, #tpu.memory_space<vmem>>, vector<1x64x128xf32>
    %61 = vector.shape_cast %60 : vector<1x64x128xf32> to vector<64x128xf32>
    %cst_62 = arith.constant dense<0.000000e+00> : vector<256x128xf32>
    %62 = tpu.matmul %59, %61, %cst_62 {dimension_numbers = #tpu.dot_dimension_numbers<[1], [0], [0], [1], [0, 0, 1, 1], [], []>} : vector<256x64xf32>, vector<64x128xf32>, vector<256x128xf32> -> vector<256x128xf32>
    %63 = arith.addf %56, %62 : vector<256x128xf32>
    %c0_63 = arith.constant 0 : index
    %c0_64 = arith.constant 0 : index
    %64 = vector.load %arg3[%c0_63, %c0_64] : memref<1x128xf32, #tpu.memory_space<vmem>>, vector<1x128xf32>
    %65 = vector.broadcast %64 : vector<1x128xf32> to vector<256x128xf32>
    %66 = arith.mulf %63, %65 : vector<256x128xf32>
    %c0_65 = arith.constant 0 : index
    %c0_66 = arith.constant 0 : index
    %67 = vector.load %arg4[%c0_65, %c0_66] : memref<1x128xf32, #tpu.memory_space<vmem>>, vector<1x128xf32>
    %68 = vector.broadcast %67 : vector<1x128xf32> to vector<256x128xf32>
    %69 = arith.addf %66, %68 : vector<256x128xf32>
    %cst_67 = arith.constant 0.000000e+00 : f32
    %70 = vector.broadcast %cst_67 : f32 to vector<256x128xf32>
    %71 = arith.cmpf oge, %69, %70 : vector<256x128xf32>
    %cst_68 = arith.constant 0.229166672 : f32
    %72 = vector.broadcast %cst_68 : f32 to vector<256x128xf32>
    %73 = arith.mulf %69, %72 : vector<256x128xf32>
    %74 = arith.select %71, %69, %73 : vector<256x128xi1>, vector<256x128xf32>
    %75 = vector.shape_cast %74 : vector<256x128xf32> to vector<16x16x128xf32>
    %c0_69 = arith.constant 0 : index
    %c0_70 = arith.constant 0 : index
    %c0_71 = arith.constant 0 : index
    %c0_72 = arith.constant 0 : index
    %76 = vector.load %arg5[%c0_69, %c0_70, %c0_71, %c0_72] : memref<1x16x16x128xf32, #tpu.memory_space<vmem>>, vector<1x16x16x128xf32>
    %77 = vector.shape_cast %76 : vector<1x16x16x128xf32> to vector<16x16x128xf32>
    %78 = vector.shape_cast %75 : vector<16x16x128xf32> to vector<1x16x16x128xf32>
    tpu.vector_store %arg5[%c0_69, %c0_70, %c0_71, %c0_72], %78 {strides = array<i32>} : memref<1x16x16x128xf32, #tpu.memory_space<vmem>>, vector<1x16x16x128xf32>,
    return
  }
  func.func @transform_0(%arg0: i32) -> (i32, i32, i32, i32) {
    %c0_i32 = arith.constant 0 : i32
    %c0_i32_0 = arith.constant 0 : i32
    %c0_i32_1 = arith.constant 0 : i32
    %c0_i32_2 = arith.constant 0 : i32
    return %arg0, %c0_i32, %c0_i32_0, %c0_i32_1 : i32, i32, i32, i32
  }
  func.func @transform_1(%arg0: i32) -> (i32, i32, i32) {
    %c0_i32 = arith.constant 0 : i32
    %c0_i32_0 = arith.constant 0 : i32
    %c0_i32_1 = arith.constant 0 : i32
    %c0_i32_2 = arith.constant 0 : i32
    return %c0_i32, %c0_i32_0, %c0_i32_1 : i32, i32, i32
  }
  func.func @transform_2(%arg0: i32) -> (i32, i32) {
    %c0_i32 = arith.constant 0 : i32
    %c0_i32_0 = arith.constant 0 : i32
    %c0_i32_1 = arith.constant 0 : i32
    return %c0_i32, %c0_i32_0 : i32, i32
  }
  func.func @transform_3(%arg0: i32) -> (i32, i32) {
    %c0_i32 = arith.constant 0 : i32
    %c0_i32_0 = arith.constant 0 : i32
    %c0_i32_1 = arith.constant 0 : i32
    return %c0_i32, %c0_i32_0 : i32, i32
  }
  func.func @transform_4(%arg0: i32) -> (i32, i32, i32, i32) {
    %c0_i32 = arith.constant 0 : i32
    %c0_i32_0 = arith.constant 0 : i32
    %c0_i32_1 = arith.constant 0 : i32
    %c0_i32_2 = arith.constant 0 : i32
    return %arg0, %c0_i32, %c0_i32_0, %c0_i32_1 : i32, i32, i32, i32
  }
}

module attributes {stable_mosaic.version = 11 : i64} {
  func.func @kernel(%arg0: i32, %arg1: memref<1x18x18x128xf32, #tpu.memory_space<vmem>>, %arg2: memref<9x128x128xf32, #tpu.memory_space<vmem>>, %arg3: memref<1x128xf32, #tpu.memory_space<vmem>>, %arg4: memref<1x128xf32, #tpu.memory_space<vmem>>, %arg5: memref<1x16x16x128xf32, #tpu.memory_space<vmem>>) attributes {dimension_semantics = [#tpu.dimension_semantics<parallel>], iteration_bounds = array<i64: 2>, scalar_prefetch = 0 : i64, scratch_operands = 0 : i64, tpu.core_type = #tpu.core_type<tc>, window_params = [{transform_indices = @transform_0, window_bounds = array<i64: 1, 18, 18, 128>}, {pipeline_mode = #tpu.pipeline_mode<synchronous>, transform_indices = @transform_1, window_bounds = array<i64: 9, 128, 128>}, {pipeline_mode = #tpu.pipeline_mode<synchronous>, transform_indices = @transform_2, window_bounds = array<i64: 1, 128>}, {pipeline_mode = #tpu.pipeline_mode<synchronous>, transform_indices = @transform_3, window_bounds = array<i64: 1, 128>}, {transform_indices = @transform_4, window_bounds = array<i64: 1, 16, 16, 128>}]} {
    %cst = arith.constant 0.000000e+00 : f32
    %0 = vector.broadcast %cst : f32 to vector<256x128xf32>
    %c0 = arith.constant 0 : index
    %c0_0 = arith.constant 0 : index
    %c0_1 = arith.constant 0 : index
    %c0_2 = arith.constant 0 : index
    %1 = vector.load %arg1[%c0, %c0_0, %c0_1, %c0_2] : memref<1x18x18x128xf32, #tpu.memory_space<vmem>>, vector<1x16x16x128xf32>
    %2 = vector.shape_cast %1 : vector<1x16x16x128xf32> to vector<16x16x128xf32>
    %3 = vector.shape_cast %2 : vector<16x16x128xf32> to vector<256x128xf32>
    %c0_3 = arith.constant 0 : index
    %c0_4 = arith.constant 0 : index
    %c0_5 = arith.constant 0 : index
    %4 = vector.load %arg2[%c0_3, %c0_4, %c0_5] : memref<9x128x128xf32, #tpu.memory_space<vmem>>, vector<1x128x128xf32>
    %5 = vector.shape_cast %4 : vector<1x128x128xf32> to vector<128x128xf32>
    %cst_6 = arith.constant dense<0.000000e+00> : vector<256x128xf32>
    %6 = tpu.matmul %3, %5, %cst_6 {dimension_numbers = #tpu.dot_dimension_numbers<[1], [0], [0], [1], [0, 0, 1, 1], [], []>} : vector<256x128xf32>, vector<128x128xf32>, vector<256x128xf32> -> vector<256x128xf32>
    %7 = arith.addf %0, %6 : vector<256x128xf32>
    %c0_7 = arith.constant 0 : index
    %c0_8 = arith.constant 0 : index
    %c1 = arith.constant 1 : index
    %c0_9 = arith.constant 0 : index
    %8 = vector.load %arg1[%c0_7, %c0_8, %c1, %c0_9] : memref<1x18x18x128xf32, #tpu.memory_space<vmem>>, vector<1x16x16x128xf32>
    %9 = vector.shape_cast %8 : vector<1x16x16x128xf32> to vector<16x16x128xf32>
    %10 = vector.shape_cast %9 : vector<16x16x128xf32> to vector<256x128xf32>
    %c1_10 = arith.constant 1 : index
    %c0_11 = arith.constant 0 : index
    %c0_12 = arith.constant 0 : index
    %11 = vector.load %arg2[%c1_10, %c0_11, %c0_12] : memref<9x128x128xf32, #tpu.memory_space<vmem>>, vector<1x128x128xf32>
    %12 = vector.shape_cast %11 : vector<1x128x128xf32> to vector<128x128xf32>
    %cst_13 = arith.constant dense<0.000000e+00> : vector<256x128xf32>
    %13 = tpu.matmul %10, %12, %cst_13 {dimension_numbers = #tpu.dot_dimension_numbers<[1], [0], [0], [1], [0, 0, 1, 1], [], []>} : vector<256x128xf32>, vector<128x128xf32>, vector<256x128xf32> -> vector<256x128xf32>
    %14 = arith.addf %7, %13 : vector<256x128xf32>
    %c0_14 = arith.constant 0 : index
    %c0_15 = arith.constant 0 : index
    %c2 = arith.constant 2 : index
    %c0_16 = arith.constant 0 : index
    %15 = vector.load %arg1[%c0_14, %c0_15, %c2, %c0_16] : memref<1x18x18x128xf32, #tpu.memory_space<vmem>>, vector<1x16x16x128xf32>
    %16 = vector.shape_cast %15 : vector<1x16x16x128xf32> to vector<16x16x128xf32>
    %17 = vector.shape_cast %16 : vector<16x16x128xf32> to vector<256x128xf32>
    %c2_17 = arith.constant 2 : index
    %c0_18 = arith.constant 0 : index
    %c0_19 = arith.constant 0 : index
    %18 = vector.load %arg2[%c2_17, %c0_18, %c0_19] : memref<9x128x128xf32, #tpu.memory_space<vmem>>, vector<1x128x128xf32>
    %19 = vector.shape_cast %18 : vector<1x128x128xf32> to vector<128x128xf32>
    %cst_20 = arith.constant dense<0.000000e+00> : vector<256x128xf32>
    %20 = tpu.matmul %17, %19, %cst_20 {dimension_numbers = #tpu.dot_dimension_numbers<[1], [0], [0], [1], [0, 0, 1, 1], [], []>} : vector<256x128xf32>, vector<128x128xf32>, vector<256x128xf32> -> vector<256x128xf32>
    %21 = arith.addf %14, %20 : vector<256x128xf32>
    %c0_21 = arith.constant 0 : index
    %c1_22 = arith.constant 1 : index
    %c0_23 = arith.constant 0 : index
    %c0_24 = arith.constant 0 : index
    %22 = vector.load %arg1[%c0_21, %c1_22, %c0_23, %c0_24] : memref<1x18x18x128xf32, #tpu.memory_space<vmem>>, vector<1x16x16x128xf32>
    %23 = vector.shape_cast %22 : vector<1x16x16x128xf32> to vector<16x16x128xf32>
    %24 = vector.shape_cast %23 : vector<16x16x128xf32> to vector<256x128xf32>
    %c3 = arith.constant 3 : index
    %c0_25 = arith.constant 0 : index
    %c0_26 = arith.constant 0 : index
    %25 = vector.load %arg2[%c3, %c0_25, %c0_26] : memref<9x128x128xf32, #tpu.memory_space<vmem>>, vector<1x128x128xf32>
    %26 = vector.shape_cast %25 : vector<1x128x128xf32> to vector<128x128xf32>
    %cst_27 = arith.constant dense<0.000000e+00> : vector<256x128xf32>
    %27 = tpu.matmul %24, %26, %cst_27 {dimension_numbers = #tpu.dot_dimension_numbers<[1], [0], [0], [1], [0, 0, 1, 1], [], []>} : vector<256x128xf32>, vector<128x128xf32>, vector<256x128xf32> -> vector<256x128xf32>
    %28 = arith.addf %21, %27 : vector<256x128xf32>
    %c0_28 = arith.constant 0 : index
    %c1_29 = arith.constant 1 : index
    %c1_30 = arith.constant 1 : index
    %c0_31 = arith.constant 0 : index
    %29 = vector.load %arg1[%c0_28, %c1_29, %c1_30, %c0_31] : memref<1x18x18x128xf32, #tpu.memory_space<vmem>>, vector<1x16x16x128xf32>
    %30 = vector.shape_cast %29 : vector<1x16x16x128xf32> to vector<16x16x128xf32>
    %31 = vector.shape_cast %30 : vector<16x16x128xf32> to vector<256x128xf32>
    %c4 = arith.constant 4 : index
    %c0_32 = arith.constant 0 : index
    %c0_33 = arith.constant 0 : index
    %32 = vector.load %arg2[%c4, %c0_32, %c0_33] : memref<9x128x128xf32, #tpu.memory_space<vmem>>, vector<1x128x128xf32>
    %33 = vector.shape_cast %32 : vector<1x128x128xf32> to vector<128x128xf32>
    %cst_34 = arith.constant dense<0.000000e+00> : vector<256x128xf32>
    %34 = tpu.matmul %31, %33, %cst_34 {dimension_numbers = #tpu.dot_dimension_numbers<[1], [0], [0], [1], [0, 0, 1, 1], [], []>} : vector<256x128xf32>, vector<128x128xf32>, vector<256x128xf32> -> vector<256x128xf32>
    %35 = arith.addf %28, %34 : vector<256x128xf32>
    %c0_35 = arith.constant 0 : index
    %c1_36 = arith.constant 1 : index
    %c2_37 = arith.constant 2 : index
    %c0_38 = arith.constant 0 : index
    %36 = vector.load %arg1[%c0_35, %c1_36, %c2_37, %c0_38] : memref<1x18x18x128xf32, #tpu.memory_space<vmem>>, vector<1x16x16x128xf32>
    %37 = vector.shape_cast %36 : vector<1x16x16x128xf32> to vector<16x16x128xf32>
    %38 = vector.shape_cast %37 : vector<16x16x128xf32> to vector<256x128xf32>
    %c5 = arith.constant 5 : index
    %c0_39 = arith.constant 0 : index
    %c0_40 = arith.constant 0 : index
    %39 = vector.load %arg2[%c5, %c0_39, %c0_40] : memref<9x128x128xf32, #tpu.memory_space<vmem>>, vector<1x128x128xf32>
    %40 = vector.shape_cast %39 : vector<1x128x128xf32> to vector<128x128xf32>
    %cst_41 = arith.constant dense<0.000000e+00> : vector<256x128xf32>
    %41 = tpu.matmul %38, %40, %cst_41 {dimension_numbers = #tpu.dot_dimension_numbers<[1], [0], [0], [1], [0, 0, 1, 1], [], []>} : vector<256x128xf32>, vector<128x128xf32>, vector<256x128xf32> -> vector<256x128xf32>
    %42 = arith.addf %35, %41 : vector<256x128xf32>
    %c0_42 = arith.constant 0 : index
    %c2_43 = arith.constant 2 : index
    %c0_44 = arith.constant 0 : index
    %c0_45 = arith.constant 0 : index
    %43 = vector.load %arg1[%c0_42, %c2_43, %c0_44, %c0_45] : memref<1x18x18x128xf32, #tpu.memory_space<vmem>>, vector<1x16x16x128xf32>
    %44 = vector.shape_cast %43 : vector<1x16x16x128xf32> to vector<16x16x128xf32>
    %45 = vector.shape_cast %44 : vector<16x16x128xf32> to vector<256x128xf32>
    %c6 = arith.constant 6 : index
    %c0_46 = arith.constant 0 : index
    %c0_47 = arith.constant 0 : index
    %46 = vector.load %arg2[%c6, %c0_46, %c0_47] : memref<9x128x128xf32, #tpu.memory_space<vmem>>, vector<1x128x128xf32>
    %47 = vector.shape_cast %46 : vector<1x128x128xf32> to vector<128x128xf32>
    %cst_48 = arith.constant dense<0.000000e+00> : vector<256x128xf32>
    %48 = tpu.matmul %45, %47, %cst_48 {dimension_numbers = #tpu.dot_dimension_numbers<[1], [0], [0], [1], [0, 0, 1, 1], [], []>} : vector<256x128xf32>, vector<128x128xf32>, vector<256x128xf32> -> vector<256x128xf32>
    %49 = arith.addf %42, %48 : vector<256x128xf32>
    %c0_49 = arith.constant 0 : index
    %c2_50 = arith.constant 2 : index
    %c1_51 = arith.constant 1 : index
    %c0_52 = arith.constant 0 : index
    %50 = vector.load %arg1[%c0_49, %c2_50, %c1_51, %c0_52] : memref<1x18x18x128xf32, #tpu.memory_space<vmem>>, vector<1x16x16x128xf32>
    %51 = vector.shape_cast %50 : vector<1x16x16x128xf32> to vector<16x16x128xf32>
    %52 = vector.shape_cast %51 : vector<16x16x128xf32> to vector<256x128xf32>
    %c7 = arith.constant 7 : index
    %c0_53 = arith.constant 0 : index
    %c0_54 = arith.constant 0 : index
    %53 = vector.load %arg2[%c7, %c0_53, %c0_54] : memref<9x128x128xf32, #tpu.memory_space<vmem>>, vector<1x128x128xf32>
    %54 = vector.shape_cast %53 : vector<1x128x128xf32> to vector<128x128xf32>
    %cst_55 = arith.constant dense<0.000000e+00> : vector<256x128xf32>
    %55 = tpu.matmul %52, %54, %cst_55 {dimension_numbers = #tpu.dot_dimension_numbers<[1], [0], [0], [1], [0, 0, 1, 1], [], []>} : vector<256x128xf32>, vector<128x128xf32>, vector<256x128xf32> -> vector<256x128xf32>
    %56 = arith.addf %49, %55 : vector<256x128xf32>
    %c0_56 = arith.constant 0 : index
    %c2_57 = arith.constant 2 : index
    %c2_58 = arith.constant 2 : index
    %c0_59 = arith.constant 0 : index
    %57 = vector.load %arg1[%c0_56, %c2_57, %c2_58, %c0_59] : memref<1x18x18x128xf32, #tpu.memory_space<vmem>>, vector<1x16x16x128xf32>
    %58 = vector.shape_cast %57 : vector<1x16x16x128xf32> to vector<16x16x128xf32>
    %59 = vector.shape_cast %58 : vector<16x16x128xf32> to vector<256x128xf32>
    %c8 = arith.constant 8 : index
    %c0_60 = arith.constant 0 : index
    %c0_61 = arith.constant 0 : index
    %60 = vector.load %arg2[%c8, %c0_60, %c0_61] : memref<9x128x128xf32, #tpu.memory_space<vmem>>, vector<1x128x128xf32>
    %61 = vector.shape_cast %60 : vector<1x128x128xf32> to vector<128x128xf32>
    %cst_62 = arith.constant dense<0.000000e+00> : vector<256x128xf32>
    %62 = tpu.matmul %59, %61, %cst_62 {dimension_numbers = #tpu.dot_dimension_numbers<[1], [0], [0], [1], [0, 0, 1, 1], [], []>} : vector<256x128xf32>, vector<128x128xf32>, vector<256x128xf32> -> vector<256x128xf32>
    %63 = arith.addf %56, %62 : vector<256x128xf32>
    %c0_63 = arith.constant 0 : index
    %c0_64 = arith.constant 0 : index
    %64 = vector.load %arg3[%c0_63, %c0_64] : memref<1x128xf32, #tpu.memory_space<vmem>>, vector<1x128xf32>
    %65 = vector.broadcast %64 : vector<1x128xf32> to vector<256x128xf32>
    %66 = arith.mulf %63, %65 : vector<256x128xf32>
    %c0_65 = arith.constant 0 : index
    %c0_66 = arith.constant 0 : index
    %67 = vector.load %arg4[%c0_65, %c0_66] : memref<1x128xf32, #tpu.memory_space<vmem>>, vector<1x128xf32>
    %68 = vector.broadcast %67 : vector<1x128xf32> to vector<256x128xf32>
    %69 = arith.addf %66, %68 : vector<256x128xf32>
    %cst_67 = arith.constant 0.000000e+00 : f32
    %70 = vector.broadcast %cst_67 : f32 to vector<256x128xf32>
    %71 = arith.cmpf oge, %69, %70 : vector<256x128xf32>
    %cst_68 = arith.constant 0.229166672 : f32
    %72 = vector.broadcast %cst_68 : f32 to vector<256x128xf32>
    %73 = arith.mulf %69, %72 : vector<256x128xf32>
    %74 = arith.select %71, %69, %73 : vector<256x128xi1>, vector<256x128xf32>
    %75 = vector.shape_cast %74 : vector<256x128xf32> to vector<16x16x128xf32>
    %c0_69 = arith.constant 0 : index
    %c0_70 = arith.constant 0 : index
    %c0_71 = arith.constant 0 : index
    %c0_72 = arith.constant 0 : index
    %76 = vector.load %arg5[%c0_69, %c0_70, %c0_71, %c0_72] : memref<1x16x16x128xf32, #tpu.memory_space<vmem>>, vector<1x16x16x128xf32>
    %77 = vector.shape_cast %76 : vector<1x16x16x128xf32> to vector<16x16x128xf32>
    %78 = vector.shape_cast %75 : vector<16x16x128xf32> to vector<1x16x16x128xf32>
    tpu.vector_store %arg5[%c0_69, %c0_70, %c0_71, %c0_72], %78 {strides = array<i32>} : memref<1x16x16x128xf32, #tpu.memory_space<vmem>>, vector<1x16x16x128xf32>,
    return
  }
  func.func @transform_0(%arg0: i32) -> (i32, i32, i32, i32) {
    %c0_i32 = arith.constant 0 : i32
    %c0_i32_0 = arith.constant 0 : i32
    %c0_i32_1 = arith.constant 0 : i32
    %c0_i32_2 = arith.constant 0 : i32
    return %arg0, %c0_i32, %c0_i32_0, %c0_i32_1 : i32, i32, i32, i32
  }
  func.func @transform_1(%arg0: i32) -> (i32, i32, i32) {
    %c0_i32 = arith.constant 0 : i32
    %c0_i32_0 = arith.constant 0 : i32
    %c0_i32_1 = arith.constant 0 : i32
    %c0_i32_2 = arith.constant 0 : i32
    return %c0_i32, %c0_i32_0, %c0_i32_1 : i32, i32, i32
  }
  func.func @transform_2(%arg0: i32) -> (i32, i32) {
    %c0_i32 = arith.constant 0 : i32
    %c0_i32_0 = arith.constant 0 : i32
    %c0_i32_1 = arith.constant 0 : i32
    return %c0_i32, %c0_i32_0 : i32, i32
  }
  func.func @transform_3(%arg0: i32) -> (i32, i32) {
    %c0_i32 = arith.constant 0 : i32
    %c0_i32_0 = arith.constant 0 : i32
    %c0_i32_1 = arith.constant 0 : i32
    return %c0_i32, %c0_i32_0 : i32, i32
  }
  func.func @transform_4(%arg0: i32) -> (i32, i32, i32, i32) {
    %c0_i32 = arith.constant 0 : i32
    %c0_i32_0 = arith.constant 0 : i32
    %c0_i32_1 = arith.constant 0 : i32
    %c0_i32_2 = arith.constant 0 : i32
    return %arg0, %c0_i32, %c0_i32_0, %c0_i32_1 : i32, i32, i32, i32
  }
}

</mosaic_0001>

<llo_original>
// kernel: tile.23
$region0: #{tile.23}
  #allocation0 [shape = 's32[1]{0}', space=sflag, size = 0x4, scoped, tag = 'scoped memory for tile.23']
  %s0 = inlined_call_operand.vmem [shape: f32[8], index: 0, kind: input, shape index: {}]
  %s1 = inlined_call_operand.vmem [shape: f32[16,8], index: 1, kind: output, shape index: {}]
  // Predicated region
  $region2: #{tile.23} parent=0 // pred_check
    _
  $region3: #{tile.23} parent=0 // pred_check_branch
    %3 = sbr.rel (0) target = $region5
  $region4: #{tile.23} parent=0 // pred_region
    _
  $region5: #{tile.23} parent=0 // pred_fallthru
    _
  %v4 = vld [vmem:[%s0] ss:$0 sm:$0xff]
  %5 = vst [vmem:[%s1] sm:$0xff] %v4
  %s6 = scalar_lea.vmem %s1, 8
  %7 = vst [vmem:[%s6] sm:$0xff] %v4

// kernel: tile.24
$region0: #{tile.24}
  %s0 = inlined_call_operand.vmem [shape: f32[16,8], index: 0, kind: input, shape index: {}]
  %s1 = inlined_call_operand.vmem [shape: f32[1,128], index: 1, kind: output, shape index: {}]
  $region1: #{tile.24} parent=0
    #allocation0 [shape = 'u8[4096]{0}', space=vmem, size = 0x1000, scoped, tag = 'scoped mem for output reshape']
    %v2 = vld [vmem:[%s0] sm:$0x1]
    %vm3 = vcmask 64512
    %4 = vst.msk [vmem:[#allocation0] sm:$0x1] %vm3, %v2
    %s5 = scalar_lea.vmem %s0, 15
    %v6 = vld [vmem:[%s5] sm:$0x1]
    %7 = vrot.lane.b32.xlu0 %v6, 120
    %v8 = vpop.permute.xlu0 %7
    %vm9 = vcmask 1048512
    %10 = vst.msk [vmem:[#allocation0] sm:$0x1] %vm9, %v8
    %s11 = scalar_lea.vmem %s0, 14
    %v12 = vld [vmem:[%s11] sm:$0x1]
    %13 = vrot.lane.b32.xlu0 %v12, 112
    %v14 = vpop.permute.xlu0 %13
    %vm15 = vcmask 982912
    %16 = vst.msk [vmem:[#allocation0] sm:$0x1] %vm15, %v14
    %s17 = scalar_lea.vmem %s0, 13
    %v18 = vld [vmem:[%s17] sm:$0x1]
    %19 = vrot.lane.b32.xlu0 %v18, 104
    %v20 = vpop.permute.xlu0 %19
    %vm21 = vcmask 917312
    %22 = vst.msk [vmem:[#allocation0] sm:$0x1] %vm21, %v20
    %s23 = scalar_lea.vmem %s0, 12
    %v24 = vld [vmem:[%s23] sm:$0x1]
    %25 = vrot.lane.b32.xlu0 %v24, 96
    %v26 = vpop.permute.xlu0 %25
    %vm27 = vcmask 851712
    %28 = vst.msk [vmem:[#allocation0] sm:$0x1] %vm27, %v26
    %s29 = scalar_lea.vmem %s0, 11
    %v30 = vld [vmem:[%s29] sm:$0x1]
    %31 = vrot.lane.b32.xlu0 %v30, 88
    %v32 = vpop.permute.xlu0 %31
    %vm33 = vcmask 786112
    %34 = vst.msk [vmem:[#allocation0] sm:$0x1] %vm33, %v32
    %s35 = scalar_lea.vmem %s0, 10
    %v36 = vld [vmem:[%s35] sm:$0x1]
    %37 = vrot.lane.b32.xlu0 %v36, 80
    %v38 = vpop.permute.xlu0 %37
    %vm39 = vcmask 720512
    %40 = vst.msk [vmem:[#allocation0] sm:$0x1] %vm39, %v38
    %s41 = scalar_lea.vmem %s0, 9
    %v42 = vld [vmem:[%s41] sm:$0x1]
    %43 = vrot.lane.b32.xlu0 %v42, 72
    %v44 = vpop.permute.xlu0 %43
    %vm45 = vcmask 654912
    %46 = vst.msk [vmem:[#allocation0] sm:$0x1] %vm45, %v44
    %s47 = scalar_lea.vmem %s0, 8
    %v48 = vld [vmem:[%s47] sm:$0x1]
    %49 = vrot.lane.b32.xlu0 %v48, 64
    %v50 = vpop.permute.xlu0 %49
    %vm51 = vcmask 589312
    %52 = vst.msk [vmem:[#allocation0] sm:$0x1] %vm51, %v50
    %s53 = scalar_lea.vmem %s0, 7
    %v54 = vld [vmem:[%s53] sm:$0x1]
    %55 = vrot.lane.b32.xlu0 %v54, 56
    %v56 = vpop.permute.xlu0 %55
    %vm57 = vcmask 523712
    %58 = vst.msk [vmem:[#allocation0] sm:$0x1] %vm57, %v56
    %s59 = scalar_lea.vmem %s0, 6
    %v60 = vld [vmem:[%s59] sm:$0x1]
    %61 = vrot.lane.b32.xlu0 %v60, 48
    %v62 = vpop.permute.xlu0 %61
    %vm63 = vcmask 458112
    %64 = vst.msk [vmem:[#allocation0] sm:$0x1] %vm63, %v62
    %s65 = scalar_lea.vmem %s0, 5
    %v66 = vld [vmem:[%s65] sm:$0x1]
    %67 = vrot.lane.b32.xlu0 %v66, 40
    %v68 = vpop.permute.xlu0 %67
    %vm69 = vcmask 392512
    %70 = vst.msk [vmem:[#allocation0] sm:$0x1] %vm69, %v68
    %s71 = scalar_lea.vmem %s0, 4
    %v72 = vld [vmem:[%s71] sm:$0x1]
    %73 = vrot.lane.b32.xlu0 %v72, 32
    %v74 = vpop.permute.xlu0 %73
    %vm75 = vcmask 326912
    %76 = vst.msk [vmem:[#allocation0] sm:$0x1] %vm75, %v74
    %s77 = scalar_lea.vmem %s0, 3
    %v78 = vld [vmem:[%s77] sm:$0x1]
    %79 = vrot.lane.b32.xlu0 %v78, 24
    %v80 = vpop.permute.xlu0 %79
    %vm81 = vcmask 261312
    %82 = vst.msk [vmem:[#allocation0] sm:$0x1] %vm81, %v80
    %s83 = scalar_lea.vmem %s0, 2
    %v84 = vld [vmem:[%s83] sm:$0x1]
    %85 = vrot.lane.b32.xlu0 %v84, 16
    %v86 = vpop.permute.xlu0 %85
    %vm87 = vcmask 195712
    %88 = vst.msk [vmem:[#allocation0] sm:$0x1] %vm87, %v86
    %s89 = scalar_lea.vmem %s0, 1
    %v90 = vld [vmem:[%s89] sm:$0x1]
    %91 = vrot.lane.b32.xlu0 %v90, 8
    %v92 = vpop.permute.xlu0 %91
    %vm93 = vcmask 130112
    %94 = vst.msk [vmem:[#allocation0] sm:$0x1] %vm93, %v92
    %s96 = sshll.u32 1, 1
    %s97 = ssub.s32 %s96, 1
    %v99 = vld [vmem:[#allocation0] sm:%s97]
    %s100 = sshll.u32 1, 1
    %s101 = ssub.s32 %s100, 1
    %102 = vst [vmem:[%s1] sm:%s101] %v99

// kernel: conv_block_forward.2
$region0: #{conv_block_forward.2}
  #allocation0 [shape = 'u32[]', space=smem, size = 0x4, offset = 0x4, fixed_abs, tag = 'smem constant byte address 0x4 - core index']
  #allocation1 [shape = 'u32[144,128]{1,0:T(1,128)}', space=vmem, size = 0x12000, scoped, tag = 'internal scratch']
  %s0 = inlined_call_operand.vmem [shape: f32[2,18,18,64], index: 0, kind: input, shape index: {}]
  %s1 = inlined_call_operand.vmem [shape: f32[9,64,128], index: 1, kind: input, shape index: {}]
  %s2 = inlined_call_operand.vmem [shape: f32[1,128], index: 2, kind: input, shape index: {}]
  %s3 = inlined_call_operand.vmem [shape: f32[1,128], index: 3, kind: input, shape index: {}]
  %s4 = inlined_call_operand.vmem [shape: f32[2,16,16,128], index: 4, kind: output, shape index: {}]
  %s5 = sld [smem:[#allocation0]]
  $region49: #{conv_block_forward.2} parent=0
    _
  %s7 = ssub.s32 1, %s5
  %s8 = scalar_select 0, %s7, %s5
  loop: start=0, step=1, limit=4
  $region2: #{conv_block_forward.2} parent=0 // loop_pre_header
    _
  $region3: #{conv_block_forward.2} parent=0 // loop_header
    %s10 = sphi 0, %s14
    %p11 = scmp.ge.s32.totalorder %s10, 4
    %s20 = sphi 0, %s22
    %s23 = sphi 0, %s20
    %s24 = sphi 0, %s23
    %s40 = sphi 0, %s24
    %s44 = sphi 0, %s44
    %s46 = sphi 0, %s44
    %s47 = sphi 0, %s46
    %s61 = sphi 0, %s47
    %s65 = sphi 0, %s65
    %s67 = sphi 0, %s65
    %s68 = sphi 0, %s67
    %s82 = sphi 0, %s68
    %s86 = sphi 0, %s86
    %s88 = sphi 0, %s86
    %s89 = sphi 0, %s88
    %s103 = sphi 0, %s89
    %s109 = sphi 0, %s111
    %s112 = sphi 0, %s109
    %s113 = sphi 0, %s112
    %s129 = sphi 0, %s113
  $region4: #{conv_block_forward.2} parent=0 // loop_header_branch
    %13 = sbr.rel (%p11) target = $region8
  $region5: #{conv_block_forward.2} parent=0 // loop_body
    %s15 = ssub.s32 %s10, 1
    %s16 = ssub.s32 %s10, 2
    %s17 = sadd.s32 %s10, 1
    %s18 = ssub.s32 %s10, %s17
    %p19 = scmp.eq.s32.totalorder %s18, 0
    %s21 = sadd.s32 %s20, 1
    %s22 = scalar_select %p19, %s20, %s21
    %p25 = pneg %p19
    %p26 = scmp.eq.s32.totalorder %s10, 1
    %p27 = por %p25, %p26
    %p28 = scmp.ne.s32.totalorder %s20, %s23
    %p29 = scmp.eq.s32.totalorder %s10, 0
    %p30 = por %p28, %p29
    %p31 = scmp.ne.s32.totalorder %s20, %s23
    %p32 = scmp.eq.s32.totalorder %s15, 1
    %p33 = por %p31, %p32
    %p34 = scmp.ne.s32.totalorder %s23, %s24
    %p35 = scmp.eq.s32.totalorder %s15, 0
    %p36 = por %p34, %p35
    %p37 = scmp.ne.s32.totalorder %s23, %s24
    %p38 = scmp.eq.s32.totalorder %s16, 1
    %p39 = por %p37, %p38
    %p41 = scmp.ne.s32.totalorder %s24, %s40
    %p42 = scmp.eq.s32.totalorder %s16, 0
    %p43 = por %p41, %p42
    %s45 = sadd.s32 %s44, 1
    %p48 = scmp.eq.s32.totalorder %s10, 1
    %p49 = scmp.ne.s32.totalorder %s44, %s46
    %p50 = scmp.eq.s32.totalorder %s10, 0
    %p51 = por %p49, %p50
    %p52 = scmp.ne.s32.totalorder %s44, %s46
    %p53 = scmp.eq.s32.totalorder %s15, 1
    %p54 = por %p52, %p53
    %p55 = scmp.ne.s32.totalorder %s46, %s47
    %p56 = scmp.eq.s32.totalorder %s15, 0
    %p57 = por %p55, %p56
    %p58 = scmp.ne.s32.totalorder %s46, %s47
    %p59 = scmp.eq.s32.totalorder %s16, 1
    %p60 = por %p58, %p59
    %p62 = scmp.ne.s32.totalorder %s47, %s61
    %p63 = scmp.eq.s32.totalorder %s16, 0
    %p64 = por %p62, %p63
    %s66 = sadd.s32 %s65, 1
    %p69 = scmp.eq.s32.totalorder %s10, 1
    %p70 = scmp.ne.s32.totalorder %s65, %s67
    %p71 = scmp.eq.s32.totalorder %s10, 0
    %p72 = por %p70, %p71
    %p73 = scmp.ne.s32.totalorder %s65, %s67
    %p74 = scmp.eq.s32.totalorder %s15, 1
    %p75 = por %p73, %p74
    %p76 = scmp.ne.s32.totalorder %s67, %s68
    %p77 = scmp.eq.s32.totalorder %s15, 0
    %p78 = por %p76, %p77
    %p79 = scmp.ne.s32.totalorder %s67, %s68
    %p80 = scmp.eq.s32.totalorder %s16, 1
    %p81 = por %p79, %p80
    %p83 = scmp.ne.s32.totalorder %s68, %s82
    %p84 = scmp.eq.s32.totalorder %s16, 0
    %p85 = por %p83, %p84
    %s87 = sadd.s32 %s86, 1
    %p90 = scmp.eq.s32.totalorder %s10, 1
    %p91 = scmp.ne.s32.totalorder %s86, %s88
    %p92 = scmp.eq.s32.totalorder %s10, 0
    %p93 = por %p91, %p92
    %p94 = scmp.ne.s32.totalorder %s86, %s88
    %p95 = scmp.eq.s32.totalorder %s15, 1
    %p96 = por %p94, %p95
    %p97 = scmp.ne.s32.totalorder %s88, %s89
    %p98 = scmp.eq.s32.totalorder %s15, 0
    %p99 = por %p97, %p98
    %p100 = scmp.ne.s32.totalorder %s88, %s89
    %p101 = scmp.eq.s32.totalorder %s16, 1
    %p102 = por %p100, %p101
    %p104 = scmp.ne.s32.totalorder %s89, %s103
    %p105 = scmp.eq.s32.totalorder %s16, 0
    %p106 = por %p104, %p105
    %s107 = ssub.s32 %s10, %s17
    %p108 = scmp.eq.s32.totalorder %s107, 0
    %s110 = sadd.s32 %s109, 1
    %s111 = scalar_select %p108, %s109, %s110
    %p114 = pneg %p108
    %p115 = scmp.eq.s32.totalorder %s10, 1
    %p116 = por %p114, %p115
    %p117 = scmp.ne.s32.totalorder %s109, %s112
    %p118 = scmp.eq.s32.totalorder %s10, 0
    %p119 = por %p117, %p118
    %p120 = scmp.ne.s32.totalorder %s109, %s112
    %p121 = scmp.eq.s32.totalorder %s15, 1
    %p122 = por %p120, %p121
    %p123 = scmp.ne.s32.totalorder %s112, %s113
    %p124 = scmp.eq.s32.totalorder %s15, 0
    %p125 = por %p123, %p124
    %p126 = scmp.ne.s32.totalorder %s112, %s113
    %p127 = scmp.eq.s32.totalorder %s16, 1
    %p128 = por %p126, %p127
    %p130 = scmp.ne.s32.totalorder %s113, %s129
    %p131 = scmp.eq.s32.totalorder %s16, 0
    %p132 = por %p130, %p131
    %p133 = scmp.le.s32.totalorder 1, %s10
    %p134 = scmp.lt.s32.totalorder %s10, 3
    %p135 = pnand %p133, %p134
    %p136 = pneg %p135
    // Predicated region
    $region9: #{conv_block_forward.2} parent=5 // pred_check
      _
    $region10: #{conv_block_forward.2} parent=5 // pred_check_branch
      %138 = sbr.rel (%p135) target = $region12
    $region11: #{conv_block_forward.2} parent=5 // pred_region
      %s139 = ssub.s32 %s10, 1
      // Predicated region
      $region13: #{conv_block_forward.2} parent=11 // pred_check
        %p140 = pneg %p57
      $region14: #{conv_block_forward.2} parent=11 // pred_check_branch
        %142 = sbr.rel (%p140) target = $region16
      $region15: #{conv_block_forward.2} parent=11 // pred_region
        _
      $region16: #{conv_block_forward.2} parent=11 // pred_fallthru
        _
      // Predicated region
      $region17: #{conv_block_forward.2} parent=11 // pred_check
        %p143 = pneg %p78
      $region18: #{conv_block_forward.2} parent=11 // pred_check_branch
        %145 = sbr.rel (%p143) target = $region20
      $region19: #{conv_block_forward.2} parent=11 // pred_region
        _
      $region20: #{conv_block_forward.2} parent=11 // pred_fallthru
        _
      // Predicated region
      $region21: #{conv_block_forward.2} parent=11 // pred_check
        %p146 = pneg %p99
      $region22: #{conv_block_forward.2} parent=11 // pred_check_branch
        %148 = sbr.rel (%p146) target = $region24
      $region23: #{conv_block_forward.2} parent=11 // pred_region
        _
      $region24: #{conv_block_forward.2} parent=11 // pred_fallthru
        _
    $region12: #{conv_block_forward.2} parent=5 // pred_fallthru
      _
    %p149 = scmp.lt.s32.totalorder %s10, 2
    // Predicated region
    $region25: #{conv_block_forward.2} parent=5 // pred_check
      %p150 = pneg %p149
    $region26: #{conv_block_forward.2} parent=5 // pred_check_branch
      %152 = sbr.rel (%p150) target = $region28
    $region27: #{conv_block_forward.2} parent=5 // pred_region
      // Predicated region
      $region29: #{conv_block_forward.2} parent=27 // pred_check
        %p153 = pneg %p30
      $region30: #{conv_block_forward.2} parent=27 // pred_check_branch
        %155 = sbr.rel (%p153) target = $region32
      $region31: #{conv_block_forward.2} parent=27 // pred_region
        %p156 = scmp.lt.s32.totalorder %s10, 1
        %s157 = scalar_select %p156, %s10, 1
        %s158 = smul.addr %s157, 54
        %s159 = smul.addr %s158, 8
        %s160 = scalar_lea.vmem %s0, %s159
      $region32: #{conv_block_forward.2} parent=27 // pred_fallthru
        _
    $region28: #{conv_block_forward.2} parent=5 // pred_fallthru
      _
    %p161 = scmp.le.s32.totalorder 1, %s10
    %p162 = scmp.lt.s32.totalorder %s10, 3
    %p163 = pnand %p161, %p162
    %p164 = pneg %p163
    // Predicated region
    $region33: #{conv_block_forward.2} parent=5 // pred_check
      _
    $region34: #{conv_block_forward.2} parent=5 // pred_check_branch
      %166 = sbr.rel (%p163) target = $region36
    $region35: #{conv_block_forward.2} parent=5 // pred_region
      %s167 = ssub.s32 %s10, 1
      %p168 = scmp.lt.s32.totalorder %s15, 1
      %s169 = scalar_select %p168, %s15, 1
      %s170 = smul.addr %s169, 54
      %s171 = smul.addr %s170, 8
      %s172 = scalar_lea.vmem %s0, %s171
      %p173 = pneg %p36
      %p174 = pneg %p33
      %p175 = pneg %p57
      %p176 = pneg %p54
      %p177 = pneg %p78
      %p178 = pneg %p75
      %p179 = pneg %p99
      %p180 = pneg %p96
      %p181 = pneg %p125
      %p182 = pneg %p122
      %p183 = scmp.lt.s32.totalorder %s15, 1
      %s184 = scalar_select %p183, %s15, 1
      %s185 = smul.addr %s184, 32
      %s186 = smul.addr %s185, 8
      %s187 = scalar_lea.vmem %s4, %s186
      %p188 = scmp.lt.s32.totalorder %s15, 1
      %s189 = scalar_select %p188, %s15, 1
      %s190 = smul.addr %s189, 54
      %s191 = smul.addr %s190, 8
      %s192 = scalar_lea.vmem %s0, %s191
      %p193 = scmp.lt.s32.totalorder %s15, 1
      %s194 = scalar_select %p193, %s15, 1
      %s195 = smul.addr %s194, 32
      %s196 = smul.addr %s195, 8
      %s197 = scalar_lea.vmem %s4, %s196
      %v198 = vld [vmem:[%s192] sm:$0xff]
      %v199 = vld [vmem:[%s192 + $0x8] sm:$0xff]
      %v200 = vld [vmem:[%s192 + $0x18] sm:$0xff]
      %v201 = vld [vmem:[%s192 + $0x20] sm:$0xff]
      %v202 = vld [vmem:[%s192 + $0x30] sm:$0xff]
      %v203 = vld [vmem:[%s192 + $0x38] sm:$0xff]
      %v204 = vld [vmem:[%s192 + $0x48] sm:$0xff]
      %v205 = vld [vmem:[%s192 + $0x50] sm:$0xff]
      %v206 = vld [vmem:[%s192 + $0x60] sm:$0xff]
      %v207 = vld [vmem:[%s192 + $0x68] sm:$0xff]
      %v208 = vld [vmem:[%s192 + $0x78] sm:$0xff]
      %v209 = vld [vmem:[%s192 + $0x80] sm:$0xff]
      %v210 = vld [vmem:[%s192 + $0x90] sm:$0xff]
      %v211 = vld [vmem:[%s192 + $0x98] sm:$0xff]
      %v212 = vld [vmem:[%s192 + $0xa8] sm:$0xff]
      %v213 = vld [vmem:[%s192 + $0xb0] sm:$0xff]
      %v214 = vld [vmem:[%s192 + $0xc0] sm:$0xff]
      %v215 = vld [vmem:[%s192 + $0xc8] sm:$0xff]
      %v216 = vld [vmem:[%s192 + $0xd8] sm:$0xff]
      %v217 = vld [vmem:[%s192 + $0xe0] sm:$0xff]
      %v218 = vld [vmem:[%s192 + $0xf0] sm:$0xff]
      %v219 = vld [vmem:[%s192 + $0xf8] sm:$0xff]
      %v220 = vld [vmem:[%s192 + $0x108] sm:$0xff]
      %v221 = vld [vmem:[%s192 + $0x110] sm:$0xff]
      %v222 = vld [vmem:[%s192 + $0x120] sm:$0xff]
      %v223 = vld [vmem:[%s192 + $0x128] sm:$0xff]
      %v224 = vld [vmem:[%s192 + $0x138] sm:$0xff]
      %v225 = vld [vmem:[%s192 + $0x140] sm:$0xff]
      %v226 = vld [vmem:[%s192 + $0x150] sm:$0xff]
      %v227 = vld [vmem:[%s192 + $0x158] sm:$0xff]
      %v228 = vld [vmem:[%s192 + $0x168] sm:$0xff]
      %v229 = vld [vmem:[%s192 + $0x170] sm:$0xff]
      %v230 = vld [vmem:[%s1] sm:$0xff]
      %v231 = vld [vmem:[%s1 + $0x8] sm:$0xff]
      %v232 = vld [vmem:[%s1 + $0x10] sm:$0xff]
      %v233 = vld [vmem:[%s1 + $0x18] sm:$0xff]
      %v234 = vld [vmem:[%s1 + $0x20] sm:$0xff]
      %v235 = vld [vmem:[%s1 + $0x28] sm:$0xff]
      %v236 = vld [vmem:[%s1 + $0x30] sm:$0xff]
      %v237 = vld [vmem:[%s1 + $0x38] sm:$0xff]
      %v238 = vld [vmem:[%s192 + $0x1] sm:$0xff]
      %v239 = vld [vmem:[%s192 + $0x9] sm:$0xff]
      %v240 = vld [vmem:[%s192 + $0x19] sm:$0xff]
      %v241 = vld [vmem:[%s192 + $0x21] sm:$0xff]
      %v242 = vld [vmem:[%s192 + $0x31] sm:$0xff]
      %v243 = vld [vmem:[%s192 + $0x39] sm:$0xff]
      %v244 = vld [vmem:[%s192 + $0x49] sm:$0xff]
      %v245 = vld [vmem:[%s192 + $0x51] sm:$0xff]
      %v246 = vld [vmem:[%s192 + $0x61] sm:$0xff]
      %v247 = vld [vmem:[%s192 + $0x69] sm:$0xff]
      %v248 = vld [vmem:[%s192 + $0x79] sm:$0xff]
      %v249 = vld [vmem:[%s192 + $0x81] sm:$0xff]
      %v250 = vld [vmem:[%s192 + $0x91] sm:$0xff]
      %v251 = vld [vmem:[%s192 + $0x99] sm:$0xff]
      %v252 = vld [vmem:[%s192 + $0xa9] sm:$0xff]
      %v253 = vld [vmem:[%s192 + $0xb1] sm:$0xff]
      %v254 = vld [vmem:[%s192 + $0xc1] sm:$0xff]
      %v255 = vld [vmem:[%s192 + $0xc9] sm:$0xff]
      %v256 = vld [vmem:[%s192 + $0xd9] sm:$0xff]
      %v257 = vld [vmem:[%s192 + $0xe1] sm:$0xff]
      %v258 = vld [vmem:[%s192 + $0xf1] sm:$0xff]
      %v259 = vld [vmem:[%s192 + $0xf9] sm:$0xff]
      %v260 = vld [vmem:[%s192 + $0x109] sm:$0xff]
      %v261 = vld [vmem:[%s192 + $0x111] sm:$0xff]
      %v262 = vld [vmem:[%s192 + $0x121] sm:$0xff]
      %v263 = vld [vmem:[%s192 + $0x129] sm:$0xff]
      %v264 = vld [vmem:[%s192 + $0x139] sm:$0xff]
      %v265 = vld [vmem:[%s192 + $0x141] sm:$0xff]
      %v266 = vld [vmem:[%s192 + $0x151] sm:$0xff]
      %v267 = vld [vmem:[%s192 + $0x159] sm:$0xff]
      %v268 = vld [vmem:[%s192 + $0x169] sm:$0xff]
      %v269 = vld [vmem:[%s192 + $0x171] sm:$0xff]
      %s270 = scalar_lea.vmem %s1, 64
      %v271 = vld [vmem:[%s270] sm:$0xff]
      %v272 = vld [vmem:[%s270 + $0x8] sm:$0xff]
      %v273 = vld [vmem:[%s270 + $0x10] sm:$0xff]
      %v274 = vld [vmem:[%s270 + $0x18] sm:$0xff]
      %v275 = vld [vmem:[%s270 + $0x20] sm:$0xff]
      %v276 = vld [vmem:[%s270 + $0x28] sm:$0xff]
      %v277 = vld [vmem:[%s270 + $0x30] sm:$0xff]
      %v278 = vld [vmem:[%s270 + $0x38] sm:$0xff]
      %vm279 = vcmask 523264
      %v281 = vsel %vm279, %v238, 0
      %v284 = vsel %vm279, %v239, 0
      %v287 = vsel %vm279, %v240, 0
      %v290 = vsel %vm279, %v241, 0
      %v293 = vsel %vm279, %v242, 0
      %v296 = vsel %vm279, %v243, 0
      %v299 = vsel %vm279, %v244, 0
      %v302 = vsel %vm279, %v245, 0
      %v305 = vsel %vm279, %v246, 0
      %v308 = vsel %vm279, %v247, 0
      %v311 = vsel %vm279, %v248, 0
      %v314 = vsel %vm279, %v249, 0
      %v317 = vsel %vm279, %v250, 0
      %v320 = vsel %vm279, %v251, 0
      %v323 = vsel %vm279, %v252, 0
      %v326 = vsel %vm279, %v253, 0
      %v329 = vsel %vm279, %v254, 0
      %v332 = vsel %vm279, %v255, 0
      %v335 = vsel %vm279, %v256, 0
      %v338 = vsel %vm279, %v257, 0
      %v341 = vsel %vm279, %v258, 0
      %v344 = vsel %vm279, %v259, 0
      %v347 = vsel %vm279, %v260, 0
      %v350 = vsel %vm279, %v261, 0
      %v353 = vsel %vm279, %v262, 0
      %v356 = vsel %vm279, %v263, 0
      %v359 = vsel %vm279, %v264, 0
      %v362 = vsel %vm279, %v265, 0
      %v365 = vsel %vm279, %v266, 0
      %v368 = vsel %vm279, %v267, 0
      %v371 = vsel %vm279, %v268, 0
      %v374 = vsel %vm279, %v269, 0
      %376 = vmatprep.subr.mxu0 0.0
      %377 = vmatpush1.msra.mxu0 0.0
      %378 = vmatprep.subr.mxu0 0.0
      %379 = vmatpush1.msra.mxu0 0.0
      %380 = vmatprep.subr.mxu0 0.0
      %381 = vmatpush1.msra.mxu0 0.0
      %382 = vmatprep.subr.mxu0 0.0
      %383 = vmatpush1.msra.mxu0 0.0
      %384 = vmatprep.subr.mxu0 0.0
      %385 = vmatpush1.msra.mxu0 0.0
      %386 = vmatprep.subr.mxu0 0.0
      %387 = vmatpush1.msra.mxu0 0.0
      %388 = vmatprep.subr.mxu0 0.0
      %389 = vmatpush1.msra.mxu0 0.0
      %390 = vmatprep.subr.mxu0 0.0
      %391 = vmatpush1.msra.mxu0 0.0
      %392 = vmatprep.subr.mxu0 0.0
      %393 = vmatpush1.msra.mxu0 %v278
      %394 = vmatprep.subr.mxu0 0.0
      %395 = vmatpush1.msra.mxu0 %v277
      %396 = vmatprep.subr.mxu0 0.0
      %397 = vmatpush1.msra.mxu0 %v276
      %398 = vmatprep.subr.mxu0 0.0
      %399 = vmatpush1.msra.mxu0 %v275
      %400 = vmatprep.subr.mxu0 0.0
      %401 = vmatpush1.msra.mxu0 %v274
      %402 = vmatprep.subr.mxu0 0.0
      %403 = vmatpush1.msra.mxu0 %v273
      %404 = vmatprep.subr.mxu0 0.0
      %405 = vmatpush1.msra.mxu0 %v272
      %406 = vmatprep.subr.mxu0 0.0
      %407 = vmatpush1.msra.mxu0 %v271
      %408 = vmatprep.subr.mxu0 0.0
      %409 = vmatpush2.msra.mxu0 0.0
      %410 = vmatprep.subr.mxu0 0.0
      %411 = vmatpush2.msra.mxu0 0.0
      %412 = vmatprep.subr.mxu0 0.0
      %413 = vmatpush2.msra.mxu0 0.0
      %414 = vmatprep.subr.mxu0 0.0
      %415 = vmatpush2.msra.mxu0 0.0
      %416 = vmatprep.subr.mxu0 0.0
      %417 = vmatpush2.msra.mxu0 0.0
      %418 = vmatprep.subr.mxu0 0.0
      %419 = vmatpush2.msra.mxu0 0.0
      %420 = vmatprep.subr.mxu0 0.0
      %421 = vmatpush2.msra.mxu0 0.0
      %422 = vmatprep.subr.mxu0 0.0
      %423 = vmatpush2.msra.mxu0 0.0
      %424 = vmatprep.subr.mxu0 0.0
      %425 = vmatpush2.msra.mxu0 0.0
      %426 = vmatprep.subr.mxu0 0.0
      %427 = vmatpush2.msra.mxu0 0.0
      %428 = vmatprep.subr.mxu0 0.0
      %429 = vmatpush2.msra.mxu0 0.0
      %430 = vmatprep.subr.mxu0 0.0
      %431 = vmatpush2.msra.mxu0 0.0
      %432 = vmatprep.subr.mxu0 0.0
      %433 = vmatpush2.msra.mxu0 0.0
      %434 = vmatprep.subr.mxu0 0.0
      %435 = vmatpush2.msra.mxu0 0.0
      %436 = vmatprep.subr.mxu0 0.0
      %437 = vmatpush2.msra.mxu0 0.0
      %438 = vmatprep.subr.mxu0 0.0
      %439 = vmatpush2.msra.mxu0 0.0
      %440 = vmatprep.mubr.f32.mxu0 0.0
      %441 = vmatmul.mubr.f32.gmra.mxu0 %v281
      %v442 = vpop.f32.mrf.mxu0
      %v443 = vadd.f32 0.0, %v442
      %v444 = vpop.f32.mrf.mxu0
      %445 = vmatprep.mubr.f32.mxu0 0.0
      %446 = vmatmul.mubr.f32.gmra.mxu0 %v284
      %v447 = vpop.f32.mrf.mxu0
      %v448 = vadd.f32 0.0, %v447
      %v449 = vpop.f32.mrf.mxu0
      %450 = vmatprep.mubr.f32.mxu0 0.0
      %451 = vmatmul.mubr.f32.gmra.mxu0 %v287
      %v452 = vpop.f32.mrf.mxu0
      %v453 = vadd.f32 0.0, %v452
      %v454 = vpop.f32.mrf.mxu0
      %455 = vmatprep.mubr.f32.mxu0 0.0
      %456 = vmatmul.mubr.f32.gmra.mxu0 %v290
      %v457 = vpop.f32.mrf.mxu0
      %v458 = vadd.f32 0.0, %v457
      %v459 = vpop.f32.mrf.mxu0
      %460 = vmatprep.mubr.f32.mxu0 0.0
      %461 = vmatmul.mubr.f32.gmra.mxu0 %v293
      %v462 = vpop.f32.mrf.mxu0
      %v463 = vadd.f32 0.0, %v462
      %v464 = vpop.f32.mrf.mxu0
      %465 = vmatprep.mubr.f32.mxu0 0.0
      %466 = vmatmul.mubr.f32.gmra.mxu0 %v296
      %v467 = vpop.f32.mrf.mxu0
      %v468 = vadd.f32 0.0, %v467
      %v469 = vpop.f32.mrf.mxu0
      %470 = vmatprep.mubr.f32.mxu0 0.0
      %471 = vmatmul.mubr.f32.gmra.mxu0 %v299
      %v472 = vpop.f32.mrf.mxu0
      %v473 = vadd.f32 0.0, %v472
      %v474 = vpop.f32.mrf.mxu0
      %475 = vmatprep.mubr.f32.mxu0 0.0
      %476 = vmatmul.mubr.f32.gmra.mxu0 %v302
      %v477 = vpop.f32.mrf.mxu0
      %v478 = vadd.f32 0.0, %v477
      %v479 = vpop.f32.mrf.mxu0
      %480 = vmatprep.mubr.f32.mxu0 0.0
      %481 = vmatmul.mubr.f32.gmra.mxu0 %v305
      %v482 = vpop.f32.mrf.mxu0
      %v483 = vadd.f32 0.0, %v482
      %v484 = vpop.f32.mrf.mxu0
      %485 = vmatprep.mubr.f32.mxu0 0.0
      %486 = vmatmul.mubr.f32.gmra.mxu0 %v308
      %v487 = vpop.f32.mrf.mxu0
      %v488 = vadd.f32 0.0, %v487
      %v489 = vpop.f32.mrf.mxu0
      %490 = vmatprep.mubr.f32.mxu0 0.0
      %491 = vmatmul.mubr.f32.gmra.mxu0 %v311
      %v492 = vpop.f32.mrf.mxu0
      %v493 = vadd.f32 0.0, %v492
      %v494 = vpop.f32.mrf.mxu0
      %495 = vmatprep.mubr.f32.mxu0 0.0
      %496 = vmatmul.mubr.f32.gmra.mxu0 %v314
      %v497 = vpop.f32.mrf.mxu0
      %v498 = vadd.f32 0.0, %v497
      %v499 = vpop.f32.mrf.mxu0
      %500 = vmatprep.mubr.f32.mxu0 0.0
      %501 = vmatmul.mubr.f32.gmra.mxu0 %v317
      %v502 = vpop.f32.mrf.mxu0
      %v503 = vadd.f32 0.0, %v502
      %v504 = vpop.f32.mrf.mxu0
      %505 = vmatprep.mubr.f32.mxu0 0.0
      %506 = vmatmul.mubr.f32.gmra.mxu0 %v320
      %v507 = vpop.f32.mrf.mxu0
      %v508 = vadd.f32 0.0, %v507
      %v509 = vpop.f32.mrf.mxu0
      %510 = vmatprep.mubr.f32.mxu0 0.0
      %511 = vmatmul.mubr.f32.gmra.mxu0 %v323
      %v512 = vpop.f32.mrf.mxu0
      %v513 = vadd.f32 0.0, %v512
      %v514 = vpop.f32.mrf.mxu0
      %515 = vmatprep.mubr.f32.mxu0 0.0
      %516 = vmatmul.mubr.f32.gmra.mxu0 %v326
      %v517 = vpop.f32.mrf.mxu0
      %v518 = vadd.f32 0.0, %v517
      %v519 = vpop.f32.mrf.mxu0
      %520 = vmatprep.mubr.f32.mxu0 0.0
      %521 = vmatmul.mubr.f32.gmra.mxu0 %v329
      %v522 = vpop.f32.mrf.mxu0
      %v523 = vadd.f32 0.0, %v522
      %v524 = vpop.f32.mrf.mxu0
      %525 = vmatprep.mubr.f32.mxu0 0.0
      %526 = vmatmul.mubr.f32.gmra.mxu0 %v332
      %v527 = vpop.f32.mrf.mxu0
      %v528 = vadd.f32 0.0, %v527
      %v529 = vpop.f32.mrf.mxu0
      %530 = vmatprep.mubr.f32.mxu0 0.0
      %531 = vmatmul.mubr.f32.gmra.mxu0 %v335
      %v532 = vpop.f32.mrf.mxu0
      %v533 = vadd.f32 0.0, %v532
      %v534 = vpop.f32.mrf.mxu0
      %535 = vmatprep.mubr.f32.mxu0 0.0
      %536 = vmatmul.mubr.f32.gmra.mxu0 %v338
      %v537 = vpop.f32.mrf.mxu0
      %v538 = vadd.f32 0.0, %v537
      %v539 = vpop.f32.mrf.mxu0
      %540 = vmatprep.mubr.f32.mxu0 0.0
      %541 = vmatmul.mubr.f32.gmra.mxu0 %v341
      %v542 = vpop.f32.mrf.mxu0
      %v543 = vadd.f32 0.0, %v542
      %v544 = vpop.f32.mrf.mxu0
      %545 = vmatprep.mubr.f32.mxu0 0.0
      %546 = vmatmul.mubr.f32.gmra.mxu0 %v344
      %v547 = vpop.f32.mrf.mxu0
      %v548 = vadd.f32 0.0, %v547
      %v549 = vpop.f32.mrf.mxu0
      %550 = vmatprep.mubr.f32.mxu0 0.0
      %551 = vmatmul.mubr.f32.gmra.mxu0 %v347
      %v552 = vpop.f32.mrf.mxu0
      %v553 = vadd.f32 0.0, %v552
      %v554 = vpop.f32.mrf.mxu0
      %555 = vmatprep.mubr.f32.mxu0 0.0
      %556 = vmatmul.mubr.f32.gmra.mxu0 %v350
      %v557 = vpop.f32.mrf.mxu0
      %v558 = vadd.f32 0.0, %v557
      %v559 = vpop.f32.mrf.mxu0
      %560 = vmatprep.mubr.f32.mxu0 0.0
      %561 = vmatmul.mubr.f32.gmra.mxu0 %v353
      %v562 = vpop.f32.mrf.mxu0
      %v563 = vadd.f32 0.0, %v562
      %v564 = vpop.f32.mrf.mxu0
      %565 = vmatprep.mubr.f32.mxu0 0.0
      %566 = vmatmul.mubr.f32.gmra.mxu0 %v356
      %v567 = vpop.f32.mrf.mxu0
      %v568 = vadd.f32 0.0, %v567
      %v569 = vpop.f32.mrf.mxu0
      %570 = vmatprep.mubr.f32.mxu0 0.0
      %571 = vmatmul.mubr.f32.gmra.mxu0 %v359
      %v572 = vpop.f32.mrf.mxu0
      %v573 = vadd.f32 0.0, %v572
      %v574 = vpop.f32.mrf.mxu0
      %575 = vmatprep.mubr.f32.mxu0 0.0
      %576 = vmatmul.mubr.f32.gmra.mxu0 %v362
      %v577 = vpop.f32.mrf.mxu0
      %v578 = vadd.f32 0.0, %v577
      %v579 = vpop.f32.mrf.mxu0
      %580 = vmatprep.mubr.f32.mxu0 0.0
      %581 = vmatmul.mubr.f32.gmra.mxu0 %v365
      %v582 = vpop.f32.mrf.mxu0
      %v583 = vadd.f32 0.0, %v582
      %v584 = vpop.f32.mrf.mxu0
      %585 = vmatprep.mubr.f32.mxu0 0.0
      %586 = vmatmul.mubr.f32.gmra.mxu0 %v368
      %v587 = vpop.f32.mrf.mxu0
      %v588 = vadd.f32 0.0, %v587
      %v589 = vpop.f32.mrf.mxu0
      %590 = vmatprep.mubr.f32.mxu0 0.0
      %591 = vmatmul.mubr.f32.gmra.mxu0 %v371
      %v592 = vpop.f32.mrf.mxu0
      %v593 = vadd.f32 0.0, %v592
      %v594 = vpop.f32.mrf.mxu0
      %595 = vmatprep.mubr.f32.mxu0 0.0
      %596 = vmatmul.mubr.f32.gmra.mxu0 %v374
      %v597 = vpop.f32.mrf.mxu0
      %v598 = vadd.f32 0.0, %v597
      %v599 = vpop.f32.mrf.mxu0
      %600 = vdwg.mxu0
      %v602 = vsel %vm279, %v198, 0
      %v605 = vsel %vm279, %v199, 0
      %v608 = vsel %vm279, %v200, 0
      %v611 = vsel %vm279, %v201, 0
      %v614 = vsel %vm279, %v202, 0
      %v617 = vsel %vm279, %v203, 0
      %v620 = vsel %vm279, %v204, 0
      %v623 = vsel %vm279, %v205, 0
      %v626 = vsel %vm279, %v206, 0
      %v629 = vsel %vm279, %v207, 0
      %v632 = vsel %vm279, %v208, 0
      %v635 = vsel %vm279, %v209, 0
      %v638 = vsel %vm279, %v210, 0
      %v641 = vsel %vm279, %v211, 0
      %v644 = vsel %vm279, %v212, 0
      %v647 = vsel %vm279, %v213, 0
      %v650 = vsel %vm279, %v214, 0
      %v653 = vsel %vm279, %v215, 0
      %v656 = vsel %vm279, %v216, 0
      %v659 = vsel %vm279, %v217, 0
      %v662 = vsel %vm279, %v218, 0
      %v665 = vsel %vm279, %v219, 0
      %v668 = vsel %vm279, %v220, 0
      %v671 = vsel %vm279, %v221, 0
      %v674 = vsel %vm279, %v222, 0
      %v677 = vsel %vm279, %v223, 0
      %v680 = vsel %vm279, %v224, 0
      %v683 = vsel %vm279, %v225, 0
      %v686 = vsel %vm279, %v226, 0
      %v689 = vsel %vm279, %v227, 0
      %v692 = vsel %vm279, %v228, 0
      %v695 = vsel %vm279, %v229, 0
      %697 = vmatprep.subr.mxu0 0.0
      %698 = vmatpush1.msra.mxu0 0.0
      %699 = vmatprep.subr.mxu0 0.0
      %700 = vmatpush1.msra.mxu0 0.0
      %701 = vmatprep.subr.mxu0 0.0
      %702 = vmatpush1.msra.mxu0 0.0
      %703 = vmatprep.subr.mxu0 0.0
      %704 = vmatpush1.msra.mxu0 0.0
      %705 = vmatprep.subr.mxu0 0.0
      %706 = vmatpush1.msra.mxu0 0.0
      %707 = vmatprep.subr.mxu0 0.0
      %708 = vmatpush1.msra.mxu0 0.0
      %709 = vmatprep.subr.mxu0 0.0
      %710 = vmatpush1.msra.mxu0 0.0
      %711 = vmatprep.subr.mxu0 0.0
      %712 = vmatpush1.msra.mxu0 0.0
      %713 = vmatprep.subr.mxu0 0.0
      %714 = vmatpush1.msra.mxu0 %v237
      %715 = vmatprep.subr.mxu0 0.0
      %716 = vmatpush1.msra.mxu0 %v236
      %717 = vmatprep.subr.mxu0 0.0
      %718 = vmatpush1.msra.mxu0 %v235
      %719 = vmatprep.subr.mxu0 0.0
      %720 = vmatpush1.msra.mxu0 %v234
      %721 = vmatprep.subr.mxu0 0.0
      %722 = vmatpush1.msra.mxu0 %v233
      %723 = vmatprep.subr.mxu0 0.0
      %724 = vmatpush1.msra.mxu0 %v232
      %725 = vmatprep.subr.mxu0 0.0
      %726 = vmatpush1.msra.mxu0 %v231
      %727 = vmatprep.subr.mxu0 0.0
      %728 = vmatpush1.msra.mxu0 %v230
      %729 = vmatprep.subr.mxu0 0.0
      %730 = vmatpush2.msra.mxu0 0.0
      %731 = vmatprep.subr.mxu0 0.0
      %732 = vmatpush2.msra.mxu0 0.0
      %733 = vmatprep.subr.mxu0 0.0
      %734 = vmatpush2.msra.mxu0 0.0
      %735 = vmatprep.subr.mxu0 0.0
      %736 = vmatpush2.msra.mxu0 0.0
      %737 = vmatprep.subr.mxu0 0.0
      %738 = vmatpush2.msra.mxu0 0.0
      %739 = vmatprep.subr.mxu0 0.0
      %740 = vmatpush2.msra.mxu0 0.0
      %741 = vmatprep.subr.mxu0 0.0
      %742 = vmatpush2.msra.mxu0 0.0
      %743 = vmatprep.subr.mxu0 0.0
      %744 = vmatpush2.msra.mxu0 0.0
      %745 = vmatprep.subr.mxu0 0.0
      %746 = vmatpush2.msra.mxu0 0.0
      %747 = vmatprep.subr.mxu0 0.0
      %748 = vmatpush2.msra.mxu0 0.0
      %749 = vmatprep.subr.mxu0 0.0
      %750 = vmatpush2.msra.mxu0 0.0
      %751 = vmatprep.subr.mxu0 0.0
      %752 = vmatpush2.msra.mxu0 0.0
      %753 = vmatprep.subr.mxu0 0.0
      %754 = vmatpush2.msra.mxu0 0.0
      %755 = vmatprep.subr.mxu0 0.0
      %756 = vmatpush2.msra.mxu0 0.0
      %757 = vmatprep.subr.mxu0 0.0
      %758 = vmatpush2.msra.mxu0 0.0
      %759 = vmatprep.subr.mxu0 0.0
      %760 = vmatpush2.msra.mxu0 0.0
      %761 = vmatprep.mubr.f32.mxu0 0.0
      %762 = vmatmul.mubr.f32.gmra.mxu0 %v602
      %v763 = vpop.f32.mrf.mxu0
      %v764 = vadd.f32 %v443, %v763
      %v765 = vpop.f32.mrf.mxu0
      %766 = vmatprep.mubr.f32.mxu0 0.0
      %767 = vmatmul.mubr.f32.gmra.mxu0 %v605
      %v768 = vpop.f32.mrf.mxu0
      %v769 = vadd.f32 %v448, %v768
      %v770 = vpop.f32.mrf.mxu0
      %771 = vmatprep.mubr.f32.mxu0 0.0
      %772 = vmatmul.mubr.f32.gmra.mxu0 %v608
      %v773 = vpop.f32.mrf.mxu0
      %v774 = vadd.f32 %v453, %v773
      %v775 = vpop.f32.mrf.mxu0
      %776 = vmatprep.mubr.f32.mxu0 0.0
      %777 = vmatmul.mubr.f32.gmra.mxu0 %v611
      %v778 = vpop.f32.mrf.mxu0
      %v779 = vadd.f32 %v458, %v778
      %v780 = vpop.f32.mrf.mxu0
      %781 = vmatprep.mubr.f32.mxu0 0.0
      %782 = vmatmul.mubr.f32.gmra.mxu0 %v614
      %v783 = vpop.f32.mrf.mxu0
      %v784 = vadd.f32 %v463, %v783
      %v785 = vpop.f32.mrf.mxu0
      %786 = vmatprep.mubr.f32.mxu0 0.0
      %787 = vmatmul.mubr.f32.gmra.mxu0 %v617
      %v788 = vpop.f32.mrf.mxu0
      %v789 = vadd.f32 %v468, %v788
      %v790 = vpop.f32.mrf.mxu0
      %791 = vmatprep.mubr.f32.mxu0 0.0
      %792 = vmatmul.mubr.f32.gmra.mxu0 %v620
      %v793 = vpop.f32.mrf.mxu0
      %v794 = vadd.f32 %v473, %v793
      %v795 = vpop.f32.mrf.mxu0
      %796 = vmatprep.mubr.f32.mxu0 0.0
      %797 = vmatmul.mubr.f32.gmra.mxu0 %v623
      %v798 = vpop.f32.mrf.mxu0
      %v799 = vadd.f32 %v478, %v798
      %v800 = vpop.f32.mrf.mxu0
      %801 = vmatprep.mubr.f32.mxu0 0.0
      %802 = vmatmul.mubr.f32.gmra.mxu0 %v626
      %v803 = vpop.f32.mrf.mxu0
      %v804 = vadd.f32 %v483, %v803
      %v805 = vpop.f32.mrf.mxu0
      %806 = vmatprep.mubr.f32.mxu0 0.0
      %807 = vmatmul.mubr.f32.gmra.mxu0 %v629
      %v808 = vpop.f32.mrf.mxu0
      %v809 = vadd.f32 %v488, %v808
      %v810 = vpop.f32.mrf.mxu0
      %811 = vmatprep.mubr.f32.mxu0 0.0
      %812 = vmatmul.mubr.f32.gmra.mxu0 %v632
      %v813 = vpop.f32.mrf.mxu0
      %v814 = vadd.f32 %v493, %v813
      %v815 = vpop.f32.mrf.mxu0
      %816 = vmatprep.mubr.f32.mxu0 0.0
      %817 = vmatmul.mubr.f32.gmra.mxu0 %v635
      %v818 = vpop.f32.mrf.mxu0
      %v819 = vadd.f32 %v498, %v818
      %v820 = vpop.f32.mrf.mxu0
      %821 = vmatprep.mubr.f32.mxu0 0.0
      %822 = vmatmul.mubr.f32.gmra.mxu0 %v638
      %v823 = vpop.f32.mrf.mxu0
      %v824 = vadd.f32 %v503, %v823
      %v825 = vpop.f32.mrf.mxu0
      %826 = vmatprep.mubr.f32.mxu0 0.0
      %827 = vmatmul.mubr.f32.gmra.mxu0 %v641
      %v828 = vpop.f32.mrf.mxu0
      %v829 = vadd.f32 %v508, %v828
      %v830 = vpop.f32.mrf.mxu0
      %831 = vmatprep.mubr.f32.mxu0 0.0
      %832 = vmatmul.mubr.f32.gmra.mxu0 %v644
      %v833 = vpop.f32.mrf.mxu0
      %v834 = vadd.f32 %v513, %v833
      %v835 = vpop.f32.mrf.mxu0
      %836 = vmatprep.mubr.f32.mxu0 0.0
      %837 = vmatmul.mubr.f32.gmra.mxu0 %v647
      %v838 = vpop.f32.mrf.mxu0
      %v839 = vadd.f32 %v518, %v838
      %v840 = vpop.f32.mrf.mxu0
      %841 = vmatprep.mubr.f32.mxu0 0.0
      %842 = vmatmul.mubr.f32.gmra.mxu0 %v650
      %v843 = vpop.f32.mrf.mxu0
      %v844 = vadd.f32 %v523, %v843
      %v845 = vpop.f32.mrf.mxu0
      %846 = vmatprep.mubr.f32.mxu0 0.0
      %847 = vmatmul.mubr.f32.gmra.mxu0 %v653
      %v848 = vpop.f32.mrf.mxu0
      %v849 = vadd.f32 %v528, %v848
      %v850 = vpop.f32.mrf.mxu0
      %851 = vmatprep.mubr.f32.mxu0 0.0
      %852 = vmatmul.mubr.f32.gmra.mxu0 %v656
      %v853 = vpop.f32.mrf.mxu0
      %v854 = vadd.f32 %v533, %v853
      %v855 = vpop.f32.mrf.mxu0
      %856 = vmatprep.mubr.f32.mxu0 0.0
      %857 = vmatmul.mubr.f32.gmra.mxu0 %v659
      %v858 = vpop.f32.mrf.mxu0
      %v859 = vadd.f32 %v538, %v858
      %v860 = vpop.f32.mrf.mxu0
      %861 = vmatprep.mubr.f32.mxu0 0.0
      %862 = vmatmul.mubr.f32.gmra.mxu0 %v662
      %v863 = vpop.f32.mrf.mxu0
      %v864 = vadd.f32 %v543, %v863
      %v865 = vpop.f32.mrf.mxu0
      %866 = vmatprep.mubr.f32.mxu0 0.0
      %867 = vmatmul.mubr.f32.gmra.mxu0 %v665
      %v868 = vpop.f32.mrf.mxu0
      %v869 = vadd.f32 %v548, %v868
      %v870 = vpop.f32.mrf.mxu0
      %871 = vmatprep.mubr.f32.mxu0 0.0
      %872 = vmatmul.mubr.f32.gmra.mxu0 %v668
      %v873 = vpop.f32.mrf.mxu0
      %v874 = vadd.f32 %v553, %v873
      %v875 = vpop.f32.mrf.mxu0
      %876 = vmatprep.mubr.f32.mxu0 0.0
      %877 = vmatmul.mubr.f32.gmra.mxu0 %v671
      %v878 = vpop.f32.mrf.mxu0
      %v879 = vadd.f32 %v558, %v878
      %v880 = vpop.f32.mrf.mxu0
      %881 = vmatprep.mubr.f32.mxu0 0.0
      %882 = vmatmul.mubr.f32.gmra.mxu0 %v674
      %v883 = vpop.f32.mrf.mxu0
      %v884 = vadd.f32 %v563, %v883
      %v885 = vpop.f32.mrf.mxu0
      %886 = vmatprep.mubr.f32.mxu0 0.0
      %887 = vmatmul.mubr.f32.gmra.mxu0 %v677
      %v888 = vpop.f32.mrf.mxu0
      %v889 = vadd.f32 %v568, %v888
      %v890 = vpop.f32.mrf.mxu0
      %891 = vmatprep.mubr.f32.mxu0 0.0
      %892 = vmatmul.mubr.f32.gmra.mxu0 %v680
      %v893 = vpop.f32.mrf.mxu0
      %v894 = vadd.f32 %v573, %v893
      %v895 = vpop.f32.mrf.mxu0
      %896 = vmatprep.mubr.f32.mxu0 0.0
      %897 = vmatmul.mubr.f32.gmra.mxu0 %v683
      %v898 = vpop.f32.mrf.mxu0
      %v899 = vadd.f32 %v578, %v898
      %v900 = vpop.f32.mrf.mxu0
      %901 = vmatprep.mubr.f32.mxu0 0.0
      %902 = vmatmul.mubr.f32.gmra.mxu0 %v686
      %v903 = vpop.f32.mrf.mxu0
      %v904 = vadd.f32 %v583, %v903
      %v905 = vpop.f32.mrf.mxu0
      %906 = vmatprep.mubr.f32.mxu0 0.0
      %907 = vmatmul.mubr.f32.gmra.mxu0 %v689
      %v908 = vpop.f32.mrf.mxu0
      %v909 = vadd.f32 %v588, %v908
      %v910 = vpop.f32.mrf.mxu0
      %911 = vmatprep.mubr.f32.mxu0 0.0
      %912 = vmatmul.mubr.f32.gmra.mxu0 %v692
      %v913 = vpop.f32.mrf.mxu0
      %v914 = vadd.f32 %v593, %v913
      %v915 = vpop.f32.mrf.mxu0
      %916 = vmatprep.mubr.f32.mxu0 0.0
      %917 = vmatmul.mubr.f32.gmra.mxu0 %v695
      %v918 = vpop.f32.mrf.mxu0
      %v919 = vadd.f32 %v598, %v918
      %v920 = vpop.f32.mrf.mxu0
      %921 = vdwg.mxu0
      %v922 = vld [vmem:[%s192 + $0x2] sm:$0xff]
      %v923 = vld [vmem:[%s192 + $0xa] sm:$0xff]
      %v924 = vld [vmem:[%s192 + $0x1a] sm:$0xff]
      %v925 = vld [vmem:[%s192 + $0x22] sm:$0xff]
      %v926 = vld [vmem:[%s192 + $0x32] sm:$0xff]
      %v927 = vld [vmem:[%s192 + $0x3a] sm:$0xff]
      %v928 = vld [vmem:[%s192 + $0x4a] sm:$0xff]
      %v929 = vld [vmem:[%s192 + $0x52] sm:$0xff]
      %v930 = vld [vmem:[%s192 + $0x62] sm:$0xff]
      %v931 = vld [vmem:[%s192 + $0x6a] sm:$0xff]
      %v932 = vld [vmem:[%s192 + $0x7a] sm:$0xff]
      %v933 = vld [vmem:[%s192 + $0x82] sm:$0xff]
      %v934 = vld [vmem:[%s192 + $0x92] sm:$0xff]
      %v935 = vld [vmem:[%s192 + $0x9a] sm:$0xff]
      %v936 = vld [vmem:[%s192 + $0xaa] sm:$0xff]
      %v937 = vld [vmem:[%s192 + $0xb2] sm:$0xff]
      %v938 = vld [vmem:[%s192 + $0xc2] sm:$0xff]
      %v939 = vld [vmem:[%s192 + $0xca] sm:$0xff]
      %v940 = vld [vmem:[%s192 + $0xda] sm:$0xff]
      %v941 = vld [vmem:[%s192 + $0xe2] sm:$0xff]
      %v942 = vld [vmem:[%s192 + $0xf2] sm:$0xff]
      %v943 = vld [vmem:[%s192 + $0xfa] sm:$0xff]
      %v944 = vld [vmem:[%s192 + $0x10a] sm:$0xff]
      %v945 = vld [vmem:[%s192 + $0x112] sm:$0xff]
      %v946 = vld [vmem:[%s192 + $0x122] sm:$0xff]
      %v947 = vld [vmem:[%s192 + $0x12a] sm:$0xff]
      %v948 = vld [vmem:[%s192 + $0x13a] sm:$0xff]
      %v949 = vld [vmem:[%s192 + $0x142] sm:$0xff]
      %v950 = vld [vmem:[%s192 + $0x152] sm:$0xff]
      %v951 = vld [vmem:[%s192 + $0x15a] sm:$0xff]
      %v952 = vld [vmem:[%s192 + $0x16a] sm:$0xff]
      %v953 = vld [vmem:[%s192 + $0x172] sm:$0xff]
      %s954 = scalar_lea.vmem %s1, 128
      %v955 = vld [vmem:[%s954] sm:$0xff]
      %v956 = vld [vmem:[%s954 + $0x8] sm:$0xff]
      %v957 = vld [vmem:[%s954 + $0x10] sm:$0xff]
      %v958 = vld [vmem:[%s954 + $0x18] sm:$0xff]
      %v959 = vld [vmem:[%s954 + $0x20] sm:$0xff]
      %v960 = vld [vmem:[%s954 + $0x28] sm:$0xff]
      %v961 = vld [vmem:[%s954 + $0x30] sm:$0xff]
      %v962 = vld [vmem:[%s954 + $0x38] sm:$0xff]
      %v964 = vsel %vm279, %v922, 0
      %v967 = vsel %vm279, %v923, 0
      %v970 = vsel %vm279, %v924, 0
      %v973 = vsel %vm279, %v925, 0
      %v976 = vsel %vm279, %v926, 0
      %v979 = vsel %vm279, %v927, 0
      %v982 = vsel %vm279, %v928, 0
      %v985 = vsel %vm279, %v929, 0
      %v988 = vsel %vm279, %v930, 0
      %v991 = vsel %vm279, %v931, 0
      %v994 = vsel %vm279, %v932, 0
      %v997 = vsel %vm279, %v933, 0
      %v1000 = vsel %vm279, %v934, 0
      %v1003 = vsel %vm279, %v935, 0
      %v1006 = vsel %vm279, %v936, 0
      %v1009 = vsel %vm279, %v937, 0
      %v1012 = vsel %vm279, %v938, 0
      %v1015 = vsel %vm279, %v939, 0
      %v1018 = vsel %vm279, %v940, 0
      %v1021 = vsel %vm279, %v941, 0
      %v1024 = vsel %vm279, %v942, 0
      %v1027 = vsel %vm279, %v943, 0
      %v1030 = vsel %vm279, %v944, 0
      %v1033 = vsel %vm279, %v945, 0
      %v1036 = vsel %vm279, %v946, 0
      %v1039 = vsel %vm279, %v947, 0
      %v1042 = vsel %vm279, %v948, 0
      %v1045 = vsel %vm279, %v949, 0
      %v1048 = vsel %vm279, %v950, 0
      %v1051 = vsel %vm279, %v951, 0
      %v1054 = vsel %vm279, %v952, 0
      %v1057 = vsel %vm279, %v953, 0
      %1059 = vmatprep.subr.mxu0 0.0
      %1060 = vmatpush1.msra.mxu0 0.0
      %1061 = vmatprep.subr.mxu0 0.0
      %1062 = vmatpush1.msra.mxu0 0.0
      %1063 = vmatprep.subr.mxu0 0.0
      %1064 = vmatpush1.msra.mxu0 0.0
      %1065 = vmatprep.subr.mxu0 0.0
      %1066 = vmatpush1.msra.mxu0 0.0
      %1067 = vmatprep.subr.mxu0 0.0
      %1068 = vmatpush1.msra.mxu0 0.0
      %1069 = vmatprep.subr.mxu0 0.0
      %1070 = vmatpush1.msra.mxu0 0.0
      %1071 = vmatprep.subr.mxu0 0.0
      %1072 = vmatpush1.msra.mxu0 0.0
      %1073 = vmatprep.subr.mxu0 0.0
      %1074 = vmatpush1.msra.mxu0 0.0
      %1075 = vmatprep.subr.mxu0 0.0
      %1076 = vmatpush1.msra.mxu0 %v962
      %1077 = vmatprep.subr.mxu0 0.0
      %1078 = vmatpush1.msra.mxu0 %v961
      %1079 = vmatprep.subr.mxu0 0.0
      %1080 = vmatpush1.msra.mxu0 %v960
      %1081 = vmatprep.subr.mxu0 0.0
      %1082 = vmatpush1.msra.mxu0 %v959
      %1083 = vmatprep.subr.mxu0 0.0
      %1084 = vmatpush1.msra.mxu0 %v958
      %1085 = vmatprep.subr.mxu0 0.0
      %1086 = vmatpush1.msra.mxu0 %v957
      %1087 = vmatprep.subr.mxu0 0.0
      %1088 = vmatpush1.msra.mxu0 %v956
      %1089 = vmatprep.subr.mxu0 0.0
      %1090 = vmatpush1.msra.mxu0 %v955
      %1091 = vmatprep.subr.mxu0 0.0
      %1092 = vmatpush2.msra.mxu0 0.0
      %1093 = vmatprep.subr.mxu0 0.0
      %1094 = vmatpush2.msra.mxu0 0.0
      %1095 = vmatprep.subr.mxu0 0.0
      %1096 = vmatpush2.msra.mxu0 0.0
      %1097 = vmatprep.subr.mxu0 0.0
      %1098 = vmatpush2.msra.mxu0 0.0
      %1099 = vmatprep.subr.mxu0 0.0
      %1100 = vmatpush2.msra.mxu0 0.0
      %1101 = vmatprep.subr.mxu0 0.0
      %1102 = vmatpush2.msra.mxu0 0.0
      %1103 = vmatprep.subr.mxu0 0.0
      %1104 = vmatpush2.msra.mxu0 0.0
      %1105 = vmatprep.subr.mxu0 0.0
      %1106 = vmatpush2.msra.mxu0 0.0
      %1107 = vmatprep.subr.mxu0 0.0
      %1108 = vmatpush2.msra.mxu0 0.0
      %1109 = vmatprep.subr.mxu0 0.0
      %1110 = vmatpush2.msra.mxu0 0.0
      %1111 = vmatprep.subr.mxu0 0.0
      %1112 = vmatpush2.msra.mxu0 0.0
      %1113 = vmatprep.subr.mxu0 0.0
      %1114 = vmatpush2.msra.mxu0 0.0
      %1115 = vmatprep.subr.mxu0 0.0
      %1116 = vmatpush2.msra.mxu0 0.0
      %1117 = vmatprep.subr.mxu0 0.0
      %1118 = vmatpush2.msra.mxu0 0.0
      %1119 = vmatprep.subr.mxu0 0.0
      %1120 = vmatpush2.msra.mxu0 0.0
      %1121 = vmatprep.subr.mxu0 0.0
      %1122 = vmatpush2.msra.mxu0 0.0
      %1123 = vmatprep.mubr.f32.mxu0 0.0
      %1124 = vmatmul.mubr.f32.gmra.mxu0 %v964
      %v1125 = vpop.f32.mrf.mxu0
      %v1126 = vadd.f32 0.0, %v1125
      %v1127 = vpop.f32.mrf.mxu0
      %1128 = vmatprep.mubr.f32.mxu0 0.0
      %1129 = vmatmul.mubr.f32.gmra.mxu0 %v967
      %v1130 = vpop.f32.mrf.mxu0
      %v1131 = vadd.f32 0.0, %v1130
      %v1132 = vpop.f32.mrf.mxu0
      %1133 = vmatprep.mubr.f32.mxu0 0.0
      %1134 = vmatmul.mubr.f32.gmra.mxu0 %v970
      %v1135 = vpop.f32.mrf.mxu0
      %v1136 = vadd.f32 0.0, %v1135
      %v1137 = vpop.f32.mrf.mxu0
      %1138 = vmatprep.mubr.f32.mxu0 0.0
      %1139 = vmatmul.mubr.f32.gmra.mxu0 %v973
      %v1140 = vpop.f32.mrf.mxu0
      %v1141 = vadd.f32 0.0, %v1140
      %v1142 = vpop.f32.mrf.mxu0
      %1143 = vmatprep.mubr.f32.mxu0 0.0
      %1144 = vmatmul.mubr.f32.gmra.mxu0 %v976
      %v1145 = vpop.f32.mrf.mxu0
      %v1146 = vadd.f32 0.0, %v1145
      %v1147 = vpop.f32.mrf.mxu0
      %1148 = vmatprep.mubr.f32.mxu0 0.0
      %1149 = vmatmul.mubr.f32.gmra.mxu0 %v979
      %v1150 = vpop.f32.mrf.mxu0
      %v1151 = vadd.f32 0.0, %v1150
      %v1152 = vpop.f32.mrf.mxu0
      %1153 = vmatprep.mubr.f32.mxu0 0.0
      %1154 = vmatmul.mubr.f32.gmra.mxu0 %v982
      %v1155 = vpop.f32.mrf.mxu0
      %v1156 = vadd.f32 0.0, %v1155
      %v1157 = vpop.f32.mrf.mxu0
      %1158 = vmatprep.mubr.f32.mxu0 0.0
      %1159 = vmatmul.mubr.f32.gmra.mxu0 %v985
      %v1160 = vpop.f32.mrf.mxu0
      %v1161 = vadd.f32 0.0, %v1160
      %v1162 = vpop.f32.mrf.mxu0
      %1163 = vmatprep.mubr.f32.mxu0 0.0
      %1164 = vmatmul.mubr.f32.gmra.mxu0 %v988
      %v1165 = vpop.f32.mrf.mxu0
      %v1166 = vadd.f32 0.0, %v1165
      %v1167 = vpop.f32.mrf.mxu0
      %1168 = vmatprep.mubr.f32.mxu0 0.0
      %1169 = vmatmul.mubr.f32.gmra.mxu0 %v991
      %v1170 = vpop.f32.mrf.mxu0
      %v1171 = vadd.f32 0.0, %v1170
      %v1172 = vpop.f32.mrf.mxu0
      %1173 = vmatprep.mubr.f32.mxu0 0.0
      %1174 = vmatmul.mubr.f32.gmra.mxu0 %v994
      %v1175 = vpop.f32.mrf.mxu0
      %v1176 = vadd.f32 0.0, %v1175
      %v1177 = vpop.f32.mrf.mxu0
      %1178 = vmatprep.mubr.f32.mxu0 0.0
      %1179 = vmatmul.mubr.f32.gmra.mxu0 %v997
      %v1180 = vpop.f32.mrf.mxu0
      %v1181 = vadd.f32 0.0, %v1180
      %v1182 = vpop.f32.mrf.mxu0
      %1183 = vmatprep.mubr.f32.mxu0 0.0
      %1184 = vmatmul.mubr.f32.gmra.mxu0 %v1000
      %v1185 = vpop.f32.mrf.mxu0
      %v1186 = vadd.f32 0.0, %v1185
      %v1187 = vpop.f32.mrf.mxu0
      %1188 = vmatprep.mubr.f32.mxu0 0.0
      %1189 = vmatmul.mubr.f32.gmra.mxu0 %v1003
      %v1190 = vpop.f32.mrf.mxu0
      %v1191 = vadd.f32 0.0, %v1190
      %v1192 = vpop.f32.mrf.mxu0
      %1193 = vmatprep.mubr.f32.mxu0 0.0
      %1194 = vmatmul.mubr.f32.gmra.mxu0 %v1006
      %v1195 = vpop.f32.mrf.mxu0
      %v1196 = vadd.f32 0.0, %v1195
      %v1197 = vpop.f32.mrf.mxu0
      %1198 = vmatprep.mubr.f32.mxu0 0.0
      %1199 = vmatmul.mubr.f32.gmra.mxu0 %v1009
      %v1200 = vpop.f32.mrf.mxu0
      %v1201 = vadd.f32 0.0, %v1200
      %v1202 = vpop.f32.mrf.mxu0
      %1203 = vmatprep.mubr.f32.mxu0 0.0
      %1204 = vmatmul.mubr.f32.gmra.mxu0 %v1012
      %v1205 = vpop.f32.mrf.mxu0
      %v1206 = vadd.f32 0.0, %v1205
      %v1207 = vpop.f32.mrf.mxu0
      %1208 = vmatprep.mubr.f32.mxu0 0.0
      %1209 = vmatmul.mubr.f32.gmra.mxu0 %v1015
      %v1210 = vpop.f32.mrf.mxu0
      %v1211 = vadd.f32 0.0, %v1210
      %v1212 = vpop.f32.mrf.mxu0
      %1213 = vmatprep.mubr.f32.mxu0 0.0
      %1214 = vmatmul.mubr.f32.gmra.mxu0 %v1018
      %v1215 = vpop.f32.mrf.mxu0
      %v1216 = vadd.f32 0.0, %v1215
      %v1217 = vpop.f32.mrf.mxu0
      %1218 = vmatprep.mubr.f32.mxu0 0.0
      %1219 = vmatmul.mubr.f32.gmra.mxu0 %v1021
      %v1220 = vpop.f32.mrf.mxu0
      %v1221 = vadd.f32 0.0, %v1220
      %v1222 = vpop.f32.mrf.mxu0
      %1223 = vmatprep.mubr.f32.mxu0 0.0
      %1224 = vmatmul.mubr.f32.gmra.mxu0 %v1024
      %v1225 = vpop.f32.mrf.mxu0
      %v1226 = vadd.f32 0.0, %v1225
      %v1227 = vpop.f32.mrf.mxu0
      %1228 = vmatprep.mubr.f32.mxu0 0.0
      %1229 = vmatmul.mubr.f32.gmra.mxu0 %v1027
      %v1230 = vpop.f32.mrf.mxu0
      %v1231 = vadd.f32 0.0, %v1230
      %v1232 = vpop.f32.mrf.mxu0
      %1233 = vmatprep.mubr.f32.mxu0 0.0
      %1234 = vmatmul.mubr.f32.gmra.mxu0 %v1030
      %v1235 = vpop.f32.mrf.mxu0
      %v1236 = vadd.f32 0.0, %v1235
      %v1237 = vpop.f32.mrf.mxu0
      %1238 = vmatprep.mubr.f32.mxu0 0.0
      %1239 = vmatmul.mubr.f32.gmra.mxu0 %v1033
      %v1240 = vpop.f32.mrf.mxu0
      %v1241 = vadd.f32 0.0, %v1240
      %v1242 = vpop.f32.mrf.mxu0
      %1243 = vmatprep.mubr.f32.mxu0 0.0
      %1244 = vmatmul.mubr.f32.gmra.mxu0 %v1036
      %v1245 = vpop.f32.mrf.mxu0
      %v1246 = vadd.f32 0.0, %v1245
      %v1247 = vpop.f32.mrf.mxu0
      %1248 = vmatprep.mubr.f32.mxu0 0.0
      %1249 = vmatmul.mubr.f32.gmra.mxu0 %v1039
      %v1250 = vpop.f32.mrf.mxu0
      %v1251 = vadd.f32 0.0, %v1250
      %v1252 = vpop.f32.mrf.mxu0
      %1253 = vmatprep.mubr.f32.mxu0 0.0
      %1254 = vmatmul.mubr.f32.gmra.mxu0 %v1042
      %v1255 = vpop.f32.mrf.mxu0
      %v1256 = vadd.f32 0.0, %v1255
      %v1257 = vpop.f32.mrf.mxu0
      %1258 = vmatprep.mubr.f32.mxu0 0.0
      %1259 = vmatmul.mubr.f32.gmra.mxu0 %v1045
      %v1260 = vpop.f32.mrf.mxu0
      %v1261 = vadd.f32 0.0, %v1260
      %v1262 = vpop.f32.mrf.mxu0
      %1263 = vmatprep.mubr.f32.mxu0 0.0
      %1264 = vmatmul.mubr.f32.gmra.mxu0 %v1048
      %v1265 = vpop.f32.mrf.mxu0
      %v1266 = vadd.f32 0.0, %v1265
      %v1267 = vpop.f32.mrf.mxu0
      %1268 = vmatprep.mubr.f32.mxu0 0.0
      %1269 = vmatmul.mubr.f32.gmra.mxu0 %v1051
      %v1270 = vpop.f32.mrf.mxu0
      %v1271 = vadd.f32 0.0, %v1270
      %v1272 = vpop.f32.mrf.mxu0
      %1273 = vmatprep.mubr.f32.mxu0 0.0
      %1274 = vmatmul.mubr.f32.gmra.mxu0 %v1054
      %v1275 = vpop.f32.mrf.mxu0
      %v1276 = vadd.f32 0.0, %v1275
      %v1277 = vpop.f32.mrf.mxu0
      %1278 = vmatprep.mubr.f32.mxu0 0.0
      %1279 = vmatmul.mubr.f32.gmra.mxu0 %v1057
      %v1280 = vpop.f32.mrf.mxu0
      %v1281 = vadd.f32 0.0, %v1280
      %v1282 = vpop.f32.mrf.mxu0
      %1283 = vdwg.mxu0
      %v1284 = vadd.f32 %v764, %v1126
      %v1285 = vadd.f32 %v769, %v1131
      %v1286 = vadd.f32 %v774, %v1136
      %v1287 = vadd.f32 %v779, %v1141
      %v1288 = vadd.f32 %v784, %v1146
      %v1289 = vadd.f32 %v789, %v1151
      %v1290 = vadd.f32 %v794, %v1156
      %v1291 = vadd.f32 %v799, %v1161
      %v1292 = vadd.f32 %v804, %v1166
      %v1293 = vadd.f32 %v809, %v1171
      %v1294 = vadd.f32 %v814, %v1176
      %v1295 = vadd.f32 %v819, %v1181
      %v1296 = vadd.f32 %v824, %v1186
      %v1297 = vadd.f32 %v829, %v1191
      %v1298 = vadd.f32 %v834, %v1196
      %v1299 = vadd.f32 %v839, %v1201
      %v1300 = vadd.f32 %v844, %v1206
      %v1301 = vadd.f32 %v849, %v1211
      %v1302 = vadd.f32 %v854, %v1216
      %v1303 = vadd.f32 %v859, %v1221
      %v1304 = vadd.f32 %v864, %v1226
      %v1305 = vadd.f32 %v869, %v1231
      %v1306 = vadd.f32 %v874, %v1236
      %v1307 = vadd.f32 %v879, %v1241
      %v1308 = vadd.f32 %v884, %v1246
      %v1309 = vadd.f32 %v889, %v1251
      %v1310 = vadd.f32 %v894, %v1256
      %v1311 = vadd.f32 %v899, %v1261
      %v1312 = vadd.f32 %v904, %v1266
      %v1313 = vadd.f32 %v909, %v1271
      %v1314 = vadd.f32 %v914, %v1276
      %v1315 = vadd.f32 %v919, %v1281
      %s1316 = scalar_lea.vmem %s192, 24
      %v1317 = vld [vmem:[%s1316] sm:$0xff]
      %v1318 = vld [vmem:[%s1316 + $0x8] sm:$0xff]
      %v1319 = vld [vmem:[%s1316 + $0x18] sm:$0xff]
      %v1320 = vld [vmem:[%s1316 + $0x20] sm:$0xff]
      %v1321 = vld [vmem:[%s1316 + $0x30] sm:$0xff]
      %v1322 = vld [vmem:[%s1316 + $0x38] sm:$0xff]
      %v1323 = vld [vmem:[%s1316 + $0x48] sm:$0xff]
      %v1324 = vld [vmem:[%s1316 + $0x50] sm:$0xff]
      %v1325 = vld [vmem:[%s1316 + $0x60] sm:$0xff]
      %v1326 = vld [vmem:[%s1316 + $0x68] sm:$0xff]
      %v1327 = vld [vmem:[%s1316 + $0x78] sm:$0xff]
      %v1328 = vld [vmem:[%s1316 + $0x80] sm:$0xff]
      %v1329 = vld [vmem:[%s1316 + $0x90] sm:$0xff]
      %v1330 = vld [vmem:[%s1316 + $0x98] sm:$0xff]
      %v1331 = vld [vmem:[%s1316 + $0xa8] sm:$0xff]
      %v1332 = vld [vmem:[%s1316 + $0xb0] sm:$0xff]
      %v1333 = vld [vmem:[%s1316 + $0xc0] sm:$0xff]
      %v1334 = vld [vmem:[%s1316 + $0xc8] sm:$0xff]
      %v1335 = vld [vmem:[%s1316 + $0xd8] sm:$0xff]
      %v1336 = vld [vmem:[%s1316 + $0xe0] sm:$0xff]
      %v1337 = vld [vmem:[%s1316 + $0xf0] sm:$0xff]
      %v1338 = vld [vmem:[%s1316 + $0xf8] sm:$0xff]
      %v1339 = vld [vmem:[%s1316 + $0x108] sm:$0xff]
      %v1340 = vld [vmem:[%s1316 + $0x110] sm:$0xff]
      %v1341 = vld [vmem:[%s1316 + $0x120] sm:$0xff]
      %v1342 = vld [vmem:[%s1316 + $0x128] sm:$0xff]
      %v1343 = vld [vmem:[%s1316 + $0x138] sm:$0xff]
      %v1344 = vld [vmem:[%s1316 + $0x140] sm:$0xff]
      %v1345 = vld [vmem:[%s1316 + $0x150] sm:$0xff]
      %v1346 = vld [vmem:[%s1316 + $0x158] sm:$0xff]
      %v1347 = vld [vmem:[%s1316 + $0x168] sm:$0xff]
      %v1348 = vld [vmem:[%s1316 + $0x170] sm:$0xff]
      %s1349 = scalar_lea.vmem %s1, 192
      %v1350 = vld [vmem:[%s1349] sm:$0xff]
      %v1351 = vld [vmem:[%s1349 + $0x8] sm:$0xff]
      %v1352 = vld [vmem:[%s1349 + $0x10] sm:$0xff]
      %v1353 = vld [vmem:[%s1349 + $0x18] sm:$0xff]
      %v1354 = vld [vmem:[%s1349 + $0x20] sm:$0xff]
      %v1355 = vld [vmem:[%s1349 + $0x28] sm:$0xff]
      %v1356 = vld [vmem:[%s1349 + $0x30] sm:$0xff]
      %v1357 = vld [vmem:[%s1349 + $0x38] sm:$0xff]
      %v1359 = vsel %vm279, %v1317, 0
      %v1362 = vsel %vm279, %v1318, 0
      %v1365 = vsel %vm279, %v1319, 0
      %v1368 = vsel %vm279, %v1320, 0
      %v1371 = vsel %vm279, %v1321, 0
      %v1374 = vsel %vm279, %v1322, 0
      %v1377 = vsel %vm279, %v1323, 0
      %v1380 = vsel %vm279, %v1324, 0
      %v1383 = vsel %vm279, %v1325, 0
      %v1386 = vsel %vm279, %v1326, 0
      %v1389 = vsel %vm279, %v1327, 0
      %v1392 = vsel %vm279, %v1328, 0
      %v1395 = vsel %vm279, %v1329, 0
      %v1398 = vsel %vm279, %v1330, 0
      %v1401 = vsel %vm279, %v1331, 0
      %v1404 = vsel %vm279, %v1332, 0
      %v1407 = vsel %vm279, %v1333, 0
      %v1410 = vsel %vm279, %v1334, 0
      %v1413 = vsel %vm279, %v1335, 0
      %v1416 = vsel %vm279, %v1336, 0
      %v1419 = vsel %vm279, %v1337, 0
      %v1422 = vsel %vm279, %v1338, 0
      %v1425 = vsel %vm279, %v1339, 0
      %v1428 = vsel %vm279, %v1340, 0
      %v1431 = vsel %vm279, %v1341, 0
      %v1434 = vsel %vm279, %v1342, 0
      %v1437 = vsel %vm279, %v1343, 0
      %v1440 = vsel %vm279, %v1344, 0
      %v1443 = vsel %vm279, %v1345, 0
      %v1446 = vsel %vm279, %v1346, 0
      %v1449 = vsel %vm279, %v1347, 0
      %v1452 = vsel %vm279, %v1348, 0
      %1454 = vmatprep.subr.mxu0 0.0
      %1455 = vmatpush1.msra.mxu0 0.0
      %1456 = vmatprep.subr.mxu0 0.0
      %1457 = vmatpush1.msra.mxu0 0.0
      %1458 = vmatprep.subr.mxu0 0.0
      %1459 = vmatpush1.msra.mxu0 0.0
      %1460 = vmatprep.subr.mxu0 0.0
      %1461 = vmatpush1.msra.mxu0 0.0
      %1462 = vmatprep.subr.mxu0 0.0
      %1463 = vmatpush1.msra.mxu0 0.0
      %1464 = vmatprep.subr.mxu0 0.0
      %1465 = vmatpush1.msra.mxu0 0.0
      %1466 = vmatprep.subr.mxu0 0.0
      %1467 = vmatpush1.msra.mxu0 0.0
      %1468 = vmatprep.subr.mxu0 0.0
      %1469 = vmatpush1.msra.mxu0 0.0
      %1470 = vmatprep.subr.mxu0 0.0
      %1471 = vmatpush1.msra.mxu0 %v1357
      %1472 = vmatprep.subr.mxu0 0.0
      %1473 = vmatpush1.msra.mxu0 %v1356
      %1474 = vmatprep.subr.mxu0 0.0
      %1475 = vmatpush1.msra.mxu0 %v1355
      %1476 = vmatprep.subr.mxu0 0.0
      %1477 = vmatpush1.msra.mxu0 %v1354
      %1478 = vmatprep.subr.mxu0 0.0
      %1479 = vmatpush1.msra.mxu0 %v1353
      %1480 = vmatprep.subr.mxu0 0.0
      %1481 = vmatpush1.msra.mxu0 %v1352
      %1482 = vmatprep.subr.mxu0 0.0
      %1483 = vmatpush1.msra.mxu0 %v1351
      %1484 = vmatprep.subr.mxu0 0.0
      %1485 = vmatpush1.msra.mxu0 %v1350
      %1486 = vmatprep.subr.mxu0 0.0
      %1487 = vmatpush2.msra.mxu0 0.0
      %1488 = vmatprep.subr.mxu0 0.0
      %1489 = vmatpush2.msra.mxu0 0.0
      %1490 = vmatprep.subr.mxu0 0.0
      %1491 = vmatpush2.msra.mxu0 0.0
      %1492 = vmatprep.subr.mxu0 0.0
      %1493 = vmatpush2.msra.mxu0 0.0
      %1494 = vmatprep.subr.mxu0 0.0
      %1495 = vmatpush2.msra.mxu0 0.0
      %1496 = vmatprep.subr.mxu0 0.0
      %1497 = vmatpush2.msra.mxu0 0.0
      %1498 = vmatprep.subr.mxu0 0.0
      %1499 = vmatpush2.msra.mxu0 0.0
      %1500 = vmatprep.subr.mxu0 0.0
      %1501 = vmatpush2.msra.mxu0 0.0
      %1502 = vmatprep.subr.mxu0 0.0
      %1503 = vmatpush2.msra.mxu0 0.0
      %1504 = vmatprep.subr.mxu0 0.0
      %1505 = vmatpush2.msra.mxu0 0.0
      %1506 = vmatprep.subr.mxu0 0.0
      %1507 = vmatpush2.msra.mxu0 0.0
      %1508 = vmatprep.subr.mxu0 0.0
      %1509 = vmatpush2.msra.mxu0 0.0
      %1510 = vmatprep.subr.mxu0 0.0
      %1511 = vmatpush2.msra.mxu0 0.0
      %1512 = vmatprep.subr.mxu0 0.0
      %1513 = vmatpush2.msra.mxu0 0.0
      %1514 = vmatprep.subr.mxu0 0.0
      %1515 = vmatpush2.msra.mxu0 0.0
      %1516 = vmatprep.subr.mxu0 0.0
      %1517 = vmatpush2.msra.mxu0 0.0
      %1518 = vmatprep.mubr.f32.mxu0 0.0
      %1519 = vmatmul.mubr.f32.gmra.mxu0 %v1359
      %v1520 = vpop.f32.mrf.mxu0
      %v1521 = vadd.f32 0.0, %v1520
      %v1522 = vpop.f32.mrf.mxu0
      %1523 = vmatprep.mubr.f32.mxu0 0.0
      %1524 = vmatmul.mubr.f32.gmra.mxu0 %v1362
      %v1525 = vpop.f32.mrf.mxu0
      %v1526 = vadd.f32 0.0, %v1525
      %v1527 = vpop.f32.mrf.mxu0
      %1528 = vmatprep.mubr.f32.mxu0 0.0
      %1529 = vmatmul.mubr.f32.gmra.mxu0 %v1365
      %v1530 = vpop.f32.mrf.mxu0
      %v1531 = vadd.f32 0.0, %v1530
      %v1532 = vpop.f32.mrf.mxu0
      %1533 = vmatprep.mubr.f32.mxu0 0.0
      %1534 = vmatmul.mubr.f32.gmra.mxu0 %v1368
      %v1535 = vpop.f32.mrf.mxu0
      %v1536 = vadd.f32 0.0, %v1535
      %v1537 = vpop.f32.mrf.mxu0
      %1538 = vmatprep.mubr.f32.mxu0 0.0
      %1539 = vmatmul.mubr.f32.gmra.mxu0 %v1371
      %v1540 = vpop.f32.mrf.mxu0
      %v1541 = vadd.f32 0.0, %v1540
      %v1542 = vpop.f32.mrf.mxu0
      %1543 = vmatprep.mubr.f32.mxu0 0.0
      %1544 = vmatmul.mubr.f32.gmra.mxu0 %v1374
      %v1545 = vpop.f32.mrf.mxu0
      %v1546 = vadd.f32 0.0, %v1545
      %v1547 = vpop.f32.mrf.mxu0
      %1548 = vmatprep.mubr.f32.mxu0 0.0
      %1549 = vmatmul.mubr.f32.gmra.mxu0 %v1377
      %v1550 = vpop.f32.mrf.mxu0
      %v1551 = vadd.f32 0.0, %v1550
      %v1552 = vpop.f32.mrf.mxu0
      %1553 = vmatprep.mubr.f32.mxu0 0.0
      %1554 = vmatmul.mubr.f32.gmra.mxu0 %v1380
      %v1555 = vpop.f32.mrf.mxu0
      %v1556 = vadd.f32 0.0, %v1555
      %v1557 = vpop.f32.mrf.mxu0
      %1558 = vmatprep.mubr.f32.mxu0 0.0
      %1559 = vmatmul.mubr.f32.gmra.mxu0 %v1383
      %v1560 = vpop.f32.mrf.mxu0
      %v1561 = vadd.f32 0.0, %v1560
      %v1562 = vpop.f32.mrf.mxu0
      %1563 = vmatprep.mubr.f32.mxu0 0.0
      %1564 = vmatmul.mubr.f32.gmra.mxu0 %v1386
      %v1565 = vpop.f32.mrf.mxu0
      %v1566 = vadd.f32 0.0, %v1565
      %v1567 = vpop.f32.mrf.mxu0
      %1568 = vmatprep.mubr.f32.mxu0 0.0
      %1569 = vmatmul.mubr.f32.gmra.mxu0 %v1389
      %v1570 = vpop.f32.mrf.mxu0
      %v1571 = vadd.f32 0.0, %v1570
      %v1572 = vpop.f32.mrf.mxu0
      %1573 = vmatprep.mubr.f32.mxu0 0.0
      %1574 = vmatmul.mubr.f32.gmra.mxu0 %v1392
      %v1575 = vpop.f32.mrf.mxu0
      %v1576 = vadd.f32 0.0, %v1575
      %v1577 = vpop.f32.mrf.mxu0
      %1578 = vmatprep.mubr.f32.mxu0 0.0
      %1579 = vmatmul.mubr.f32.gmra.mxu0 %v1395
      %v1580 = vpop.f32.mrf.mxu0
      %v1581 = vadd.f32 0.0, %v1580
      %v1582 = vpop.f32.mrf.mxu0
      %1583 = vmatprep.mubr.f32.mxu0 0.0
      %1584 = vmatmul.mubr.f32.gmra.mxu0 %v1398
      %v1585 = vpop.f32.mrf.mxu0
      %v1586 = vadd.f32 0.0, %v1585
      %v1587 = vpop.f32.mrf.mxu0
      %1588 = vmatprep.mubr.f32.mxu0 0.0
      %1589 = vmatmul.mubr.f32.gmra.mxu0 %v1401
      %v1590 = vpop.f32.mrf.mxu0
      %v1591 = vadd.f32 0.0, %v1590
      %v1592 = vpop.f32.mrf.mxu0
      %1593 = vmatprep.mubr.f32.mxu0 0.0
      %1594 = vmatmul.mubr.f32.gmra.mxu0 %v1404
      %v1595 = vpop.f32.mrf.mxu0
      %v1596 = vadd.f32 0.0, %v1595
      %v1597 = vpop.f32.mrf.mxu0
      %1598 = vmatprep.mubr.f32.mxu0 0.0
      %1599 = vmatmul.mubr.f32.gmra.mxu0 %v1407
      %v1600 = vpop.f32.mrf.mxu0
      %v1601 = vadd.f32 0.0, %v1600
      %v1602 = vpop.f32.mrf.mxu0
      %1603 = vmatprep.mubr.f32.mxu0 0.0
      %1604 = vmatmul.mubr.f32.gmra.mxu0 %v1410
      %v1605 = vpop.f32.mrf.mxu0
      %v1606 = vadd.f32 0.0, %v1605
      %v1607 = vpop.f32.mrf.mxu0
      %1608 = vmatprep.mubr.f32.mxu0 0.0
      %1609 = vmatmul.mubr.f32.gmra.mxu0 %v1413
      %v1610 = vpop.f32.mrf.mxu0
      %v1611 = vadd.f32 0.0, %v1610
      %v1612 = vpop.f32.mrf.mxu0
      %1613 = vmatprep.mubr.f32.mxu0 0.0
      %1614 = vmatmul.mubr.f32.gmra.mxu0 %v1416
      %v1615 = vpop.f32.mrf.mxu0
      %v1616 = vadd.f32 0.0, %v1615
      %v1617 = vpop.f32.mrf.mxu0
      %1618 = vmatprep.mubr.f32.mxu0 0.0
      %1619 = vmatmul.mubr.f32.gmra.mxu0 %v1419
      %v1620 = vpop.f32.mrf.mxu0
      %v1621 = vadd.f32 0.0, %v1620
      %v1622 = vpop.f32.mrf.mxu0
      %1623 = vmatprep.mubr.f32.mxu0 0.0
      %1624 = vmatmul.mubr.f32.gmra.mxu0 %v1422
      %v1625 = vpop.f32.mrf.mxu0
      %v1626 = vadd.f32 0.0, %v1625
      %v1627 = vpop.f32.mrf.mxu0
      %1628 = vmatprep.mubr.f32.mxu0 0.0
      %1629 = vmatmul.mubr.f32.gmra.mxu0 %v1425
      %v1630 = vpop.f32.mrf.mxu0
      %v1631 = vadd.f32 0.0, %v1630
      %v1632 = vpop.f32.mrf.mxu0
      %1633 = vmatprep.mubr.f32.mxu0 0.0
      %1634 = vmatmul.mubr.f32.gmra.mxu0 %v1428
      %v1635 = vpop.f32.mrf.mxu0
      %v1636 = vadd.f32 0.0, %v1635
      %v1637 = vpop.f32.mrf.mxu0
      %1638 = vmatprep.mubr.f32.mxu0 0.0
      %1639 = vmatmul.mubr.f32.gmra.mxu0 %v1431
      %v1640 = vpop.f32.mrf.mxu0
      %v1641 = vadd.f32 0.0, %v1640
      %v1642 = vpop.f32.mrf.mxu0
      %1643 = vmatprep.mubr.f32.mxu0 0.0
      %1644 = vmatmul.mubr.f32.gmra.mxu0 %v1434
      %v1645 = vpop.f32.mrf.mxu0
      %v1646 = vadd.f32 0.0, %v1645
      %v1647 = vpop.f32.mrf.mxu0
      %1648 = vmatprep.mubr.f32.mxu0 0.0
      %1649 = vmatmul.mubr.f32.gmra.mxu0 %v1437
      %v1650 = vpop.f32.mrf.mxu0
      %v1651 = vadd.f32 0.0, %v1650
      %v1652 = vpop.f32.mrf.mxu0
      %1653 = vmatprep.mubr.f32.mxu0 0.0
      %1654 = vmatmul.mubr.f32.gmra.mxu0 %v1440
      %v1655 = vpop.f32.mrf.mxu0
      %v1656 = vadd.f32 0.0, %v1655
      %v1657 = vpop.f32.mrf.mxu0
      %1658 = vmatprep.mubr.f32.mxu0 0.0
      %1659 = vmatmul.mubr.f32.gmra.mxu0 %v1443
      %v1660 = vpop.f32.mrf.mxu0
      %v1661 = vadd.f32 0.0, %v1660
      %v1662 = vpop.f32.mrf.mxu0
      %1663 = vmatprep.mubr.f32.mxu0 0.0
      %1664 = vmatmul.mubr.f32.gmra.mxu0 %v1446
      %v1665 = vpop.f32.mrf.mxu0
      %v1666 = vadd.f32 0.0, %v1665
      %v1667 = vpop.f32.mrf.mxu0
      %1668 = vmatprep.mubr.f32.mxu0 0.0
      %1669 = vmatmul.mubr.f32.gmra.mxu0 %v1449
      %v1670 = vpop.f32.mrf.mxu0
      %v1671 = vadd.f32 0.0, %v1670
      %v1672 = vpop.f32.mrf.mxu0
      %1673 = vmatprep.mubr.f32.mxu0 0.0
      %1674 = vmatmul.mubr.f32.gmra.mxu0 %v1452
      %v1675 = vpop.f32.mrf.mxu0
      %v1676 = vadd.f32 0.0, %v1675
      %v1677 = vpop.f32.mrf.mxu0
      %1678 = vdwg.mxu0
      %v1679 = vadd.f32 %v1284, %v1521
      %v1680 = vadd.f32 %v1285, %v1526
      %v1681 = vadd.f32 %v1286, %v1531
      %v1682 = vadd.f32 %v1287, %v1536
      %v1683 = vadd.f32 %v1288, %v1541
      %v1684 = vadd.f32 %v1289, %v1546
      %v1685 = vadd.f32 %v1290, %v1551
      %v1686 = vadd.f32 %v1291, %v1556
      %v1687 = vadd.f32 %v1292, %v1561
      %v1688 = vadd.f32 %v1293, %v1566
      %v1689 = vadd.f32 %v1294, %v1571
      %v1690 = vadd.f32 %v1295, %v1576
      %v1691 = vadd.f32 %v1296, %v1581
      %v1692 = vadd.f32 %v1297, %v1586
      %v1693 = vadd.f32 %v1298, %v1591
      %v1694 = vadd.f32 %v1299, %v1596
      %v1695 = vadd.f32 %v1300, %v1601
      %v1696 = vadd.f32 %v1301, %v1606
      %v1697 = vadd.f32 %v1302, %v1611
      %v1698 = vadd.f32 %v1303, %v1616
      %v1699 = vadd.f32 %v1304, %v1621
      %v1700 = vadd.f32 %v1305, %v1626
      %v1701 = vadd.f32 %v1306, %v1631
      %v1702 = vadd.f32 %v1307, %v1636
      %v1703 = vadd.f32 %v1308, %v1641
      %v1704 = vadd.f32 %v1309, %v1646
      %v1705 = vadd.f32 %v1310, %v1651
      %v1706 = vadd.f32 %v1311, %v1656
      %v1707 = vadd.f32 %v1312, %v1661
      %v1708 = vadd.f32 %v1313, %v1666
      %v1709 = vadd.f32 %v1314, %v1671
      %v1710 = vadd.f32 %v1315, %v1676
      %v1711 = vld [vmem:[%s1316 + $0x1] sm:$0xff]
      %v1712 = vld [vmem:[%s1316 + $0x9] sm:$0xff]
      %v1713 = vld [vmem:[%s1316 + $0x19] sm:$0xff]
      %v1714 = vld [vmem:[%s1316 + $0x21] sm:$0xff]
      %v1715 = vld [vmem:[%s1316 + $0x31] sm:$0xff]
      %v1716 = vld [vmem:[%s1316 + $0x39] sm:$0xff]
      %v1717 = vld [vmem:[%s1316 + $0x49] sm:$0xff]
      %v1718 = vld [vmem:[%s1316 + $0x51] sm:$0xff]
      %v1719 = vld [vmem:[%s1316 + $0x61] sm:$0xff]
      %v1720 = vld [vmem:[%s1316 + $0x69] sm:$0xff]
      %v1721 = vld [vmem:[%s1316 + $0x79] sm:$0xff]
      %v1722 = vld [vmem:[%s1316 + $0x81] sm:$0xff]
      %v1723 = vld [vmem:[%s1316 + $0x91] sm:$0xff]
      %v1724 = vld [vmem:[%s1316 + $0x99] sm:$0xff]
      %v1725 = vld [vmem:[%s1316 + $0xa9] sm:$0xff]
      %v1726 = vld [vmem:[%s1316 + $0xb1] sm:$0xff]
      %v1727 = vld [vmem:[%s1316 + $0xc1] sm:$0xff]
      %v1728 = vld [vmem:[%s1316 + $0xc9] sm:$0xff]
      %v1729 = vld [vmem:[%s1316 + $0xd9] sm:$0xff]
      %v1730 = vld [vmem:[%s1316 + $0xe1] sm:$0xff]
      %v1731 = vld [vmem:[%s1316 + $0xf1] sm:$0xff]
      %v1732 = vld [vmem:[%s1316 + $0xf9] sm:$0xff]
      %v1733 = vld [vmem:[%s1316 + $0x109] sm:$0xff]
      %v1734 = vld [vmem:[%s1316 + $0x111] sm:$0xff]
      %v1735 = vld [vmem:[%s1316 + $0x121] sm:$0xff]
      %v1736 = vld [vmem:[%s1316 + $0x129] sm:$0xff]
      %v1737 = vld [vmem:[%s1316 + $0x139] sm:$0xff]
      %v1738 = vld [vmem:[%s1316 + $0x141] sm:$0xff]
      %v1739 = vld [vmem:[%s1316 + $0x151] sm:$0xff]
      %v1740 = vld [vmem:[%s1316 + $0x159] sm:$0xff]
      %v1741 = vld [vmem:[%s1316 + $0x169] sm:$0xff]
      %v1742 = vld [vmem:[%s1316 + $0x171] sm:$0xff]
      %s1743 = scalar_lea.vmem %s1, 256
      %v1744 = vld [vmem:[%s1743] sm:$0xff]
      %v1745 = vld [vmem:[%s1743 + $0x8] sm:$0xff]
      %v1746 = vld [vmem:[%s1743 + $0x10] sm:$0xff]
      %v1747 = vld [vmem:[%s1743 + $0x18] sm:$0xff]
      %v1748 = vld [vmem:[%s1743 + $0x20] sm:$0xff]
      %v1749 = vld [vmem:[%s1743 + $0x28] sm:$0xff]
      %v1750 = vld [vmem:[%s1743 + $0x30] sm:$0xff]
      %v1751 = vld [vmem:[%s1743 + $0x38] sm:$0xff]
      %v1753 = vsel %vm279, %v1711, 0
      %v1756 = vsel %vm279, %v1712, 0
      %v1759 = vsel %vm279, %v1713, 0
      %v1762 = vsel %vm279, %v1714, 0
      %v1765 = vsel %vm279, %v1715, 0
      %v1768 = vsel %vm279, %v1716, 0
      %v1771 = vsel %vm279, %v1717, 0
      %v1774 = vsel %vm279, %v1718, 0
      %v1777 = vsel %vm279, %v1719, 0
      %v1780 = vsel %vm279, %v1720, 0
      %v1783 = vsel %vm279, %v1721, 0
      %v1786 = vsel %vm279, %v1722, 0
      %v1789 = vsel %vm279, %v1723, 0
      %v1792 = vsel %vm279, %v1724, 0
      %v1795 = vsel %vm279, %v1725, 0
      %v1798 = vsel %vm279, %v1726, 0
      %v1801 = vsel %vm279, %v1727, 0
      %v1804 = vsel %vm279, %v1728, 0
      %v1807 = vsel %vm279, %v1729, 0
      %v1810 = vsel %vm279, %v1730, 0
      %v1813 = vsel %vm279, %v1731, 0
      %v1816 = vsel %vm279, %v1732, 0
      %v1819 = vsel %vm279, %v1733, 0
      %v1822 = vsel %vm279, %v1734, 0
      %v1825 = vsel %vm279, %v1735, 0
      %v1828 = vsel %vm279, %v1736, 0
      %v1831 = vsel %vm279, %v1737, 0
      %v1834 = vsel %vm279, %v1738, 0
      %v1837 = vsel %vm279, %v1739, 0
      %v1840 = vsel %vm279, %v1740, 0
      %v1843 = vsel %vm279, %v1741, 0
      %v1846 = vsel %vm279, %v1742, 0
      %1848 = vmatprep.subr.mxu0 0.0
      %1849 = vmatpush1.msra.mxu0 0.0
      %1850 = vmatprep.subr.mxu0 0.0
      %1851 = vmatpush1.msra.mxu0 0.0
      %1852 = vmatprep.subr.mxu0 0.0
      %1853 = vmatpush1.msra.mxu0 0.0
      %1854 = vmatprep.subr.mxu0 0.0
      %1855 = vmatpush1.msra.mxu0 0.0
      %1856 = vmatprep.subr.mxu0 0.0
      %1857 = vmatpush1.msra.mxu0 0.0
      %1858 = vmatprep.subr.mxu0 0.0
      %1859 = vmatpush1.msra.mxu0 0.0
      %1860 = vmatprep.subr.mxu0 0.0
      %1861 = vmatpush1.msra.mxu0 0.0
      %1862 = vmatprep.subr.mxu0 0.0
      %1863 = vmatpush1.msra.mxu0 0.0
      %1864 = vmatprep.subr.mxu0 0.0
      %1865 = vmatpush1.msra.mxu0 %v1751
      %1866 = vmatprep.subr.mxu0 0.0
      %1867 = vmatpush1.msra.mxu0 %v1750
      %1868 = vmatprep.subr.mxu0 0.0
      %1869 = vmatpush1.msra.mxu0 %v1749
      %1870 = vmatprep.subr.mxu0 0.0
      %1871 = vmatpush1.msra.mxu0 %v1748
      %1872 = vmatprep.subr.mxu0 0.0
      %1873 = vmatpush1.msra.mxu0 %v1747
      %1874 = vmatprep.subr.mxu0 0.0
      %1875 = vmatpush1.msra.mxu0 %v1746
      %1876 = vmatprep.subr.mxu0 0.0
      %1877 = vmatpush1.msra.mxu0 %v1745
      %1878 = vmatprep.subr.mxu0 0.0
      %1879 = vmatpush1.msra.mxu0 %v1744
      %1880 = vmatprep.subr.mxu0 0.0
      %1881 = vmatpush2.msra.mxu0 0.0
      %1882 = vmatprep.subr.mxu0 0.0
      %1883 = vmatpush2.msra.mxu0 0.0
      %1884 = vmatprep.subr.mxu0 0.0
      %1885 = vmatpush2.msra.mxu0 0.0
      %1886 = vmatprep.subr.mxu0 0.0
      %1887 = vmatpush2.msra.mxu0 0.0
      %1888 = vmatprep.subr.mxu0 0.0
      %1889 = vmatpush2.msra.mxu0 0.0
      %1890 = vmatprep.subr.mxu0 0.0
      %1891 = vmatpush2.msra.mxu0 0.0
      %1892 = vmatprep.subr.mxu0 0.0
      %1893 = vmatpush2.msra.mxu0 0.0
      %1894 = vmatprep.subr.mxu0 0.0
      %1895 = vmatpush2.msra.mxu0 0.0
      %1896 = vmatprep.subr.mxu0 0.0
      %1897 = vmatpush2.msra.mxu0 0.0
      %1898 = vmatprep.subr.mxu0 0.0
      %1899 = vmatpush2.msra.mxu0 0.0
      %1900 = vmatprep.subr.mxu0 0.0
      %1901 = vmatpush2.msra.mxu0 0.0
      %1902 = vmatprep.subr.mxu0 0.0
      %1903 = vmatpush2.msra.mxu0 0.0
      %1904 = vmatprep.subr.mxu0 0.0
      %1905 = vmatpush2.msra.mxu0 0.0
      %1906 = vmatprep.subr.mxu0 0.0
      %1907 = vmatpush2.msra.mxu0 0.0
      %1908 = vmatprep.subr.mxu0 0.0
      %1909 = vmatpush2.msra.mxu0 0.0
      %1910 = vmatprep.subr.mxu0 0.0
      %1911 = vmatpush2.msra.mxu0 0.0
      %1912 = vmatprep.mubr.f32.mxu0 0.0
      %1913 = vmatmul.mubr.f32.gmra.mxu0 %v1753
      %v1914 = vpop.f32.mrf.mxu0
      %v1915 = vadd.f32 0.0, %v1914
      %v1916 = vpop.f32.mrf.mxu0
      %1917 = vmatprep.mubr.f32.mxu0 0.0
      %1918 = vmatmul.mubr.f32.gmra.mxu0 %v1756
      %v1919 = vpop.f32.mrf.mxu0
      %v1920 = vadd.f32 0.0, %v1919
      %v1921 = vpop.f32.mrf.mxu0
      %1922 = vmatprep.mubr.f32.mxu0 0.0
      %1923 = vmatmul.mubr.f32.gmra.mxu0 %v1759
      %v1924 = vpop.f32.mrf.mxu0
      %v1925 = vadd.f32 0.0, %v1924
      %v1926 = vpop.f32.mrf.mxu0
      %1927 = vmatprep.mubr.f32.mxu0 0.0
      %1928 = vmatmul.mubr.f32.gmra.mxu0 %v1762
      %v1929 = vpop.f32.mrf.mxu0
      %v1930 = vadd.f32 0.0, %v1929
      %v1931 = vpop.f32.mrf.mxu0
      %1932 = vmatprep.mubr.f32.mxu0 0.0
      %1933 = vmatmul.mubr.f32.gmra.mxu0 %v1765
      %v1934 = vpop.f32.mrf.mxu0
      %v1935 = vadd.f32 0.0, %v1934
      %v1936 = vpop.f32.mrf.mxu0
      %1937 = vmatprep.mubr.f32.mxu0 0.0
      %1938 = vmatmul.mubr.f32.gmra.mxu0 %v1768
      %v1939 = vpop.f32.mrf.mxu0
      %v1940 = vadd.f32 0.0, %v1939
      %v1941 = vpop.f32.mrf.mxu0
      %1942 = vmatprep.mubr.f32.mxu0 0.0
      %1943 = vmatmul.mubr.f32.gmra.mxu0 %v1771
      %v1944 = vpop.f32.mrf.mxu0
      %v1945 = vadd.f32 0.0, %v1944
      %v1946 = vpop.f32.mrf.mxu0
      %1947 = vmatprep.mubr.f32.mxu0 0.0
      %1948 = vmatmul.mubr.f32.gmra.mxu0 %v1774
      %v1949 = vpop.f32.mrf.mxu0
      %v1950 = vadd.f32 0.0, %v1949
      %v1951 = vpop.f32.mrf.mxu0
      %1952 = vmatprep.mubr.f32.mxu0 0.0
      %1953 = vmatmul.mubr.f32.gmra.mxu0 %v1777
      %v1954 = vpop.f32.mrf.mxu0
      %v1955 = vadd.f32 0.0, %v1954
      %v1956 = vpop.f32.mrf.mxu0
      %1957 = vmatprep.mubr.f32.mxu0 0.0
      %1958 = vmatmul.mubr.f32.gmra.mxu0 %v1780
      %v1959 = vpop.f32.mrf.mxu0
      %v1960 = vadd.f32 0.0, %v1959
      %v1961 = vpop.f32.mrf.mxu0
      %1962 = vmatprep.mubr.f32.mxu0 0.0
      %1963 = vmatmul.mubr.f32.gmra.mxu0 %v1783
      %v1964 = vpop.f32.mrf.mxu0
      %v1965 = vadd.f32 0.0, %v1964
      %v1966 = vpop.f32.mrf.mxu0
      %1967 = vmatprep.mubr.f32.mxu0 0.0
      %1968 = vmatmul.mubr.f32.gmra.mxu0 %v1786
      %v1969 = vpop.f32.mrf.mxu0
      %v1970 = vadd.f32 0.0, %v1969
      %v1971 = vpop.f32.mrf.mxu0
      %1972 = vmatprep.mubr.f32.mxu0 0.0
      %1973 = vmatmul.mubr.f32.gmra.mxu0 %v1789
      %v1974 = vpop.f32.mrf.mxu0
      %v1975 = vadd.f32 0.0, %v1974
      %v1976 = vpop.f32.mrf.mxu0
      %1977 = vmatprep.mubr.f32.mxu0 0.0
      %1978 = vmatmul.mubr.f32.gmra.mxu0 %v1792
      %v1979 = vpop.f32.mrf.mxu0
      %v1980 = vadd.f32 0.0, %v1979
      %v1981 = vpop.f32.mrf.mxu0
      %1982 = vmatprep.mubr.f32.mxu0 0.0
      %1983 = vmatmul.mubr.f32.gmra.mxu0 %v1795
      %v1984 = vpop.f32.mrf.mxu0
      %v1985 = vadd.f32 0.0, %v1984
      %v1986 = vpop.f32.mrf.mxu0
      %1987 = vmatprep.mubr.f32.mxu0 0.0
      %1988 = vmatmul.mubr.f32.gmra.mxu0 %v1798
      %v1989 = vpop.f32.mrf.mxu0
      %v1990 = vadd.f32 0.0, %v1989
      %v1991 = vpop.f32.mrf.mxu0
      %1992 = vmatprep.mubr.f32.mxu0 0.0
      %1993 = vmatmul.mubr.f32.gmra.mxu0 %v1801
      %v1994 = vpop.f32.mrf.mxu0
      %v1995 = vadd.f32 0.0, %v1994
      %v1996 = vpop.f32.mrf.mxu0
      %1997 = vmatprep.mubr.f32.mxu0 0.0
      %1998 = vmatmul.mubr.f32.gmra.mxu0 %v1804
      %v1999 = vpop.f32.mrf.mxu0
      %v2000 = vadd.f32 0.0, %v1999
      %v2001 = vpop.f32.mrf.mxu0
      %2002 = vmatprep.mubr.f32.mxu0 0.0
      %2003 = vmatmul.mubr.f32.gmra.mxu0 %v1807
      %v2004 = vpop.f32.mrf.mxu0
      %v2005 = vadd.f32 0.0, %v2004
      %v2006 = vpop.f32.mrf.mxu0
      %2007 = vmatprep.mubr.f32.mxu0 0.0
      %2008 = vmatmul.mubr.f32.gmra.mxu0 %v1810
      %v2009 = vpop.f32.mrf.mxu0
      %v2010 = vadd.f32 0.0, %v2009
      %v2011 = vpop.f32.mrf.mxu0
      %2012 = vmatprep.mubr.f32.mxu0 0.0
      %2013 = vmatmul.mubr.f32.gmra.mxu0 %v1813
      %v2014 = vpop.f32.mrf.mxu0
      %v2015 = vadd.f32 0.0, %v2014
      %v2016 = vpop.f32.mrf.mxu0
      %2017 = vmatprep.mubr.f32.mxu0 0.0
      %2018 = vmatmul.mubr.f32.gmra.mxu0 %v1816
      %v2019 = vpop.f32.mrf.mxu0
      %v2020 = vadd.f32 0.0, %v2019
      %v2021 = vpop.f32.mrf.mxu0
      %2022 = vmatprep.mubr.f32.mxu0 0.0
      %2023 = vmatmul.mubr.f32.gmra.mxu0 %v1819
      %v2024 = vpop.f32.mrf.mxu0
      %v2025 = vadd.f32 0.0, %v2024
      %v2026 = vpop.f32.mrf.mxu0
      %2027 = vmatprep.mubr.f32.mxu0 0.0
      %2028 = vmatmul.mubr.f32.gmra.mxu0 %v1822
      %v2029 = vpop.f32.mrf.mxu0
      %v2030 = vadd.f32 0.0, %v2029
      %v2031 = vpop.f32.mrf.mxu0
      %2032 = vmatprep.mubr.f32.mxu0 0.0
      %2033 = vmatmul.mubr.f32.gmra.mxu0 %v1825
      %v2034 = vpop.f32.mrf.mxu0
      %v2035 = vadd.f32 0.0, %v2034
      %v2036 = vpop.f32.mrf.mxu0
      %2037 = vmatprep.mubr.f32.mxu0 0.0
      %2038 = vmatmul.mubr.f32.gmra.mxu0 %v1828
      %v2039 = vpop.f32.mrf.mxu0
      %v2040 = vadd.f32 0.0, %v2039
      %v2041 = vpop.f32.mrf.mxu0
      %2042 = vmatprep.mubr.f32.mxu0 0.0
      %2043 = vmatmul.mubr.f32.gmra.mxu0 %v1831
      %v2044 = vpop.f32.mrf.mxu0
      %v2045 = vadd.f32 0.0, %v2044
      %v2046 = vpop.f32.mrf.mxu0
      %2047 = vmatprep.mubr.f32.mxu0 0.0
      %2048 = vmatmul.mubr.f32.gmra.mxu0 %v1834
      %v2049 = vpop.f32.mrf.mxu0
      %v2050 = vadd.f32 0.0, %v2049
      %v2051 = vpop.f32.mrf.mxu0
      %2052 = vmatprep.mubr.f32.mxu0 0.0
      %2053 = vmatmul.mubr.f32.gmra.mxu0 %v1837
      %v2054 = vpop.f32.mrf.mxu0
      %v2055 = vadd.f32 0.0, %v2054
      %v2056 = vpop.f32.mrf.mxu0
      %2057 = vmatprep.mubr.f32.mxu0 0.0
      %2058 = vmatmul.mubr.f32.gmra.mxu0 %v1840
      %v2059 = vpop.f32.mrf.mxu0
      %v2060 = vadd.f32 0.0, %v2059
      %v2061 = vpop.f32.mrf.mxu0
      %2062 = vmatprep.mubr.f32.mxu0 0.0
      %2063 = vmatmul.mubr.f32.gmra.mxu0 %v1843
      %v2064 = vpop.f32.mrf.mxu0
      %v2065 = vadd.f32 0.0, %v2064
      %v2066 = vpop.f32.mrf.mxu0
      %2067 = vmatprep.mubr.f32.mxu0 0.0
      %2068 = vmatmul.mubr.f32.gmra.mxu0 %v1846
      %v2069 = vpop.f32.mrf.mxu0
      %v2070 = vadd.f32 0.0, %v2069
      %v2071 = vpop.f32.mrf.mxu0
      %2072 = vdwg.mxu0
      %v2073 = vadd.f32 %v1679, %v1915
      %v2074 = vadd.f32 %v1680, %v1920
      %v2075 = vadd.f32 %v1681, %v1925
      %v2076 = vadd.f32 %v1682, %v1930
      %v2077 = vadd.f32 %v1683, %v1935
      %v2078 = vadd.f32 %v1684, %v1940
      %v2079 = vadd.f32 %v1685, %v1945
      %v2080 = vadd.f32 %v1686, %v1950
      %v2081 = vadd.f32 %v1687, %v1955
      %v2082 = vadd.f32 %v1688, %v1960
      %v2083 = vadd.f32 %v1689, %v1965
      %v2084 = vadd.f32 %v1690, %v1970
      %v2085 = vadd.f32 %v1691, %v1975
      %v2086 = vadd.f32 %v1692, %v1980
      %v2087 = vadd.f32 %v1693, %v1985
      %v2088 = vadd.f32 %v1694, %v1990
      %v2089 = vadd.f32 %v1695, %v1995
      %v2090 = vadd.f32 %v1696, %v2000
      %v2091 = vadd.f32 %v1697, %v2005
      %v2092 = vadd.f32 %v1698, %v2010
      %v2093 = vadd.f32 %v1699, %v2015
      %v2094 = vadd.f32 %v1700, %v2020
      %v2095 = vadd.f32 %v1701, %v2025
      %v2096 = vadd.f32 %v1702, %v2030
      %v2097 = vadd.f32 %v1703, %v2035
      %v2098 = vadd.f32 %v1704, %v2040
      %v2099 = vadd.f32 %v1705, %v2045
      %v2100 = vadd.f32 %v1706, %v2050
      %v2101 = vadd.f32 %v1707, %v2055
      %v2102 = vadd.f32 %v1708, %v2060
      %v2103 = vadd.f32 %v1709, %v2065
      %v2104 = vadd.f32 %v1710, %v2070
      %v2105 = vld [vmem:[%s1316 + $0x2] sm:$0xff]
      %v2106 = vld [vmem:[%s1316 + $0xa] sm:$0xff]
      %v2107 = vld [vmem:[%s1316 + $0x1a] sm:$0xff]
      %v2108 = vld [vmem:[%s1316 + $0x22] sm:$0xff]
      %v2109 = vld [vmem:[%s1316 + $0x32] sm:$0xff]
      %v2110 = vld [vmem:[%s1316 + $0x3a] sm:$0xff]
      %v2111 = vld [vmem:[%s1316 + $0x4a] sm:$0xff]
      %v2112 = vld [vmem:[%s1316 + $0x52] sm:$0xff]
      %v2113 = vld [vmem:[%s1316 + $0x62] sm:$0xff]
      %v2114 = vld [vmem:[%s1316 + $0x6a] sm:$0xff]
      %v2115 = vld [vmem:[%s1316 + $0x7a] sm:$0xff]
      %v2116 = vld [vmem:[%s1316 + $0x82] sm:$0xff]
      %v2117 = vld [vmem:[%s1316 + $0x92] sm:$0xff]
      %v2118 = vld [vmem:[%s1316 + $0x9a] sm:$0xff]
      %v2119 = vld [vmem:[%s1316 + $0xaa] sm:$0xff]
      %v2120 = vld [vmem:[%s1316 + $0xb2] sm:$0xff]
      %v2121 = vld [vmem:[%s1316 + $0xc2] sm:$0xff]
      %v2122 = vld [vmem:[%s1316 + $0xca] sm:$0xff]
      %v2123 = vld [vmem:[%s1316 + $0xda] sm:$0xff]
      %v2124 = vld [vmem:[%s1316 + $0xe2] sm:$0xff]
      %v2125 = vld [vmem:[%s1316 + $0xf2] sm:$0xff]
      %v2126 = vld [vmem:[%s1316 + $0xfa] sm:$0xff]
      %v2127 = vld [vmem:[%s1316 + $0x10a] sm:$0xff]
      %v2128 = vld [vmem:[%s1316 + $0x112] sm:$0xff]
      %v2129 = vld [vmem:[%s1316 + $0x122] sm:$0xff]
      %v2130 = vld [vmem:[%s1316 + $0x12a] sm:$0xff]
      %v2131 = vld [vmem:[%s1316 + $0x13a] sm:$0xff]
      %v2132 = vld [vmem:[%s1316 + $0x142] sm:$0xff]
      %v2133 = vld [vmem:[%s1316 + $0x152] sm:$0xff]
      %v2134 = vld [vmem:[%s1316 + $0x15a] sm:$0xff]
      %v2135 = vld [vmem:[%s1316 + $0x16a] sm:$0xff]
      %v2136 = vld [vmem:[%s1316 + $0x172] sm:$0xff]
      %s2137 = scalar_lea.vmem %s1, 320
      %v2138 = vld [vmem:[%s2137] sm:$0xff]
      %v2139 = vld [vmem:[%s2137 + $0x8] sm:$0xff]
      %v2140 = vld [vmem:[%s2137 + $0x10] sm:$0xff]
      %v2141 = vld [vmem:[%s2137 + $0x18] sm:$0xff]
      %v2142 = vld [vmem:[%s2137 + $0x20] sm:$0xff]
      %v2143 = vld [vmem:[%s2137 + $0x28] sm:$0xff]
      %v2144 = vld [vmem:[%s2137 + $0x30] sm:$0xff]
      %v2145 = vld [vmem:[%s2137 + $0x38] sm:$0xff]
      %v2147 = vsel %vm279, %v2105, 0
      %v2150 = vsel %vm279, %v2106, 0
      %v2153 = vsel %vm279, %v2107, 0
      %v2156 = vsel %vm279, %v2108, 0
      %v2159 = vsel %vm279, %v2109, 0
      %v2162 = vsel %vm279, %v2110, 0
      %v2165 = vsel %vm279, %v2111, 0
      %v2168 = vsel %vm279, %v2112, 0
      %v2171 = vsel %vm279, %v2113, 0
      %v2174 = vsel %vm279, %v2114, 0
      %v2177 = vsel %vm279, %v2115, 0
      %v2180 = vsel %vm279, %v2116, 0
      %v2183 = vsel %vm279, %v2117, 0
      %v2186 = vsel %vm279, %v2118, 0
      %v2189 = vsel %vm279, %v2119, 0
      %v2192 = vsel %vm279, %v2120, 0
      %v2195 = vsel %vm279, %v2121, 0
      %v2198 = vsel %vm279, %v2122, 0
      %v2201 = vsel %vm279, %v2123, 0
      %v2204 = vsel %vm279, %v2124, 0
      %v2207 = vsel %vm279, %v2125, 0
      %v2210 = vsel %vm279, %v2126, 0
      %v2213 = vsel %vm279, %v2127, 0
      %v2216 = vsel %vm279, %v2128, 0
      %v2219 = vsel %vm279, %v2129, 0
      %v2222 = vsel %vm279, %v2130, 0
      %v2225 = vsel %vm279, %v2131, 0
      %v2228 = vsel %vm279, %v2132, 0
      %v2231 = vsel %vm279, %v2133, 0
      %v2234 = vsel %vm279, %v2134, 0
      %v2237 = vsel %vm279, %v2135, 0
      %v2240 = vsel %vm279, %v2136, 0
      %2242 = vmatprep.subr.mxu0 0.0
      %2243 = vmatpush1.msra.mxu0 0.0
      %2244 = vmatprep.subr.mxu0 0.0
      %2245 = vmatpush1.msra.mxu0 0.0
      %2246 = vmatprep.subr.mxu0 0.0
      %2247 = vmatpush1.msra.mxu0 0.0
      %2248 = vmatprep.subr.mxu0 0.0
      %2249 = vmatpush1.msra.mxu0 0.0
      %2250 = vmatprep.subr.mxu0 0.0
      %2251 = vmatpush1.msra.mxu0 0.0
      %2252 = vmatprep.subr.mxu0 0.0
      %2253 = vmatpush1.msra.mxu0 0.0
      %2254 = vmatprep.subr.mxu0 0.0
      %2255 = vmatpush1.msra.mxu0 0.0
      %2256 = vmatprep.subr.mxu0 0.0
      %2257 = vmatpush1.msra.mxu0 0.0
      %2258 = vmatprep.subr.mxu0 0.0
      %2259 = vmatpush1.msra.mxu0 %v2145
      %2260 = vmatprep.subr.mxu0 0.0
      %2261 = vmatpush1.msra.mxu0 %v2144
      %2262 = vmatprep.subr.mxu0 0.0
      %2263 = vmatpush1.msra.mxu0 %v2143
      %2264 = vmatprep.subr.mxu0 0.0
      %2265 = vmatpush1.msra.mxu0 %v2142
      %2266 = vmatprep.subr.mxu0 0.0
      %2267 = vmatpush1.msra.mxu0 %v2141
      %2268 = vmatprep.subr.mxu0 0.0
      %2269 = vmatpush1.msra.mxu0 %v2140
      %2270 = vmatprep.subr.mxu0 0.0
      %2271 = vmatpush1.msra.mxu0 %v2139
      %2272 = vmatprep.subr.mxu0 0.0
      %2273 = vmatpush1.msra.mxu0 %v2138
      %2274 = vmatprep.subr.mxu0 0.0
      %2275 = vmatpush2.msra.mxu0 0.0
      %2276 = vmatprep.subr.mxu0 0.0
      %2277 = vmatpush2.msra.mxu0 0.0
      %2278 = vmatprep.subr.mxu0 0.0
      %2279 = vmatpush2.msra.mxu0 0.0
      %2280 = vmatprep.subr.mxu0 0.0
      %2281 = vmatpush2.msra.mxu0 0.0
      %2282 = vmatprep.subr.mxu0 0.0
      %2283 = vmatpush2.msra.mxu0 0.0
      %2284 = vmatprep.subr.mxu0 0.0
      %2285 = vmatpush2.msra.mxu0 0.0
      %2286 = vmatprep.subr.mxu0 0.0
      %2287 = vmatpush2.msra.mxu0 0.0
      %2288 = vmatprep.subr.mxu0 0.0
      %2289 = vmatpush2.msra.mxu0 0.0
      %2290 = vmatprep.subr.mxu0 0.0
      %2291 = vmatpush2.msra.mxu0 0.0
      %2292 = vmatprep.subr.mxu0 0.0
      %2293 = vmatpush2.msra.mxu0 0.0
      %2294 = vmatprep.subr.mxu0 0.0
      %2295 = vmatpush2.msra.mxu0 0.0
      %2296 = vmatprep.subr.mxu0 0.0
      %2297 = vmatpush2.msra.mxu0 0.0
      %2298 = vmatprep.subr.mxu0 0.0
      %2299 = vmatpush2.msra.mxu0 0.0
      %2300 = vmatprep.subr.mxu0 0.0
      %2301 = vmatpush2.msra.mxu0 0.0
      %2302 = vmatprep.subr.mxu0 0.0
      %2303 = vmatpush2.msra.mxu0 0.0
      %2304 = vmatprep.subr.mxu0 0.0
      %2305 = vmatpush2.msra.mxu0 0.0
      %2306 = vmatprep.mubr.f32.mxu0 0.0
      %2307 = vmatmul.mubr.f32.gmra.mxu0 %v2147
      %v2308 = vpop.f32.mrf.mxu0
      %v2309 = vadd.f32 0.0, %v2308
      %v2310 = vpop.f32.mrf.mxu0
      %2311 = vmatprep.mubr.f32.mxu0 0.0
      %2312 = vmatmul.mubr.f32.gmra.mxu0 %v2150
      %v2313 = vpop.f32.mrf.mxu0
      %v2314 = vadd.f32 0.0, %v2313
      %v2315 = vpop.f32.mrf.mxu0
      %2316 = vmatprep.mubr.f32.mxu0 0.0
      %2317 = vmatmul.mubr.f32.gmra.mxu0 %v2153
      %v2318 = vpop.f32.mrf.mxu0
      %v2319 = vadd.f32 0.0, %v2318
      %v2320 = vpop.f32.mrf.mxu0
      %2321 = vmatprep.mubr.f32.mxu0 0.0
      %2322 = vmatmul.mubr.f32.gmra.mxu0 %v2156
      %v2323 = vpop.f32.mrf.mxu0
      %v2324 = vadd.f32 0.0, %v2323
      %v2325 = vpop.f32.mrf.mxu0
      %2326 = vmatprep.mubr.f32.mxu0 0.0
      %2327 = vmatmul.mubr.f32.gmra.mxu0 %v2159
      %v2328 = vpop.f32.mrf.mxu0
      %v2329 = vadd.f32 0.0, %v2328
      %v2330 = vpop.f32.mrf.mxu0
      %2331 = vmatprep.mubr.f32.mxu0 0.0
      %2332 = vmatmul.mubr.f32.gmra.mxu0 %v2162
      %v2333 = vpop.f32.mrf.mxu0
      %v2334 = vadd.f32 0.0, %v2333
      %v2335 = vpop.f32.mrf.mxu0
      %2336 = vmatprep.mubr.f32.mxu0 0.0
      %2337 = vmatmul.mubr.f32.gmra.mxu0 %v2165
      %v2338 = vpop.f32.mrf.mxu0
      %v2339 = vadd.f32 0.0, %v2338
      %v2340 = vpop.f32.mrf.mxu0
      %2341 = vmatprep.mubr.f32.mxu0 0.0
      %2342 = vmatmul.mubr.f32.gmra.mxu0 %v2168
      %v2343 = vpop.f32.mrf.mxu0
      %v2344 = vadd.f32 0.0, %v2343
      %v2345 = vpop.f32.mrf.mxu0
      %2346 = vmatprep.mubr.f32.mxu0 0.0
      %2347 = vmatmul.mubr.f32.gmra.mxu0 %v2171
      %v2348 = vpop.f32.mrf.mxu0
      %v2349 = vadd.f32 0.0, %v2348
      %v2350 = vpop.f32.mrf.mxu0
      %2351 = vmatprep.mubr.f32.mxu0 0.0
      %2352 = vmatmul.mubr.f32.gmra.mxu0 %v2174
      %v2353 = vpop.f32.mrf.mxu0
      %v2354 = vadd.f32 0.0, %v2353
      %v2355 = vpop.f32.mrf.mxu0
      %2356 = vmatprep.mubr.f32.mxu0 0.0
      %2357 = vmatmul.mubr.f32.gmra.mxu0 %v2177
      %v2358 = vpop.f32.mrf.mxu0
      %v2359 = vadd.f32 0.0, %v2358
      %v2360 = vpop.f32.mrf.mxu0
      %2361 = vmatprep.mubr.f32.mxu0 0.0
      %2362 = vmatmul.mubr.f32.gmra.mxu0 %v2180
      %v2363 = vpop.f32.mrf.mxu0
      %v2364 = vadd.f32 0.0, %v2363
      %v2365 = vpop.f32.mrf.mxu0
      %2366 = vmatprep.mubr.f32.mxu0 0.0
      %2367 = vmatmul.mubr.f32.gmra.mxu0 %v2183
      %v2368 = vpop.f32.mrf.mxu0
      %v2369 = vadd.f32 0.0, %v2368
      %v2370 = vpop.f32.mrf.mxu0
      %2371 = vmatprep.mubr.f32.mxu0 0.0
      %2372 = vmatmul.mubr.f32.gmra.mxu0 %v2186
      %v2373 = vpop.f32.mrf.mxu0
      %v2374 = vadd.f32 0.0, %v2373
      %v2375 = vpop.f32.mrf.mxu0
      %2376 = vmatprep.mubr.f32.mxu0 0.0
      %2377 = vmatmul.mubr.f32.gmra.mxu0 %v2189
      %v2378 = vpop.f32.mrf.mxu0
      %v2379 = vadd.f32 0.0, %v2378
      %v2380 = vpop.f32.mrf.mxu0
      %2381 = vmatprep.mubr.f32.mxu0 0.0
      %2382 = vmatmul.mubr.f32.gmra.mxu0 %v2192
      %v2383 = vpop.f32.mrf.mxu0
      %v2384 = vadd.f32 0.0, %v2383
      %v2385 = vpop.f32.mrf.mxu0
      %2386 = vmatprep.mubr.f32.mxu0 0.0
      %2387 = vmatmul.mubr.f32.gmra.mxu0 %v2195
      %v2388 = vpop.f32.mrf.mxu0
      %v2389 = vadd.f32 0.0, %v2388
      %v2390 = vpop.f32.mrf.mxu0
      %2391 = vmatprep.mubr.f32.mxu0 0.0
      %2392 = vmatmul.mubr.f32.gmra.mxu0 %v2198
      %v2393 = vpop.f32.mrf.mxu0
      %v2394 = vadd.f32 0.0, %v2393
      %v2395 = vpop.f32.mrf.mxu0
      %2396 = vmatprep.mubr.f32.mxu0 0.0
      %2397 = vmatmul.mubr.f32.gmra.mxu0 %v2201
      %v2398 = vpop.f32.mrf.mxu0
      %v2399 = vadd.f32 0.0, %v2398
      %v2400 = vpop.f32.mrf.mxu0
      %2401 = vmatprep.mubr.f32.mxu0 0.0
      %2402 = vmatmul.mubr.f32.gmra.mxu0 %v2204
      %v2403 = vpop.f32.mrf.mxu0
      %v2404 = vadd.f32 0.0, %v2403
      %v2405 = vpop.f32.mrf.mxu0
      %2406 = vmatprep.mubr.f32.mxu0 0.0
      %2407 = vmatmul.mubr.f32.gmra.mxu0 %v2207
      %v2408 = vpop.f32.mrf.mxu0
      %v2409 = vadd.f32 0.0, %v2408
      %v2410 = vpop.f32.mrf.mxu0
      %2411 = vmatprep.mubr.f32.mxu0 0.0
      %2412 = vmatmul.mubr.f32.gmra.mxu0 %v2210
      %v2413 = vpop.f32.mrf.mxu0
      %v2414 = vadd.f32 0.0, %v2413
      %v2415 = vpop.f32.mrf.mxu0
      %2416 = vmatprep.mubr.f32.mxu0 0.0
      %2417 = vmatmul.mubr.f32.gmra.mxu0 %v2213
      %v2418 = vpop.f32.mrf.mxu0
      %v2419 = vadd.f32 0.0, %v2418
      %v2420 = vpop.f32.mrf.mxu0
      %2421 = vmatprep.mubr.f32.mxu0 0.0
      %2422 = vmatmul.mubr.f32.gmra.mxu0 %v2216
      %v2423 = vpop.f32.mrf.mxu0
      %v2424 = vadd.f32 0.0, %v2423
      %v2425 = vpop.f32.mrf.mxu0
      %2426 = vmatprep.mubr.f32.mxu0 0.0
      %2427 = vmatmul.mubr.f32.gmra.mxu0 %v2219
      %v2428 = vpop.f32.mrf.mxu0
      %v2429 = vadd.f32 0.0, %v2428
      %v2430 = vpop.f32.mrf.mxu0
      %2431 = vmatprep.mubr.f32.mxu0 0.0
      %2432 = vmatmul.mubr.f32.gmra.mxu0 %v2222
      %v2433 = vpop.f32.mrf.mxu0
      %v2434 = vadd.f32 0.0, %v2433
      %v2435 = vpop.f32.mrf.mxu0
      %2436 = vmatprep.mubr.f32.mxu0 0.0
      %2437 = vmatmul.mubr.f32.gmra.mxu0 %v2225
      %v2438 = vpop.f32.mrf.mxu0
      %v2439 = vadd.f32 0.0, %v2438
      %v2440 = vpop.f32.mrf.mxu0
      %2441 = vmatprep.mubr.f32.mxu0 0.0
      %2442 = vmatmul.mubr.f32.gmra.mxu0 %v2228
      %v2443 = vpop.f32.mrf.mxu0
      %v2444 = vadd.f32 0.0, %v2443
      %v2445 = vpop.f32.mrf.mxu0
      %2446 = vmatprep.mubr.f32.mxu0 0.0
      %2447 = vmatmul.mubr.f32.gmra.mxu0 %v2231
      %v2448 = vpop.f32.mrf.mxu0
      %v2449 = vadd.f32 0.0, %v2448
      %v2450 = vpop.f32.mrf.mxu0
      %2451 = vmatprep.mubr.f32.mxu0 0.0
      %2452 = vmatmul.mubr.f32.gmra.mxu0 %v2234
      %v2453 = vpop.f32.mrf.mxu0
      %v2454 = vadd.f32 0.0, %v2453
      %v2455 = vpop.f32.mrf.mxu0
      %2456 = vmatprep.mubr.f32.mxu0 0.0
      %2457 = vmatmul.mubr.f32.gmra.mxu0 %v2237
      %v2458 = vpop.f32.mrf.mxu0
      %v2459 = vadd.f32 0.0, %v2458
      %v2460 = vpop.f32.mrf.mxu0
      %2461 = vmatprep.mubr.f32.mxu0 0.0
      %2462 = vmatmul.mubr.f32.gmra.mxu0 %v2240
      %v2463 = vpop.f32.mrf.mxu0
      %v2464 = vadd.f32 0.0, %v2463
      %v2465 = vpop.f32.mrf.mxu0
      %2466 = vdwg.mxu0
      %v2467 = vadd.f32 %v2073, %v2309
      %v2468 = vadd.f32 %v2074, %v2314
      %v2469 = vadd.f32 %v2075, %v2319
      %v2470 = vadd.f32 %v2076, %v2324
      %v2471 = vadd.f32 %v2077, %v2329
      %v2472 = vadd.f32 %v2078, %v2334
      %v2473 = vadd.f32 %v2079, %v2339
      %v2474 = vadd.f32 %v2080, %v2344
      %v2475 = vadd.f32 %v2081, %v2349
      %v2476 = vadd.f32 %v2082, %v2354
      %v2477 = vadd.f32 %v2083, %v2359
      %v2478 = vadd.f32 %v2084, %v2364
      %v2479 = vadd.f32 %v2085, %v2369
      %v2480 = vadd.f32 %v2086, %v2374
      %v2481 = vadd.f32 %v2087, %v2379
      %v2482 = vadd.f32 %v2088, %v2384
      %v2483 = vadd.f32 %v2089, %v2389
      %v2484 = vadd.f32 %v2090, %v2394
      %v2485 = vadd.f32 %v2091, %v2399
      %v2486 = vadd.f32 %v2092, %v2404
      %v2487 = vadd.f32 %v2093, %v2409
      %v2488 = vadd.f32 %v2094, %v2414
      %v2489 = vadd.f32 %v2095, %v2419
      %v2490 = vadd.f32 %v2096, %v2424
      %v2491 = vadd.f32 %v2097, %v2429
      %v2492 = vadd.f32 %v2098, %v2434
      %v2493 = vadd.f32 %v2099, %v2439
      %v2494 = vadd.f32 %v2100, %v2444
      %v2495 = vadd.f32 %v2101, %v2449
      %v2496 = vadd.f32 %v2102, %v2454
      %v2497 = vadd.f32 %v2103, %v2459
      %v2498 = vadd.f32 %v2104, %v2464
      %s2499 = scalar_lea.vmem %s192, 48
      %v2500 = vld [vmem:[%s2499] sm:$0xff]
      %v2501 = vld [vmem:[%s2499 + $0x8] sm:$0xff]
      %v2502 = vld [vmem:[%s2499 + $0x18] sm:$0xff]
      %v2503 = vld [vmem:[%s2499 + $0x20] sm:$0xff]
      %v2504 = vld [vmem:[%s2499 + $0x30] sm:$0xff]
      %v2505 = vld [vmem:[%s2499 + $0x38] sm:$0xff]
      %v2506 = vld [vmem:[%s2499 + $0x48] sm:$0xff]
      %v2507 = vld [vmem:[%s2499 + $0x50] sm:$0xff]
      %v2508 = vld [vmem:[%s2499 + $0x60] sm:$0xff]
      %v2509 = vld [vmem:[%s2499 + $0x68] sm:$0xff]
      %v2510 = vld [vmem:[%s2499 + $0x78] sm:$0xff]
      %v2511 = vld [vmem:[%s2499 + $0x80] sm:$0xff]
      %v2512 = vld [vmem:[%s2499 + $0x90] sm:$0xff]
      %v2513 = vld [vmem:[%s2499 + $0x98] sm:$0xff]
      %v2514 = vld [vmem:[%s2499 + $0xa8] sm:$0xff]
      %v2515 = vld [vmem:[%s2499 + $0xb0] sm:$0xff]
      %v2516 = vld [vmem:[%s2499 + $0xc0] sm:$0xff]
      %v2517 = vld [vmem:[%s2499 + $0xc8] sm:$0xff]
      %v2518 = vld [vmem:[%s2499 + $0xd8] sm:$0xff]
      %v2519 = vld [vmem:[%s2499 + $0xe0] sm:$0xff]
      %v2520 = vld [vmem:[%s2499 + $0xf0] sm:$0xff]
      %v2521 = vld [vmem:[%s2499 + $0xf8] sm:$0xff]
      %v2522 = vld [vmem:[%s2499 + $0x108] sm:$0xff]
      %v2523 = vld [vmem:[%s2499 + $0x110] sm:$0xff]
      %v2524 = vld [vmem:[%s2499 + $0x120] sm:$0xff]
      %v2525 = vld [vmem:[%s2499 + $0x128] sm:$0xff]
      %v2526 = vld [vmem:[%s2499 + $0x138] sm:$0xff]
      %v2527 = vld [vmem:[%s2499 + $0x140] sm:$0xff]
      %v2528 = vld [vmem:[%s2499 + $0x150] sm:$0xff]
      %v2529 = vld [vmem:[%s2499 + $0x158] sm:$0xff]
      %v2530 = vld [vmem:[%s2499 + $0x168] sm:$0xff]
      %v2531 = vld [vmem:[%s2499 + $0x170] sm:$0xff]
      %s2532 = scalar_lea.vmem %s1, 384
      %v2533 = vld [vmem:[%s2532] sm:$0xff]
      %v2534 = vld [vmem:[%s2532 + $0x8] sm:$0xff]
      %v2535 = vld [vmem:[%s2532 + $0x10] sm:$0xff]
      %v2536 = vld [vmem:[%s2532 + $0x18] sm:$0xff]
      %v2537 = vld [vmem:[%s2532 + $0x20] sm:$0xff]
      %v2538 = vld [vmem:[%s2532 + $0x28] sm:$0xff]
      %v2539 = vld [vmem:[%s2532 + $0x30] sm:$0xff]
      %v2540 = vld [vmem:[%s2532 + $0x38] sm:$0xff]
      %v2542 = vsel %vm279, %v2500, 0
      %v2545 = vsel %vm279, %v2501, 0
      %v2548 = vsel %vm279, %v2502, 0
      %v2551 = vsel %vm279, %v2503, 0
      %v2554 = vsel %vm279, %v2504, 0
      %v2557 = vsel %vm279, %v2505, 0
      %v2560 = vsel %vm279, %v2506, 0
      %v2563 = vsel %vm279, %v2507, 0
      %v2566 = vsel %vm279, %v2508, 0
      %v2569 = vsel %vm279, %v2509, 0
      %v2572 = vsel %vm279, %v2510, 0
      %v2575 = vsel %vm279, %v2511, 0
      %v2578 = vsel %vm279, %v2512, 0
      %v2581 = vsel %vm279, %v2513, 0
      %v2584 = vsel %vm279, %v2514, 0
      %v2587 = vsel %vm279, %v2515, 0
      %v2590 = vsel %vm279, %v2516, 0
      %v2593 = vsel %vm279, %v2517, 0
      %v2596 = vsel %vm279, %v2518, 0
      %v2599 = vsel %vm279, %v2519, 0
      %v2602 = vsel %vm279, %v2520, 0
      %v2605 = vsel %vm279, %v2521, 0
      %v2608 = vsel %vm279, %v2522, 0
      %v2611 = vsel %vm279, %v2523, 0
      %v2614 = vsel %vm279, %v2524, 0
      %v2617 = vsel %vm279, %v2525, 0
      %v2620 = vsel %vm279, %v2526, 0
      %v2623 = vsel %vm279, %v2527, 0
      %v2626 = vsel %vm279, %v2528, 0
      %v2629 = vsel %vm279, %v2529, 0
      %v2632 = vsel %vm279, %v2530, 0
      %v2635 = vsel %vm279, %v2531, 0
      %2637 = vmatprep.subr.mxu0 0.0
      %2638 = vmatpush1.msra.mxu0 0.0
      %2639 = vmatprep.subr.mxu0 0.0
      %2640 = vmatpush1.msra.mxu0 0.0
      %2641 = vmatprep.subr.mxu0 0.0
      %2642 = vmatpush1.msra.mxu0 0.0
      %2643 = vmatprep.subr.mxu0 0.0
      %2644 = vmatpush1.msra.mxu0 0.0
      %2645 = vmatprep.subr.mxu0 0.0
      %2646 = vmatpush1.msra.mxu0 0.0
      %2647 = vmatprep.subr.mxu0 0.0
      %2648 = vmatpush1.msra.mxu0 0.0
      %2649 = vmatprep.subr.mxu0 0.0
      %2650 = vmatpush1.msra.mxu0 0.0
      %2651 = vmatprep.subr.mxu0 0.0
      %2652 = vmatpush1.msra.mxu0 0.0
      %2653 = vmatprep.subr.mxu0 0.0
      %2654 = vmatpush1.msra.mxu0 %v2540
      %2655 = vmatprep.subr.mxu0 0.0
      %2656 = vmatpush1.msra.mxu0 %v2539
      %2657 = vmatprep.subr.mxu0 0.0
      %2658 = vmatpush1.msra.mxu0 %v2538
      %2659 = vmatprep.subr.mxu0 0.0
      %2660 = vmatpush1.msra.mxu0 %v2537
      %2661 = vmatprep.subr.mxu0 0.0
      %2662 = vmatpush1.msra.mxu0 %v2536
      %2663 = vmatprep.subr.mxu0 0.0
      %2664 = vmatpush1.msra.mxu0 %v2535
      %2665 = vmatprep.subr.mxu0 0.0
      %2666 = vmatpush1.msra.mxu0 %v2534
      %2667 = vmatprep.subr.mxu0 0.0
      %2668 = vmatpush1.msra.mxu0 %v2533
      %2669 = vmatprep.subr.mxu0 0.0
      %2670 = vmatpush2.msra.mxu0 0.0
      %2671 = vmatprep.subr.mxu0 0.0
      %2672 = vmatpush2.msra.mxu0 0.0
      %2673 = vmatprep.subr.mxu0 0.0
      %2674 = vmatpush2.msra.mxu0 0.0
      %2675 = vmatprep.subr.mxu0 0.0
      %2676 = vmatpush2.msra.mxu0 0.0
      %2677 = vmatprep.subr.mxu0 0.0
      %2678 = vmatpush2.msra.mxu0 0.0
      %2679 = vmatprep.subr.mxu0 0.0
      %2680 = vmatpush2.msra.mxu0 0.0
      %2681 = vmatprep.subr.mxu0 0.0
      %2682 = vmatpush2.msra.mxu0 0.0
      %2683 = vmatprep.subr.mxu0 0.0
      %2684 = vmatpush2.msra.mxu0 0.0
      %2685 = vmatprep.subr.mxu0 0.0
      %2686 = vmatpush2.msra.mxu0 0.0
      %2687 = vmatprep.subr.mxu0 0.0
      %2688 = vmatpush2.msra.mxu0 0.0
      %2689 = vmatprep.subr.mxu0 0.0
      %2690 = vmatpush2.msra.mxu0 0.0
      %2691 = vmatprep.subr.mxu0 0.0
      %2692 = vmatpush2.msra.mxu0 0.0
      %2693 = vmatprep.subr.mxu0 0.0
      %2694 = vmatpush2.msra.mxu0 0.0
      %2695 = vmatprep.subr.mxu0 0.0
      %2696 = vmatpush2.msra.mxu0 0.0
      %2697 = vmatprep.subr.mxu0 0.0
      %2698 = vmatpush2.msra.mxu0 0.0
      %2699 = vmatprep.subr.mxu0 0.0
      %2700 = vmatpush2.msra.mxu0 0.0
      %2701 = vmatprep.mubr.f32.mxu0 0.0
      %2702 = vmatmul.mubr.f32.gmra.mxu0 %v2542
      %v2703 = vpop.f32.mrf.mxu0
      %v2704 = vadd.f32 0.0, %v2703
      %v2705 = vpop.f32.mrf.mxu0
      %2706 = vmatprep.mubr.f32.mxu0 0.0
      %2707 = vmatmul.mubr.f32.gmra.mxu0 %v2545
      %v2708 = vpop.f32.mrf.mxu0
      %v2709 = vadd.f32 0.0, %v2708
      %v2710 = vpop.f32.mrf.mxu0
      %2711 = vmatprep.mubr.f32.mxu0 0.0
      %2712 = vmatmul.mubr.f32.gmra.mxu0 %v2548
      %v2713 = vpop.f32.mrf.mxu0
      %v2714 = vadd.f32 0.0, %v2713
      %v2715 = vpop.f32.mrf.mxu0
      %2716 = vmatprep.mubr.f32.mxu0 0.0
      %2717 = vmatmul.mubr.f32.gmra.mxu0 %v2551
      %v2718 = vpop.f32.mrf.mxu0
      %v2719 = vadd.f32 0.0, %v2718
      %v2720 = vpop.f32.mrf.mxu0
      %2721 = vmatprep.mubr.f32.mxu0 0.0
      %2722 = vmatmul.mubr.f32.gmra.mxu0 %v2554
      %v2723 = vpop.f32.mrf.mxu0
      %v2724 = vadd.f32 0.0, %v2723
      %v2725 = vpop.f32.mrf.mxu0
      %2726 = vmatprep.mubr.f32.mxu0 0.0
      %2727 = vmatmul.mubr.f32.gmra.mxu0 %v2557
      %v2728 = vpop.f32.mrf.mxu0
      %v2729 = vadd.f32 0.0, %v2728
      %v2730 = vpop.f32.mrf.mxu0
      %2731 = vmatprep.mubr.f32.mxu0 0.0
      %2732 = vmatmul.mubr.f32.gmra.mxu0 %v2560
      %v2733 = vpop.f32.mrf.mxu0
      %v2734 = vadd.f32 0.0, %v2733
      %v2735 = vpop.f32.mrf.mxu0
      %2736 = vmatprep.mubr.f32.mxu0 0.0
      %2737 = vmatmul.mubr.f32.gmra.mxu0 %v2563
      %v2738 = vpop.f32.mrf.mxu0
      %v2739 = vadd.f32 0.0, %v2738
      %v2740 = vpop.f32.mrf.mxu0
      %2741 = vmatprep.mubr.f32.mxu0 0.0
      %2742 = vmatmul.mubr.f32.gmra.mxu0 %v2566
      %v2743 = vpop.f32.mrf.mxu0
      %v2744 = vadd.f32 0.0, %v2743
      %v2745 = vpop.f32.mrf.mxu0
      %2746 = vmatprep.mubr.f32.mxu0 0.0
      %2747 = vmatmul.mubr.f32.gmra.mxu0 %v2569
      %v2748 = vpop.f32.mrf.mxu0
      %v2749 = vadd.f32 0.0, %v2748
      %v2750 = vpop.f32.mrf.mxu0
      %2751 = vmatprep.mubr.f32.mxu0 0.0
      %2752 = vmatmul.mubr.f32.gmra.mxu0 %v2572
      %v2753 = vpop.f32.mrf.mxu0
      %v2754 = vadd.f32 0.0, %v2753
      %v2755 = vpop.f32.mrf.mxu0
      %2756 = vmatprep.mubr.f32.mxu0 0.0
      %2757 = vmatmul.mubr.f32.gmra.mxu0 %v2575
      %v2758 = vpop.f32.mrf.mxu0
      %v2759 = vadd.f32 0.0, %v2758
      %v2760 = vpop.f32.mrf.mxu0
      %2761 = vmatprep.mubr.f32.mxu0 0.0
      %2762 = vmatmul.mubr.f32.gmra.mxu0 %v2578
      %v2763 = vpop.f32.mrf.mxu0
      %v2764 = vadd.f32 0.0, %v2763
      %v2765 = vpop.f32.mrf.mxu0
      %2766 = vmatprep.mubr.f32.mxu0 0.0
      %2767 = vmatmul.mubr.f32.gmra.mxu0 %v2581
      %v2768 = vpop.f32.mrf.mxu0
      %v2769 = vadd.f32 0.0, %v2768
      %v2770 = vpop.f32.mrf.mxu0
      %2771 = vmatprep.mubr.f32.mxu0 0.0
      %2772 = vmatmul.mubr.f32.gmra.mxu0 %v2584
      %v2773 = vpop.f32.mrf.mxu0
      %v2774 = vadd.f32 0.0, %v2773
      %v2775 = vpop.f32.mrf.mxu0
      %2776 = vmatprep.mubr.f32.mxu0 0.0
      %2777 = vmatmul.mubr.f32.gmra.mxu0 %v2587
      %v2778 = vpop.f32.mrf.mxu0
      %v2779 = vadd.f32 0.0, %v2778
      %v2780 = vpop.f32.mrf.mxu0
      %2781 = vmatprep.mubr.f32.mxu0 0.0
      %2782 = vmatmul.mubr.f32.gmra.mxu0 %v2590
      %v2783 = vpop.f32.mrf.mxu0
      %v2784 = vadd.f32 0.0, %v2783
      %v2785 = vpop.f32.mrf.mxu0
      %2786 = vmatprep.mubr.f32.mxu0 0.0
      %2787 = vmatmul.mubr.f32.gmra.mxu0 %v2593
      %v2788 = vpop.f32.mrf.mxu0
      %v2789 = vadd.f32 0.0, %v2788
      %v2790 = vpop.f32.mrf.mxu0
      %2791 = vmatprep.mubr.f32.mxu0 0.0
      %2792 = vmatmul.mubr.f32.gmra.mxu0 %v2596
      %v2793 = vpop.f32.mrf.mxu0
      %v2794 = vadd.f32 0.0, %v2793
      %v2795 = vpop.f32.mrf.mxu0
      %2796 = vmatprep.mubr.f32.mxu0 0.0
      %2797 = vmatmul.mubr.f32.gmra.mxu0 %v2599
      %v2798 = vpop.f32.mrf.mxu0
      %v2799 = vadd.f32 0.0, %v2798
      %v2800 = vpop.f32.mrf.mxu0
      %2801 = vmatprep.mubr.f32.mxu0 0.0
      %2802 = vmatmul.mubr.f32.gmra.mxu0 %v2602
      %v2803 = vpop.f32.mrf.mxu0
      %v2804 = vadd.f32 0.0, %v2803
      %v2805 = vpop.f32.mrf.mxu0
      %2806 = vmatprep.mubr.f32.mxu0 0.0
      %2807 = vmatmul.mubr.f32.gmra.mxu0 %v2605
      %v2808 = vpop.f32.mrf.mxu0
      %v2809 = vadd.f32 0.0, %v2808
      %v2810 = vpop.f32.mrf.mxu0
      %2811 = vmatprep.mubr.f32.mxu0 0.0
      %2812 = vmatmul.mubr.f32.gmra.mxu0 %v2608
      %v2813 = vpop.f32.mrf.mxu0
      %v2814 = vadd.f32 0.0, %v2813
      %v2815 = vpop.f32.mrf.mxu0
      %2816 = vmatprep.mubr.f32.mxu0 0.0
      %2817 = vmatmul.mubr.f32.gmra.mxu0 %v2611
      %v2818 = vpop.f32.mrf.mxu0
      %v2819 = vadd.f32 0.0, %v2818
      %v2820 = vpop.f32.mrf.mxu0
      %2821 = vmatprep.mubr.f32.mxu0 0.0
      %2822 = vmatmul.mubr.f32.gmra.mxu0 %v2614
      %v2823 = vpop.f32.mrf.mxu0
      %v2824 = vadd.f32 0.0, %v2823
      %v2825 = vpop.f32.mrf.mxu0
      %2826 = vmatprep.mubr.f32.mxu0 0.0
      %2827 = vmatmul.mubr.f32.gmra.mxu0 %v2617
      %v2828 = vpop.f32.mrf.mxu0
      %v2829 = vadd.f32 0.0, %v2828
      %v2830 = vpop.f32.mrf.mxu0
      %2831 = vmatprep.mubr.f32.mxu0 0.0
      %2832 = vmatmul.mubr.f32.gmra.mxu0 %v2620
      %v2833 = vpop.f32.mrf.mxu0
      %v2834 = vadd.f32 0.0, %v2833
      %v2835 = vpop.f32.mrf.mxu0
      %2836 = vmatprep.mubr.f32.mxu0 0.0
      %2837 = vmatmul.mubr.f32.gmra.mxu0 %v2623
      %v2838 = vpop.f32.mrf.mxu0
      %v2839 = vadd.f32 0.0, %v2838
      %v2840 = vpop.f32.mrf.mxu0
      %2841 = vmatprep.mubr.f32.mxu0 0.0
      %2842 = vmatmul.mubr.f32.gmra.mxu0 %v2626
      %v2843 = vpop.f32.mrf.mxu0
      %v2844 = vadd.f32 0.0, %v2843
      %v2845 = vpop.f32.mrf.mxu0
      %2846 = vmatprep.mubr.f32.mxu0 0.0
      %2847 = vmatmul.mubr.f32.gmra.mxu0 %v2629
      %v2848 = vpop.f32.mrf.mxu0
      %v2849 = vadd.f32 0.0, %v2848
      %v2850 = vpop.f32.mrf.mxu0
      %2851 = vmatprep.mubr.f32.mxu0 0.0
      %2852 = vmatmul.mubr.f32.gmra.mxu0 %v2632
      %v2853 = vpop.f32.mrf.mxu0
      %v2854 = vadd.f32 0.0, %v2853
      %v2855 = vpop.f32.mrf.mxu0
      %2856 = vmatprep.mubr.f32.mxu0 0.0
      %2857 = vmatmul.mubr.f32.gmra.mxu0 %v2635
      %v2858 = vpop.f32.mrf.mxu0
      %v2859 = vadd.f32 0.0, %v2858
      %v2860 = vpop.f32.mrf.mxu0
      %2861 = vdwg.mxu0
      %v2862 = vadd.f32 %v2467, %v2704
      %v2863 = vadd.f32 %v2468, %v2709
      %v2864 = vadd.f32 %v2469, %v2714
      %v2865 = vadd.f32 %v2470, %v2719
      %v2866 = vadd.f32 %v2471, %v2724
      %v2867 = vadd.f32 %v2472, %v2729
      %v2868 = vadd.f32 %v2473, %v2734
      %v2869 = vadd.f32 %v2474, %v2739
      %v2870 = vadd.f32 %v2475, %v2744
      %v2871 = vadd.f32 %v2476, %v2749
      %v2872 = vadd.f32 %v2477, %v2754
      %v2873 = vadd.f32 %v2478, %v2759
      %v2874 = vadd.f32 %v2479, %v2764
      %v2875 = vadd.f32 %v2480, %v2769
      %v2876 = vadd.f32 %v2481, %v2774
      %v2877 = vadd.f32 %v2482, %v2779
      %v2878 = vadd.f32 %v2483, %v2784
      %v2879 = vadd.f32 %v2484, %v2789
      %v2880 = vadd.f32 %v2485, %v2794
      %v2881 = vadd.f32 %v2486, %v2799
      %v2882 = vadd.f32 %v2487, %v2804
      %v2883 = vadd.f32 %v2488, %v2809
      %v2884 = vadd.f32 %v2489, %v2814
      %v2885 = vadd.f32 %v2490, %v2819
      %v2886 = vadd.f32 %v2491, %v2824
      %v2887 = vadd.f32 %v2492, %v2829
      %v2888 = vadd.f32 %v2493, %v2834
      %v2889 = vadd.f32 %v2494, %v2839
      %v2890 = vadd.f32 %v2495, %v2844
      %v2891 = vadd.f32 %v2496, %v2849
      %v2892 = vadd.f32 %v2497, %v2854
      %v2893 = vadd.f32 %v2498, %v2859
      %v2894 = vld [vmem:[%s2499 + $0x1] sm:$0xff]
      %v2895 = vld [vmem:[%s2499 + $0x9] sm:$0xff]
      %v2896 = vld [vmem:[%s2499 + $0x19] sm:$0xff]
      %v2897 = vld [vmem:[%s2499 + $0x21] sm:$0xff]
      %v2898 = vld [vmem:[%s2499 + $0x31] sm:$0xff]
      %v2899 = vld [vmem:[%s2499 + $0x39] sm:$0xff]
      %v2900 = vld [vmem:[%s2499 + $0x49] sm:$0xff]
      %v2901 = vld [vmem:[%s2499 + $0x51] sm:$0xff]
      %v2902 = vld [vmem:[%s2499 + $0x61] sm:$0xff]
      %v2903 = vld [vmem:[%s2499 + $0x69] sm:$0xff]
      %v2904 = vld [vmem:[%s2499 + $0x79] sm:$0xff]
      %v2905 = vld [vmem:[%s2499 + $0x81] sm:$0xff]
      %v2906 = vld [vmem:[%s2499 + $0x91] sm:$0xff]
      %v2907 = vld [vmem:[%s2499 + $0x99] sm:$0xff]
      %v2908 = vld [vmem:[%s2499 + $0xa9] sm:$0xff]
      %v2909 = vld [vmem:[%s2499 + $0xb1] sm:$0xff]
      %v2910 = vld [vmem:[%s2499 + $0xc1] sm:$0xff]
      %v2911 = vld [vmem:[%s2499 + $0xc9] sm:$0xff]
      %v2912 = vld [vmem:[%s2499 + $0xd9] sm:$0xff]
      %v2913 = vld [vmem:[%s2499 + $0xe1] sm:$0xff]
      %v2914 = vld [vmem:[%s2499 + $0xf1] sm:$0xff]
      %v2915 = vld [vmem:[%s2499 + $0xf9] sm:$0xff]
      %v2916 = vld [vmem:[%s2499 + $0x109] sm:$0xff]
      %v2917 = vld [vmem:[%s2499 + $0x111] sm:$0xff]
      %v2918 = vld [vmem:[%s2499 + $0x121] sm:$0xff]
      %v2919 = vld [vmem:[%s2499 + $0x129] sm:$0xff]
      %v2920 = vld [vmem:[%s2499 + $0x139] sm:$0xff]
      %v2921 = vld [vmem:[%s2499 + $0x141] sm:$0xff]
      %v2922 = vld [vmem:[%s2499 + $0x151] sm:$0xff]
      %v2923 = vld [vmem:[%s2499 + $0x159] sm:$0xff]
      %v2924 = vld [vmem:[%s2499 + $0x169] sm:$0xff]
      %v2925 = vld [vmem:[%s2499 + $0x171] sm:$0xff]
      %s2926 = scalar_lea.vmem %s1, 448
      %v2927 = vld [vmem:[%s2926] sm:$0xff]
      %v2928 = vld [vmem:[%s2926 + $0x8] sm:$0xff]
      %v2929 = vld [vmem:[%s2926 + $0x10] sm:$0xff]
      %v2930 = vld [vmem:[%s2926 + $0x18] sm:$0xff]
      %v2931 = vld [vmem:[%s2926 + $0x20] sm:$0xff]
      %v2932 = vld [vmem:[%s2926 + $0x28] sm:$0xff]
      %v2933 = vld [vmem:[%s2926 + $0x30] sm:$0xff]
      %v2934 = vld [vmem:[%s2926 + $0x38] sm:$0xff]
      %v2936 = vsel %vm279, %v2894, 0
      %v2939 = vsel %vm279, %v2895, 0
      %v2942 = vsel %vm279, %v2896, 0
      %v2945 = vsel %vm279, %v2897, 0
      %v2948 = vsel %vm279, %v2898, 0
      %v2951 = vsel %vm279, %v2899, 0
      %v2954 = vsel %vm279, %v2900, 0
      %v2957 = vsel %vm279, %v2901, 0
      %v2960 = vsel %vm279, %v2902, 0
      %v2963 = vsel %vm279, %v2903, 0
      %v2966 = vsel %vm279, %v2904, 0
      %v2969 = vsel %vm279, %v2905, 0
      %v2972 = vsel %vm279, %v2906, 0
      %v2975 = vsel %vm279, %v2907, 0
      %v2978 = vsel %vm279, %v2908, 0
      %v2981 = vsel %vm279, %v2909, 0
      %v2984 = vsel %vm279, %v2910, 0
      %v2987 = vsel %vm279, %v2911, 0
      %v2990 = vsel %vm279, %v2912, 0
      %v2993 = vsel %vm279, %v2913, 0
      %v2996 = vsel %vm279, %v2914, 0
      %v2999 = vsel %vm279, %v2915, 0
      %v3002 = vsel %vm279, %v2916, 0
      %v3005 = vsel %vm279, %v2917, 0
      %v3008 = vsel %vm279, %v2918, 0
      %v3011 = vsel %vm279, %v2919, 0
      %v3014 = vsel %vm279, %v2920, 0
      %v3017 = vsel %vm279, %v2921, 0
      %v3020 = vsel %vm279, %v2922, 0
      %v3023 = vsel %vm279, %v2923, 0
      %v3026 = vsel %vm279, %v2924, 0
      %v3029 = vsel %vm279, %v2925, 0
      %3031 = vmatprep.subr.mxu0 0.0
      %3032 = vmatpush1.msra.mxu0 0.0
      %3033 = vmatprep.subr.mxu0 0.0
      %3034 = vmatpush1.msra.mxu0 0.0
      %3035 = vmatprep.subr.mxu0 0.0
      %3036 = vmatpush1.msra.mxu0 0.0
      %3037 = vmatprep.subr.mxu0 0.0
      %3038 = vmatpush1.msra.mxu0 0.0
      %3039 = vmatprep.subr.mxu0 0.0
      %3040 = vmatpush1.msra.mxu0 0.0
      %3041 = vmatprep.subr.mxu0 0.0
      %3042 = vmatpush1.msra.mxu0 0.0
      %3043 = vmatprep.subr.mxu0 0.0
      %3044 = vmatpush1.msra.mxu0 0.0
      %3045 = vmatprep.subr.mxu0 0.0
      %3046 = vmatpush1.msra.mxu0 0.0
      %3047 = vmatprep.subr.mxu0 0.0
      %3048 = vmatpush1.msra.mxu0 %v2934
      %3049 = vmatprep.subr.mxu0 0.0
      %3050 = vmatpush1.msra.mxu0 %v2933
      %3051 = vmatprep.subr.mxu0 0.0
      %3052 = vmatpush1.msra.mxu0 %v2932
      %3053 = vmatprep.subr.mxu0 0.0
      %3054 = vmatpush1.msra.mxu0 %v2931
      %3055 = vmatprep.subr.mxu0 0.0
      %3056 = vmatpush1.msra.mxu0 %v2930
      %3057 = vmatprep.subr.mxu0 0.0
      %3058 = vmatpush1.msra.mxu0 %v2929
      %3059 = vmatprep.subr.mxu0 0.0
      %3060 = vmatpush1.msra.mxu0 %v2928
      %3061 = vmatprep.subr.mxu0 0.0
      %3062 = vmatpush1.msra.mxu0 %v2927
      %3063 = vmatprep.subr.mxu0 0.0
      %3064 = vmatpush2.msra.mxu0 0.0
      %3065 = vmatprep.subr.mxu0 0.0
      %3066 = vmatpush2.msra.mxu0 0.0
      %3067 = vmatprep.subr.mxu0 0.0
      %3068 = vmatpush2.msra.mxu0 0.0
      %3069 = vmatprep.subr.mxu0 0.0
      %3070 = vmatpush2.msra.mxu0 0.0
      %3071 = vmatprep.subr.mxu0 0.0
      %3072 = vmatpush2.msra.mxu0 0.0
      %3073 = vmatprep.subr.mxu0 0.0
      %3074 = vmatpush2.msra.mxu0 0.0
      %3075 = vmatprep.subr.mxu0 0.0
      %3076 = vmatpush2.msra.mxu0 0.0
      %3077 = vmatprep.subr.mxu0 0.0
      %3078 = vmatpush2.msra.mxu0 0.0
      %3079 = vmatprep.subr.mxu0 0.0
      %3080 = vmatpush2.msra.mxu0 0.0
      %3081 = vmatprep.subr.mxu0 0.0
      %3082 = vmatpush2.msra.mxu0 0.0
      %3083 = vmatprep.subr.mxu0 0.0
      %3084 = vmatpush2.msra.mxu0 0.0
      %3085 = vmatprep.subr.mxu0 0.0
      %3086 = vmatpush2.msra.mxu0 0.0
      %3087 = vmatprep.subr.mxu0 0.0
      %3088 = vmatpush2.msra.mxu0 0.0
      %3089 = vmatprep.subr.mxu0 0.0
      %3090 = vmatpush2.msra.mxu0 0.0
      %3091 = vmatprep.subr.mxu0 0.0
      %3092 = vmatpush2.msra.mxu0 0.0
      %3093 = vmatprep.subr.mxu0 0.0
      %3094 = vmatpush2.msra.mxu0 0.0
      %3095 = vmatprep.mubr.f32.mxu0 0.0
      %3096 = vmatmul.mubr.f32.gmra.mxu0 %v2936
      %v3097 = vpop.f32.mrf.mxu0
      %v3098 = vadd.f32 0.0, %v3097
      %v3099 = vpop.f32.mrf.mxu0
      %3100 = vmatprep.mubr.f32.mxu0 0.0
      %3101 = vmatmul.mubr.f32.gmra.mxu0 %v2939
      %v3102 = vpop.f32.mrf.mxu0
      %v3103 = vadd.f32 0.0, %v3102
      %v3104 = vpop.f32.mrf.mxu0
      %3105 = vmatprep.mubr.f32.mxu0 0.0
      %3106 = vmatmul.mubr.f32.gmra.mxu0 %v2942
      %v3107 = vpop.f32.mrf.mxu0
      %v3108 = vadd.f32 0.0, %v3107
      %v3109 = vpop.f32.mrf.mxu0
      %3110 = vmatprep.mubr.f32.mxu0 0.0
      %3111 = vmatmul.mubr.f32.gmra.mxu0 %v2945
      %v3112 = vpop.f32.mrf.mxu0
      %v3113 = vadd.f32 0.0, %v3112
      %v3114 = vpop.f32.mrf.mxu0
      %3115 = vmatprep.mubr.f32.mxu0 0.0
      %3116 = vmatmul.mubr.f32.gmra.mxu0 %v2948
      %v3117 = vpop.f32.mrf.mxu0
      %v3118 = vadd.f32 0.0, %v3117
      %v3119 = vpop.f32.mrf.mxu0
      %3120 = vmatprep.mubr.f32.mxu0 0.0
      %3121 = vmatmul.mubr.f32.gmra.mxu0 %v2951
      %v3122 = vpop.f32.mrf.mxu0
      %v3123 = vadd.f32 0.0, %v3122
      %v3124 = vpop.f32.mrf.mxu0
      %3125 = vmatprep.mubr.f32.mxu0 0.0
      %3126 = vmatmul.mubr.f32.gmra.mxu0 %v2954
      %v3127 = vpop.f32.mrf.mxu0
      %v3128 = vadd.f32 0.0, %v3127
      %v3129 = vpop.f32.mrf.mxu0
      %3130 = vmatprep.mubr.f32.mxu0 0.0
      %3131 = vmatmul.mubr.f32.gmra.mxu0 %v2957
      %v3132 = vpop.f32.mrf.mxu0
      %v3133 = vadd.f32 0.0, %v3132
      %v3134 = vpop.f32.mrf.mxu0
      %3135 = vmatprep.mubr.f32.mxu0 0.0
      %3136 = vmatmul.mubr.f32.gmra.mxu0 %v2960
      %v3137 = vpop.f32.mrf.mxu0
      %v3138 = vadd.f32 0.0, %v3137
      %v3139 = vpop.f32.mrf.mxu0
      %3140 = vmatprep.mubr.f32.mxu0 0.0
      %3141 = vmatmul.mubr.f32.gmra.mxu0 %v2963
      %v3142 = vpop.f32.mrf.mxu0
      %v3143 = vadd.f32 0.0, %v3142
      %v3144 = vpop.f32.mrf.mxu0
      %3145 = vmatprep.mubr.f32.mxu0 0.0
      %3146 = vmatmul.mubr.f32.gmra.mxu0 %v2966
      %v3147 = vpop.f32.mrf.mxu0
      %v3148 = vadd.f32 0.0, %v3147
      %v3149 = vpop.f32.mrf.mxu0
      %3150 = vmatprep.mubr.f32.mxu0 0.0
      %3151 = vmatmul.mubr.f32.gmra.mxu0 %v2969
      %v3152 = vpop.f32.mrf.mxu0
      %v3153 = vadd.f32 0.0, %v3152
      %v3154 = vpop.f32.mrf.mxu0
      %3155 = vmatprep.mubr.f32.mxu0 0.0
      %3156 = vmatmul.mubr.f32.gmra.mxu0 %v2972
      %v3157 = vpop.f32.mrf.mxu0
      %v3158 = vadd.f32 0.0, %v3157
      %v3159 = vpop.f32.mrf.mxu0
      %3160 = vmatprep.mubr.f32.mxu0 0.0
      %3161 = vmatmul.mubr.f32.gmra.mxu0 %v2975
      %v3162 = vpop.f32.mrf.mxu0
      %v3163 = vadd.f32 0.0, %v3162
      %v3164 = vpop.f32.mrf.mxu0
      %3165 = vmatprep.mubr.f32.mxu0 0.0
      %3166 = vmatmul.mubr.f32.gmra.mxu0 %v2978
      %v3167 = vpop.f32.mrf.mxu0
      %v3168 = vadd.f32 0.0, %v3167
      %v3169 = vpop.f32.mrf.mxu0
      %3170 = vmatprep.mubr.f32.mxu0 0.0
      %3171 = vmatmul.mubr.f32.gmra.mxu0 %v2981
      %v3172 = vpop.f32.mrf.mxu0
      %v3173 = vadd.f32 0.0, %v3172
      %v3174 = vpop.f32.mrf.mxu0
      %3175 = vmatprep.mubr.f32.mxu0 0.0
      %3176 = vmatmul.mubr.f32.gmra.mxu0 %v2984
      %v3177 = vpop.f32.mrf.mxu0
      %v3178 = vadd.f32 0.0, %v3177
      %v3179 = vpop.f32.mrf.mxu0
      %3180 = vmatprep.mubr.f32.mxu0 0.0
      %3181 = vmatmul.mubr.f32.gmra.mxu0 %v2987
      %v3182 = vpop.f32.mrf.mxu0
      %v3183 = vadd.f32 0.0, %v3182
      %v3184 = vpop.f32.mrf.mxu0
      %3185 = vmatprep.mubr.f32.mxu0 0.0
      %3186 = vmatmul.mubr.f32.gmra.mxu0 %v2990
      %v3187 = vpop.f32.mrf.mxu0
      %v3188 = vadd.f32 0.0, %v3187
      %v3189 = vpop.f32.mrf.mxu0
      %3190 = vmatprep.mubr.f32.mxu0 0.0
      %3191 = vmatmul.mubr.f32.gmra.mxu0 %v2993
      %v3192 = vpop.f32.mrf.mxu0
      %v3193 = vadd.f32 0.0, %v3192
      %v3194 = vpop.f32.mrf.mxu0
      %3195 = vmatprep.mubr.f32.mxu0 0.0
      %3196 = vmatmul.mubr.f32.gmra.mxu0 %v2996
      %v3197 = vpop.f32.mrf.mxu0
      %v3198 = vadd.f32 0.0, %v3197
      %v3199 = vpop.f32.mrf.mxu0
      %3200 = vmatprep.mubr.f32.mxu0 0.0
      %3201 = vmatmul.mubr.f32.gmra.mxu0 %v2999
      %v3202 = vpop.f32.mrf.mxu0
      %v3203 = vadd.f32 0.0, %v3202
      %v3204 = vpop.f32.mrf.mxu0
      %3205 = vmatprep.mubr.f32.mxu0 0.0
      %3206 = vmatmul.mubr.f32.gmra.mxu0 %v3002
      %v3207 = vpop.f32.mrf.mxu0
      %v3208 = vadd.f32 0.0, %v3207
      %v3209 = vpop.f32.mrf.mxu0
      %3210 = vmatprep.mubr.f32.mxu0 0.0
      %3211 = vmatmul.mubr.f32.gmra.mxu0 %v3005
      %v3212 = vpop.f32.mrf.mxu0
      %v3213 = vadd.f32 0.0, %v3212
      %v3214 = vpop.f32.mrf.mxu0
      %3215 = vmatprep.mubr.f32.mxu0 0.0
      %3216 = vmatmul.mubr.f32.gmra.mxu0 %v3008
      %v3217 = vpop.f32.mrf.mxu0
      %v3218 = vadd.f32 0.0, %v3217
      %v3219 = vpop.f32.mrf.mxu0
      %3220 = vmatprep.mubr.f32.mxu0 0.0
      %3221 = vmatmul.mubr.f32.gmra.mxu0 %v3011
      %v3222 = vpop.f32.mrf.mxu0
      %v3223 = vadd.f32 0.0, %v3222
      %v3224 = vpop.f32.mrf.mxu0
      %3225 = vmatprep.mubr.f32.mxu0 0.0
      %3226 = vmatmul.mubr.f32.gmra.mxu0 %v3014
      %v3227 = vpop.f32.mrf.mxu0
      %v3228 = vadd.f32 0.0, %v3227
      %v3229 = vpop.f32.mrf.mxu0
      %3230 = vmatprep.mubr.f32.mxu0 0.0
      %3231 = vmatmul.mubr.f32.gmra.mxu0 %v3017
      %v3232 = vpop.f32.mrf.mxu0
      %v3233 = vadd.f32 0.0, %v3232
      %v3234 = vpop.f32.mrf.mxu0
      %3235 = vmatprep.mubr.f32.mxu0 0.0
      %3236 = vmatmul.mubr.f32.gmra.mxu0 %v3020
      %v3237 = vpop.f32.mrf.mxu0
      %v3238 = vadd.f32 0.0, %v3237
      %v3239 = vpop.f32.mrf.mxu0
      %3240 = vmatprep.mubr.f32.mxu0 0.0
      %3241 = vmatmul.mubr.f32.gmra.mxu0 %v3023
      %v3242 = vpop.f32.mrf.mxu0
      %v3243 = vadd.f32 0.0, %v3242
      %v3244 = vpop.f32.mrf.mxu0
      %3245 = vmatprep.mubr.f32.mxu0 0.0
      %3246 = vmatmul.mubr.f32.gmra.mxu0 %v3026
      %v3247 = vpop.f32.mrf.mxu0
      %v3248 = vadd.f32 0.0, %v3247
      %v3249 = vpop.f32.mrf.mxu0
      %3250 = vmatprep.mubr.f32.mxu0 0.0
      %3251 = vmatmul.mubr.f32.gmra.mxu0 %v3029
      %v3252 = vpop.f32.mrf.mxu0
      %v3253 = vadd.f32 0.0, %v3252
      %v3254 = vpop.f32.mrf.mxu0
      %3255 = vdwg.mxu0
      %v3256 = vadd.f32 %v2862, %v3098
      %v3257 = vadd.f32 %v2863, %v3103
      %v3258 = vadd.f32 %v2864, %v3108
      %v3259 = vadd.f32 %v2865, %v3113
      %v3260 = vadd.f32 %v2866, %v3118
      %v3261 = vadd.f32 %v2867, %v3123
      %v3262 = vadd.f32 %v2868, %v3128
      %v3263 = vadd.f32 %v2869, %v3133
      %v3264 = vadd.f32 %v2870, %v3138
      %v3265 = vadd.f32 %v2871, %v3143
      %v3266 = vadd.f32 %v2872, %v3148
      %v3267 = vadd.f32 %v2873, %v3153
      %v3268 = vadd.f32 %v2874, %v3158
      %v3269 = vadd.f32 %v2875, %v3163
      %v3270 = vadd.f32 %v2876, %v3168
      %v3271 = vadd.f32 %v2877, %v3173
      %v3272 = vadd.f32 %v2878, %v3178
      %v3273 = vadd.f32 %v2879, %v3183
      %v3274 = vadd.f32 %v2880, %v3188
      %v3275 = vadd.f32 %v2881, %v3193
      %v3276 = vadd.f32 %v2882, %v3198
      %v3277 = vadd.f32 %v2883, %v3203
      %v3278 = vadd.f32 %v2884, %v3208
      %v3279 = vadd.f32 %v2885, %v3213
      %v3280 = vadd.f32 %v2886, %v3218
      %v3281 = vadd.f32 %v2887, %v3223
      %v3282 = vadd.f32 %v2888, %v3228
      %v3283 = vadd.f32 %v2889, %v3233
      %v3284 = vadd.f32 %v2890, %v3238
      %v3285 = vadd.f32 %v2891, %v3243
      %v3286 = vadd.f32 %v2892, %v3248
      %v3287 = vadd.f32 %v2893, %v3253
      %v3288 = vld [vmem:[%s2499 + $0x2] sm:$0xff]
      %v3289 = vld [vmem:[%s2499 + $0xa] sm:$0xff]
      %v3290 = vld [vmem:[%s2499 + $0x1a] sm:$0xff]
      %v3291 = vld [vmem:[%s2499 + $0x22] sm:$0xff]
      %v3292 = vld [vmem:[%s2499 + $0x32] sm:$0xff]
      %v3293 = vld [vmem:[%s2499 + $0x3a] sm:$0xff]
      %v3294 = vld [vmem:[%s2499 + $0x4a] sm:$0xff]
      %v3295 = vld [vmem:[%s2499 + $0x52] sm:$0xff]
      %v3296 = vld [vmem:[%s2499 + $0x62] sm:$0xff]
      %v3297 = vld [vmem:[%s2499 + $0x6a] sm:$0xff]
      %v3298 = vld [vmem:[%s2499 + $0x7a] sm:$0xff]
      %v3299 = vld [vmem:[%s2499 + $0x82] sm:$0xff]
      %v3300 = vld [vmem:[%s2499 + $0x92] sm:$0xff]
      %v3301 = vld [vmem:[%s2499 + $0x9a] sm:$0xff]
      %v3302 = vld [vmem:[%s2499 + $0xaa] sm:$0xff]
      %v3303 = vld [vmem:[%s2499 + $0xb2] sm:$0xff]
      %v3304 = vld [vmem:[%s2499 + $0xc2] sm:$0xff]
      %v3305 = vld [vmem:[%s2499 + $0xca] sm:$0xff]
      %v3306 = vld [vmem:[%s2499 + $0xda] sm:$0xff]
      %v3307 = vld [vmem:[%s2499 + $0xe2] sm:$0xff]
      %v3308 = vld [vmem:[%s2499 + $0xf2] sm:$0xff]
      %v3309 = vld [vmem:[%s2499 + $0xfa] sm:$0xff]
      %v3310 = vld [vmem:[%s2499 + $0x10a] sm:$0xff]
      %v3311 = vld [vmem:[%s2499 + $0x112] sm:$0xff]
      %v3312 = vld [vmem:[%s2499 + $0x122] sm:$0xff]
      %v3313 = vld [vmem:[%s2499 + $0x12a] sm:$0xff]
      %v3314 = vld [vmem:[%s2499 + $0x13a] sm:$0xff]
      %v3315 = vld [vmem:[%s2499 + $0x142] sm:$0xff]
      %v3316 = vld [vmem:[%s2499 + $0x152] sm:$0xff]
      %v3317 = vld [vmem:[%s2499 + $0x15a] sm:$0xff]
      %v3318 = vld [vmem:[%s2499 + $0x16a] sm:$0xff]
      %v3319 = vld [vmem:[%s2499 + $0x172] sm:$0xff]
      %s3320 = scalar_lea.vmem %s1, 512
      %v3321 = vld [vmem:[%s3320] sm:$0xff]
      %v3322 = vld [vmem:[%s3320 + $0x8] sm:$0xff]
      %v3323 = vld [vmem:[%s3320 + $0x10] sm:$0xff]
      %v3324 = vld [vmem:[%s3320 + $0x18] sm:$0xff]
      %v3325 = vld [vmem:[%s3320 + $0x20] sm:$0xff]
      %v3326 = vld [vmem:[%s3320 + $0x28] sm:$0xff]
      %v3327 = vld [vmem:[%s3320 + $0x30] sm:$0xff]
      %v3328 = vld [vmem:[%s3320 + $0x38] sm:$0xff]
      %v3330 = vsel %vm279, %v3288, 0
      %v3333 = vsel %vm279, %v3289, 0
      %v3336 = vsel %vm279, %v3290, 0
      %v3339 = vsel %vm279, %v3291, 0
      %v3342 = vsel %vm279, %v3292, 0
      %v3345 = vsel %vm279, %v3293, 0
      %v3348 = vsel %vm279, %v3294, 0
      %v3351 = vsel %vm279, %v3295, 0
      %v3354 = vsel %vm279, %v3296, 0
      %v3357 = vsel %vm279, %v3297, 0
      %v3360 = vsel %vm279, %v3298, 0
      %v3363 = vsel %vm279, %v3299, 0
      %v3366 = vsel %vm279, %v3300, 0
      %v3369 = vsel %vm279, %v3301, 0
      %v3372 = vsel %vm279, %v3302, 0
      %v3375 = vsel %vm279, %v3303, 0
      %v3378 = vsel %vm279, %v3304, 0
      %v3381 = vsel %vm279, %v3305, 0
      %v3384 = vsel %vm279, %v3306, 0
      %v3387 = vsel %vm279, %v3307, 0
      %v3390 = vsel %vm279, %v3308, 0
      %v3393 = vsel %vm279, %v3309, 0
      %v3396 = vsel %vm279, %v3310, 0
      %v3399 = vsel %vm279, %v3311, 0
      %v3402 = vsel %vm279, %v3312, 0
      %v3405 = vsel %vm279, %v3313, 0
      %v3408 = vsel %vm279, %v3314, 0
      %v3411 = vsel %vm279, %v3315, 0
      %v3414 = vsel %vm279, %v3316, 0
      %v3417 = vsel %vm279, %v3317, 0
      %v3420 = vsel %vm279, %v3318, 0
      %v3423 = vsel %vm279, %v3319, 0
      %3425 = vmatprep.subr.mxu0 0.0
      %3426 = vmatpush1.msra.mxu0 0.0
      %3427 = vmatprep.subr.mxu0 0.0
      %3428 = vmatpush1.msra.mxu0 0.0
      %3429 = vmatprep.subr.mxu0 0.0
      %3430 = vmatpush1.msra.mxu0 0.0
      %3431 = vmatprep.subr.mxu0 0.0
      %3432 = vmatpush1.msra.mxu0 0.0
      %3433 = vmatprep.subr.mxu0 0.0
      %3434 = vmatpush1.msra.mxu0 0.0
      %3435 = vmatprep.subr.mxu0 0.0
      %3436 = vmatpush1.msra.mxu0 0.0
      %3437 = vmatprep.subr.mxu0 0.0
      %3438 = vmatpush1.msra.mxu0 0.0
      %3439 = vmatprep.subr.mxu0 0.0
      %3440 = vmatpush1.msra.mxu0 0.0
      %3441 = vmatprep.subr.mxu0 0.0
      %3442 = vmatpush1.msra.mxu0 %v3328
      %3443 = vmatprep.subr.mxu0 0.0
      %3444 = vmatpush1.msra.mxu0 %v3327
      %3445 = vmatprep.subr.mxu0 0.0
      %3446 = vmatpush1.msra.mxu0 %v3326
      %3447 = vmatprep.subr.mxu0 0.0
      %3448 = vmatpush1.msra.mxu0 %v3325
      %3449 = vmatprep.subr.mxu0 0.0
      %3450 = vmatpush1.msra.mxu0 %v3324
      %3451 = vmatprep.subr.mxu0 0.0
      %3452 = vmatpush1.msra.mxu0 %v3323
      %3453 = vmatprep.subr.mxu0 0.0
      %3454 = vmatpush1.msra.mxu0 %v3322
      %3455 = vmatprep.subr.mxu0 0.0
      %3456 = vmatpush1.msra.mxu0 %v3321
      %3457 = vmatprep.subr.mxu0 0.0
      %3458 = vmatpush2.msra.mxu0 0.0
      %3459 = vmatprep.subr.mxu0 0.0
      %3460 = vmatpush2.msra.mxu0 0.0
      %3461 = vmatprep.subr.mxu0 0.0
      %3462 = vmatpush2.msra.mxu0 0.0
      %3463 = vmatprep.subr.mxu0 0.0
      %3464 = vmatpush2.msra.mxu0 0.0
      %3465 = vmatprep.subr.mxu0 0.0
      %3466 = vmatpush2.msra.mxu0 0.0
      %3467 = vmatprep.subr.mxu0 0.0
      %3468 = vmatpush2.msra.mxu0 0.0
      %3469 = vmatprep.subr.mxu0 0.0
      %3470 = vmatpush2.msra.mxu0 0.0
      %3471 = vmatprep.subr.mxu0 0.0
      %3472 = vmatpush2.msra.mxu0 0.0
      %3473 = vmatprep.subr.mxu0 0.0
      %3474 = vmatpush2.msra.mxu0 0.0
      %3475 = vmatprep.subr.mxu0 0.0
      %3476 = vmatpush2.msra.mxu0 0.0
      %3477 = vmatprep.subr.mxu0 0.0
      %3478 = vmatpush2.msra.mxu0 0.0
      %3479 = vmatprep.subr.mxu0 0.0
      %3480 = vmatpush2.msra.mxu0 0.0
      %3481 = vmatprep.subr.mxu0 0.0
      %3482 = vmatpush2.msra.mxu0 0.0
      %3483 = vmatprep.subr.mxu0 0.0
      %3484 = vmatpush2.msra.mxu0 0.0
      %3485 = vmatprep.subr.mxu0 0.0
      %3486 = vmatpush2.msra.mxu0 0.0
      %3487 = vmatprep.subr.mxu0 0.0
      %3488 = vmatpush2.msra.mxu0 0.0
      %3489 = vmatprep.mubr.f32.mxu0 0.0
      %3490 = vmatmul.mubr.f32.gmra.mxu0 %v3330
      %v3491 = vpop.f32.mrf.mxu0
      %v3492 = vadd.f32 0.0, %v3491
      %v3493 = vpop.f32.mrf.mxu0
      %3494 = vmatprep.mubr.f32.mxu0 0.0
      %3495 = vmatmul.mubr.f32.gmra.mxu0 %v3333
      %v3496 = vpop.f32.mrf.mxu0
      %v3497 = vadd.f32 0.0, %v3496
      %v3498 = vpop.f32.mrf.mxu0
      %3499 = vmatprep.mubr.f32.mxu0 0.0
      %3500 = vmatmul.mubr.f32.gmra.mxu0 %v3336
      %v3501 = vpop.f32.mrf.mxu0
      %v3502 = vadd.f32 0.0, %v3501
      %v3503 = vpop.f32.mrf.mxu0
      %3504 = vmatprep.mubr.f32.mxu0 0.0
      %3505 = vmatmul.mubr.f32.gmra.mxu0 %v3339
      %v3506 = vpop.f32.mrf.mxu0
      %v3507 = vadd.f32 0.0, %v3506
      %v3508 = vpop.f32.mrf.mxu0
      %3509 = vmatprep.mubr.f32.mxu0 0.0
      %3510 = vmatmul.mubr.f32.gmra.mxu0 %v3342
      %v3511 = vpop.f32.mrf.mxu0
      %v3512 = vadd.f32 0.0, %v3511
      %v3513 = vpop.f32.mrf.mxu0
      %3514 = vmatprep.mubr.f32.mxu0 0.0
      %3515 = vmatmul.mubr.f32.gmra.mxu0 %v3345
      %v3516 = vpop.f32.mrf.mxu0
      %v3517 = vadd.f32 0.0, %v3516
      %v3518 = vpop.f32.mrf.mxu0
      %3519 = vmatprep.mubr.f32.mxu0 0.0
      %3520 = vmatmul.mubr.f32.gmra.mxu0 %v3348
      %v3521 = vpop.f32.mrf.mxu0
      %v3522 = vadd.f32 0.0, %v3521
      %v3523 = vpop.f32.mrf.mxu0
      %3524 = vmatprep.mubr.f32.mxu0 0.0
      %3525 = vmatmul.mubr.f32.gmra.mxu0 %v3351
      %v3526 = vpop.f32.mrf.mxu0
      %v3527 = vadd.f32 0.0, %v3526
      %v3528 = vpop.f32.mrf.mxu0
      %3529 = vmatprep.mubr.f32.mxu0 0.0
      %3530 = vmatmul.mubr.f32.gmra.mxu0 %v3354
      %v3531 = vpop.f32.mrf.mxu0
      %v3532 = vadd.f32 0.0, %v3531
      %v3533 = vpop.f32.mrf.mxu0
      %3534 = vmatprep.mubr.f32.mxu0 0.0
      %3535 = vmatmul.mubr.f32.gmra.mxu0 %v3357
      %v3536 = vpop.f32.mrf.mxu0
      %v3537 = vadd.f32 0.0, %v3536
      %v3538 = vpop.f32.mrf.mxu0
      %3539 = vmatprep.mubr.f32.mxu0 0.0
      %3540 = vmatmul.mubr.f32.gmra.mxu0 %v3360
      %v3541 = vpop.f32.mrf.mxu0
      %v3542 = vadd.f32 0.0, %v3541
      %v3543 = vpop.f32.mrf.mxu0
      %3544 = vmatprep.mubr.f32.mxu0 0.0
      %3545 = vmatmul.mubr.f32.gmra.mxu0 %v3363
      %v3546 = vpop.f32.mrf.mxu0
      %v3547 = vadd.f32 0.0, %v3546
      %v3548 = vpop.f32.mrf.mxu0
      %3549 = vmatprep.mubr.f32.mxu0 0.0
      %3550 = vmatmul.mubr.f32.gmra.mxu0 %v3366
      %v3551 = vpop.f32.mrf.mxu0
      %v3552 = vadd.f32 0.0, %v3551
      %v3553 = vpop.f32.mrf.mxu0
      %3554 = vmatprep.mubr.f32.mxu0 0.0
      %3555 = vmatmul.mubr.f32.gmra.mxu0 %v3369
      %v3556 = vpop.f32.mrf.mxu0
      %v3557 = vadd.f32 0.0, %v3556
      %v3558 = vpop.f32.mrf.mxu0
      %3559 = vmatprep.mubr.f32.mxu0 0.0
      %3560 = vmatmul.mubr.f32.gmra.mxu0 %v3372
      %v3561 = vpop.f32.mrf.mxu0
      %v3562 = vadd.f32 0.0, %v3561
      %v3563 = vpop.f32.mrf.mxu0
      %3564 = vmatprep.mubr.f32.mxu0 0.0
      %3565 = vmatmul.mubr.f32.gmra.mxu0 %v3375
      %v3566 = vpop.f32.mrf.mxu0
      %v3567 = vadd.f32 0.0, %v3566
      %v3568 = vpop.f32.mrf.mxu0
      %3569 = vmatprep.mubr.f32.mxu0 0.0
      %3570 = vmatmul.mubr.f32.gmra.mxu0 %v3378
      %v3571 = vpop.f32.mrf.mxu0
      %v3572 = vadd.f32 0.0, %v3571
      %v3573 = vpop.f32.mrf.mxu0
      %3574 = vmatprep.mubr.f32.mxu0 0.0
      %3575 = vmatmul.mubr.f32.gmra.mxu0 %v3381
      %v3576 = vpop.f32.mrf.mxu0
      %v3577 = vadd.f32 0.0, %v3576
      %v3578 = vpop.f32.mrf.mxu0
      %3579 = vmatprep.mubr.f32.mxu0 0.0
      %3580 = vmatmul.mubr.f32.gmra.mxu0 %v3384
      %v3581 = vpop.f32.mrf.mxu0
      %v3582 = vadd.f32 0.0, %v3581
      %v3583 = vpop.f32.mrf.mxu0
      %3584 = vmatprep.mubr.f32.mxu0 0.0
      %3585 = vmatmul.mubr.f32.gmra.mxu0 %v3387
      %v3586 = vpop.f32.mrf.mxu0
      %v3587 = vadd.f32 0.0, %v3586
      %v3588 = vpop.f32.mrf.mxu0
      %3589 = vmatprep.mubr.f32.mxu0 0.0
      %3590 = vmatmul.mubr.f32.gmra.mxu0 %v3390
      %v3591 = vpop.f32.mrf.mxu0
      %v3592 = vadd.f32 0.0, %v3591
      %v3593 = vpop.f32.mrf.mxu0
      %3594 = vmatprep.mubr.f32.mxu0 0.0
      %3595 = vmatmul.mubr.f32.gmra.mxu0 %v3393
      %v3596 = vpop.f32.mrf.mxu0
      %v3597 = vadd.f32 0.0, %v3596
      %v3598 = vpop.f32.mrf.mxu0
      %3599 = vmatprep.mubr.f32.mxu0 0.0
      %3600 = vmatmul.mubr.f32.gmra.mxu0 %v3396
      %v3601 = vpop.f32.mrf.mxu0
      %v3602 = vadd.f32 0.0, %v3601
      %v3603 = vpop.f32.mrf.mxu0
      %3604 = vmatprep.mubr.f32.mxu0 0.0
      %3605 = vmatmul.mubr.f32.gmra.mxu0 %v3399
      %v3606 = vpop.f32.mrf.mxu0
      %v3607 = vadd.f32 0.0, %v3606
      %v3608 = vpop.f32.mrf.mxu0
      %3609 = vmatprep.mubr.f32.mxu0 0.0
      %3610 = vmatmul.mubr.f32.gmra.mxu0 %v3402
      %v3611 = vpop.f32.mrf.mxu0
      %v3612 = vadd.f32 0.0, %v3611
      %v3613 = vpop.f32.mrf.mxu0
      %3614 = vmatprep.mubr.f32.mxu0 0.0
      %3615 = vmatmul.mubr.f32.gmra.mxu0 %v3405
      %v3616 = vpop.f32.mrf.mxu0
      %v3617 = vadd.f32 0.0, %v3616
      %v3618 = vpop.f32.mrf.mxu0
      %3619 = vmatprep.mubr.f32.mxu0 0.0
      %3620 = vmatmul.mubr.f32.gmra.mxu0 %v3408
      %v3621 = vpop.f32.mrf.mxu0
      %v3622 = vadd.f32 0.0, %v3621
      %v3623 = vpop.f32.mrf.mxu0
      %3624 = vmatprep.mubr.f32.mxu0 0.0
      %3625 = vmatmul.mubr.f32.gmra.mxu0 %v3411
      %v3626 = vpop.f32.mrf.mxu0
      %v3627 = vadd.f32 0.0, %v3626
      %v3628 = vpop.f32.mrf.mxu0
      %3629 = vmatprep.mubr.f32.mxu0 0.0
      %3630 = vmatmul.mubr.f32.gmra.mxu0 %v3414
      %v3631 = vpop.f32.mrf.mxu0
      %v3632 = vadd.f32 0.0, %v3631
      %v3633 = vpop.f32.mrf.mxu0
      %3634 = vmatprep.mubr.f32.mxu0 0.0
      %3635 = vmatmul.mubr.f32.gmra.mxu0 %v3417
      %v3636 = vpop.f32.mrf.mxu0
      %v3637 = vadd.f32 0.0, %v3636
      %v3638 = vpop.f32.mrf.mxu0
      %3639 = vmatprep.mubr.f32.mxu0 0.0
      %3640 = vmatmul.mubr.f32.gmra.mxu0 %v3420
      %v3641 = vpop.f32.mrf.mxu0
      %v3642 = vadd.f32 0.0, %v3641
      %v3643 = vpop.f32.mrf.mxu0
      %3644 = vmatprep.mubr.f32.mxu0 0.0
      %3645 = vmatmul.mubr.f32.gmra.mxu0 %v3423
      %v3646 = vpop.f32.mrf.mxu0
      %v3647 = vadd.f32 0.0, %v3646
      %v3648 = vpop.f32.mrf.mxu0
      %3649 = vdwg.mxu0
      %v3650 = vadd.f32 %v3256, %v3492
      %v3651 = vadd.f32 %v3257, %v3497
      %v3652 = vadd.f32 %v3258, %v3502
      %v3653 = vadd.f32 %v3259, %v3507
      %v3654 = vadd.f32 %v3260, %v3512
      %v3655 = vadd.f32 %v3261, %v3517
      %v3656 = vadd.f32 %v3262, %v3522
      %v3657 = vadd.f32 %v3263, %v3527
      %v3658 = vadd.f32 %v3264, %v3532
      %v3659 = vadd.f32 %v3265, %v3537
      %v3660 = vadd.f32 %v3266, %v3542
      %v3661 = vadd.f32 %v3267, %v3547
      %v3662 = vadd.f32 %v3268, %v3552
      %v3663 = vadd.f32 %v3269, %v3557
      %v3664 = vadd.f32 %v3270, %v3562
      %v3665 = vadd.f32 %v3271, %v3567
      %v3666 = vadd.f32 %v3272, %v3572
      %v3667 = vadd.f32 %v3273, %v3577
      %v3668 = vadd.f32 %v3274, %v3582
      %v3669 = vadd.f32 %v3275, %v3587
      %v3670 = vadd.f32 %v3276, %v3592
      %v3671 = vadd.f32 %v3277, %v3597
      %v3672 = vadd.f32 %v3278, %v3602
      %v3673 = vadd.f32 %v3279, %v3607
      %v3674 = vadd.f32 %v3280, %v3612
      %v3675 = vadd.f32 %v3281, %v3617
      %v3676 = vadd.f32 %v3282, %v3622
      %v3677 = vadd.f32 %v3283, %v3627
      %v3678 = vadd.f32 %v3284, %v3632
      %v3679 = vadd.f32 %v3285, %v3637
      %v3680 = vadd.f32 %v3286, %v3642
      %v3681 = vadd.f32 %v3287, %v3647
      %v3682 = vld [vmem:[%s2] sm:$0x1]
      %v3684 = vlaneseq
      %v3685 = vshrl.u32 %v3684, 7
      %v3686 = vsub.s32 0, %v3685
      %v3687 = vrot.slane %v3682, %v3686
      %v3689 = vmul.f32 %v3650, %v3687
      %v3690 = vmul.f32 %v3651, %v3687
      %v3691 = vmul.f32 %v3652, %v3687
      %v3692 = vmul.f32 %v3653, %v3687
      %v3693 = vmul.f32 %v3654, %v3687
      %v3694 = vmul.f32 %v3655, %v3687
      %v3695 = vmul.f32 %v3656, %v3687
      %v3696 = vmul.f32 %v3657, %v3687
      %v3697 = vmul.f32 %v3658, %v3687
      %v3698 = vmul.f32 %v3659, %v3687
      %v3699 = vmul.f32 %v3660, %v3687
      %v3700 = vmul.f32 %v3661, %v3687
      %v3701 = vmul.f32 %v3662, %v3687
      %v3702 = vmul.f32 %v3663, %v3687
      %v3703 = vmul.f32 %v3664, %v3687
      %v3704 = vmul.f32 %v3665, %v3687
      %v3705 = vmul.f32 %v3666, %v3687
      %v3706 = vmul.f32 %v3667, %v3687
      %v3707 = vmul.f32 %v3668, %v3687
      %v3708 = vmul.f32 %v3669, %v3687
      %v3709 = vmul.f32 %v3670, %v3687
      %v3710 = vmul.f32 %v3671, %v3687
      %v3711 = vmul.f32 %v3672, %v3687
      %v3712 = vmul.f32 %v3673, %v3687
      %v3713 = vmul.f32 %v3674, %v3687
      %v3714 = vmul.f32 %v3675, %v3687
      %v3715 = vmul.f32 %v3676, %v3687
      %v3716 = vmul.f32 %v3677, %v3687
      %v3717 = vmul.f32 %v3678, %v3687
      %v3718 = vmul.f32 %v3679, %v3687
      %v3719 = vmul.f32 %v3680, %v3687
      %v3720 = vmul.f32 %v3681, %v3687
      %v3721 = vld [vmem:[%s3] sm:$0x1]
      %v3723 = vlaneseq
      %v3724 = vshrl.u32 %v3723, 7
      %v3725 = vsub.s32 0, %v3724
      %v3726 = vrot.slane %v3721, %v3725
      %v3728 = vadd.f32 %v3689, %v3726
      %v3729 = vadd.f32 %v3690, %v3726
      %v3730 = vadd.f32 %v3691, %v3726
      %v3731 = vadd.f32 %v3692, %v3726
      %v3732 = vadd.f32 %v3693, %v3726
      %v3733 = vadd.f32 %v3694, %v3726
      %v3734 = vadd.f32 %v3695, %v3726
      %v3735 = vadd.f32 %v3696, %v3726
      %v3736 = vadd.f32 %v3697, %v3726
      %v3737 = vadd.f32 %v3698, %v3726
      %v3738 = vadd.f32 %v3699, %v3726
      %v3739 = vadd.f32 %v3700, %v3726
      %v3740 = vadd.f32 %v3701, %v3726
      %v3741 = vadd.f32 %v3702, %v3726
      %v3742 = vadd.f32 %v3703, %v3726
      %v3743 = vadd.f32 %v3704, %v3726
      %v3744 = vadd.f32 %v3705, %v3726
      %v3745 = vadd.f32 %v3706, %v3726
      %v3746 = vadd.f32 %v3707, %v3726
      %v3747 = vadd.f32 %v3708, %v3726
      %v3748 = vadd.f32 %v3709, %v3726
      %v3749 = vadd.f32 %v3710, %v3726
      %v3750 = vadd.f32 %v3711, %v3726
      %v3751 = vadd.f32 %v3712, %v3726
      %v3752 = vadd.f32 %v3713, %v3726
      %v3753 = vadd.f32 %v3714, %v3726
      %v3754 = vadd.f32 %v3715, %v3726
      %v3755 = vadd.f32 %v3716, %v3726
      %v3756 = vadd.f32 %v3717, %v3726
      %v3757 = vadd.f32 %v3718, %v3726
      %v3758 = vadd.f32 %v3719, %v3726
      %v3759 = vadd.f32 %v3720, %v3726
      %vm3760 = vcmp.ge.f32.partialorder %v3728, 0.0
      %vm3761 = vcmp.ge.f32.partialorder %v3729, 0.0
      %vm3762 = vcmp.ge.f32.partialorder %v3730, 0.0
      %vm3763 = vcmp.ge.f32.partialorder %v3731, 0.0
      %vm3764 = vcmp.ge.f32.partialorder %v3732, 0.0
      %vm3765 = vcmp.ge.f32.partialorder %v3733, 0.0
      %vm3766 = vcmp.ge.f32.partialorder %v3734, 0.0
      %vm3767 = vcmp.ge.f32.partialorder %v3735, 0.0
      %vm3768 = vcmp.ge.f32.partialorder %v3736, 0.0
      %vm3769 = vcmp.ge.f32.partialorder %v3737, 0.0
      %vm3770 = vcmp.ge.f32.partialorder %v3738, 0.0
      %vm3771 = vcmp.ge.f32.partialorder %v3739, 0.0
      %vm3772 = vcmp.ge.f32.partialorder %v3740, 0.0
      %vm3773 = vcmp.ge.f32.partialorder %v3741, 0.0
      %vm3774 = vcmp.ge.f32.partialorder %v3742, 0.0
      %vm3775 = vcmp.ge.f32.partialorder %v3743, 0.0
      %vm3776 = vcmp.ge.f32.partialorder %v3744, 0.0
      %vm3777 = vcmp.ge.f32.partialorder %v3745, 0.0
      %vm3778 = vcmp.ge.f32.partialorder %v3746, 0.0
      %vm3779 = vcmp.ge.f32.partialorder %v3747, 0.0
      %vm3780 = vcmp.ge.f32.partialorder %v3748, 0.0
      %vm3781 = vcmp.ge.f32.partialorder %v3749, 0.0
      %vm3782 = vcmp.ge.f32.partialorder %v3750, 0.0
      %vm3783 = vcmp.ge.f32.partialorder %v3751, 0.0
      %vm3784 = vcmp.ge.f32.partialorder %v3752, 0.0
      %vm3785 = vcmp.ge.f32.partialorder %v3753, 0.0
      %vm3786 = vcmp.ge.f32.partialorder %v3754, 0.0
      %vm3787 = vcmp.ge.f32.partialorder %v3755, 0.0
      %vm3788 = vcmp.ge.f32.partialorder %v3756, 0.0
      %vm3789 = vcmp.ge.f32.partialorder %v3757, 0.0
      %vm3790 = vcmp.ge.f32.partialorder %v3758, 0.0
      %vm3791 = vcmp.ge.f32.partialorder %v3759, 0.0
      %v3792 = vmul.f32 %v3728, 0.22916667
      %v3793 = vmul.f32 %v3729, 0.22916667
      %v3794 = vmul.f32 %v3730, 0.22916667
      %v3795 = vmul.f32 %v3731, 0.22916667
      %v3796 = vmul.f32 %v3732, 0.22916667
      %v3797 = vmul.f32 %v3733, 0.22916667
      %v3798 = vmul.f32 %v3734, 0.22916667
      %v3799 = vmul.f32 %v3735, 0.22916667
      %v3800 = vmul.f32 %v3736, 0.22916667
      %v3801 = vmul.f32 %v3737, 0.22916667
      %v3802 = vmul.f32 %v3738, 0.22916667
      %v3803 = vmul.f32 %v3739, 0.22916667
      %v3804 = vmul.f32 %v3740, 0.22916667
      %v3805 = vmul.f32 %v3741, 0.22916667
      %v3806 = vmul.f32 %v3742, 0.22916667
      %v3807 = vmul.f32 %v3743, 0.22916667
      %v3808 = vmul.f32 %v3744, 0.22916667
      %v3809 = vmul.f32 %v3745, 0.22916667
      %v3810 = vmul.f32 %v3746, 0.22916667
      %v3811 = vmul.f32 %v3747, 0.22916667
      %v3812 = vmul.f32 %v3748, 0.22916667
      %v3813 = vmul.f32 %v3749, 0.22916667
      %v3814 = vmul.f32 %v3750, 0.22916667
      %v3815 = vmul.f32 %v3751, 0.22916667
      %v3816 = vmul.f32 %v3752, 0.22916667
      %v3817 = vmul.f32 %v3753, 0.22916667
      %v3818 = vmul.f32 %v3754, 0.22916667
      %v3819 = vmul.f32 %v3755, 0.22916667
      %v3820 = vmul.f32 %v3756, 0.22916667
      %v3821 = vmul.f32 %v3757, 0.22916667
      %v3822 = vmul.f32 %v3758, 0.22916667
      %v3823 = vmul.f32 %v3759, 0.22916667
      %v3824 = vsel %vm3760, %v3728, %v3792
      %v3825 = vsel %vm3761, %v3729, %v3793
      %v3826 = vsel %vm3762, %v3730, %v3794
      %v3827 = vsel %vm3763, %v3731, %v3795
      %v3828 = vsel %vm3764, %v3732, %v3796
      %v3829 = vsel %vm3765, %v3733, %v3797
      %v3830 = vsel %vm3766, %v3734, %v3798
      %v3831 = vsel %vm3767, %v3735, %v3799
      %v3832 = vsel %vm3768, %v3736, %v3800
      %v3833 = vsel %vm3769, %v3737, %v3801
      %v3834 = vsel %vm3770, %v3738, %v3802
      %v3835 = vsel %vm3771, %v3739, %v3803
      %v3836 = vsel %vm3772, %v3740, %v3804
      %v3837 = vsel %vm3773, %v3741, %v3805
      %v3838 = vsel %vm3774, %v3742, %v3806
      %v3839 = vsel %vm3775, %v3743, %v3807
      %v3840 = vsel %vm3776, %v3744, %v3808
      %v3841 = vsel %vm3777, %v3745, %v3809
      %v3842 = vsel %vm3778, %v3746, %v3810
      %v3843 = vsel %vm3779, %v3747, %v3811
      %v3844 = vsel %vm3780, %v3748, %v3812
      %v3845 = vsel %vm3781, %v3749, %v3813
      %v3846 = vsel %vm3782, %v3750, %v3814
      %v3847 = vsel %vm3783, %v3751, %v3815
      %v3848 = vsel %vm3784, %v3752, %v3816
      %v3849 = vsel %vm3785, %v3753, %v3817
      %v3850 = vsel %vm3786, %v3754, %v3818
      %v3851 = vsel %vm3787, %v3755, %v3819
      %v3852 = vsel %vm3788, %v3756, %v3820
      %v3853 = vsel %vm3789, %v3757, %v3821
      %v3854 = vsel %vm3790, %v3758, %v3822
      %v3855 = vsel %vm3791, %v3759, %v3823
      %3856 = vst [vmem:[%s197] sm:$0xff] %v3824
      %3857 = vst [vmem:[%s197 + $0x8] sm:$0xff] %v3825
      %3858 = vst [vmem:[%s197 + $0x10] sm:$0xff] %v3826
      %3859 = vst [vmem:[%s197 + $0x18] sm:$0xff] %v3827
      %3860 = vst [vmem:[%s197 + $0x20] sm:$0xff] %v3828
      %3861 = vst [vmem:[%s197 + $0x28] sm:$0xff] %v3829
      %3862 = vst [vmem:[%s197 + $0x30] sm:$0xff] %v3830
      %3863 = vst [vmem:[%s197 + $0x38] sm:$0xff] %v3831
      %3864 = vst [vmem:[%s197 + $0x40] sm:$0xff] %v3832
      %3865 = vst [vmem:[%s197 + $0x48] sm:$0xff] %v3833
      %3866 = vst [vmem:[%s197 + $0x50] sm:$0xff] %v3834
      %3867 = vst [vmem:[%s197 + $0x58] sm:$0xff] %v3835
      %3868 = vst [vmem:[%s197 + $0x60] sm:$0xff] %v3836
      %3869 = vst [vmem:[%s197 + $0x68] sm:$0xff] %v3837
      %3870 = vst [vmem:[%s197 + $0x70] sm:$0xff] %v3838
      %3871 = vst [vmem:[%s197 + $0x78] sm:$0xff] %v3839
      %3872 = vst [vmem:[%s197 + $0x80] sm:$0xff] %v3840
      %3873 = vst [vmem:[%s197 + $0x88] sm:$0xff] %v3841
      %3874 = vst [vmem:[%s197 + $0x90] sm:$0xff] %v3842
      %3875 = vst [vmem:[%s197 + $0x98] sm:$0xff] %v3843
      %3876 = vst [vmem:[%s197 + $0xa0] sm:$0xff] %v3844
      %3877 = vst [vmem:[%s197 + $0xa8] sm:$0xff] %v3845
      %3878 = vst [vmem:[%s197 + $0xb0] sm:$0xff] %v3846
      %3879 = vst [vmem:[%s197 + $0xb8] sm:$0xff] %v3847
      %3880 = vst [vmem:[%s197 + $0xc0] sm:$0xff] %v3848
      %3881 = vst [vmem:[%s197 + $0xc8] sm:$0xff] %v3849
      %3882 = vst [vmem:[%s197 + $0xd0] sm:$0xff] %v3850
      %3883 = vst [vmem:[%s197 + $0xd8] sm:$0xff] %v3851
      %3884 = vst [vmem:[%s197 + $0xe0] sm:$0xff] %v3852
      %3885 = vst [vmem:[%s197 + $0xe8] sm:$0xff] %v3853
      %3886 = vst [vmem:[%s197 + $0xf0] sm:$0xff] %v3854
      %3887 = vst [vmem:[%s197 + $0xf8] sm:$0xff] %v3855
      %p3888 = scmp.lt.s32.totalorder %s15, 1
      %s3889 = scalar_select %p3888, %s15, 1
      %s3890 = smul.addr %s3889, 32
      %s3891 = smul.addr %s3890, 8
      %s3892 = scalar_lea.vmem %s4, %s3891
      // Predicated region
      $region37: #{conv_block_forward.2} parent=35 // pred_check
        %p3893 = pneg %p122
      $region38: #{conv_block_forward.2} parent=35 // pred_check_branch
        %3895 = sbr.rel (%p3893) target = $region40
      $region39: #{conv_block_forward.2} parent=35 // pred_region
        _
      $region40: #{conv_block_forward.2} parent=35 // pred_fallthru
        _
    $region36: #{conv_block_forward.2} parent=5 // pred_fallthru
      _
    %p3896 = scmp.le.s32.totalorder 2, %s10
    // Predicated region
    $region41: #{conv_block_forward.2} parent=5 // pred_check
      %p3897 = pneg %p3896
    $region42: #{conv_block_forward.2} parent=5 // pred_check_branch
      %3899 = sbr.rel (%p3897) target = $region44
    $region43: #{conv_block_forward.2} parent=5 // pred_region
      %s3900 = ssub.s32 %s10, 2
      // Predicated region
      $region45: #{conv_block_forward.2} parent=43 // pred_check
        %p3901 = pneg %p128
      $region46: #{conv_block_forward.2} parent=43 // pred_check_branch
        %3903 = sbr.rel (%p3901) target = $region48
      $region47: #{conv_block_forward.2} parent=43 // pred_region
        %p3904 = scmp.lt.s32.totalorder %s16, 1
        %s3905 = scalar_select %p3904, %s16, 1
        %s3906 = smul.addr %s3905, 32
        %s3907 = smul.addr %s3906, 8
        %s3908 = scalar_lea.vmem %s4, %s3907
      $region48: #{conv_block_forward.2} parent=43 // pred_fallthru
        _
    $region44: #{conv_block_forward.2} parent=5 // pred_fallthru
      _
  $region6: #{conv_block_forward.2} parent=0 // loop_footer
    %s14 = sadd.s32 1, %s10
  $region7: #{conv_block_forward.2} parent=0 // loop_footer_branch
    %9 = sbr.rel target = $region3
  $region8: #{conv_block_forward.2} parent=0 // loop_exit
    _

// kernel: conv_block_forward.3
$region0: #{conv_block_forward.3}
  #allocation0 [shape = 'u32[]', space=smem, size = 0x4, offset = 0x4, fixed_abs, tag = 'smem constant byte address 0x4 - core index']
  #allocation1 [shape = 'u32[144,128]{1,0:T(1,128)}', space=vmem, size = 0x12000, scoped, tag = 'internal scratch']
  %s0 = inlined_call_operand.vmem [shape: f32[2,18,18,128], index: 0, kind: input, shape index: {}]
  %s1 = inlined_call_operand.vmem [shape: f32[9,128,128], index: 1, kind: input, shape index: {}]
  %s2 = inlined_call_operand.vmem [shape: f32[1,128], index: 2, kind: input, shape index: {}]
  %s3 = inlined_call_operand.vmem [shape: f32[1,128], index: 3, kind: input, shape index: {}]
  %s4 = inlined_call_operand.vmem [shape: f32[2,16,16,128], index: 4, kind: output, shape index: {}]
  %s5 = sld [smem:[#allocation0]]
  $region49: #{conv_block_forward.3} parent=0
    _
  %s7 = ssub.s32 1, %s5
  %s8 = scalar_select 0, %s7, %s5
  loop: start=0, step=1, limit=4
  $region2: #{conv_block_forward.3} parent=0 // loop_pre_header
    _
  $region3: #{conv_block_forward.3} parent=0 // loop_header
    %s10 = sphi 0, %s14
    %p11 = scmp.ge.s32.totalorder %s10, 4
    %s20 = sphi 0, %s22
    %s23 = sphi 0, %s20
    %s24 = sphi 0, %s23
    %s40 = sphi 0, %s24
    %s44 = sphi 0, %s44
    %s46 = sphi 0, %s44
    %s47 = sphi 0, %s46
    %s61 = sphi 0, %s47
    %s65 = sphi 0, %s65
    %s67 = sphi 0, %s65
    %s68 = sphi 0, %s67
    %s82 = sphi 0, %s68
    %s86 = sphi 0, %s86
    %s88 = sphi 0, %s86
    %s89 = sphi 0, %s88
    %s103 = sphi 0, %s89
    %s109 = sphi 0, %s111
    %s112 = sphi 0, %s109
    %s113 = sphi 0, %s112
    %s129 = sphi 0, %s113
  $region4: #{conv_block_forward.3} parent=0 // loop_header_branch
    %13 = sbr.rel (%p11) target = $region8
  $region5: #{conv_block_forward.3} parent=0 // loop_body
    %s15 = ssub.s32 %s10, 1
    %s16 = ssub.s32 %s10, 2
    %s17 = sadd.s32 %s10, 1
    %s18 = ssub.s32 %s10, %s17
    %p19 = scmp.eq.s32.totalorder %s18, 0
    %s21 = sadd.s32 %s20, 1
    %s22 = scalar_select %p19, %s20, %s21
    %p25 = pneg %p19
    %p26 = scmp.eq.s32.totalorder %s10, 1
    %p27 = por %p25, %p26
    %p28 = scmp.ne.s32.totalorder %s20, %s23
    %p29 = scmp.eq.s32.totalorder %s10, 0
    %p30 = por %p28, %p29
    %p31 = scmp.ne.s32.totalorder %s20, %s23
    %p32 = scmp.eq.s32.totalorder %s15, 1
    %p33 = por %p31, %p32
    %p34 = scmp.ne.s32.totalorder %s23, %s24
    %p35 = scmp.eq.s32.totalorder %s15, 0
    %p36 = por %p34, %p35
    %p37 = scmp.ne.s32.totalorder %s23, %s24
    %p38 = scmp.eq.s32.totalorder %s16, 1
    %p39 = por %p37, %p38
    %p41 = scmp.ne.s32.totalorder %s24, %s40
    %p42 = scmp.eq.s32.totalorder %s16, 0
    %p43 = por %p41, %p42
    %s45 = sadd.s32 %s44, 1
    %p48 = scmp.eq.s32.totalorder %s10, 1
    %p49 = scmp.ne.s32.totalorder %s44, %s46
    %p50 = scmp.eq.s32.totalorder %s10, 0
    %p51 = por %p49, %p50
    %p52 = scmp.ne.s32.totalorder %s44, %s46
    %p53 = scmp.eq.s32.totalorder %s15, 1
    %p54 = por %p52, %p53
    %p55 = scmp.ne.s32.totalorder %s46, %s47
    %p56 = scmp.eq.s32.totalorder %s15, 0
    %p57 = por %p55, %p56
    %p58 = scmp.ne.s32.totalorder %s46, %s47
    %p59 = scmp.eq.s32.totalorder %s16, 1
    %p60 = por %p58, %p59
    %p62 = scmp.ne.s32.totalorder %s47, %s61
    %p63 = scmp.eq.s32.totalorder %s16, 0
    %p64 = por %p62, %p63
    %s66 = sadd.s32 %s65, 1
    %p69 = scmp.eq.s32.totalorder %s10, 1
    %p70 = scmp.ne.s32.totalorder %s65, %s67
    %p71 = scmp.eq.s32.totalorder %s10, 0
    %p72 = por %p70, %p71
    %p73 = scmp.ne.s32.totalorder %s65, %s67
    %p74 = scmp.eq.s32.totalorder %s15, 1
    %p75 = por %p73, %p74
    %p76 = scmp.ne.s32.totalorder %s67, %s68
    %p77 = scmp.eq.s32.totalorder %s15, 0
    %p78 = por %p76, %p77
    %p79 = scmp.ne.s32.totalorder %s67, %s68
    %p80 = scmp.eq.s32.totalorder %s16, 1
    %p81 = por %p79, %p80
    %p83 = scmp.ne.s32.totalorder %s68, %s82
    %p84 = scmp.eq.s32.totalorder %s16, 0
    %p85 = por %p83, %p84
    %s87 = sadd.s32 %s86, 1
    %p90 = scmp.eq.s32.totalorder %s10, 1
    %p91 = scmp.ne.s32.totalorder %s86, %s88
    %p92 = scmp.eq.s32.totalorder %s10, 0
    %p93 = por %p91, %p92
    %p94 = scmp.ne.s32.totalorder %s86, %s88
    %p95 = scmp.eq.s32.totalorder %s15, 1
    %p96 = por %p94, %p95
    %p97 = scmp.ne.s32.totalorder %s88, %s89
    %p98 = scmp.eq.s32.totalorder %s15, 0
    %p99 = por %p97, %p98
    %p100 = scmp.ne.s32.totalorder %s88, %s89
    %p101 = scmp.eq.s32.totalorder %s16, 1
    %p102 = por %p100, %p101
    %p104 = scmp.ne.s32.totalorder %s89, %s103
    %p105 = scmp.eq.s32.totalorder %s16, 0
    %p106 = por %p104, %p105
    %s107 = ssub.s32 %s10, %s17
    %p108 = scmp.eq.s32.totalorder %s107, 0
    %s110 = sadd.s32 %s109, 1
    %s111 = scalar_select %p108, %s109, %s110
    %p114 = pneg %p108
    %p115 = scmp.eq.s32.totalorder %s10, 1
    %p116 = por %p114, %p115
    %p117 = scmp.ne.s32.totalorder %s109, %s112
    %p118 = scmp.eq.s32.totalorder %s10, 0
    %p119 = por %p117, %p118
    %p120 = scmp.ne.s32.totalorder %s109, %s112
    %p121 = scmp.eq.s32.totalorder %s15, 1
    %p122 = por %p120, %p121
    %p123 = scmp.ne.s32.totalorder %s112, %s113
    %p124 = scmp.eq.s32.totalorder %s15, 0
    %p125 = por %p123, %p124
    %p126 = scmp.ne.s32.totalorder %s112, %s113
    %p127 = scmp.eq.s32.totalorder %s16, 1
    %p128 = por %p126, %p127
    %p130 = scmp.ne.s32.totalorder %s113, %s129
    %p131 = scmp.eq.s32.totalorder %s16, 0
    %p132 = por %p130, %p131
    %p133 = scmp.le.s32.totalorder 1, %s10
    %p134 = scmp.lt.s32.totalorder %s10, 3
    %p135 = pnand %p133, %p134
    %p136 = pneg %p135
    // Predicated region
    $region9: #{conv_block_forward.3} parent=5 // pred_check
      _
    $region10: #{conv_block_forward.3} parent=5 // pred_check_branch
      %138 = sbr.rel (%p135) target = $region12
    $region11: #{conv_block_forward.3} parent=5 // pred_region
      %s139 = ssub.s32 %s10, 1
      // Predicated region
      $region13: #{conv_block_forward.3} parent=11 // pred_check
        %p140 = pneg %p57
      $region14: #{conv_block_forward.3} parent=11 // pred_check_branch
        %142 = sbr.rel (%p140) target = $region16
      $region15: #{conv_block_forward.3} parent=11 // pred_region
        _
      $region16: #{conv_block_forward.3} parent=11 // pred_fallthru
        _
      // Predicated region
      $region17: #{conv_block_forward.3} parent=11 // pred_check
        %p143 = pneg %p78
      $region18: #{conv_block_forward.3} parent=11 // pred_check_branch
        %145 = sbr.rel (%p143) target = $region20
      $region19: #{conv_block_forward.3} parent=11 // pred_region
        _
      $region20: #{conv_block_forward.3} parent=11 // pred_fallthru
        _
      // Predicated region
      $region21: #{conv_block_forward.3} parent=11 // pred_check
        %p146 = pneg %p99
      $region22: #{conv_block_forward.3} parent=11 // pred_check_branch
        %148 = sbr.rel (%p146) target = $region24
      $region23: #{conv_block_forward.3} parent=11 // pred_region
        _
      $region24: #{conv_block_forward.3} parent=11 // pred_fallthru
        _
    $region12: #{conv_block_forward.3} parent=5 // pred_fallthru
      _
    %p149 = scmp.lt.s32.totalorder %s10, 2
    // Predicated region
    $region25: #{conv_block_forward.3} parent=5 // pred_check
      %p150 = pneg %p149
    $region26: #{conv_block_forward.3} parent=5 // pred_check_branch
      %152 = sbr.rel (%p150) target = $region28
    $region27: #{conv_block_forward.3} parent=5 // pred_region
      // Predicated region
      $region29: #{conv_block_forward.3} parent=27 // pred_check
        %p153 = pneg %p30
      $region30: #{conv_block_forward.3} parent=27 // pred_check_branch
        %155 = sbr.rel (%p153) target = $region32
      $region31: #{conv_block_forward.3} parent=27 // pred_region
        %p156 = scmp.lt.s32.totalorder %s10, 1
        %s157 = scalar_select %p156, %s10, 1
        %s158 = smul.addr %s157, 54
        %s159 = smul.addr %s158, 8
        %s160 = scalar_lea.vmem %s0, %s159
      $region32: #{conv_block_forward.3} parent=27 // pred_fallthru
        _
    $region28: #{conv_block_forward.3} parent=5 // pred_fallthru
      _
    %p161 = scmp.le.s32.totalorder 1, %s10
    %p162 = scmp.lt.s32.totalorder %s10, 3
    %p163 = pnand %p161, %p162
    %p164 = pneg %p163
    // Predicated region
    $region33: #{conv_block_forward.3} parent=5 // pred_check
      _
    $region34: #{conv_block_forward.3} parent=5 // pred_check_branch
      %166 = sbr.rel (%p163) target = $region36
    $region35: #{conv_block_forward.3} parent=5 // pred_region
      %s167 = ssub.s32 %s10, 1
      %p168 = scmp.lt.s32.totalorder %s15, 1
      %s169 = scalar_select %p168, %s15, 1
      %s170 = smul.addr %s169, 54
      %s171 = smul.addr %s170, 8
      %s172 = scalar_lea.vmem %s0, %s171
      %p173 = pneg %p36
      %p174 = pneg %p33
      %p175 = pneg %p57
      %p176 = pneg %p54
      %p177 = pneg %p78
      %p178 = pneg %p75
      %p179 = pneg %p99
      %p180 = pneg %p96
      %p181 = pneg %p125
      %p182 = pneg %p122
      %p183 = scmp.lt.s32.totalorder %s15, 1
      %s184 = scalar_select %p183, %s15, 1
      %s185 = smul.addr %s184, 32
      %s186 = smul.addr %s185, 8
      %s187 = scalar_lea.vmem %s4, %s186
      %p188 = scmp.lt.s32.totalorder %s15, 1
      %s189 = scalar_select %p188, %s15, 1
      %s190 = smul.addr %s189, 54
      %s191 = smul.addr %s190, 8
      %s192 = scalar_lea.vmem %s0, %s191
      %p193 = scmp.lt.s32.totalorder %s15, 1
      %s194 = scalar_select %p193, %s15, 1
      %s195 = smul.addr %s194, 32
      %s196 = smul.addr %s195, 8
      %s197 = scalar_lea.vmem %s4, %s196
      %v198 = vld [vmem:[%s192] sm:$0xff]
      %v199 = vld [vmem:[%s192 + $0x8] sm:$0xff]
      %v200 = vld [vmem:[%s192 + $0x18] sm:$0xff]
      %v201 = vld [vmem:[%s192 + $0x20] sm:$0xff]
      %v202 = vld [vmem:[%s192 + $0x30] sm:$0xff]
      %v203 = vld [vmem:[%s192 + $0x38] sm:$0xff]
      %v204 = vld [vmem:[%s192 + $0x48] sm:$0xff]
      %v205 = vld [vmem:[%s192 + $0x50] sm:$0xff]
      %v206 = vld [vmem:[%s192 + $0x60] sm:$0xff]
      %v207 = vld [vmem:[%s192 + $0x68] sm:$0xff]
      %v208 = vld [vmem:[%s192 + $0x78] sm:$0xff]
      %v209 = vld [vmem:[%s192 + $0x80] sm:$0xff]
      %v210 = vld [vmem:[%s192 + $0x90] sm:$0xff]
      %v211 = vld [vmem:[%s192 + $0x98] sm:$0xff]
      %v212 = vld [vmem:[%s192 + $0xa8] sm:$0xff]
      %v213 = vld [vmem:[%s192 + $0xb0] sm:$0xff]
      %v214 = vld [vmem:[%s192 + $0xc0] sm:$0xff]
      %v215 = vld [vmem:[%s192 + $0xc8] sm:$0xff]
      %v216 = vld [vmem:[%s192 + $0xd8] sm:$0xff]
      %v217 = vld [vmem:[%s192 + $0xe0] sm:$0xff]
      %v218 = vld [vmem:[%s192 + $0xf0] sm:$0xff]
      %v219 = vld [vmem:[%s192 + $0xf8] sm:$0xff]
      %v220 = vld [vmem:[%s192 + $0x108] sm:$0xff]
      %v221 = vld [vmem:[%s192 + $0x110] sm:$0xff]
      %v222 = vld [vmem:[%s192 + $0x120] sm:$0xff]
      %v223 = vld [vmem:[%s192 + $0x128] sm:$0xff]
      %v224 = vld [vmem:[%s192 + $0x138] sm:$0xff]
      %v225 = vld [vmem:[%s192 + $0x140] sm:$0xff]
      %v226 = vld [vmem:[%s192 + $0x150] sm:$0xff]
      %v227 = vld [vmem:[%s192 + $0x158] sm:$0xff]
      %v228 = vld [vmem:[%s192 + $0x168] sm:$0xff]
      %v229 = vld [vmem:[%s192 + $0x170] sm:$0xff]
      %v230 = vld [vmem:[%s1] sm:$0xff]
      %v231 = vld [vmem:[%s1 + $0x8] sm:$0xff]
      %v232 = vld [vmem:[%s1 + $0x10] sm:$0xff]
      %v233 = vld [vmem:[%s1 + $0x18] sm:$0xff]
      %v234 = vld [vmem:[%s1 + $0x20] sm:$0xff]
      %v235 = vld [vmem:[%s1 + $0x28] sm:$0xff]
      %v236 = vld [vmem:[%s1 + $0x30] sm:$0xff]
      %v237 = vld [vmem:[%s1 + $0x38] sm:$0xff]
      %v238 = vld [vmem:[%s1 + $0x40] sm:$0xff]
      %v239 = vld [vmem:[%s1 + $0x48] sm:$0xff]
      %v240 = vld [vmem:[%s1 + $0x50] sm:$0xff]
      %v241 = vld [vmem:[%s1 + $0x58] sm:$0xff]
      %v242 = vld [vmem:[%s1 + $0x60] sm:$0xff]
      %v243 = vld [vmem:[%s1 + $0x68] sm:$0xff]
      %v244 = vld [vmem:[%s1 + $0x70] sm:$0xff]
      %v245 = vld [vmem:[%s1 + $0x78] sm:$0xff]
      %v246 = vld [vmem:[%s192 + $0x1] sm:$0xff]
      %v247 = vld [vmem:[%s192 + $0x9] sm:$0xff]
      %v248 = vld [vmem:[%s192 + $0x19] sm:$0xff]
      %v249 = vld [vmem:[%s192 + $0x21] sm:$0xff]
      %v250 = vld [vmem:[%s192 + $0x31] sm:$0xff]
      %v251 = vld [vmem:[%s192 + $0x39] sm:$0xff]
      %v252 = vld [vmem:[%s192 + $0x49] sm:$0xff]
      %v253 = vld [vmem:[%s192 + $0x51] sm:$0xff]
      %v254 = vld [vmem:[%s192 + $0x61] sm:$0xff]
      %v255 = vld [vmem:[%s192 + $0x69] sm:$0xff]
      %v256 = vld [vmem:[%s192 + $0x79] sm:$0xff]
      %v257 = vld [vmem:[%s192 + $0x81] sm:$0xff]
      %v258 = vld [vmem:[%s192 + $0x91] sm:$0xff]
      %v259 = vld [vmem:[%s192 + $0x99] sm:$0xff]
      %v260 = vld [vmem:[%s192 + $0xa9] sm:$0xff]
      %v261 = vld [vmem:[%s192 + $0xb1] sm:$0xff]
      %v262 = vld [vmem:[%s192 + $0xc1] sm:$0xff]
      %v263 = vld [vmem:[%s192 + $0xc9] sm:$0xff]
      %v264 = vld [vmem:[%s192 + $0xd9] sm:$0xff]
      %v265 = vld [vmem:[%s192 + $0xe1] sm:$0xff]
      %v266 = vld [vmem:[%s192 + $0xf1] sm:$0xff]
      %v267 = vld [vmem:[%s192 + $0xf9] sm:$0xff]
      %v268 = vld [vmem:[%s192 + $0x109] sm:$0xff]
      %v269 = vld [vmem:[%s192 + $0x111] sm:$0xff]
      %v270 = vld [vmem:[%s192 + $0x121] sm:$0xff]
      %v271 = vld [vmem:[%s192 + $0x129] sm:$0xff]
      %v272 = vld [vmem:[%s192 + $0x139] sm:$0xff]
      %v273 = vld [vmem:[%s192 + $0x141] sm:$0xff]
      %v274 = vld [vmem:[%s192 + $0x151] sm:$0xff]
      %v275 = vld [vmem:[%s192 + $0x159] sm:$0xff]
      %v276 = vld [vmem:[%s192 + $0x169] sm:$0xff]
      %v277 = vld [vmem:[%s192 + $0x171] sm:$0xff]
      %s278 = scalar_lea.vmem %s1, 128
      %v279 = vld [vmem:[%s278] sm:$0xff]
      %v280 = vld [vmem:[%s278 + $0x8] sm:$0xff]
      %v281 = vld [vmem:[%s278 + $0x10] sm:$0xff]
      %v282 = vld [vmem:[%s278 + $0x18] sm:$0xff]
      %v283 = vld [vmem:[%s278 + $0x20] sm:$0xff]
      %v284 = vld [vmem:[%s278 + $0x28] sm:$0xff]
      %v285 = vld [vmem:[%s278 + $0x30] sm:$0xff]
      %v286 = vld [vmem:[%s278 + $0x38] sm:$0xff]
      %v287 = vld [vmem:[%s278 + $0x40] sm:$0xff]
      %v288 = vld [vmem:[%s278 + $0x48] sm:$0xff]
      %v289 = vld [vmem:[%s278 + $0x50] sm:$0xff]
      %v290 = vld [vmem:[%s278 + $0x58] sm:$0xff]
      %v291 = vld [vmem:[%s278 + $0x60] sm:$0xff]
      %v292 = vld [vmem:[%s278 + $0x68] sm:$0xff]
      %v293 = vld [vmem:[%s278 + $0x70] sm:$0xff]
      %v294 = vld [vmem:[%s278 + $0x78] sm:$0xff]
      %295 = vmatprep.subr.mxu0 0.0
      %296 = vmatpush1.msra.mxu0 %v294
      %297 = vmatprep.subr.mxu0 0.0
      %298 = vmatpush1.msra.mxu0 %v293
      %299 = vmatprep.subr.mxu0 0.0
      %300 = vmatpush1.msra.mxu0 %v292
      %301 = vmatprep.subr.mxu0 0.0
      %302 = vmatpush1.msra.mxu0 %v291
      %303 = vmatprep.subr.mxu0 0.0
      %304 = vmatpush1.msra.mxu0 %v290
      %305 = vmatprep.subr.mxu0 0.0
      %306 = vmatpush1.msra.mxu0 %v289
      %307 = vmatprep.subr.mxu0 0.0
      %308 = vmatpush1.msra.mxu0 %v288
      %309 = vmatprep.subr.mxu0 0.0
      %310 = vmatpush1.msra.mxu0 %v287
      %311 = vmatprep.subr.mxu0 0.0
      %312 = vmatpush1.msra.mxu0 %v286
      %313 = vmatprep.subr.mxu0 0.0
      %314 = vmatpush1.msra.mxu0 %v285
      %315 = vmatprep.subr.mxu0 0.0
      %316 = vmatpush1.msra.mxu0 %v284
      %317 = vmatprep.subr.mxu0 0.0
      %318 = vmatpush1.msra.mxu0 %v283
      %319 = vmatprep.subr.mxu0 0.0
      %320 = vmatpush1.msra.mxu0 %v282
      %321 = vmatprep.subr.mxu0 0.0
      %322 = vmatpush1.msra.mxu0 %v281
      %323 = vmatprep.subr.mxu0 0.0
      %324 = vmatpush1.msra.mxu0 %v280
      %325 = vmatprep.subr.mxu0 0.0
      %326 = vmatpush1.msra.mxu0 %v279
      %327 = vmatprep.subr.mxu0 0.0
      %328 = vmatpush2.msra.mxu0 0.0
      %329 = vmatprep.subr.mxu0 0.0
      %330 = vmatpush2.msra.mxu0 0.0
      %331 = vmatprep.subr.mxu0 0.0
      %332 = vmatpush2.msra.mxu0 0.0
      %333 = vmatprep.subr.mxu0 0.0
      %334 = vmatpush2.msra.mxu0 0.0
      %335 = vmatprep.subr.mxu0 0.0
      %336 = vmatpush2.msra.mxu0 0.0
      %337 = vmatprep.subr.mxu0 0.0
      %338 = vmatpush2.msra.mxu0 0.0
      %339 = vmatprep.subr.mxu0 0.0
      %340 = vmatpush2.msra.mxu0 0.0
      %341 = vmatprep.subr.mxu0 0.0
      %342 = vmatpush2.msra.mxu0 0.0
      %343 = vmatprep.subr.mxu0 0.0
      %344 = vmatpush2.msra.mxu0 0.0
      %345 = vmatprep.subr.mxu0 0.0
      %346 = vmatpush2.msra.mxu0 0.0
      %347 = vmatprep.subr.mxu0 0.0
      %348 = vmatpush2.msra.mxu0 0.0
      %349 = vmatprep.subr.mxu0 0.0
      %350 = vmatpush2.msra.mxu0 0.0
      %351 = vmatprep.subr.mxu0 0.0
      %352 = vmatpush2.msra.mxu0 0.0
      %353 = vmatprep.subr.mxu0 0.0
      %354 = vmatpush2.msra.mxu0 0.0
      %355 = vmatprep.subr.mxu0 0.0
      %356 = vmatpush2.msra.mxu0 0.0
      %357 = vmatprep.subr.mxu0 0.0
      %358 = vmatpush2.msra.mxu0 0.0
      %359 = vmatprep.mubr.f32.mxu0 0.0
      %360 = vmatmul.mubr.f32.gmra.mxu0 %v246
      %v361 = vpop.f32.mrf.mxu0
      %v362 = vadd.f32 0.0, %v361
      %v363 = vpop.f32.mrf.mxu0
      %364 = vmatprep.mubr.f32.mxu0 0.0
      %365 = vmatmul.mubr.f32.gmra.mxu0 %v247
      %v366 = vpop.f32.mrf.mxu0
      %v367 = vadd.f32 0.0, %v366
      %v368 = vpop.f32.mrf.mxu0
      %369 = vmatprep.mubr.f32.mxu0 0.0
      %370 = vmatmul.mubr.f32.gmra.mxu0 %v248
      %v371 = vpop.f32.mrf.mxu0
      %v372 = vadd.f32 0.0, %v371
      %v373 = vpop.f32.mrf.mxu0
      %374 = vmatprep.mubr.f32.mxu0 0.0
      %375 = vmatmul.mubr.f32.gmra.mxu0 %v249
      %v376 = vpop.f32.mrf.mxu0
      %v377 = vadd.f32 0.0, %v376
      %v378 = vpop.f32.mrf.mxu0
      %379 = vmatprep.mubr.f32.mxu0 0.0
      %380 = vmatmul.mubr.f32.gmra.mxu0 %v250
      %v381 = vpop.f32.mrf.mxu0
      %v382 = vadd.f32 0.0, %v381
      %v383 = vpop.f32.mrf.mxu0
      %384 = vmatprep.mubr.f32.mxu0 0.0
      %385 = vmatmul.mubr.f32.gmra.mxu0 %v251
      %v386 = vpop.f32.mrf.mxu0
      %v387 = vadd.f32 0.0, %v386
      %v388 = vpop.f32.mrf.mxu0
      %389 = vmatprep.mubr.f32.mxu0 0.0
      %390 = vmatmul.mubr.f32.gmra.mxu0 %v252
      %v391 = vpop.f32.mrf.mxu0
      %v392 = vadd.f32 0.0, %v391
      %v393 = vpop.f32.mrf.mxu0
      %394 = vmatprep.mubr.f32.mxu0 0.0
      %395 = vmatmul.mubr.f32.gmra.mxu0 %v253
      %v396 = vpop.f32.mrf.mxu0
      %v397 = vadd.f32 0.0, %v396
      %v398 = vpop.f32.mrf.mxu0
      %399 = vmatprep.mubr.f32.mxu0 0.0
      %400 = vmatmul.mubr.f32.gmra.mxu0 %v254
      %v401 = vpop.f32.mrf.mxu0
      %v402 = vadd.f32 0.0, %v401
      %v403 = vpop.f32.mrf.mxu0
      %404 = vmatprep.mubr.f32.mxu0 0.0
      %405 = vmatmul.mubr.f32.gmra.mxu0 %v255
      %v406 = vpop.f32.mrf.mxu0
      %v407 = vadd.f32 0.0, %v406
      %v408 = vpop.f32.mrf.mxu0
      %409 = vmatprep.mubr.f32.mxu0 0.0
      %410 = vmatmul.mubr.f32.gmra.mxu0 %v256
      %v411 = vpop.f32.mrf.mxu0
      %v412 = vadd.f32 0.0, %v411
      %v413 = vpop.f32.mrf.mxu0
      %414 = vmatprep.mubr.f32.mxu0 0.0
      %415 = vmatmul.mubr.f32.gmra.mxu0 %v257
      %v416 = vpop.f32.mrf.mxu0
      %v417 = vadd.f32 0.0, %v416
      %v418 = vpop.f32.mrf.mxu0
      %419 = vmatprep.mubr.f32.mxu0 0.0
      %420 = vmatmul.mubr.f32.gmra.mxu0 %v258
      %v421 = vpop.f32.mrf.mxu0
      %v422 = vadd.f32 0.0, %v421
      %v423 = vpop.f32.mrf.mxu0
      %424 = vmatprep.mubr.f32.mxu0 0.0
      %425 = vmatmul.mubr.f32.gmra.mxu0 %v259
      %v426 = vpop.f32.mrf.mxu0
      %v427 = vadd.f32 0.0, %v426
      %v428 = vpop.f32.mrf.mxu0
      %429 = vmatprep.mubr.f32.mxu0 0.0
      %430 = vmatmul.mubr.f32.gmra.mxu0 %v260
      %v431 = vpop.f32.mrf.mxu0
      %v432 = vadd.f32 0.0, %v431
      %v433 = vpop.f32.mrf.mxu0
      %434 = vmatprep.mubr.f32.mxu0 0.0
      %435 = vmatmul.mubr.f32.gmra.mxu0 %v261
      %v436 = vpop.f32.mrf.mxu0
      %v437 = vadd.f32 0.0, %v436
      %v438 = vpop.f32.mrf.mxu0
      %439 = vmatprep.mubr.f32.mxu0 0.0
      %440 = vmatmul.mubr.f32.gmra.mxu0 %v262
      %v441 = vpop.f32.mrf.mxu0
      %v442 = vadd.f32 0.0, %v441
      %v443 = vpop.f32.mrf.mxu0
      %444 = vmatprep.mubr.f32.mxu0 0.0
      %445 = vmatmul.mubr.f32.gmra.mxu0 %v263
      %v446 = vpop.f32.mrf.mxu0
      %v447 = vadd.f32 0.0, %v446
      %v448 = vpop.f32.mrf.mxu0
      %449 = vmatprep.mubr.f32.mxu0 0.0
      %450 = vmatmul.mubr.f32.gmra.mxu0 %v264
      %v451 = vpop.f32.mrf.mxu0
      %v452 = vadd.f32 0.0, %v451
      %v453 = vpop.f32.mrf.mxu0
      %454 = vmatprep.mubr.f32.mxu0 0.0
      %455 = vmatmul.mubr.f32.gmra.mxu0 %v265
      %v456 = vpop.f32.mrf.mxu0
      %v457 = vadd.f32 0.0, %v456
      %v458 = vpop.f32.mrf.mxu0
      %459 = vmatprep.mubr.f32.mxu0 0.0
      %460 = vmatmul.mubr.f32.gmra.mxu0 %v266
      %v461 = vpop.f32.mrf.mxu0
      %v462 = vadd.f32 0.0, %v461
      %v463 = vpop.f32.mrf.mxu0
      %464 = vmatprep.mubr.f32.mxu0 0.0
      %465 = vmatmul.mubr.f32.gmra.mxu0 %v267
      %v466 = vpop.f32.mrf.mxu0
      %v467 = vadd.f32 0.0, %v466
      %v468 = vpop.f32.mrf.mxu0
      %469 = vmatprep.mubr.f32.mxu0 0.0
      %470 = vmatmul.mubr.f32.gmra.mxu0 %v268
      %v471 = vpop.f32.mrf.mxu0
      %v472 = vadd.f32 0.0, %v471
      %v473 = vpop.f32.mrf.mxu0
      %474 = vmatprep.mubr.f32.mxu0 0.0
      %475 = vmatmul.mubr.f32.gmra.mxu0 %v269
      %v476 = vpop.f32.mrf.mxu0
      %v477 = vadd.f32 0.0, %v476
      %v478 = vpop.f32.mrf.mxu0
      %479 = vmatprep.mubr.f32.mxu0 0.0
      %480 = vmatmul.mubr.f32.gmra.mxu0 %v270
      %v481 = vpop.f32.mrf.mxu0
      %v482 = vadd.f32 0.0, %v481
      %v483 = vpop.f32.mrf.mxu0
      %484 = vmatprep.mubr.f32.mxu0 0.0
      %485 = vmatmul.mubr.f32.gmra.mxu0 %v271
      %v486 = vpop.f32.mrf.mxu0
      %v487 = vadd.f32 0.0, %v486
      %v488 = vpop.f32.mrf.mxu0
      %489 = vmatprep.mubr.f32.mxu0 0.0
      %490 = vmatmul.mubr.f32.gmra.mxu0 %v272
      %v491 = vpop.f32.mrf.mxu0
      %v492 = vadd.f32 0.0, %v491
      %v493 = vpop.f32.mrf.mxu0
      %494 = vmatprep.mubr.f32.mxu0 0.0
      %495 = vmatmul.mubr.f32.gmra.mxu0 %v273
      %v496 = vpop.f32.mrf.mxu0
      %v497 = vadd.f32 0.0, %v496
      %v498 = vpop.f32.mrf.mxu0
      %499 = vmatprep.mubr.f32.mxu0 0.0
      %500 = vmatmul.mubr.f32.gmra.mxu0 %v274
      %v501 = vpop.f32.mrf.mxu0
      %v502 = vadd.f32 0.0, %v501
      %v503 = vpop.f32.mrf.mxu0
      %504 = vmatprep.mubr.f32.mxu0 0.0
      %505 = vmatmul.mubr.f32.gmra.mxu0 %v275
      %v506 = vpop.f32.mrf.mxu0
      %v507 = vadd.f32 0.0, %v506
      %v508 = vpop.f32.mrf.mxu0
      %509 = vmatprep.mubr.f32.mxu0 0.0
      %510 = vmatmul.mubr.f32.gmra.mxu0 %v276
      %v511 = vpop.f32.mrf.mxu0
      %v512 = vadd.f32 0.0, %v511
      %v513 = vpop.f32.mrf.mxu0
      %514 = vmatprep.mubr.f32.mxu0 0.0
      %515 = vmatmul.mubr.f32.gmra.mxu0 %v277
      %v516 = vpop.f32.mrf.mxu0
      %v517 = vadd.f32 0.0, %v516
      %v518 = vpop.f32.mrf.mxu0
      %519 = vdwg.mxu0
      %520 = vmatprep.subr.mxu0 0.0
      %521 = vmatpush1.msra.mxu0 %v245
      %522 = vmatprep.subr.mxu0 0.0
      %523 = vmatpush1.msra.mxu0 %v244
      %524 = vmatprep.subr.mxu0 0.0
      %525 = vmatpush1.msra.mxu0 %v243
      %526 = vmatprep.subr.mxu0 0.0
      %527 = vmatpush1.msra.mxu0 %v242
      %528 = vmatprep.subr.mxu0 0.0
      %529 = vmatpush1.msra.mxu0 %v241
      %530 = vmatprep.subr.mxu0 0.0
      %531 = vmatpush1.msra.mxu0 %v240
      %532 = vmatprep.subr.mxu0 0.0
      %533 = vmatpush1.msra.mxu0 %v239
      %534 = vmatprep.subr.mxu0 0.0
      %535 = vmatpush1.msra.mxu0 %v238
      %536 = vmatprep.subr.mxu0 0.0
      %537 = vmatpush1.msra.mxu0 %v237
      %538 = vmatprep.subr.mxu0 0.0
      %539 = vmatpush1.msra.mxu0 %v236
      %540 = vmatprep.subr.mxu0 0.0
      %541 = vmatpush1.msra.mxu0 %v235
      %542 = vmatprep.subr.mxu0 0.0
      %543 = vmatpush1.msra.mxu0 %v234
      %544 = vmatprep.subr.mxu0 0.0
      %545 = vmatpush1.msra.mxu0 %v233
      %546 = vmatprep.subr.mxu0 0.0
      %547 = vmatpush1.msra.mxu0 %v232
      %548 = vmatprep.subr.mxu0 0.0
      %549 = vmatpush1.msra.mxu0 %v231
      %550 = vmatprep.subr.mxu0 0.0
      %551 = vmatpush1.msra.mxu0 %v230
      %552 = vmatprep.subr.mxu0 0.0
      %553 = vmatpush2.msra.mxu0 0.0
      %554 = vmatprep.subr.mxu0 0.0
      %555 = vmatpush2.msra.mxu0 0.0
      %556 = vmatprep.subr.mxu0 0.0
      %557 = vmatpush2.msra.mxu0 0.0
      %558 = vmatprep.subr.mxu0 0.0
      %559 = vmatpush2.msra.mxu0 0.0
      %560 = vmatprep.subr.mxu0 0.0
      %561 = vmatpush2.msra.mxu0 0.0
      %562 = vmatprep.subr.mxu0 0.0
      %563 = vmatpush2.msra.mxu0 0.0
      %564 = vmatprep.subr.mxu0 0.0
      %565 = vmatpush2.msra.mxu0 0.0
      %566 = vmatprep.subr.mxu0 0.0
      %567 = vmatpush2.msra.mxu0 0.0
      %568 = vmatprep.subr.mxu0 0.0
      %569 = vmatpush2.msra.mxu0 0.0
      %570 = vmatprep.subr.mxu0 0.0
      %571 = vmatpush2.msra.mxu0 0.0
      %572 = vmatprep.subr.mxu0 0.0
      %573 = vmatpush2.msra.mxu0 0.0
      %574 = vmatprep.subr.mxu0 0.0
      %575 = vmatpush2.msra.mxu0 0.0
      %576 = vmatprep.subr.mxu0 0.0
      %577 = vmatpush2.msra.mxu0 0.0
      %578 = vmatprep.subr.mxu0 0.0
      %579 = vmatpush2.msra.mxu0 0.0
      %580 = vmatprep.subr.mxu0 0.0
      %581 = vmatpush2.msra.mxu0 0.0
      %582 = vmatprep.subr.mxu0 0.0
      %583 = vmatpush2.msra.mxu0 0.0
      %584 = vmatprep.mubr.f32.mxu0 0.0
      %585 = vmatmul.mubr.f32.gmra.mxu0 %v198
      %v586 = vpop.f32.mrf.mxu0
      %v587 = vadd.f32 %v362, %v586
      %v588 = vpop.f32.mrf.mxu0
      %589 = vmatprep.mubr.f32.mxu0 0.0
      %590 = vmatmul.mubr.f32.gmra.mxu0 %v199
      %v591 = vpop.f32.mrf.mxu0
      %v592 = vadd.f32 %v367, %v591
      %v593 = vpop.f32.mrf.mxu0
      %594 = vmatprep.mubr.f32.mxu0 0.0
      %595 = vmatmul.mubr.f32.gmra.mxu0 %v200
      %v596 = vpop.f32.mrf.mxu0
      %v597 = vadd.f32 %v372, %v596
      %v598 = vpop.f32.mrf.mxu0
      %599 = vmatprep.mubr.f32.mxu0 0.0
      %600 = vmatmul.mubr.f32.gmra.mxu0 %v201
      %v601 = vpop.f32.mrf.mxu0
      %v602 = vadd.f32 %v377, %v601
      %v603 = vpop.f32.mrf.mxu0
      %604 = vmatprep.mubr.f32.mxu0 0.0
      %605 = vmatmul.mubr.f32.gmra.mxu0 %v202
      %v606 = vpop.f32.mrf.mxu0
      %v607 = vadd.f32 %v382, %v606
      %v608 = vpop.f32.mrf.mxu0
      %609 = vmatprep.mubr.f32.mxu0 0.0
      %610 = vmatmul.mubr.f32.gmra.mxu0 %v203
      %v611 = vpop.f32.mrf.mxu0
      %v612 = vadd.f32 %v387, %v611
      %v613 = vpop.f32.mrf.mxu0
      %614 = vmatprep.mubr.f32.mxu0 0.0
      %615 = vmatmul.mubr.f32.gmra.mxu0 %v204
      %v616 = vpop.f32.mrf.mxu0
      %v617 = vadd.f32 %v392, %v616
      %v618 = vpop.f32.mrf.mxu0
      %619 = vmatprep.mubr.f32.mxu0 0.0
      %620 = vmatmul.mubr.f32.gmra.mxu0 %v205
      %v621 = vpop.f32.mrf.mxu0
      %v622 = vadd.f32 %v397, %v621
      %v623 = vpop.f32.mrf.mxu0
      %624 = vmatprep.mubr.f32.mxu0 0.0
      %625 = vmatmul.mubr.f32.gmra.mxu0 %v206
      %v626 = vpop.f32.mrf.mxu0
      %v627 = vadd.f32 %v402, %v626
      %v628 = vpop.f32.mrf.mxu0
      %629 = vmatprep.mubr.f32.mxu0 0.0
      %630 = vmatmul.mubr.f32.gmra.mxu0 %v207
      %v631 = vpop.f32.mrf.mxu0
      %v632 = vadd.f32 %v407, %v631
      %v633 = vpop.f32.mrf.mxu0
      %634 = vmatprep.mubr.f32.mxu0 0.0
      %635 = vmatmul.mubr.f32.gmra.mxu0 %v208
      %v636 = vpop.f32.mrf.mxu0
      %v637 = vadd.f32 %v412, %v636
      %v638 = vpop.f32.mrf.mxu0
      %639 = vmatprep.mubr.f32.mxu0 0.0
      %640 = vmatmul.mubr.f32.gmra.mxu0 %v209
      %v641 = vpop.f32.mrf.mxu0
      %v642 = vadd.f32 %v417, %v641
      %v643 = vpop.f32.mrf.mxu0
      %644 = vmatprep.mubr.f32.mxu0 0.0
      %645 = vmatmul.mubr.f32.gmra.mxu0 %v210
      %v646 = vpop.f32.mrf.mxu0
      %v647 = vadd.f32 %v422, %v646
      %v648 = vpop.f32.mrf.mxu0
      %649 = vmatprep.mubr.f32.mxu0 0.0
      %650 = vmatmul.mubr.f32.gmra.mxu0 %v211
      %v651 = vpop.f32.mrf.mxu0
      %v652 = vadd.f32 %v427, %v651
      %v653 = vpop.f32.mrf.mxu0
      %654 = vmatprep.mubr.f32.mxu0 0.0
      %655 = vmatmul.mubr.f32.gmra.mxu0 %v212
      %v656 = vpop.f32.mrf.mxu0
      %v657 = vadd.f32 %v432, %v656
      %v658 = vpop.f32.mrf.mxu0
      %659 = vmatprep.mubr.f32.mxu0 0.0
      %660 = vmatmul.mubr.f32.gmra.mxu0 %v213
      %v661 = vpop.f32.mrf.mxu0
      %v662 = vadd.f32 %v437, %v661
      %v663 = vpop.f32.mrf.mxu0
      %664 = vmatprep.mubr.f32.mxu0 0.0
      %665 = vmatmul.mubr.f32.gmra.mxu0 %v214
      %v666 = vpop.f32.mrf.mxu0
      %v667 = vadd.f32 %v442, %v666
      %v668 = vpop.f32.mrf.mxu0
      %669 = vmatprep.mubr.f32.mxu0 0.0
      %670 = vmatmul.mubr.f32.gmra.mxu0 %v215
      %v671 = vpop.f32.mrf.mxu0
      %v672 = vadd.f32 %v447, %v671
      %v673 = vpop.f32.mrf.mxu0
      %674 = vmatprep.mubr.f32.mxu0 0.0
      %675 = vmatmul.mubr.f32.gmra.mxu0 %v216
      %v676 = vpop.f32.mrf.mxu0
      %v677 = vadd.f32 %v452, %v676
      %v678 = vpop.f32.mrf.mxu0
      %679 = vmatprep.mubr.f32.mxu0 0.0
      %680 = vmatmul.mubr.f32.gmra.mxu0 %v217
      %v681 = vpop.f32.mrf.mxu0
      %v682 = vadd.f32 %v457, %v681
      %v683 = vpop.f32.mrf.mxu0
      %684 = vmatprep.mubr.f32.mxu0 0.0
      %685 = vmatmul.mubr.f32.gmra.mxu0 %v218
      %v686 = vpop.f32.mrf.mxu0
      %v687 = vadd.f32 %v462, %v686
      %v688 = vpop.f32.mrf.mxu0
      %689 = vmatprep.mubr.f32.mxu0 0.0
      %690 = vmatmul.mubr.f32.gmra.mxu0 %v219
      %v691 = vpop.f32.mrf.mxu0
      %v692 = vadd.f32 %v467, %v691
      %v693 = vpop.f32.mrf.mxu0
      %694 = vmatprep.mubr.f32.mxu0 0.0
      %695 = vmatmul.mubr.f32.gmra.mxu0 %v220
      %v696 = vpop.f32.mrf.mxu0
      %v697 = vadd.f32 %v472, %v696
      %v698 = vpop.f32.mrf.mxu0
      %699 = vmatprep.mubr.f32.mxu0 0.0
      %700 = vmatmul.mubr.f32.gmra.mxu0 %v221
      %v701 = vpop.f32.mrf.mxu0
      %v702 = vadd.f32 %v477, %v701
      %v703 = vpop.f32.mrf.mxu0
      %704 = vmatprep.mubr.f32.mxu0 0.0
      %705 = vmatmul.mubr.f32.gmra.mxu0 %v222
      %v706 = vpop.f32.mrf.mxu0
      %v707 = vadd.f32 %v482, %v706
      %v708 = vpop.f32.mrf.mxu0
      %709 = vmatprep.mubr.f32.mxu0 0.0
      %710 = vmatmul.mubr.f32.gmra.mxu0 %v223
      %v711 = vpop.f32.mrf.mxu0
      %v712 = vadd.f32 %v487, %v711
      %v713 = vpop.f32.mrf.mxu0
      %714 = vmatprep.mubr.f32.mxu0 0.0
      %715 = vmatmul.mubr.f32.gmra.mxu0 %v224
      %v716 = vpop.f32.mrf.mxu0
      %v717 = vadd.f32 %v492, %v716
      %v718 = vpop.f32.mrf.mxu0
      %719 = vmatprep.mubr.f32.mxu0 0.0
      %720 = vmatmul.mubr.f32.gmra.mxu0 %v225
      %v721 = vpop.f32.mrf.mxu0
      %v722 = vadd.f32 %v497, %v721
      %v723 = vpop.f32.mrf.mxu0
      %724 = vmatprep.mubr.f32.mxu0 0.0
      %725 = vmatmul.mubr.f32.gmra.mxu0 %v226
      %v726 = vpop.f32.mrf.mxu0
      %v727 = vadd.f32 %v502, %v726
      %v728 = vpop.f32.mrf.mxu0
      %729 = vmatprep.mubr.f32.mxu0 0.0
      %730 = vmatmul.mubr.f32.gmra.mxu0 %v227
      %v731 = vpop.f32.mrf.mxu0
      %v732 = vadd.f32 %v507, %v731
      %v733 = vpop.f32.mrf.mxu0
      %734 = vmatprep.mubr.f32.mxu0 0.0
      %735 = vmatmul.mubr.f32.gmra.mxu0 %v228
      %v736 = vpop.f32.mrf.mxu0
      %v737 = vadd.f32 %v512, %v736
      %v738 = vpop.f32.mrf.mxu0
      %739 = vmatprep.mubr.f32.mxu0 0.0
      %740 = vmatmul.mubr.f32.gmra.mxu0 %v229
      %v741 = vpop.f32.mrf.mxu0
      %v742 = vadd.f32 %v517, %v741
      %v743 = vpop.f32.mrf.mxu0
      %744 = vdwg.mxu0
      %v745 = vld [vmem:[%s192 + $0x2] sm:$0xff]
      %v746 = vld [vmem:[%s192 + $0xa] sm:$0xff]
      %v747 = vld [vmem:[%s192 + $0x1a] sm:$0xff]
      %v748 = vld [vmem:[%s192 + $0x22] sm:$0xff]
      %v749 = vld [vmem:[%s192 + $0x32] sm:$0xff]
      %v750 = vld [vmem:[%s192 + $0x3a] sm:$0xff]
      %v751 = vld [vmem:[%s192 + $0x4a] sm:$0xff]
      %v752 = vld [vmem:[%s192 + $0x52] sm:$0xff]
      %v753 = vld [vmem:[%s192 + $0x62] sm:$0xff]
      %v754 = vld [vmem:[%s192 + $0x6a] sm:$0xff]
      %v755 = vld [vmem:[%s192 + $0x7a] sm:$0xff]
      %v756 = vld [vmem:[%s192 + $0x82] sm:$0xff]
      %v757 = vld [vmem:[%s192 + $0x92] sm:$0xff]
      %v758 = vld [vmem:[%s192 + $0x9a] sm:$0xff]
      %v759 = vld [vmem:[%s192 + $0xaa] sm:$0xff]
      %v760 = vld [vmem:[%s192 + $0xb2] sm:$0xff]
      %v761 = vld [vmem:[%s192 + $0xc2] sm:$0xff]
      %v762 = vld [vmem:[%s192 + $0xca] sm:$0xff]
      %v763 = vld [vmem:[%s192 + $0xda] sm:$0xff]
      %v764 = vld [vmem:[%s192 + $0xe2] sm:$0xff]
      %v765 = vld [vmem:[%s192 + $0xf2] sm:$0xff]
      %v766 = vld [vmem:[%s192 + $0xfa] sm:$0xff]
      %v767 = vld [vmem:[%s192 + $0x10a] sm:$0xff]
      %v768 = vld [vmem:[%s192 + $0x112] sm:$0xff]
      %v769 = vld [vmem:[%s192 + $0x122] sm:$0xff]
      %v770 = vld [vmem:[%s192 + $0x12a] sm:$0xff]
      %v771 = vld [vmem:[%s192 + $0x13a] sm:$0xff]
      %v772 = vld [vmem:[%s192 + $0x142] sm:$0xff]
      %v773 = vld [vmem:[%s192 + $0x152] sm:$0xff]
      %v774 = vld [vmem:[%s192 + $0x15a] sm:$0xff]
      %v775 = vld [vmem:[%s192 + $0x16a] sm:$0xff]
      %v776 = vld [vmem:[%s192 + $0x172] sm:$0xff]
      %s777 = scalar_lea.vmem %s1, 256
      %v778 = vld [vmem:[%s777] sm:$0xff]
      %v779 = vld [vmem:[%s777 + $0x8] sm:$0xff]
      %v780 = vld [vmem:[%s777 + $0x10] sm:$0xff]
      %v781 = vld [vmem:[%s777 + $0x18] sm:$0xff]
      %v782 = vld [vmem:[%s777 + $0x20] sm:$0xff]
      %v783 = vld [vmem:[%s777 + $0x28] sm:$0xff]
      %v784 = vld [vmem:[%s777 + $0x30] sm:$0xff]
      %v785 = vld [vmem:[%s777 + $0x38] sm:$0xff]
      %v786 = vld [vmem:[%s777 + $0x40] sm:$0xff]
      %v787 = vld [vmem:[%s777 + $0x48] sm:$0xff]
      %v788 = vld [vmem:[%s777 + $0x50] sm:$0xff]
      %v789 = vld [vmem:[%s777 + $0x58] sm:$0xff]
      %v790 = vld [vmem:[%s777 + $0x60] sm:$0xff]
      %v791 = vld [vmem:[%s777 + $0x68] sm:$0xff]
      %v792 = vld [vmem:[%s777 + $0x70] sm:$0xff]
      %v793 = vld [vmem:[%s777 + $0x78] sm:$0xff]
      %794 = vmatprep.subr.mxu0 0.0
      %795 = vmatpush1.msra.mxu0 %v793
      %796 = vmatprep.subr.mxu0 0.0
      %797 = vmatpush1.msra.mxu0 %v792
      %798 = vmatprep.subr.mxu0 0.0
      %799 = vmatpush1.msra.mxu0 %v791
      %800 = vmatprep.subr.mxu0 0.0
      %801 = vmatpush1.msra.mxu0 %v790
      %802 = vmatprep.subr.mxu0 0.0
      %803 = vmatpush1.msra.mxu0 %v789
      %804 = vmatprep.subr.mxu0 0.0
      %805 = vmatpush1.msra.mxu0 %v788
      %806 = vmatprep.subr.mxu0 0.0
      %807 = vmatpush1.msra.mxu0 %v787
      %808 = vmatprep.subr.mxu0 0.0
      %809 = vmatpush1.msra.mxu0 %v786
      %810 = vmatprep.subr.mxu0 0.0
      %811 = vmatpush1.msra.mxu0 %v785
      %812 = vmatprep.subr.mxu0 0.0
      %813 = vmatpush1.msra.mxu0 %v784
      %814 = vmatprep.subr.mxu0 0.0
      %815 = vmatpush1.msra.mxu0 %v783
      %816 = vmatprep.subr.mxu0 0.0
      %817 = vmatpush1.msra.mxu0 %v782
      %818 = vmatprep.subr.mxu0 0.0
      %819 = vmatpush1.msra.mxu0 %v781
      %820 = vmatprep.subr.mxu0 0.0
      %821 = vmatpush1.msra.mxu0 %v780
      %822 = vmatprep.subr.mxu0 0.0
      %823 = vmatpush1.msra.mxu0 %v779
      %824 = vmatprep.subr.mxu0 0.0
      %825 = vmatpush1.msra.mxu0 %v778
      %826 = vmatprep.subr.mxu0 0.0
      %827 = vmatpush2.msra.mxu0 0.0
      %828 = vmatprep.subr.mxu0 0.0
      %829 = vmatpush2.msra.mxu0 0.0
      %830 = vmatprep.subr.mxu0 0.0
      %831 = vmatpush2.msra.mxu0 0.0
      %832 = vmatprep.subr.mxu0 0.0
      %833 = vmatpush2.msra.mxu0 0.0
      %834 = vmatprep.subr.mxu0 0.0
      %835 = vmatpush2.msra.mxu0 0.0
      %836 = vmatprep.subr.mxu0 0.0
      %837 = vmatpush2.msra.mxu0 0.0
      %838 = vmatprep.subr.mxu0 0.0
      %839 = vmatpush2.msra.mxu0 0.0
      %840 = vmatprep.subr.mxu0 0.0
      %841 = vmatpush2.msra.mxu0 0.0
      %842 = vmatprep.subr.mxu0 0.0
      %843 = vmatpush2.msra.mxu0 0.0
      %844 = vmatprep.subr.mxu0 0.0
      %845 = vmatpush2.msra.mxu0 0.0
      %846 = vmatprep.subr.mxu0 0.0
      %847 = vmatpush2.msra.mxu0 0.0
      %848 = vmatprep.subr.mxu0 0.0
      %849 = vmatpush2.msra.mxu0 0.0
      %850 = vmatprep.subr.mxu0 0.0
      %851 = vmatpush2.msra.mxu0 0.0
      %852 = vmatprep.subr.mxu0 0.0
      %853 = vmatpush2.msra.mxu0 0.0
      %854 = vmatprep.subr.mxu0 0.0
      %855 = vmatpush2.msra.mxu0 0.0
      %856 = vmatprep.subr.mxu0 0.0
      %857 = vmatpush2.msra.mxu0 0.0
      %858 = vmatprep.mubr.f32.mxu0 0.0
      %859 = vmatmul.mubr.f32.gmra.mxu0 %v745
      %v860 = vpop.f32.mrf.mxu0
      %v861 = vadd.f32 0.0, %v860
      %v862 = vpop.f32.mrf.mxu0
      %863 = vmatprep.mubr.f32.mxu0 0.0
      %864 = vmatmul.mubr.f32.gmra.mxu0 %v746
      %v865 = vpop.f32.mrf.mxu0
      %v866 = vadd.f32 0.0, %v865
      %v867 = vpop.f32.mrf.mxu0
      %868 = vmatprep.mubr.f32.mxu0 0.0
      %869 = vmatmul.mubr.f32.gmra.mxu0 %v747
      %v870 = vpop.f32.mrf.mxu0
      %v871 = vadd.f32 0.0, %v870
      %v872 = vpop.f32.mrf.mxu0
      %873 = vmatprep.mubr.f32.mxu0 0.0
      %874 = vmatmul.mubr.f32.gmra.mxu0 %v748
      %v875 = vpop.f32.mrf.mxu0
      %v876 = vadd.f32 0.0, %v875
      %v877 = vpop.f32.mrf.mxu0
      %878 = vmatprep.mubr.f32.mxu0 0.0
      %879 = vmatmul.mubr.f32.gmra.mxu0 %v749
      %v880 = vpop.f32.mrf.mxu0
      %v881 = vadd.f32 0.0, %v880
      %v882 = vpop.f32.mrf.mxu0
      %883 = vmatprep.mubr.f32.mxu0 0.0
      %884 = vmatmul.mubr.f32.gmra.mxu0 %v750
      %v885 = vpop.f32.mrf.mxu0
      %v886 = vadd.f32 0.0, %v885
      %v887 = vpop.f32.mrf.mxu0
      %888 = vmatprep.mubr.f32.mxu0 0.0
      %889 = vmatmul.mubr.f32.gmra.mxu0 %v751
      %v890 = vpop.f32.mrf.mxu0
      %v891 = vadd.f32 0.0, %v890
      %v892 = vpop.f32.mrf.mxu0
      %893 = vmatprep.mubr.f32.mxu0 0.0
      %894 = vmatmul.mubr.f32.gmra.mxu0 %v752
      %v895 = vpop.f32.mrf.mxu0
      %v896 = vadd.f32 0.0, %v895
      %v897 = vpop.f32.mrf.mxu0
      %898 = vmatprep.mubr.f32.mxu0 0.0
      %899 = vmatmul.mubr.f32.gmra.mxu0 %v753
      %v900 = vpop.f32.mrf.mxu0
      %v901 = vadd.f32 0.0, %v900
      %v902 = vpop.f32.mrf.mxu0
      %903 = vmatprep.mubr.f32.mxu0 0.0
      %904 = vmatmul.mubr.f32.gmra.mxu0 %v754
      %v905 = vpop.f32.mrf.mxu0
      %v906 = vadd.f32 0.0, %v905
      %v907 = vpop.f32.mrf.mxu0
      %908 = vmatprep.mubr.f32.mxu0 0.0
      %909 = vmatmul.mubr.f32.gmra.mxu0 %v755
      %v910 = vpop.f32.mrf.mxu0
      %v911 = vadd.f32 0.0, %v910
      %v912 = vpop.f32.mrf.mxu0
      %913 = vmatprep.mubr.f32.mxu0 0.0
      %914 = vmatmul.mubr.f32.gmra.mxu0 %v756
      %v915 = vpop.f32.mrf.mxu0
      %v916 = vadd.f32 0.0, %v915
      %v917 = vpop.f32.mrf.mxu0
      %918 = vmatprep.mubr.f32.mxu0 0.0
      %919 = vmatmul.mubr.f32.gmra.mxu0 %v757
      %v920 = vpop.f32.mrf.mxu0
      %v921 = vadd.f32 0.0, %v920
      %v922 = vpop.f32.mrf.mxu0
      %923 = vmatprep.mubr.f32.mxu0 0.0
      %924 = vmatmul.mubr.f32.gmra.mxu0 %v758
      %v925 = vpop.f32.mrf.mxu0
      %v926 = vadd.f32 0.0, %v925
      %v927 = vpop.f32.mrf.mxu0
      %928 = vmatprep.mubr.f32.mxu0 0.0
      %929 = vmatmul.mubr.f32.gmra.mxu0 %v759
      %v930 = vpop.f32.mrf.mxu0
      %v931 = vadd.f32 0.0, %v930
      %v932 = vpop.f32.mrf.mxu0
      %933 = vmatprep.mubr.f32.mxu0 0.0
      %934 = vmatmul.mubr.f32.gmra.mxu0 %v760
      %v935 = vpop.f32.mrf.mxu0
      %v936 = vadd.f32 0.0, %v935
      %v937 = vpop.f32.mrf.mxu0
      %938 = vmatprep.mubr.f32.mxu0 0.0
      %939 = vmatmul.mubr.f32.gmra.mxu0 %v761
      %v940 = vpop.f32.mrf.mxu0
      %v941 = vadd.f32 0.0, %v940
      %v942 = vpop.f32.mrf.mxu0
      %943 = vmatprep.mubr.f32.mxu0 0.0
      %944 = vmatmul.mubr.f32.gmra.mxu0 %v762
      %v945 = vpop.f32.mrf.mxu0
      %v946 = vadd.f32 0.0, %v945
      %v947 = vpop.f32.mrf.mxu0
      %948 = vmatprep.mubr.f32.mxu0 0.0
      %949 = vmatmul.mubr.f32.gmra.mxu0 %v763
      %v950 = vpop.f32.mrf.mxu0
      %v951 = vadd.f32 0.0, %v950
      %v952 = vpop.f32.mrf.mxu0
      %953 = vmatprep.mubr.f32.mxu0 0.0
      %954 = vmatmul.mubr.f32.gmra.mxu0 %v764
      %v955 = vpop.f32.mrf.mxu0
      %v956 = vadd.f32 0.0, %v955
      %v957 = vpop.f32.mrf.mxu0
      %958 = vmatprep.mubr.f32.mxu0 0.0
      %959 = vmatmul.mubr.f32.gmra.mxu0 %v765
      %v960 = vpop.f32.mrf.mxu0
      %v961 = vadd.f32 0.0, %v960
      %v962 = vpop.f32.mrf.mxu0
      %963 = vmatprep.mubr.f32.mxu0 0.0
      %964 = vmatmul.mubr.f32.gmra.mxu0 %v766
      %v965 = vpop.f32.mrf.mxu0
      %v966 = vadd.f32 0.0, %v965
      %v967 = vpop.f32.mrf.mxu0
      %968 = vmatprep.mubr.f32.mxu0 0.0
      %969 = vmatmul.mubr.f32.gmra.mxu0 %v767
      %v970 = vpop.f32.mrf.mxu0
      %v971 = vadd.f32 0.0, %v970
      %v972 = vpop.f32.mrf.mxu0
      %973 = vmatprep.mubr.f32.mxu0 0.0
      %974 = vmatmul.mubr.f32.gmra.mxu0 %v768
      %v975 = vpop.f32.mrf.mxu0
      %v976 = vadd.f32 0.0, %v975
      %v977 = vpop.f32.mrf.mxu0
      %978 = vmatprep.mubr.f32.mxu0 0.0
      %979 = vmatmul.mubr.f32.gmra.mxu0 %v769
      %v980 = vpop.f32.mrf.mxu0
      %v981 = vadd.f32 0.0, %v980
      %v982 = vpop.f32.mrf.mxu0
      %983 = vmatprep.mubr.f32.mxu0 0.0
      %984 = vmatmul.mubr.f32.gmra.mxu0 %v770
      %v985 = vpop.f32.mrf.mxu0
      %v986 = vadd.f32 0.0, %v985
      %v987 = vpop.f32.mrf.mxu0
      %988 = vmatprep.mubr.f32.mxu0 0.0
      %989 = vmatmul.mubr.f32.gmra.mxu0 %v771
      %v990 = vpop.f32.mrf.mxu0
      %v991 = vadd.f32 0.0, %v990
      %v992 = vpop.f32.mrf.mxu0
      %993 = vmatprep.mubr.f32.mxu0 0.0
      %994 = vmatmul.mubr.f32.gmra.mxu0 %v772
      %v995 = vpop.f32.mrf.mxu0
      %v996 = vadd.f32 0.0, %v995
      %v997 = vpop.f32.mrf.mxu0
      %998 = vmatprep.mubr.f32.mxu0 0.0
      %999 = vmatmul.mubr.f32.gmra.mxu0 %v773
      %v1000 = vpop.f32.mrf.mxu0
      %v1001 = vadd.f32 0.0, %v1000
      %v1002 = vpop.f32.mrf.mxu0
      %1003 = vmatprep.mubr.f32.mxu0 0.0
      %1004 = vmatmul.mubr.f32.gmra.mxu0 %v774
      %v1005 = vpop.f32.mrf.mxu0
      %v1006 = vadd.f32 0.0, %v1005
      %v1007 = vpop.f32.mrf.mxu0
      %1008 = vmatprep.mubr.f32.mxu0 0.0
      %1009 = vmatmul.mubr.f32.gmra.mxu0 %v775
      %v1010 = vpop.f32.mrf.mxu0
      %v1011 = vadd.f32 0.0, %v1010
      %v1012 = vpop.f32.mrf.mxu0
      %1013 = vmatprep.mubr.f32.mxu0 0.0
      %1014 = vmatmul.mubr.f32.gmra.mxu0 %v776
      %v1015 = vpop.f32.mrf.mxu0
      %v1016 = vadd.f32 0.0, %v1015
      %v1017 = vpop.f32.mrf.mxu0
      %1018 = vdwg.mxu0
      %v1019 = vadd.f32 %v587, %v861
      %v1020 = vadd.f32 %v592, %v866
      %v1021 = vadd.f32 %v597, %v871
      %v1022 = vadd.f32 %v602, %v876
      %v1023 = vadd.f32 %v607, %v881
      %v1024 = vadd.f32 %v612, %v886
      %v1025 = vadd.f32 %v617, %v891
      %v1026 = vadd.f32 %v622, %v896
      %v1027 = vadd.f32 %v627, %v901
      %v1028 = vadd.f32 %v632, %v906
      %v1029 = vadd.f32 %v637, %v911
      %v1030 = vadd.f32 %v642, %v916
      %v1031 = vadd.f32 %v647, %v921
      %v1032 = vadd.f32 %v652, %v926
      %v1033 = vadd.f32 %v657, %v931
      %v1034 = vadd.f32 %v662, %v936
      %v1035 = vadd.f32 %v667, %v941
      %v1036 = vadd.f32 %v672, %v946
      %v1037 = vadd.f32 %v677, %v951
      %v1038 = vadd.f32 %v682, %v956
      %v1039 = vadd.f32 %v687, %v961
      %v1040 = vadd.f32 %v692, %v966
      %v1041 = vadd.f32 %v697, %v971
      %v1042 = vadd.f32 %v702, %v976
      %v1043 = vadd.f32 %v707, %v981
      %v1044 = vadd.f32 %v712, %v986
      %v1045 = vadd.f32 %v717, %v991
      %v1046 = vadd.f32 %v722, %v996
      %v1047 = vadd.f32 %v727, %v1001
      %v1048 = vadd.f32 %v732, %v1006
      %v1049 = vadd.f32 %v737, %v1011
      %v1050 = vadd.f32 %v742, %v1016
      %s1051 = scalar_lea.vmem %s192, 24
      %v1052 = vld [vmem:[%s1051] sm:$0xff]
      %v1053 = vld [vmem:[%s1051 + $0x8] sm:$0xff]
      %v1054 = vld [vmem:[%s1051 + $0x18] sm:$0xff]
      %v1055 = vld [vmem:[%s1051 + $0x20] sm:$0xff]
      %v1056 = vld [vmem:[%s1051 + $0x30] sm:$0xff]
      %v1057 = vld [vmem:[%s1051 + $0x38] sm:$0xff]
      %v1058 = vld [vmem:[%s1051 + $0x48] sm:$0xff]
      %v1059 = vld [vmem:[%s1051 + $0x50] sm:$0xff]
      %v1060 = vld [vmem:[%s1051 + $0x60] sm:$0xff]
      %v1061 = vld [vmem:[%s1051 + $0x68] sm:$0xff]
      %v1062 = vld [vmem:[%s1051 + $0x78] sm:$0xff]
      %v1063 = vld [vmem:[%s1051 + $0x80] sm:$0xff]
      %v1064 = vld [vmem:[%s1051 + $0x90] sm:$0xff]
      %v1065 = vld [vmem:[%s1051 + $0x98] sm:$0xff]
      %v1066 = vld [vmem:[%s1051 + $0xa8] sm:$0xff]
      %v1067 = vld [vmem:[%s1051 + $0xb0] sm:$0xff]
      %v1068 = vld [vmem:[%s1051 + $0xc0] sm:$0xff]
      %v1069 = vld [vmem:[%s1051 + $0xc8] sm:$0xff]
      %v1070 = vld [vmem:[%s1051 + $0xd8] sm:$0xff]
      %v1071 = vld [vmem:[%s1051 + $0xe0] sm:$0xff]
      %v1072 = vld [vmem:[%s1051 + $0xf0] sm:$0xff]
      %v1073 = vld [vmem:[%s1051 + $0xf8] sm:$0xff]
      %v1074 = vld [vmem:[%s1051 + $0x108] sm:$0xff]
      %v1075 = vld [vmem:[%s1051 + $0x110] sm:$0xff]
      %v1076 = vld [vmem:[%s1051 + $0x120] sm:$0xff]
      %v1077 = vld [vmem:[%s1051 + $0x128] sm:$0xff]
      %v1078 = vld [vmem:[%s1051 + $0x138] sm:$0xff]
      %v1079 = vld [vmem:[%s1051 + $0x140] sm:$0xff]
      %v1080 = vld [vmem:[%s1051 + $0x150] sm:$0xff]
      %v1081 = vld [vmem:[%s1051 + $0x158] sm:$0xff]
      %v1082 = vld [vmem:[%s1051 + $0x168] sm:$0xff]
      %v1083 = vld [vmem:[%s1051 + $0x170] sm:$0xff]
      %s1084 = scalar_lea.vmem %s1, 384
      %v1085 = vld [vmem:[%s1084] sm:$0xff]
      %v1086 = vld [vmem:[%s1084 + $0x8] sm:$0xff]
      %v1087 = vld [vmem:[%s1084 + $0x10] sm:$0xff]
      %v1088 = vld [vmem:[%s1084 + $0x18] sm:$0xff]
      %v1089 = vld [vmem:[%s1084 + $0x20] sm:$0xff]
      %v1090 = vld [vmem:[%s1084 + $0x28] sm:$0xff]
      %v1091 = vld [vmem:[%s1084 + $0x30] sm:$0xff]
      %v1092 = vld [vmem:[%s1084 + $0x38] sm:$0xff]
      %v1093 = vld [vmem:[%s1084 + $0x40] sm:$0xff]
      %v1094 = vld [vmem:[%s1084 + $0x48] sm:$0xff]
      %v1095 = vld [vmem:[%s1084 + $0x50] sm:$0xff]
      %v1096 = vld [vmem:[%s1084 + $0x58] sm:$0xff]
      %v1097 = vld [vmem:[%s1084 + $0x60] sm:$0xff]
      %v1098 = vld [vmem:[%s1084 + $0x68] sm:$0xff]
      %v1099 = vld [vmem:[%s1084 + $0x70] sm:$0xff]
      %v1100 = vld [vmem:[%s1084 + $0x78] sm:$0xff]
      %1101 = vmatprep.subr.mxu0 0.0
      %1102 = vmatpush1.msra.mxu0 %v1100
      %1103 = vmatprep.subr.mxu0 0.0
      %1104 = vmatpush1.msra.mxu0 %v1099
      %1105 = vmatprep.subr.mxu0 0.0
      %1106 = vmatpush1.msra.mxu0 %v1098
      %1107 = vmatprep.subr.mxu0 0.0
      %1108 = vmatpush1.msra.mxu0 %v1097
      %1109 = vmatprep.subr.mxu0 0.0
      %1110 = vmatpush1.msra.mxu0 %v1096
      %1111 = vmatprep.subr.mxu0 0.0
      %1112 = vmatpush1.msra.mxu0 %v1095
      %1113 = vmatprep.subr.mxu0 0.0
      %1114 = vmatpush1.msra.mxu0 %v1094
      %1115 = vmatprep.subr.mxu0 0.0
      %1116 = vmatpush1.msra.mxu0 %v1093
      %1117 = vmatprep.subr.mxu0 0.0
      %1118 = vmatpush1.msra.mxu0 %v1092
      %1119 = vmatprep.subr.mxu0 0.0
      %1120 = vmatpush1.msra.mxu0 %v1091
      %1121 = vmatprep.subr.mxu0 0.0
      %1122 = vmatpush1.msra.mxu0 %v1090
      %1123 = vmatprep.subr.mxu0 0.0
      %1124 = vmatpush1.msra.mxu0 %v1089
      %1125 = vmatprep.subr.mxu0 0.0
      %1126 = vmatpush1.msra.mxu0 %v1088
      %1127 = vmatprep.subr.mxu0 0.0
      %1128 = vmatpush1.msra.mxu0 %v1087
      %1129 = vmatprep.subr.mxu0 0.0
      %1130 = vmatpush1.msra.mxu0 %v1086
      %1131 = vmatprep.subr.mxu0 0.0
      %1132 = vmatpush1.msra.mxu0 %v1085
      %1133 = vmatprep.subr.mxu0 0.0
      %1134 = vmatpush2.msra.mxu0 0.0
      %1135 = vmatprep.subr.mxu0 0.0
      %1136 = vmatpush2.msra.mxu0 0.0
      %1137 = vmatprep.subr.mxu0 0.0
      %1138 = vmatpush2.msra.mxu0 0.0
      %1139 = vmatprep.subr.mxu0 0.0
      %1140 = vmatpush2.msra.mxu0 0.0
      %1141 = vmatprep.subr.mxu0 0.0
      %1142 = vmatpush2.msra.mxu0 0.0
      %1143 = vmatprep.subr.mxu0 0.0
      %1144 = vmatpush2.msra.mxu0 0.0
      %1145 = vmatprep.subr.mxu0 0.0
      %1146 = vmatpush2.msra.mxu0 0.0
      %1147 = vmatprep.subr.mxu0 0.0
      %1148 = vmatpush2.msra.mxu0 0.0
      %1149 = vmatprep.subr.mxu0 0.0
      %1150 = vmatpush2.msra.mxu0 0.0
      %1151 = vmatprep.subr.mxu0 0.0
      %1152 = vmatpush2.msra.mxu0 0.0
      %1153 = vmatprep.subr.mxu0 0.0
      %1154 = vmatpush2.msra.mxu0 0.0
      %1155 = vmatprep.subr.mxu0 0.0
      %1156 = vmatpush2.msra.mxu0 0.0
      %1157 = vmatprep.subr.mxu0 0.0
      %1158 = vmatpush2.msra.mxu0 0.0
      %1159 = vmatprep.subr.mxu0 0.0
      %1160 = vmatpush2.msra.mxu0 0.0
      %1161 = vmatprep.subr.mxu0 0.0
      %1162 = vmatpush2.msra.mxu0 0.0
      %1163 = vmatprep.subr.mxu0 0.0
      %1164 = vmatpush2.msra.mxu0 0.0
      %1165 = vmatprep.mubr.f32.mxu0 0.0
      %1166 = vmatmul.mubr.f32.gmra.mxu0 %v1052
      %v1167 = vpop.f32.mrf.mxu0
      %v1168 = vadd.f32 0.0, %v1167
      %v1169 = vpop.f32.mrf.mxu0
      %1170 = vmatprep.mubr.f32.mxu0 0.0
      %1171 = vmatmul.mubr.f32.gmra.mxu0 %v1053
      %v1172 = vpop.f32.mrf.mxu0
      %v1173 = vadd.f32 0.0, %v1172
      %v1174 = vpop.f32.mrf.mxu0
      %1175 = vmatprep.mubr.f32.mxu0 0.0
      %1176 = vmatmul.mubr.f32.gmra.mxu0 %v1054
      %v1177 = vpop.f32.mrf.mxu0
      %v1178 = vadd.f32 0.0, %v1177
      %v1179 = vpop.f32.mrf.mxu0
      %1180 = vmatprep.mubr.f32.mxu0 0.0
      %1181 = vmatmul.mubr.f32.gmra.mxu0 %v1055
      %v1182 = vpop.f32.mrf.mxu0
      %v1183 = vadd.f32 0.0, %v1182
      %v1184 = vpop.f32.mrf.mxu0
      %1185 = vmatprep.mubr.f32.mxu0 0.0
      %1186 = vmatmul.mubr.f32.gmra.mxu0 %v1056
      %v1187 = vpop.f32.mrf.mxu0
      %v1188 = vadd.f32 0.0, %v1187
      %v1189 = vpop.f32.mrf.mxu0
      %1190 = vmatprep.mubr.f32.mxu0 0.0
      %1191 = vmatmul.mubr.f32.gmra.mxu0 %v1057
      %v1192 = vpop.f32.mrf.mxu0
      %v1193 = vadd.f32 0.0, %v1192
      %v1194 = vpop.f32.mrf.mxu0
      %1195 = vmatprep.mubr.f32.mxu0 0.0
      %1196 = vmatmul.mubr.f32.gmra.mxu0 %v1058
      %v1197 = vpop.f32.mrf.mxu0
      %v1198 = vadd.f32 0.0, %v1197
      %v1199 = vpop.f32.mrf.mxu0
      %1200 = vmatprep.mubr.f32.mxu0 0.0
      %1201 = vmatmul.mubr.f32.gmra.mxu0 %v1059
      %v1202 = vpop.f32.mrf.mxu0
      %v1203 = vadd.f32 0.0, %v1202
      %v1204 = vpop.f32.mrf.mxu0
      %1205 = vmatprep.mubr.f32.mxu0 0.0
      %1206 = vmatmul.mubr.f32.gmra.mxu0 %v1060
      %v1207 = vpop.f32.mrf.mxu0
      %v1208 = vadd.f32 0.0, %v1207
      %v1209 = vpop.f32.mrf.mxu0
      %1210 = vmatprep.mubr.f32.mxu0 0.0
      %1211 = vmatmul.mubr.f32.gmra.mxu0 %v1061
      %v1212 = vpop.f32.mrf.mxu0
      %v1213 = vadd.f32 0.0, %v1212
      %v1214 = vpop.f32.mrf.mxu0
      %1215 = vmatprep.mubr.f32.mxu0 0.0
      %1216 = vmatmul.mubr.f32.gmra.mxu0 %v1062
      %v1217 = vpop.f32.mrf.mxu0
      %v1218 = vadd.f32 0.0, %v1217
      %v1219 = vpop.f32.mrf.mxu0
      %1220 = vmatprep.mubr.f32.mxu0 0.0
      %1221 = vmatmul.mubr.f32.gmra.mxu0 %v1063
      %v1222 = vpop.f32.mrf.mxu0
      %v1223 = vadd.f32 0.0, %v1222
      %v1224 = vpop.f32.mrf.mxu0
      %1225 = vmatprep.mubr.f32.mxu0 0.0
      %1226 = vmatmul.mubr.f32.gmra.mxu0 %v1064
      %v1227 = vpop.f32.mrf.mxu0
      %v1228 = vadd.f32 0.0, %v1227
      %v1229 = vpop.f32.mrf.mxu0
      %1230 = vmatprep.mubr.f32.mxu0 0.0
      %1231 = vmatmul.mubr.f32.gmra.mxu0 %v1065
      %v1232 = vpop.f32.mrf.mxu0
      %v1233 = vadd.f32 0.0, %v1232
      %v1234 = vpop.f32.mrf.mxu0
      %1235 = vmatprep.mubr.f32.mxu0 0.0
      %1236 = vmatmul.mubr.f32.gmra.mxu0 %v1066
      %v1237 = vpop.f32.mrf.mxu0
      %v1238 = vadd.f32 0.0, %v1237
      %v1239 = vpop.f32.mrf.mxu0
      %1240 = vmatprep.mubr.f32.mxu0 0.0
      %1241 = vmatmul.mubr.f32.gmra.mxu0 %v1067
      %v1242 = vpop.f32.mrf.mxu0
      %v1243 = vadd.f32 0.0, %v1242
      %v1244 = vpop.f32.mrf.mxu0
      %1245 = vmatprep.mubr.f32.mxu0 0.0
      %1246 = vmatmul.mubr.f32.gmra.mxu0 %v1068
      %v1247 = vpop.f32.mrf.mxu0
      %v1248 = vadd.f32 0.0, %v1247
      %v1249 = vpop.f32.mrf.mxu0
      %1250 = vmatprep.mubr.f32.mxu0 0.0
      %1251 = vmatmul.mubr.f32.gmra.mxu0 %v1069
      %v1252 = vpop.f32.mrf.mxu0
      %v1253 = vadd.f32 0.0, %v1252
      %v1254 = vpop.f32.mrf.mxu0
      %1255 = vmatprep.mubr.f32.mxu0 0.0
      %1256 = vmatmul.mubr.f32.gmra.mxu0 %v1070
      %v1257 = vpop.f32.mrf.mxu0
      %v1258 = vadd.f32 0.0, %v1257
      %v1259 = vpop.f32.mrf.mxu0
      %1260 = vmatprep.mubr.f32.mxu0 0.0
      %1261 = vmatmul.mubr.f32.gmra.mxu0 %v1071
      %v1262 = vpop.f32.mrf.mxu0
      %v1263 = vadd.f32 0.0, %v1262
      %v1264 = vpop.f32.mrf.mxu0
      %1265 = vmatprep.mubr.f32.mxu0 0.0
      %1266 = vmatmul.mubr.f32.gmra.mxu0 %v1072
      %v1267 = vpop.f32.mrf.mxu0
      %v1268 = vadd.f32 0.0, %v1267
      %v1269 = vpop.f32.mrf.mxu0
      %1270 = vmatprep.mubr.f32.mxu0 0.0
      %1271 = vmatmul.mubr.f32.gmra.mxu0 %v1073
      %v1272 = vpop.f32.mrf.mxu0
      %v1273 = vadd.f32 0.0, %v1272
      %v1274 = vpop.f32.mrf.mxu0
      %1275 = vmatprep.mubr.f32.mxu0 0.0
      %1276 = vmatmul.mubr.f32.gmra.mxu0 %v1074
      %v1277 = vpop.f32.mrf.mxu0
      %v1278 = vadd.f32 0.0, %v1277
      %v1279 = vpop.f32.mrf.mxu0
      %1280 = vmatprep.mubr.f32.mxu0 0.0
      %1281 = vmatmul.mubr.f32.gmra.mxu0 %v1075
      %v1282 = vpop.f32.mrf.mxu0
      %v1283 = vadd.f32 0.0, %v1282
      %v1284 = vpop.f32.mrf.mxu0
      %1285 = vmatprep.mubr.f32.mxu0 0.0
      %1286 = vmatmul.mubr.f32.gmra.mxu0 %v1076
      %v1287 = vpop.f32.mrf.mxu0
      %v1288 = vadd.f32 0.0, %v1287
      %v1289 = vpop.f32.mrf.mxu0
      %1290 = vmatprep.mubr.f32.mxu0 0.0
      %1291 = vmatmul.mubr.f32.gmra.mxu0 %v1077
      %v1292 = vpop.f32.mrf.mxu0
      %v1293 = vadd.f32 0.0, %v1292
      %v1294 = vpop.f32.mrf.mxu0
      %1295 = vmatprep.mubr.f32.mxu0 0.0
      %1296 = vmatmul.mubr.f32.gmra.mxu0 %v1078
      %v1297 = vpop.f32.mrf.mxu0
      %v1298 = vadd.f32 0.0, %v1297
      %v1299 = vpop.f32.mrf.mxu0
      %1300 = vmatprep.mubr.f32.mxu0 0.0
      %1301 = vmatmul.mubr.f32.gmra.mxu0 %v1079
      %v1302 = vpop.f32.mrf.mxu0
      %v1303 = vadd.f32 0.0, %v1302
      %v1304 = vpop.f32.mrf.mxu0
      %1305 = vmatprep.mubr.f32.mxu0 0.0
      %1306 = vmatmul.mubr.f32.gmra.mxu0 %v1080
      %v1307 = vpop.f32.mrf.mxu0
      %v1308 = vadd.f32 0.0, %v1307
      %v1309 = vpop.f32.mrf.mxu0
      %1310 = vmatprep.mubr.f32.mxu0 0.0
      %1311 = vmatmul.mubr.f32.gmra.mxu0 %v1081
      %v1312 = vpop.f32.mrf.mxu0
      %v1313 = vadd.f32 0.0, %v1312
      %v1314 = vpop.f32.mrf.mxu0
      %1315 = vmatprep.mubr.f32.mxu0 0.0
      %1316 = vmatmul.mubr.f32.gmra.mxu0 %v1082
      %v1317 = vpop.f32.mrf.mxu0
      %v1318 = vadd.f32 0.0, %v1317
      %v1319 = vpop.f32.mrf.mxu0
      %1320 = vmatprep.mubr.f32.mxu0 0.0
      %1321 = vmatmul.mubr.f32.gmra.mxu0 %v1083
      %v1322 = vpop.f32.mrf.mxu0
      %v1323 = vadd.f32 0.0, %v1322
      %v1324 = vpop.f32.mrf.mxu0
      %1325 = vdwg.mxu0
      %v1326 = vadd.f32 %v1019, %v1168
      %v1327 = vadd.f32 %v1020, %v1173
      %v1328 = vadd.f32 %v1021, %v1178
      %v1329 = vadd.f32 %v1022, %v1183
      %v1330 = vadd.f32 %v1023, %v1188
      %v1331 = vadd.f32 %v1024, %v1193
      %v1332 = vadd.f32 %v1025, %v1198
      %v1333 = vadd.f32 %v1026, %v1203
      %v1334 = vadd.f32 %v1027, %v1208
      %v1335 = vadd.f32 %v1028, %v1213
      %v1336 = vadd.f32 %v1029, %v1218
      %v1337 = vadd.f32 %v1030, %v1223
      %v1338 = vadd.f32 %v1031, %v1228
      %v1339 = vadd.f32 %v1032, %v1233
      %v1340 = vadd.f32 %v1033, %v1238
      %v1341 = vadd.f32 %v1034, %v1243
      %v1342 = vadd.f32 %v1035, %v1248
      %v1343 = vadd.f32 %v1036, %v1253
      %v1344 = vadd.f32 %v1037, %v1258
      %v1345 = vadd.f32 %v1038, %v1263
      %v1346 = vadd.f32 %v1039, %v1268
      %v1347 = vadd.f32 %v1040, %v1273
      %v1348 = vadd.f32 %v1041, %v1278
      %v1349 = vadd.f32 %v1042, %v1283
      %v1350 = vadd.f32 %v1043, %v1288
      %v1351 = vadd.f32 %v1044, %v1293
      %v1352 = vadd.f32 %v1045, %v1298
      %v1353 = vadd.f32 %v1046, %v1303
      %v1354 = vadd.f32 %v1047, %v1308
      %v1355 = vadd.f32 %v1048, %v1313
      %v1356 = vadd.f32 %v1049, %v1318
      %v1357 = vadd.f32 %v1050, %v1323
      %v1358 = vld [vmem:[%s1051 + $0x1] sm:$0xff]
      %v1359 = vld [vmem:[%s1051 + $0x9] sm:$0xff]
      %v1360 = vld [vmem:[%s1051 + $0x19] sm:$0xff]
      %v1361 = vld [vmem:[%s1051 + $0x21] sm:$0xff]
      %v1362 = vld [vmem:[%s1051 + $0x31] sm:$0xff]
      %v1363 = vld [vmem:[%s1051 + $0x39] sm:$0xff]
      %v1364 = vld [vmem:[%s1051 + $0x49] sm:$0xff]
      %v1365 = vld [vmem:[%s1051 + $0x51] sm:$0xff]
      %v1366 = vld [vmem:[%s1051 + $0x61] sm:$0xff]
      %v1367 = vld [vmem:[%s1051 + $0x69] sm:$0xff]
      %v1368 = vld [vmem:[%s1051 + $0x79] sm:$0xff]
      %v1369 = vld [vmem:[%s1051 + $0x81] sm:$0xff]
      %v1370 = vld [vmem:[%s1051 + $0x91] sm:$0xff]
      %v1371 = vld [vmem:[%s1051 + $0x99] sm:$0xff]
      %v1372 = vld [vmem:[%s1051 + $0xa9] sm:$0xff]
      %v1373 = vld [vmem:[%s1051 + $0xb1] sm:$0xff]
      %v1374 = vld [vmem:[%s1051 + $0xc1] sm:$0xff]
      %v1375 = vld [vmem:[%s1051 + $0xc9] sm:$0xff]
      %v1376 = vld [vmem:[%s1051 + $0xd9] sm:$0xff]
      %v1377 = vld [vmem:[%s1051 + $0xe1] sm:$0xff]
      %v1378 = vld [vmem:[%s1051 + $0xf1] sm:$0xff]
      %v1379 = vld [vmem:[%s1051 + $0xf9] sm:$0xff]
      %v1380 = vld [vmem:[%s1051 + $0x109] sm:$0xff]
      %v1381 = vld [vmem:[%s1051 + $0x111] sm:$0xff]
      %v1382 = vld [vmem:[%s1051 + $0x121] sm:$0xff]
      %v1383 = vld [vmem:[%s1051 + $0x129] sm:$0xff]
      %v1384 = vld [vmem:[%s1051 + $0x139] sm:$0xff]
      %v1385 = vld [vmem:[%s1051 + $0x141] sm:$0xff]
      %v1386 = vld [vmem:[%s1051 + $0x151] sm:$0xff]
      %v1387 = vld [vmem:[%s1051 + $0x159] sm:$0xff]
      %v1388 = vld [vmem:[%s1051 + $0x169] sm:$0xff]
      %v1389 = vld [vmem:[%s1051 + $0x171] sm:$0xff]
      %s1390 = scalar_lea.vmem %s1, 512
      %v1391 = vld [vmem:[%s1390] sm:$0xff]
      %v1392 = vld [vmem:[%s1390 + $0x8] sm:$0xff]
      %v1393 = vld [vmem:[%s1390 + $0x10] sm:$0xff]
      %v1394 = vld [vmem:[%s1390 + $0x18] sm:$0xff]
      %v1395 = vld [vmem:[%s1390 + $0x20] sm:$0xff]
      %v1396 = vld [vmem:[%s1390 + $0x28] sm:$0xff]
      %v1397 = vld [vmem:[%s1390 + $0x30] sm:$0xff]
      %v1398 = vld [vmem:[%s1390 + $0x38] sm:$0xff]
      %v1399 = vld [vmem:[%s1390 + $0x40] sm:$0xff]
      %v1400 = vld [vmem:[%s1390 + $0x48] sm:$0xff]
      %v1401 = vld [vmem:[%s1390 + $0x50] sm:$0xff]
      %v1402 = vld [vmem:[%s1390 + $0x58] sm:$0xff]
      %v1403 = vld [vmem:[%s1390 + $0x60] sm:$0xff]
      %v1404 = vld [vmem:[%s1390 + $0x68] sm:$0xff]
      %v1405 = vld [vmem:[%s1390 + $0x70] sm:$0xff]
      %v1406 = vld [vmem:[%s1390 + $0x78] sm:$0xff]
      %1407 = vmatprep.subr.mxu0 0.0
      %1408 = vmatpush1.msra.mxu0 %v1406
      %1409 = vmatprep.subr.mxu0 0.0
      %1410 = vmatpush1.msra.mxu0 %v1405
      %1411 = vmatprep.subr.mxu0 0.0
      %1412 = vmatpush1.msra.mxu0 %v1404
      %1413 = vmatprep.subr.mxu0 0.0
      %1414 = vmatpush1.msra.mxu0 %v1403
      %1415 = vmatprep.subr.mxu0 0.0
      %1416 = vmatpush1.msra.mxu0 %v1402
      %1417 = vmatprep.subr.mxu0 0.0
      %1418 = vmatpush1.msra.mxu0 %v1401
      %1419 = vmatprep.subr.mxu0 0.0
      %1420 = vmatpush1.msra.mxu0 %v1400
      %1421 = vmatprep.subr.mxu0 0.0
      %1422 = vmatpush1.msra.mxu0 %v1399
      %1423 = vmatprep.subr.mxu0 0.0
      %1424 = vmatpush1.msra.mxu0 %v1398
      %1425 = vmatprep.subr.mxu0 0.0
      %1426 = vmatpush1.msra.mxu0 %v1397
      %1427 = vmatprep.subr.mxu0 0.0
      %1428 = vmatpush1.msra.mxu0 %v1396
      %1429 = vmatprep.subr.mxu0 0.0
      %1430 = vmatpush1.msra.mxu0 %v1395
      %1431 = vmatprep.subr.mxu0 0.0
      %1432 = vmatpush1.msra.mxu0 %v1394
      %1433 = vmatprep.subr.mxu0 0.0
      %1434 = vmatpush1.msra.mxu0 %v1393
      %1435 = vmatprep.subr.mxu0 0.0
      %1436 = vmatpush1.msra.mxu0 %v1392
      %1437 = vmatprep.subr.mxu0 0.0
      %1438 = vmatpush1.msra.mxu0 %v1391
      %1439 = vmatprep.subr.mxu0 0.0
      %1440 = vmatpush2.msra.mxu0 0.0
      %1441 = vmatprep.subr.mxu0 0.0
      %1442 = vmatpush2.msra.mxu0 0.0
      %1443 = vmatprep.subr.mxu0 0.0
      %1444 = vmatpush2.msra.mxu0 0.0
      %1445 = vmatprep.subr.mxu0 0.0
      %1446 = vmatpush2.msra.mxu0 0.0
      %1447 = vmatprep.subr.mxu0 0.0
      %1448 = vmatpush2.msra.mxu0 0.0
      %1449 = vmatprep.subr.mxu0 0.0
      %1450 = vmatpush2.msra.mxu0 0.0
      %1451 = vmatprep.subr.mxu0 0.0
      %1452 = vmatpush2.msra.mxu0 0.0
      %1453 = vmatprep.subr.mxu0 0.0
      %1454 = vmatpush2.msra.mxu0 0.0
      %1455 = vmatprep.subr.mxu0 0.0
      %1456 = vmatpush2.msra.mxu0 0.0
      %1457 = vmatprep.subr.mxu0 0.0
      %1458 = vmatpush2.msra.mxu0 0.0
      %1459 = vmatprep.subr.mxu0 0.0
      %1460 = vmatpush2.msra.mxu0 0.0
      %1461 = vmatprep.subr.mxu0 0.0
      %1462 = vmatpush2.msra.mxu0 0.0
      %1463 = vmatprep.subr.mxu0 0.0
      %1464 = vmatpush2.msra.mxu0 0.0
      %1465 = vmatprep.subr.mxu0 0.0
      %1466 = vmatpush2.msra.mxu0 0.0
      %1467 = vmatprep.subr.mxu0 0.0
      %1468 = vmatpush2.msra.mxu0 0.0
      %1469 = vmatprep.subr.mxu0 0.0
      %1470 = vmatpush2.msra.mxu0 0.0
      %1471 = vmatprep.mubr.f32.mxu0 0.0
      %1472 = vmatmul.mubr.f32.gmra.mxu0 %v1358
      %v1473 = vpop.f32.mrf.mxu0
      %v1474 = vadd.f32 0.0, %v1473
      %v1475 = vpop.f32.mrf.mxu0
      %1476 = vmatprep.mubr.f32.mxu0 0.0
      %1477 = vmatmul.mubr.f32.gmra.mxu0 %v1359
      %v1478 = vpop.f32.mrf.mxu0
      %v1479 = vadd.f32 0.0, %v1478
      %v1480 = vpop.f32.mrf.mxu0
      %1481 = vmatprep.mubr.f32.mxu0 0.0
      %1482 = vmatmul.mubr.f32.gmra.mxu0 %v1360
      %v1483 = vpop.f32.mrf.mxu0
      %v1484 = vadd.f32 0.0, %v1483
      %v1485 = vpop.f32.mrf.mxu0
      %1486 = vmatprep.mubr.f32.mxu0 0.0
      %1487 = vmatmul.mubr.f32.gmra.mxu0 %v1361
      %v1488 = vpop.f32.mrf.mxu0
      %v1489 = vadd.f32 0.0, %v1488
      %v1490 = vpop.f32.mrf.mxu0
      %1491 = vmatprep.mubr.f32.mxu0 0.0
      %1492 = vmatmul.mubr.f32.gmra.mxu0 %v1362
      %v1493 = vpop.f32.mrf.mxu0
      %v1494 = vadd.f32 0.0, %v1493
      %v1495 = vpop.f32.mrf.mxu0
      %1496 = vmatprep.mubr.f32.mxu0 0.0
      %1497 = vmatmul.mubr.f32.gmra.mxu0 %v1363
      %v1498 = vpop.f32.mrf.mxu0
      %v1499 = vadd.f32 0.0, %v1498
      %v1500 = vpop.f32.mrf.mxu0
      %1501 = vmatprep.mubr.f32.mxu0 0.0
      %1502 = vmatmul.mubr.f32.gmra.mxu0 %v1364
      %v1503 = vpop.f32.mrf.mxu0
      %v1504 = vadd.f32 0.0, %v1503
      %v1505 = vpop.f32.mrf.mxu0
      %1506 = vmatprep.mubr.f32.mxu0 0.0
      %1507 = vmatmul.mubr.f32.gmra.mxu0 %v1365
      %v1508 = vpop.f32.mrf.mxu0
      %v1509 = vadd.f32 0.0, %v1508
      %v1510 = vpop.f32.mrf.mxu0
      %1511 = vmatprep.mubr.f32.mxu0 0.0
      %1512 = vmatmul.mubr.f32.gmra.mxu0 %v1366
      %v1513 = vpop.f32.mrf.mxu0
      %v1514 = vadd.f32 0.0, %v1513
      %v1515 = vpop.f32.mrf.mxu0
      %1516 = vmatprep.mubr.f32.mxu0 0.0
      %1517 = vmatmul.mubr.f32.gmra.mxu0 %v1367
      %v1518 = vpop.f32.mrf.mxu0
      %v1519 = vadd.f32 0.0, %v1518
      %v1520 = vpop.f32.mrf.mxu0
      %1521 = vmatprep.mubr.f32.mxu0 0.0
      %1522 = vmatmul.mubr.f32.gmra.mxu0 %v1368
      %v1523 = vpop.f32.mrf.mxu0
      %v1524 = vadd.f32 0.0, %v1523
      %v1525 = vpop.f32.mrf.mxu0
      %1526 = vmatprep.mubr.f32.mxu0 0.0
      %1527 = vmatmul.mubr.f32.gmra.mxu0 %v1369
      %v1528 = vpop.f32.mrf.mxu0
      %v1529 = vadd.f32 0.0, %v1528
      %v1530 = vpop.f32.mrf.mxu0
      %1531 = vmatprep.mubr.f32.mxu0 0.0
      %1532 = vmatmul.mubr.f32.gmra.mxu0 %v1370
      %v1533 = vpop.f32.mrf.mxu0
      %v1534 = vadd.f32 0.0, %v1533
      %v1535 = vpop.f32.mrf.mxu0
      %1536 = vmatprep.mubr.f32.mxu0 0.0
      %1537 = vmatmul.mubr.f32.gmra.mxu0 %v1371
      %v1538 = vpop.f32.mrf.mxu0
      %v1539 = vadd.f32 0.0, %v1538
      %v1540 = vpop.f32.mrf.mxu0
      %1541 = vmatprep.mubr.f32.mxu0 0.0
      %1542 = vmatmul.mubr.f32.gmra.mxu0 %v1372
      %v1543 = vpop.f32.mrf.mxu0
      %v1544 = vadd.f32 0.0, %v1543
      %v1545 = vpop.f32.mrf.mxu0
      %1546 = vmatprep.mubr.f32.mxu0 0.0
      %1547 = vmatmul.mubr.f32.gmra.mxu0 %v1373
      %v1548 = vpop.f32.mrf.mxu0
      %v1549 = vadd.f32 0.0, %v1548
      %v1550 = vpop.f32.mrf.mxu0
      %1551 = vmatprep.mubr.f32.mxu0 0.0
      %1552 = vmatmul.mubr.f32.gmra.mxu0 %v1374
      %v1553 = vpop.f32.mrf.mxu0
      %v1554 = vadd.f32 0.0, %v1553
      %v1555 = vpop.f32.mrf.mxu0
      %1556 = vmatprep.mubr.f32.mxu0 0.0
      %1557 = vmatmul.mubr.f32.gmra.mxu0 %v1375
      %v1558 = vpop.f32.mrf.mxu0
      %v1559 = vadd.f32 0.0, %v1558
      %v1560 = vpop.f32.mrf.mxu0
      %1561 = vmatprep.mubr.f32.mxu0 0.0
      %1562 = vmatmul.mubr.f32.gmra.mxu0 %v1376
      %v1563 = vpop.f32.mrf.mxu0
      %v1564 = vadd.f32 0.0, %v1563
      %v1565 = vpop.f32.mrf.mxu0
      %1566 = vmatprep.mubr.f32.mxu0 0.0
      %1567 = vmatmul.mubr.f32.gmra.mxu0 %v1377
      %v1568 = vpop.f32.mrf.mxu0
      %v1569 = vadd.f32 0.0, %v1568
      %v1570 = vpop.f32.mrf.mxu0
      %1571 = vmatprep.mubr.f32.mxu0 0.0
      %1572 = vmatmul.mubr.f32.gmra.mxu0 %v1378
      %v1573 = vpop.f32.mrf.mxu0
      %v1574 = vadd.f32 0.0, %v1573
      %v1575 = vpop.f32.mrf.mxu0
      %1576 = vmatprep.mubr.f32.mxu0 0.0
      %1577 = vmatmul.mubr.f32.gmra.mxu0 %v1379
      %v1578 = vpop.f32.mrf.mxu0
      %v1579 = vadd.f32 0.0, %v1578
      %v1580 = vpop.f32.mrf.mxu0
      %1581 = vmatprep.mubr.f32.mxu0 0.0
      %1582 = vmatmul.mubr.f32.gmra.mxu0 %v1380
      %v1583 = vpop.f32.mrf.mxu0
      %v1584 = vadd.f32 0.0, %v1583
      %v1585 = vpop.f32.mrf.mxu0
      %1586 = vmatprep.mubr.f32.mxu0 0.0
      %1587 = vmatmul.mubr.f32.gmra.mxu0 %v1381
      %v1588 = vpop.f32.mrf.mxu0
      %v1589 = vadd.f32 0.0, %v1588
      %v1590 = vpop.f32.mrf.mxu0
      %1591 = vmatprep.mubr.f32.mxu0 0.0
      %1592 = vmatmul.mubr.f32.gmra.mxu0 %v1382
      %v1593 = vpop.f32.mrf.mxu0
      %v1594 = vadd.f32 0.0, %v1593
      %v1595 = vpop.f32.mrf.mxu0
      %1596 = vmatprep.mubr.f32.mxu0 0.0
      %1597 = vmatmul.mubr.f32.gmra.mxu0 %v1383
      %v1598 = vpop.f32.mrf.mxu0
      %v1599 = vadd.f32 0.0, %v1598
      %v1600 = vpop.f32.mrf.mxu0
      %1601 = vmatprep.mubr.f32.mxu0 0.0
      %1602 = vmatmul.mubr.f32.gmra.mxu0 %v1384
      %v1603 = vpop.f32.mrf.mxu0
      %v1604 = vadd.f32 0.0, %v1603
      %v1605 = vpop.f32.mrf.mxu0
      %1606 = vmatprep.mubr.f32.mxu0 0.0
      %1607 = vmatmul.mubr.f32.gmra.mxu0 %v1385
      %v1608 = vpop.f32.mrf.mxu0
      %v1609 = vadd.f32 0.0, %v1608
      %v1610 = vpop.f32.mrf.mxu0
      %1611 = vmatprep.mubr.f32.mxu0 0.0
      %1612 = vmatmul.mubr.f32.gmra.mxu0 %v1386
      %v1613 = vpop.f32.mrf.mxu0
      %v1614 = vadd.f32 0.0, %v1613
      %v1615 = vpop.f32.mrf.mxu0
      %1616 = vmatprep.mubr.f32.mxu0 0.0
      %1617 = vmatmul.mubr.f32.gmra.mxu0 %v1387
      %v1618 = vpop.f32.mrf.mxu0
      %v1619 = vadd.f32 0.0, %v1618
      %v1620 = vpop.f32.mrf.mxu0
      %1621 = vmatprep.mubr.f32.mxu0 0.0
      %1622 = vmatmul.mubr.f32.gmra.mxu0 %v1388
      %v1623 = vpop.f32.mrf.mxu0
      %v1624 = vadd.f32 0.0, %v1623
      %v1625 = vpop.f32.mrf.mxu0
      %1626 = vmatprep.mubr.f32.mxu0 0.0
      %1627 = vmatmul.mubr.f32.gmra.mxu0 %v1389
      %v1628 = vpop.f32.mrf.mxu0
      %v1629 = vadd.f32 0.0, %v1628
      %v1630 = vpop.f32.mrf.mxu0
      %1631 = vdwg.mxu0
      %v1632 = vadd.f32 %v1326, %v1474
      %v1633 = vadd.f32 %v1327, %v1479
      %v1634 = vadd.f32 %v1328, %v1484
      %v1635 = vadd.f32 %v1329, %v1489
      %v1636 = vadd.f32 %v1330, %v1494
      %v1637 = vadd.f32 %v1331, %v1499
      %v1638 = vadd.f32 %v1332, %v1504
      %v1639 = vadd.f32 %v1333, %v1509
      %v1640 = vadd.f32 %v1334, %v1514
      %v1641 = vadd.f32 %v1335, %v1519
      %v1642 = vadd.f32 %v1336, %v1524
      %v1643 = vadd.f32 %v1337, %v1529
      %v1644 = vadd.f32 %v1338, %v1534
      %v1645 = vadd.f32 %v1339, %v1539
      %v1646 = vadd.f32 %v1340, %v1544
      %v1647 = vadd.f32 %v1341, %v1549
      %v1648 = vadd.f32 %v1342, %v1554
      %v1649 = vadd.f32 %v1343, %v1559
      %v1650 = vadd.f32 %v1344, %v1564
      %v1651 = vadd.f32 %v1345, %v1569
      %v1652 = vadd.f32 %v1346, %v1574
      %v1653 = vadd.f32 %v1347, %v1579
      %v1654 = vadd.f32 %v1348, %v1584
      %v1655 = vadd.f32 %v1349, %v1589
      %v1656 = vadd.f32 %v1350, %v1594
      %v1657 = vadd.f32 %v1351, %v1599
      %v1658 = vadd.f32 %v1352, %v1604
      %v1659 = vadd.f32 %v1353, %v1609
      %v1660 = vadd.f32 %v1354, %v1614
      %v1661 = vadd.f32 %v1355, %v1619
      %v1662 = vadd.f32 %v1356, %v1624
      %v1663 = vadd.f32 %v1357, %v1629
      %v1664 = vld [vmem:[%s1051 + $0x2] sm:$0xff]
      %v1665 = vld [vmem:[%s1051 + $0xa] sm:$0xff]
      %v1666 = vld [vmem:[%s1051 + $0x1a] sm:$0xff]
      %v1667 = vld [vmem:[%s1051 + $0x22] sm:$0xff]
      %v1668 = vld [vmem:[%s1051 + $0x32] sm:$0xff]
      %v1669 = vld [vmem:[%s1051 + $0x3a] sm:$0xff]
      %v1670 = vld [vmem:[%s1051 + $0x4a] sm:$0xff]
      %v1671 = vld [vmem:[%s1051 + $0x52] sm:$0xff]
      %v1672 = vld [vmem:[%s1051 + $0x62] sm:$0xff]
      %v1673 = vld [vmem:[%s1051 + $0x6a] sm:$0xff]
      %v1674 = vld [vmem:[%s1051 + $0x7a] sm:$0xff]
      %v1675 = vld [vmem:[%s1051 + $0x82] sm:$0xff]
      %v1676 = vld [vmem:[%s1051 + $0x92] sm:$0xff]
      %v1677 = vld [vmem:[%s1051 + $0x9a] sm:$0xff]
      %v1678 = vld [vmem:[%s1051 + $0xaa] sm:$0xff]
      %v1679 = vld [vmem:[%s1051 + $0xb2] sm:$0xff]
      %v1680 = vld [vmem:[%s1051 + $0xc2] sm:$0xff]
      %v1681 = vld [vmem:[%s1051 + $0xca] sm:$0xff]
      %v1682 = vld [vmem:[%s1051 + $0xda] sm:$0xff]
      %v1683 = vld [vmem:[%s1051 + $0xe2] sm:$0xff]
      %v1684 = vld [vmem:[%s1051 + $0xf2] sm:$0xff]
      %v1685 = vld [vmem:[%s1051 + $0xfa] sm:$0xff]
      %v1686 = vld [vmem:[%s1051 + $0x10a] sm:$0xff]
      %v1687 = vld [vmem:[%s1051 + $0x112] sm:$0xff]
      %v1688 = vld [vmem:[%s1051 + $0x122] sm:$0xff]
      %v1689 = vld [vmem:[%s1051 + $0x12a] sm:$0xff]
      %v1690 = vld [vmem:[%s1051 + $0x13a] sm:$0xff]
      %v1691 = vld [vmem:[%s1051 + $0x142] sm:$0xff]
      %v1692 = vld [vmem:[%s1051 + $0x152] sm:$0xff]
      %v1693 = vld [vmem:[%s1051 + $0x15a] sm:$0xff]
      %v1694 = vld [vmem:[%s1051 + $0x16a] sm:$0xff]
      %v1695 = vld [vmem:[%s1051 + $0x172] sm:$0xff]
      %s1696 = scalar_lea.vmem %s1, 640
      %v1697 = vld [vmem:[%s1696] sm:$0xff]
      %v1698 = vld [vmem:[%s1696 + $0x8] sm:$0xff]
      %v1699 = vld [vmem:[%s1696 + $0x10] sm:$0xff]
      %v1700 = vld [vmem:[%s1696 + $0x18] sm:$0xff]
      %v1701 = vld [vmem:[%s1696 + $0x20] sm:$0xff]
      %v1702 = vld [vmem:[%s1696 + $0x28] sm:$0xff]
      %v1703 = vld [vmem:[%s1696 + $0x30] sm:$0xff]
      %v1704 = vld [vmem:[%s1696 + $0x38] sm:$0xff]
      %v1705 = vld [vmem:[%s1696 + $0x40] sm:$0xff]
      %v1706 = vld [vmem:[%s1696 + $0x48] sm:$0xff]
      %v1707 = vld [vmem:[%s1696 + $0x50] sm:$0xff]
      %v1708 = vld [vmem:[%s1696 + $0x58] sm:$0xff]
      %v1709 = vld [vmem:[%s1696 + $0x60] sm:$0xff]
      %v1710 = vld [vmem:[%s1696 + $0x68] sm:$0xff]
      %v1711 = vld [vmem:[%s1696 + $0x70] sm:$0xff]
      %v1712 = vld [vmem:[%s1696 + $0x78] sm:$0xff]
      %1713 = vmatprep.subr.mxu0 0.0
      %1714 = vmatpush1.msra.mxu0 %v1712
      %1715 = vmatprep.subr.mxu0 0.0
      %1716 = vmatpush1.msra.mxu0 %v1711
      %1717 = vmatprep.subr.mxu0 0.0
      %1718 = vmatpush1.msra.mxu0 %v1710
      %1719 = vmatprep.subr.mxu0 0.0
      %1720 = vmatpush1.msra.mxu0 %v1709
      %1721 = vmatprep.subr.mxu0 0.0
      %1722 = vmatpush1.msra.mxu0 %v1708
      %1723 = vmatprep.subr.mxu0 0.0
      %1724 = vmatpush1.msra.mxu0 %v1707
      %1725 = vmatprep.subr.mxu0 0.0
      %1726 = vmatpush1.msra.mxu0 %v1706
      %1727 = vmatprep.subr.mxu0 0.0
      %1728 = vmatpush1.msra.mxu0 %v1705
      %1729 = vmatprep.subr.mxu0 0.0
      %1730 = vmatpush1.msra.mxu0 %v1704
      %1731 = vmatprep.subr.mxu0 0.0
      %1732 = vmatpush1.msra.mxu0 %v1703
      %1733 = vmatprep.subr.mxu0 0.0
      %1734 = vmatpush1.msra.mxu0 %v1702
      %1735 = vmatprep.subr.mxu0 0.0
      %1736 = vmatpush1.msra.mxu0 %v1701
      %1737 = vmatprep.subr.mxu0 0.0
      %1738 = vmatpush1.msra.mxu0 %v1700
      %1739 = vmatprep.subr.mxu0 0.0
      %1740 = vmatpush1.msra.mxu0 %v1699
      %1741 = vmatprep.subr.mxu0 0.0
      %1742 = vmatpush1.msra.mxu0 %v1698
      %1743 = vmatprep.subr.mxu0 0.0
      %1744 = vmatpush1.msra.mxu0 %v1697
      %1745 = vmatprep.subr.mxu0 0.0
      %1746 = vmatpush2.msra.mxu0 0.0
      %1747 = vmatprep.subr.mxu0 0.0
      %1748 = vmatpush2.msra.mxu0 0.0
      %1749 = vmatprep.subr.mxu0 0.0
      %1750 = vmatpush2.msra.mxu0 0.0
      %1751 = vmatprep.subr.mxu0 0.0
      %1752 = vmatpush2.msra.mxu0 0.0
      %1753 = vmatprep.subr.mxu0 0.0
      %1754 = vmatpush2.msra.mxu0 0.0
      %1755 = vmatprep.subr.mxu0 0.0
      %1756 = vmatpush2.msra.mxu0 0.0
      %1757 = vmatprep.subr.mxu0 0.0
      %1758 = vmatpush2.msra.mxu0 0.0
      %1759 = vmatprep.subr.mxu0 0.0
      %1760 = vmatpush2.msra.mxu0 0.0
      %1761 = vmatprep.subr.mxu0 0.0
      %1762 = vmatpush2.msra.mxu0 0.0
      %1763 = vmatprep.subr.mxu0 0.0
      %1764 = vmatpush2.msra.mxu0 0.0
      %1765 = vmatprep.subr.mxu0 0.0
      %1766 = vmatpush2.msra.mxu0 0.0
      %1767 = vmatprep.subr.mxu0 0.0
      %1768 = vmatpush2.msra.mxu0 0.0
      %1769 = vmatprep.subr.mxu0 0.0
      %1770 = vmatpush2.msra.mxu0 0.0
      %1771 = vmatprep.subr.mxu0 0.0
      %1772 = vmatpush2.msra.mxu0 0.0
      %1773 = vmatprep.subr.mxu0 0.0
      %1774 = vmatpush2.msra.mxu0 0.0
      %1775 = vmatprep.subr.mxu0 0.0
      %1776 = vmatpush2.msra.mxu0 0.0
      %1777 = vmatprep.mubr.f32.mxu0 0.0
      %1778 = vmatmul.mubr.f32.gmra.mxu0 %v1664
      %v1779 = vpop.f32.mrf.mxu0
      %v1780 = vadd.f32 0.0, %v1779
      %v1781 = vpop.f32.mrf.mxu0
      %1782 = vmatprep.mubr.f32.mxu0 0.0
      %1783 = vmatmul.mubr.f32.gmra.mxu0 %v1665
      %v1784 = vpop.f32.mrf.mxu0
      %v1785 = vadd.f32 0.0, %v1784
      %v1786 = vpop.f32.mrf.mxu0
      %1787 = vmatprep.mubr.f32.mxu0 0.0
      %1788 = vmatmul.mubr.f32.gmra.mxu0 %v1666
      %v1789 = vpop.f32.mrf.mxu0
      %v1790 = vadd.f32 0.0, %v1789
      %v1791 = vpop.f32.mrf.mxu0
      %1792 = vmatprep.mubr.f32.mxu0 0.0
      %1793 = vmatmul.mubr.f32.gmra.mxu0 %v1667
      %v1794 = vpop.f32.mrf.mxu0
      %v1795 = vadd.f32 0.0, %v1794
      %v1796 = vpop.f32.mrf.mxu0
      %1797 = vmatprep.mubr.f32.mxu0 0.0
      %1798 = vmatmul.mubr.f32.gmra.mxu0 %v1668
      %v1799 = vpop.f32.mrf.mxu0
      %v1800 = vadd.f32 0.0, %v1799
      %v1801 = vpop.f32.mrf.mxu0
      %1802 = vmatprep.mubr.f32.mxu0 0.0
      %1803 = vmatmul.mubr.f32.gmra.mxu0 %v1669
      %v1804 = vpop.f32.mrf.mxu0
      %v1805 = vadd.f32 0.0, %v1804
      %v1806 = vpop.f32.mrf.mxu0
      %1807 = vmatprep.mubr.f32.mxu0 0.0
      %1808 = vmatmul.mubr.f32.gmra.mxu0 %v1670
      %v1809 = vpop.f32.mrf.mxu0
      %v1810 = vadd.f32 0.0, %v1809
      %v1811 = vpop.f32.mrf.mxu0
      %1812 = vmatprep.mubr.f32.mxu0 0.0
      %1813 = vmatmul.mubr.f32.gmra.mxu0 %v1671
      %v1814 = vpop.f32.mrf.mxu0
      %v1815 = vadd.f32 0.0, %v1814
      %v1816 = vpop.f32.mrf.mxu0
      %1817 = vmatprep.mubr.f32.mxu0 0.0
      %1818 = vmatmul.mubr.f32.gmra.mxu0 %v1672
      %v1819 = vpop.f32.mrf.mxu0
      %v1820 = vadd.f32 0.0, %v1819
      %v1821 = vpop.f32.mrf.mxu0
      %1822 = vmatprep.mubr.f32.mxu0 0.0
      %1823 = vmatmul.mubr.f32.gmra.mxu0 %v1673
      %v1824 = vpop.f32.mrf.mxu0
      %v1825 = vadd.f32 0.0, %v1824
      %v1826 = vpop.f32.mrf.mxu0
      %1827 = vmatprep.mubr.f32.mxu0 0.0
      %1828 = vmatmul.mubr.f32.gmra.mxu0 %v1674
      %v1829 = vpop.f32.mrf.mxu0
      %v1830 = vadd.f32 0.0, %v1829
      %v1831 = vpop.f32.mrf.mxu0
      %1832 = vmatprep.mubr.f32.mxu0 0.0
      %1833 = vmatmul.mubr.f32.gmra.mxu0 %v1675
      %v1834 = vpop.f32.mrf.mxu0
      %v1835 = vadd.f32 0.0, %v1834
      %v1836 = vpop.f32.mrf.mxu0
      %1837 = vmatprep.mubr.f32.mxu0 0.0
      %1838 = vmatmul.mubr.f32.gmra.mxu0 %v1676
      %v1839 = vpop.f32.mrf.mxu0
      %v1840 = vadd.f32 0.0, %v1839
      %v1841 = vpop.f32.mrf.mxu0
      %1842 = vmatprep.mubr.f32.mxu0 0.0
      %1843 = vmatmul.mubr.f32.gmra.mxu0 %v1677
      %v1844 = vpop.f32.mrf.mxu0
      %v1845 = vadd.f32 0.0, %v1844
      %v1846 = vpop.f32.mrf.mxu0
      %1847 = vmatprep.mubr.f32.mxu0 0.0
      %1848 = vmatmul.mubr.f32.gmra.mxu0 %v1678
      %v1849 = vpop.f32.mrf.mxu0
      %v1850 = vadd.f32 0.0, %v1849
      %v1851 = vpop.f32.mrf.mxu0
      %1852 = vmatprep.mubr.f32.mxu0 0.0
      %1853 = vmatmul.mubr.f32.gmra.mxu0 %v1679
      %v1854 = vpop.f32.mrf.mxu0
      %v1855 = vadd.f32 0.0, %v1854
      %v1856 = vpop.f32.mrf.mxu0
      %1857 = vmatprep.mubr.f32.mxu0 0.0
      %1858 = vmatmul.mubr.f32.gmra.mxu0 %v1680
      %v1859 = vpop.f32.mrf.mxu0
      %v1860 = vadd.f32 0.0, %v1859
      %v1861 = vpop.f32.mrf.mxu0
      %1862 = vmatprep.mubr.f32.mxu0 0.0
      %1863 = vmatmul.mubr.f32.gmra.mxu0 %v1681
      %v1864 = vpop.f32.mrf.mxu0
      %v1865 = vadd.f32 0.0, %v1864
      %v1866 = vpop.f32.mrf.mxu0
      %1867 = vmatprep.mubr.f32.mxu0 0.0
      %1868 = vmatmul.mubr.f32.gmra.mxu0 %v1682
      %v1869 = vpop.f32.mrf.mxu0
      %v1870 = vadd.f32 0.0, %v1869
      %v1871 = vpop.f32.mrf.mxu0
      %1872 = vmatprep.mubr.f32.mxu0 0.0
      %1873 = vmatmul.mubr.f32.gmra.mxu0 %v1683
      %v1874 = vpop.f32.mrf.mxu0
      %v1875 = vadd.f32 0.0, %v1874
      %v1876 = vpop.f32.mrf.mxu0
      %1877 = vmatprep.mubr.f32.mxu0 0.0
      %1878 = vmatmul.mubr.f32.gmra.mxu0 %v1684
      %v1879 = vpop.f32.mrf.mxu0
      %v1880 = vadd.f32 0.0, %v1879
      %v1881 = vpop.f32.mrf.mxu0
      %1882 = vmatprep.mubr.f32.mxu0 0.0
      %1883 = vmatmul.mubr.f32.gmra.mxu0 %v1685
      %v1884 = vpop.f32.mrf.mxu0
      %v1885 = vadd.f32 0.0, %v1884
      %v1886 = vpop.f32.mrf.mxu0
      %1887 = vmatprep.mubr.f32.mxu0 0.0
      %1888 = vmatmul.mubr.f32.gmra.mxu0 %v1686
      %v1889 = vpop.f32.mrf.mxu0
      %v1890 = vadd.f32 0.0, %v1889
      %v1891 = vpop.f32.mrf.mxu0
      %1892 = vmatprep.mubr.f32.mxu0 0.0
      %1893 = vmatmul.mubr.f32.gmra.mxu0 %v1687
      %v1894 = vpop.f32.mrf.mxu0
      %v1895 = vadd.f32 0.0, %v1894
      %v1896 = vpop.f32.mrf.mxu0
      %1897 = vmatprep.mubr.f32.mxu0 0.0
      %1898 = vmatmul.mubr.f32.gmra.mxu0 %v1688
      %v1899 = vpop.f32.mrf.mxu0
      %v1900 = vadd.f32 0.0, %v1899
      %v1901 = vpop.f32.mrf.mxu0
      %1902 = vmatprep.mubr.f32.mxu0 0.0
      %1903 = vmatmul.mubr.f32.gmra.mxu0 %v1689
      %v1904 = vpop.f32.mrf.mxu0
      %v1905 = vadd.f32 0.0, %v1904
      %v1906 = vpop.f32.mrf.mxu0
      %1907 = vmatprep.mubr.f32.mxu0 0.0
      %1908 = vmatmul.mubr.f32.gmra.mxu0 %v1690
      %v1909 = vpop.f32.mrf.mxu0
      %v1910 = vadd.f32 0.0, %v1909
      %v1911 = vpop.f32.mrf.mxu0
      %1912 = vmatprep.mubr.f32.mxu0 0.0
      %1913 = vmatmul.mubr.f32.gmra.mxu0 %v1691
      %v1914 = vpop.f32.mrf.mxu0
      %v1915 = vadd.f32 0.0, %v1914
      %v1916 = vpop.f32.mrf.mxu0
      %1917 = vmatprep.mubr.f32.mxu0 0.0
      %1918 = vmatmul.mubr.f32.gmra.mxu0 %v1692
      %v1919 = vpop.f32.mrf.mxu0
      %v1920 = vadd.f32 0.0, %v1919
      %v1921 = vpop.f32.mrf.mxu0
      %1922 = vmatprep.mubr.f32.mxu0 0.0
      %1923 = vmatmul.mubr.f32.gmra.mxu0 %v1693
      %v1924 = vpop.f32.mrf.mxu0
      %v1925 = vadd.f32 0.0, %v1924
      %v1926 = vpop.f32.mrf.mxu0
      %1927 = vmatprep.mubr.f32.mxu0 0.0
      %1928 = vmatmul.mubr.f32.gmra.mxu0 %v1694
      %v1929 = vpop.f32.mrf.mxu0
      %v1930 = vadd.f32 0.0, %v1929
      %v1931 = vpop.f32.mrf.mxu0
      %1932 = vmatprep.mubr.f32.mxu0 0.0
      %1933 = vmatmul.mubr.f32.gmra.mxu0 %v1695
      %v1934 = vpop.f32.mrf.mxu0
      %v1935 = vadd.f32 0.0, %v1934
      %v1936 = vpop.f32.mrf.mxu0
      %1937 = vdwg.mxu0
      %v1938 = vadd.f32 %v1632, %v1780
      %v1939 = vadd.f32 %v1633, %v1785
      %v1940 = vadd.f32 %v1634, %v1790
      %v1941 = vadd.f32 %v1635, %v1795
      %v1942 = vadd.f32 %v1636, %v1800
      %v1943 = vadd.f32 %v1637, %v1805
      %v1944 = vadd.f32 %v1638, %v1810
      %v1945 = vadd.f32 %v1639, %v1815
      %v1946 = vadd.f32 %v1640, %v1820
      %v1947 = vadd.f32 %v1641, %v1825
      %v1948 = vadd.f32 %v1642, %v1830
      %v1949 = vadd.f32 %v1643, %v1835
      %v1950 = vadd.f32 %v1644, %v1840
      %v1951 = vadd.f32 %v1645, %v1845
      %v1952 = vadd.f32 %v1646, %v1850
      %v1953 = vadd.f32 %v1647, %v1855
      %v1954 = vadd.f32 %v1648, %v1860
      %v1955 = vadd.f32 %v1649, %v1865
      %v1956 = vadd.f32 %v1650, %v1870
      %v1957 = vadd.f32 %v1651, %v1875
      %v1958 = vadd.f32 %v1652, %v1880
      %v1959 = vadd.f32 %v1653, %v1885
      %v1960 = vadd.f32 %v1654, %v1890
      %v1961 = vadd.f32 %v1655, %v1895
      %v1962 = vadd.f32 %v1656, %v1900
      %v1963 = vadd.f32 %v1657, %v1905
      %v1964 = vadd.f32 %v1658, %v1910
      %v1965 = vadd.f32 %v1659, %v1915
      %v1966 = vadd.f32 %v1660, %v1920
      %v1967 = vadd.f32 %v1661, %v1925
      %v1968 = vadd.f32 %v1662, %v1930
      %v1969 = vadd.f32 %v1663, %v1935
      %s1970 = scalar_lea.vmem %s192, 48
      %v1971 = vld [vmem:[%s1970] sm:$0xff]
      %v1972 = vld [vmem:[%s1970 + $0x8] sm:$0xff]
      %v1973 = vld [vmem:[%s1970 + $0x18] sm:$0xff]
      %v1974 = vld [vmem:[%s1970 + $0x20] sm:$0xff]
      %v1975 = vld [vmem:[%s1970 + $0x30] sm:$0xff]
      %v1976 = vld [vmem:[%s1970 + $0x38] sm:$0xff]
      %v1977 = vld [vmem:[%s1970 + $0x48] sm:$0xff]
      %v1978 = vld [vmem:[%s1970 + $0x50] sm:$0xff]
      %v1979 = vld [vmem:[%s1970 + $0x60] sm:$0xff]
      %v1980 = vld [vmem:[%s1970 + $0x68] sm:$0xff]
      %v1981 = vld [vmem:[%s1970 + $0x78] sm:$0xff]
      %v1982 = vld [vmem:[%s1970 + $0x80] sm:$0xff]
      %v1983 = vld [vmem:[%s1970 + $0x90] sm:$0xff]
      %v1984 = vld [vmem:[%s1970 + $0x98] sm:$0xff]
      %v1985 = vld [vmem:[%s1970 + $0xa8] sm:$0xff]
      %v1986 = vld [vmem:[%s1970 + $0xb0] sm:$0xff]
      %v1987 = vld [vmem:[%s1970 + $0xc0] sm:$0xff]
      %v1988 = vld [vmem:[%s1970 + $0xc8] sm:$0xff]
      %v1989 = vld [vmem:[%s1970 + $0xd8] sm:$0xff]
      %v1990 = vld [vmem:[%s1970 + $0xe0] sm:$0xff]
      %v1991 = vld [vmem:[%s1970 + $0xf0] sm:$0xff]
      %v1992 = vld [vmem:[%s1970 + $0xf8] sm:$0xff]
      %v1993 = vld [vmem:[%s1970 + $0x108] sm:$0xff]
      %v1994 = vld [vmem:[%s1970 + $0x110] sm:$0xff]
      %v1995 = vld [vmem:[%s1970 + $0x120] sm:$0xff]
      %v1996 = vld [vmem:[%s1970 + $0x128] sm:$0xff]
      %v1997 = vld [vmem:[%s1970 + $0x138] sm:$0xff]
      %v1998 = vld [vmem:[%s1970 + $0x140] sm:$0xff]
      %v1999 = vld [vmem:[%s1970 + $0x150] sm:$0xff]
      %v2000 = vld [vmem:[%s1970 + $0x158] sm:$0xff]
      %v2001 = vld [vmem:[%s1970 + $0x168] sm:$0xff]
      %v2002 = vld [vmem:[%s1970 + $0x170] sm:$0xff]
      %s2003 = scalar_lea.vmem %s1, 768
      %v2004 = vld [vmem:[%s2003] sm:$0xff]
      %v2005 = vld [vmem:[%s2003 + $0x8] sm:$0xff]
      %v2006 = vld [vmem:[%s2003 + $0x10] sm:$0xff]
      %v2007 = vld [vmem:[%s2003 + $0x18] sm:$0xff]
      %v2008 = vld [vmem:[%s2003 + $0x20] sm:$0xff]
      %v2009 = vld [vmem:[%s2003 + $0x28] sm:$0xff]
      %v2010 = vld [vmem:[%s2003 + $0x30] sm:$0xff]
      %v2011 = vld [vmem:[%s2003 + $0x38] sm:$0xff]
      %v2012 = vld [vmem:[%s2003 + $0x40] sm:$0xff]
      %v2013 = vld [vmem:[%s2003 + $0x48] sm:$0xff]
      %v2014 = vld [vmem:[%s2003 + $0x50] sm:$0xff]
      %v2015 = vld [vmem:[%s2003 + $0x58] sm:$0xff]
      %v2016 = vld [vmem:[%s2003 + $0x60] sm:$0xff]
      %v2017 = vld [vmem:[%s2003 + $0x68] sm:$0xff]
      %v2018 = vld [vmem:[%s2003 + $0x70] sm:$0xff]
      %v2019 = vld [vmem:[%s2003 + $0x78] sm:$0xff]
      %2020 = vmatprep.subr.mxu0 0.0
      %2021 = vmatpush1.msra.mxu0 %v2019
      %2022 = vmatprep.subr.mxu0 0.0
      %2023 = vmatpush1.msra.mxu0 %v2018
      %2024 = vmatprep.subr.mxu0 0.0
      %2025 = vmatpush1.msra.mxu0 %v2017
      %2026 = vmatprep.subr.mxu0 0.0
      %2027 = vmatpush1.msra.mxu0 %v2016
      %2028 = vmatprep.subr.mxu0 0.0
      %2029 = vmatpush1.msra.mxu0 %v2015
      %2030 = vmatprep.subr.mxu0 0.0
      %2031 = vmatpush1.msra.mxu0 %v2014
      %2032 = vmatprep.subr.mxu0 0.0
      %2033 = vmatpush1.msra.mxu0 %v2013
      %2034 = vmatprep.subr.mxu0 0.0
      %2035 = vmatpush1.msra.mxu0 %v2012
      %2036 = vmatprep.subr.mxu0 0.0
      %2037 = vmatpush1.msra.mxu0 %v2011
      %2038 = vmatprep.subr.mxu0 0.0
      %2039 = vmatpush1.msra.mxu0 %v2010
      %2040 = vmatprep.subr.mxu0 0.0
      %2041 = vmatpush1.msra.mxu0 %v2009
      %2042 = vmatprep.subr.mxu0 0.0
      %2043 = vmatpush1.msra.mxu0 %v2008
      %2044 = vmatprep.subr.mxu0 0.0
      %2045 = vmatpush1.msra.mxu0 %v2007
      %2046 = vmatprep.subr.mxu0 0.0
      %2047 = vmatpush1.msra.mxu0 %v2006
      %2048 = vmatprep.subr.mxu0 0.0
      %2049 = vmatpush1.msra.mxu0 %v2005
      %2050 = vmatprep.subr.mxu0 0.0
      %2051 = vmatpush1.msra.mxu0 %v2004
      %2052 = vmatprep.subr.mxu0 0.0
      %2053 = vmatpush2.msra.mxu0 0.0
      %2054 = vmatprep.subr.mxu0 0.0
      %2055 = vmatpush2.msra.mxu0 0.0
      %2056 = vmatprep.subr.mxu0 0.0
      %2057 = vmatpush2.msra.mxu0 0.0
      %2058 = vmatprep.subr.mxu0 0.0
      %2059 = vmatpush2.msra.mxu0 0.0
      %2060 = vmatprep.subr.mxu0 0.0
      %2061 = vmatpush2.msra.mxu0 0.0
      %2062 = vmatprep.subr.mxu0 0.0
      %2063 = vmatpush2.msra.mxu0 0.0
      %2064 = vmatprep.subr.mxu0 0.0
      %2065 = vmatpush2.msra.mxu0 0.0
      %2066 = vmatprep.subr.mxu0 0.0
      %2067 = vmatpush2.msra.mxu0 0.0
      %2068 = vmatprep.subr.mxu0 0.0
      %2069 = vmatpush2.msra.mxu0 0.0
      %2070 = vmatprep.subr.mxu0 0.0
      %2071 = vmatpush2.msra.mxu0 0.0
      %2072 = vmatprep.subr.mxu0 0.0
      %2073 = vmatpush2.msra.mxu0 0.0
      %2074 = vmatprep.subr.mxu0 0.0
      %2075 = vmatpush2.msra.mxu0 0.0
      %2076 = vmatprep.subr.mxu0 0.0
      %2077 = vmatpush2.msra.mxu0 0.0
      %2078 = vmatprep.subr.mxu0 0.0
      %2079 = vmatpush2.msra.mxu0 0.0
      %2080 = vmatprep.subr.mxu0 0.0
      %2081 = vmatpush2.msra.mxu0 0.0
      %2082 = vmatprep.subr.mxu0 0.0
      %2083 = vmatpush2.msra.mxu0 0.0
      %2084 = vmatprep.mubr.f32.mxu0 0.0
      %2085 = vmatmul.mubr.f32.gmra.mxu0 %v1971
      %v2086 = vpop.f32.mrf.mxu0
      %v2087 = vadd.f32 0.0, %v2086
      %v2088 = vpop.f32.mrf.mxu0
      %2089 = vmatprep.mubr.f32.mxu0 0.0
      %2090 = vmatmul.mubr.f32.gmra.mxu0 %v1972
      %v2091 = vpop.f32.mrf.mxu0
      %v2092 = vadd.f32 0.0, %v2091
      %v2093 = vpop.f32.mrf.mxu0
      %2094 = vmatprep.mubr.f32.mxu0 0.0
      %2095 = vmatmul.mubr.f32.gmra.mxu0 %v1973
      %v2096 = vpop.f32.mrf.mxu0
      %v2097 = vadd.f32 0.0, %v2096
      %v2098 = vpop.f32.mrf.mxu0
      %2099 = vmatprep.mubr.f32.mxu0 0.0
      %2100 = vmatmul.mubr.f32.gmra.mxu0 %v1974
      %v2101 = vpop.f32.mrf.mxu0
      %v2102 = vadd.f32 0.0, %v2101
      %v2103 = vpop.f32.mrf.mxu0
      %2104 = vmatprep.mubr.f32.mxu0 0.0
      %2105 = vmatmul.mubr.f32.gmra.mxu0 %v1975
      %v2106 = vpop.f32.mrf.mxu0
      %v2107 = vadd.f32 0.0, %v2106
      %v2108 = vpop.f32.mrf.mxu0
      %2109 = vmatprep.mubr.f32.mxu0 0.0
      %2110 = vmatmul.mubr.f32.gmra.mxu0 %v1976
      %v2111 = vpop.f32.mrf.mxu0
      %v2112 = vadd.f32 0.0, %v2111
      %v2113 = vpop.f32.mrf.mxu0
      %2114 = vmatprep.mubr.f32.mxu0 0.0
      %2115 = vmatmul.mubr.f32.gmra.mxu0 %v1977
      %v2116 = vpop.f32.mrf.mxu0
      %v2117 = vadd.f32 0.0, %v2116
      %v2118 = vpop.f32.mrf.mxu0
      %2119 = vmatprep.mubr.f32.mxu0 0.0
      %2120 = vmatmul.mubr.f32.gmra.mxu0 %v1978
      %v2121 = vpop.f32.mrf.mxu0
      %v2122 = vadd.f32 0.0, %v2121
      %v2123 = vpop.f32.mrf.mxu0
      %2124 = vmatprep.mubr.f32.mxu0 0.0
      %2125 = vmatmul.mubr.f32.gmra.mxu0 %v1979
      %v2126 = vpop.f32.mrf.mxu0
      %v2127 = vadd.f32 0.0, %v2126
      %v2128 = vpop.f32.mrf.mxu0
      %2129 = vmatprep.mubr.f32.mxu0 0.0
      %2130 = vmatmul.mubr.f32.gmra.mxu0 %v1980
      %v2131 = vpop.f32.mrf.mxu0
      %v2132 = vadd.f32 0.0, %v2131
      %v2133 = vpop.f32.mrf.mxu0
      %2134 = vmatprep.mubr.f32.mxu0 0.0
      %2135 = vmatmul.mubr.f32.gmra.mxu0 %v1981
      %v2136 = vpop.f32.mrf.mxu0
      %v2137 = vadd.f32 0.0, %v2136
      %v2138 = vpop.f32.mrf.mxu0
      %2139 = vmatprep.mubr.f32.mxu0 0.0
      %2140 = vmatmul.mubr.f32.gmra.mxu0 %v1982
      %v2141 = vpop.f32.mrf.mxu0
      %v2142 = vadd.f32 0.0, %v2141
      %v2143 = vpop.f32.mrf.mxu0
      %2144 = vmatprep.mubr.f32.mxu0 0.0
      %2145 = vmatmul.mubr.f32.gmra.mxu0 %v1983
      %v2146 = vpop.f32.mrf.mxu0
      %v2147 = vadd.f32 0.0, %v2146
      %v2148 = vpop.f32.mrf.mxu0
      %2149 = vmatprep.mubr.f32.mxu0 0.0
      %2150 = vmatmul.mubr.f32.gmra.mxu0 %v1984
      %v2151 = vpop.f32.mrf.mxu0
      %v2152 = vadd.f32 0.0, %v2151
      %v2153 = vpop.f32.mrf.mxu0
      %2154 = vmatprep.mubr.f32.mxu0 0.0
      %2155 = vmatmul.mubr.f32.gmra.mxu0 %v1985
      %v2156 = vpop.f32.mrf.mxu0
      %v2157 = vadd.f32 0.0, %v2156
      %v2158 = vpop.f32.mrf.mxu0
      %2159 = vmatprep.mubr.f32.mxu0 0.0
      %2160 = vmatmul.mubr.f32.gmra.mxu0 %v1986
      %v2161 = vpop.f32.mrf.mxu0
      %v2162 = vadd.f32 0.0, %v2161
      %v2163 = vpop.f32.mrf.mxu0
      %2164 = vmatprep.mubr.f32.mxu0 0.0
      %2165 = vmatmul.mubr.f32.gmra.mxu0 %v1987
      %v2166 = vpop.f32.mrf.mxu0
      %v2167 = vadd.f32 0.0, %v2166
      %v2168 = vpop.f32.mrf.mxu0
      %2169 = vmatprep.mubr.f32.mxu0 0.0
      %2170 = vmatmul.mubr.f32.gmra.mxu0 %v1988
      %v2171 = vpop.f32.mrf.mxu0
      %v2172 = vadd.f32 0.0, %v2171
      %v2173 = vpop.f32.mrf.mxu0
      %2174 = vmatprep.mubr.f32.mxu0 0.0
      %2175 = vmatmul.mubr.f32.gmra.mxu0 %v1989
      %v2176 = vpop.f32.mrf.mxu0
      %v2177 = vadd.f32 0.0, %v2176
      %v2178 = vpop.f32.mrf.mxu0
      %2179 = vmatprep.mubr.f32.mxu0 0.0
      %2180 = vmatmul.mubr.f32.gmra.mxu0 %v1990
      %v2181 = vpop.f32.mrf.mxu0
      %v2182 = vadd.f32 0.0, %v2181
      %v2183 = vpop.f32.mrf.mxu0
      %2184 = vmatprep.mubr.f32.mxu0 0.0
      %2185 = vmatmul.mubr.f32.gmra.mxu0 %v1991
      %v2186 = vpop.f32.mrf.mxu0
      %v2187 = vadd.f32 0.0, %v2186
      %v2188 = vpop.f32.mrf.mxu0
      %2189 = vmatprep.mubr.f32.mxu0 0.0
      %2190 = vmatmul.mubr.f32.gmra.mxu0 %v1992
      %v2191 = vpop.f32.mrf.mxu0
      %v2192 = vadd.f32 0.0, %v2191
      %v2193 = vpop.f32.mrf.mxu0
      %2194 = vmatprep.mubr.f32.mxu0 0.0
      %2195 = vmatmul.mubr.f32.gmra.mxu0 %v1993
      %v2196 = vpop.f32.mrf.mxu0
      %v2197 = vadd.f32 0.0, %v2196
      %v2198 = vpop.f32.mrf.mxu0
      %2199 = vmatprep.mubr.f32.mxu0 0.0
      %2200 = vmatmul.mubr.f32.gmra.mxu0 %v1994
      %v2201 = vpop.f32.mrf.mxu0
      %v2202 = vadd.f32 0.0, %v2201
      %v2203 = vpop.f32.mrf.mxu0
      %2204 = vmatprep.mubr.f32.mxu0 0.0
      %2205 = vmatmul.mubr.f32.gmra.mxu0 %v1995
      %v2206 = vpop.f32.mrf.mxu0
      %v2207 = vadd.f32 0.0, %v2206
      %v2208 = vpop.f32.mrf.mxu0
      %2209 = vmatprep.mubr.f32.mxu0 0.0
      %2210 = vmatmul.mubr.f32.gmra.mxu0 %v1996
      %v2211 = vpop.f32.mrf.mxu0
      %v2212 = vadd.f32 0.0, %v2211
      %v2213 = vpop.f32.mrf.mxu0
      %2214 = vmatprep.mubr.f32.mxu0 0.0
      %2215 = vmatmul.mubr.f32.gmra.mxu0 %v1997
      %v2216 = vpop.f32.mrf.mxu0
      %v2217 = vadd.f32 0.0, %v2216
      %v2218 = vpop.f32.mrf.mxu0
      %2219 = vmatprep.mubr.f32.mxu0 0.0
      %2220 = vmatmul.mubr.f32.gmra.mxu0 %v1998
      %v2221 = vpop.f32.mrf.mxu0
      %v2222 = vadd.f32 0.0, %v2221
      %v2223 = vpop.f32.mrf.mxu0
      %2224 = vmatprep.mubr.f32.mxu0 0.0
      %2225 = vmatmul.mubr.f32.gmra.mxu0 %v1999
      %v2226 = vpop.f32.mrf.mxu0
      %v2227 = vadd.f32 0.0, %v2226
      %v2228 = vpop.f32.mrf.mxu0
      %2229 = vmatprep.mubr.f32.mxu0 0.0
      %2230 = vmatmul.mubr.f32.gmra.mxu0 %v2000
      %v2231 = vpop.f32.mrf.mxu0
      %v2232 = vadd.f32 0.0, %v2231
      %v2233 = vpop.f32.mrf.mxu0
      %2234 = vmatprep.mubr.f32.mxu0 0.0
      %2235 = vmatmul.mubr.f32.gmra.mxu0 %v2001
      %v2236 = vpop.f32.mrf.mxu0
      %v2237 = vadd.f32 0.0, %v2236
      %v2238 = vpop.f32.mrf.mxu0
      %2239 = vmatprep.mubr.f32.mxu0 0.0
      %2240 = vmatmul.mubr.f32.gmra.mxu0 %v2002
      %v2241 = vpop.f32.mrf.mxu0
      %v2242 = vadd.f32 0.0, %v2241
      %v2243 = vpop.f32.mrf.mxu0
      %2244 = vdwg.mxu0
      %v2245 = vadd.f32 %v1938, %v2087
      %v2246 = vadd.f32 %v1939, %v2092
      %v2247 = vadd.f32 %v1940, %v2097
      %v2248 = vadd.f32 %v1941, %v2102
      %v2249 = vadd.f32 %v1942, %v2107
      %v2250 = vadd.f32 %v1943, %v2112
      %v2251 = vadd.f32 %v1944, %v2117
      %v2252 = vadd.f32 %v1945, %v2122
      %v2253 = vadd.f32 %v1946, %v2127
      %v2254 = vadd.f32 %v1947, %v2132
      %v2255 = vadd.f32 %v1948, %v2137
      %v2256 = vadd.f32 %v1949, %v2142
      %v2257 = vadd.f32 %v1950, %v2147
      %v2258 = vadd.f32 %v1951, %v2152
      %v2259 = vadd.f32 %v1952, %v2157
      %v2260 = vadd.f32 %v1953, %v2162
      %v2261 = vadd.f32 %v1954, %v2167
      %v2262 = vadd.f32 %v1955, %v2172
      %v2263 = vadd.f32 %v1956, %v2177
      %v2264 = vadd.f32 %v1957, %v2182
      %v2265 = vadd.f32 %v1958, %v2187
      %v2266 = vadd.f32 %v1959, %v2192
      %v2267 = vadd.f32 %v1960, %v2197
      %v2268 = vadd.f32 %v1961, %v2202
      %v2269 = vadd.f32 %v1962, %v2207
      %v2270 = vadd.f32 %v1963, %v2212
      %v2271 = vadd.f32 %v1964, %v2217
      %v2272 = vadd.f32 %v1965, %v2222
      %v2273 = vadd.f32 %v1966, %v2227
      %v2274 = vadd.f32 %v1967, %v2232
      %v2275 = vadd.f32 %v1968, %v2237
      %v2276 = vadd.f32 %v1969, %v2242
      %v2277 = vld [vmem:[%s1970 + $0x1] sm:$0xff]
      %v2278 = vld [vmem:[%s1970 + $0x9] sm:$0xff]
      %v2279 = vld [vmem:[%s1970 + $0x19] sm:$0xff]
      %v2280 = vld [vmem:[%s1970 + $0x21] sm:$0xff]
      %v2281 = vld [vmem:[%s1970 + $0x31] sm:$0xff]
      %v2282 = vld [vmem:[%s1970 + $0x39] sm:$0xff]
      %v2283 = vld [vmem:[%s1970 + $0x49] sm:$0xff]
      %v2284 = vld [vmem:[%s1970 + $0x51] sm:$0xff]
      %v2285 = vld [vmem:[%s1970 + $0x61] sm:$0xff]
      %v2286 = vld [vmem:[%s1970 + $0x69] sm:$0xff]
      %v2287 = vld [vmem:[%s1970 + $0x79] sm:$0xff]
      %v2288 = vld [vmem:[%s1970 + $0x81] sm:$0xff]
      %v2289 = vld [vmem:[%s1970 + $0x91] sm:$0xff]
      %v2290 = vld [vmem:[%s1970 + $0x99] sm:$0xff]
      %v2291 = vld [vmem:[%s1970 + $0xa9] sm:$0xff]
      %v2292 = vld [vmem:[%s1970 + $0xb1] sm:$0xff]
      %v2293 = vld [vmem:[%s1970 + $0xc1] sm:$0xff]
      %v2294 = vld [vmem:[%s1970 + $0xc9] sm:$0xff]
      %v2295 = vld [vmem:[%s1970 + $0xd9] sm:$0xff]
      %v2296 = vld [vmem:[%s1970 + $0xe1] sm:$0xff]
      %v2297 = vld [vmem:[%s1970 + $0xf1] sm:$0xff]
      %v2298 = vld [vmem:[%s1970 + $0xf9] sm:$0xff]
      %v2299 = vld [vmem:[%s1970 + $0x109] sm:$0xff]
      %v2300 = vld [vmem:[%s1970 + $0x111] sm:$0xff]
      %v2301 = vld [vmem:[%s1970 + $0x121] sm:$0xff]
      %v2302 = vld [vmem:[%s1970 + $0x129] sm:$0xff]
      %v2303 = vld [vmem:[%s1970 + $0x139] sm:$0xff]
      %v2304 = vld [vmem:[%s1970 + $0x141] sm:$0xff]
      %v2305 = vld [vmem:[%s1970 + $0x151] sm:$0xff]
      %v2306 = vld [vmem:[%s1970 + $0x159] sm:$0xff]
      %v2307 = vld [vmem:[%s1970 + $0x169] sm:$0xff]
      %v2308 = vld [vmem:[%s1970 + $0x171] sm:$0xff]
      %s2309 = scalar_lea.vmem %s1, 896
      %v2310 = vld [vmem:[%s2309] sm:$0xff]
      %v2311 = vld [vmem:[%s2309 + $0x8] sm:$0xff]
      %v2312 = vld [vmem:[%s2309 + $0x10] sm:$0xff]
      %v2313 = vld [vmem:[%s2309 + $0x18] sm:$0xff]
      %v2314 = vld [vmem:[%s2309 + $0x20] sm:$0xff]
      %v2315 = vld [vmem:[%s2309 + $0x28] sm:$0xff]
      %v2316 = vld [vmem:[%s2309 + $0x30] sm:$0xff]
      %v2317 = vld [vmem:[%s2309 + $0x38] sm:$0xff]
      %v2318 = vld [vmem:[%s2309 + $0x40] sm:$0xff]
      %v2319 = vld [vmem:[%s2309 + $0x48] sm:$0xff]
      %v2320 = vld [vmem:[%s2309 + $0x50] sm:$0xff]
      %v2321 = vld [vmem:[%s2309 + $0x58] sm:$0xff]
      %v2322 = vld [vmem:[%s2309 + $0x60] sm:$0xff]
      %v2323 = vld [vmem:[%s2309 + $0x68] sm:$0xff]
      %v2324 = vld [vmem:[%s2309 + $0x70] sm:$0xff]
      %v2325 = vld [vmem:[%s2309 + $0x78] sm:$0xff]
      %2326 = vmatprep.subr.mxu0 0.0
      %2327 = vmatpush1.msra.mxu0 %v2325
      %2328 = vmatprep.subr.mxu0 0.0
      %2329 = vmatpush1.msra.mxu0 %v2324
      %2330 = vmatprep.subr.mxu0 0.0
      %2331 = vmatpush1.msra.mxu0 %v2323
      %2332 = vmatprep.subr.mxu0 0.0
      %2333 = vmatpush1.msra.mxu0 %v2322
      %2334 = vmatprep.subr.mxu0 0.0
      %2335 = vmatpush1.msra.mxu0 %v2321
      %2336 = vmatprep.subr.mxu0 0.0
      %2337 = vmatpush1.msra.mxu0 %v2320
      %2338 = vmatprep.subr.mxu0 0.0
      %2339 = vmatpush1.msra.mxu0 %v2319
      %2340 = vmatprep.subr.mxu0 0.0
      %2341 = vmatpush1.msra.mxu0 %v2318
      %2342 = vmatprep.subr.mxu0 0.0
      %2343 = vmatpush1.msra.mxu0 %v2317
      %2344 = vmatprep.subr.mxu0 0.0
      %2345 = vmatpush1.msra.mxu0 %v2316
      %2346 = vmatprep.subr.mxu0 0.0
      %2347 = vmatpush1.msra.mxu0 %v2315
      %2348 = vmatprep.subr.mxu0 0.0
      %2349 = vmatpush1.msra.mxu0 %v2314
      %2350 = vmatprep.subr.mxu0 0.0
      %2351 = vmatpush1.msra.mxu0 %v2313
      %2352 = vmatprep.subr.mxu0 0.0
      %2353 = vmatpush1.msra.mxu0 %v2312
      %2354 = vmatprep.subr.mxu0 0.0
      %2355 = vmatpush1.msra.mxu0 %v2311
      %2356 = vmatprep.subr.mxu0 0.0
      %2357 = vmatpush1.msra.mxu0 %v2310
      %2358 = vmatprep.subr.mxu0 0.0
      %2359 = vmatpush2.msra.mxu0 0.0
      %2360 = vmatprep.subr.mxu0 0.0
      %2361 = vmatpush2.msra.mxu0 0.0
      %2362 = vmatprep.subr.mxu0 0.0
      %2363 = vmatpush2.msra.mxu0 0.0
      %2364 = vmatprep.subr.mxu0 0.0
      %2365 = vmatpush2.msra.mxu0 0.0
      %2366 = vmatprep.subr.mxu0 0.0
      %2367 = vmatpush2.msra.mxu0 0.0
      %2368 = vmatprep.subr.mxu0 0.0
      %2369 = vmatpush2.msra.mxu0 0.0
      %2370 = vmatprep.subr.mxu0 0.0
      %2371 = vmatpush2.msra.mxu0 0.0
      %2372 = vmatprep.subr.mxu0 0.0
      %2373 = vmatpush2.msra.mxu0 0.0
      %2374 = vmatprep.subr.mxu0 0.0
      %2375 = vmatpush2.msra.mxu0 0.0
      %2376 = vmatprep.subr.mxu0 0.0
      %2377 = vmatpush2.msra.mxu0 0.0
      %2378 = vmatprep.subr.mxu0 0.0
      %2379 = vmatpush2.msra.mxu0 0.0
      %2380 = vmatprep.subr.mxu0 0.0
      %2381 = vmatpush2.msra.mxu0 0.0
      %2382 = vmatprep.subr.mxu0 0.0
      %2383 = vmatpush2.msra.mxu0 0.0
      %2384 = vmatprep.subr.mxu0 0.0
      %2385 = vmatpush2.msra.mxu0 0.0
      %2386 = vmatprep.subr.mxu0 0.0
      %2387 = vmatpush2.msra.mxu0 0.0
      %2388 = vmatprep.subr.mxu0 0.0
      %2389 = vmatpush2.msra.mxu0 0.0
      %2390 = vmatprep.mubr.f32.mxu0 0.0
      %2391 = vmatmul.mubr.f32.gmra.mxu0 %v2277
      %v2392 = vpop.f32.mrf.mxu0
      %v2393 = vadd.f32 0.0, %v2392
      %v2394 = vpop.f32.mrf.mxu0
      %2395 = vmatprep.mubr.f32.mxu0 0.0
      %2396 = vmatmul.mubr.f32.gmra.mxu0 %v2278
      %v2397 = vpop.f32.mrf.mxu0
      %v2398 = vadd.f32 0.0, %v2397
      %v2399 = vpop.f32.mrf.mxu0
      %2400 = vmatprep.mubr.f32.mxu0 0.0
      %2401 = vmatmul.mubr.f32.gmra.mxu0 %v2279
      %v2402 = vpop.f32.mrf.mxu0
      %v2403 = vadd.f32 0.0, %v2402
      %v2404 = vpop.f32.mrf.mxu0
      %2405 = vmatprep.mubr.f32.mxu0 0.0
      %2406 = vmatmul.mubr.f32.gmra.mxu0 %v2280
      %v2407 = vpop.f32.mrf.mxu0
      %v2408 = vadd.f32 0.0, %v2407
      %v2409 = vpop.f32.mrf.mxu0
      %2410 = vmatprep.mubr.f32.mxu0 0.0
      %2411 = vmatmul.mubr.f32.gmra.mxu0 %v2281
      %v2412 = vpop.f32.mrf.mxu0
      %v2413 = vadd.f32 0.0, %v2412
      %v2414 = vpop.f32.mrf.mxu0
      %2415 = vmatprep.mubr.f32.mxu0 0.0
      %2416 = vmatmul.mubr.f32.gmra.mxu0 %v2282
      %v2417 = vpop.f32.mrf.mxu0
      %v2418 = vadd.f32 0.0, %v2417
      %v2419 = vpop.f32.mrf.mxu0
      %2420 = vmatprep.mubr.f32.mxu0 0.0
      %2421 = vmatmul.mubr.f32.gmra.mxu0 %v2283
      %v2422 = vpop.f32.mrf.mxu0
      %v2423 = vadd.f32 0.0, %v2422
      %v2424 = vpop.f32.mrf.mxu0
      %2425 = vmatprep.mubr.f32.mxu0 0.0
      %2426 = vmatmul.mubr.f32.gmra.mxu0 %v2284
      %v2427 = vpop.f32.mrf.mxu0
      %v2428 = vadd.f32 0.0, %v2427
      %v2429 = vpop.f32.mrf.mxu0
      %2430 = vmatprep.mubr.f32.mxu0 0.0
      %2431 = vmatmul.mubr.f32.gmra.mxu0 %v2285
      %v2432 = vpop.f32.mrf.mxu0
      %v2433 = vadd.f32 0.0, %v2432
      %v2434 = vpop.f32.mrf.mxu0
      %2435 = vmatprep.mubr.f32.mxu0 0.0
      %2436 = vmatmul.mubr.f32.gmra.mxu0 %v2286
      %v2437 = vpop.f32.mrf.mxu0
      %v2438 = vadd.f32 0.0, %v2437
      %v2439 = vpop.f32.mrf.mxu0
      %2440 = vmatprep.mubr.f32.mxu0 0.0
      %2441 = vmatmul.mubr.f32.gmra.mxu0 %v2287
      %v2442 = vpop.f32.mrf.mxu0
      %v2443 = vadd.f32 0.0, %v2442
      %v2444 = vpop.f32.mrf.mxu0
      %2445 = vmatprep.mubr.f32.mxu0 0.0
      %2446 = vmatmul.mubr.f32.gmra.mxu0 %v2288
      %v2447 = vpop.f32.mrf.mxu0
      %v2448 = vadd.f32 0.0, %v2447
      %v2449 = vpop.f32.mrf.mxu0
      %2450 = vmatprep.mubr.f32.mxu0 0.0
      %2451 = vmatmul.mubr.f32.gmra.mxu0 %v2289
      %v2452 = vpop.f32.mrf.mxu0
      %v2453 = vadd.f32 0.0, %v2452
      %v2454 = vpop.f32.mrf.mxu0
      %2455 = vmatprep.mubr.f32.mxu0 0.0
      %2456 = vmatmul.mubr.f32.gmra.mxu0 %v2290
      %v2457 = vpop.f32.mrf.mxu0
      %v2458 = vadd.f32 0.0, %v2457
      %v2459 = vpop.f32.mrf.mxu0
      %2460 = vmatprep.mubr.f32.mxu0 0.0
      %2461 = vmatmul.mubr.f32.gmra.mxu0 %v2291
      %v2462 = vpop.f32.mrf.mxu0
      %v2463 = vadd.f32 0.0, %v2462
      %v2464 = vpop.f32.mrf.mxu0
      %2465 = vmatprep.mubr.f32.mxu0 0.0
      %2466 = vmatmul.mubr.f32.gmra.mxu0 %v2292
      %v2467 = vpop.f32.mrf.mxu0
      %v2468 = vadd.f32 0.0, %v2467
      %v2469 = vpop.f32.mrf.mxu0
      %2470 = vmatprep.mubr.f32.mxu0 0.0
      %2471 = vmatmul.mubr.f32.gmra.mxu0 %v2293
      %v2472 = vpop.f32.mrf.mxu0
      %v2473 = vadd.f32 0.0, %v2472
      %v2474 = vpop.f32.mrf.mxu0
      %2475 = vmatprep.mubr.f32.mxu0 0.0
      %2476 = vmatmul.mubr.f32.gmra.mxu0 %v2294
      %v2477 = vpop.f32.mrf.mxu0
      %v2478 = vadd.f32 0.0, %v2477
      %v2479 = vpop.f32.mrf.mxu0
      %2480 = vmatprep.mubr.f32.mxu0 0.0
      %2481 = vmatmul.mubr.f32.gmra.mxu0 %v2295
      %v2482 = vpop.f32.mrf.mxu0
      %v2483 = vadd.f32 0.0, %v2482
      %v2484 = vpop.f32.mrf.mxu0
      %2485 = vmatprep.mubr.f32.mxu0 0.0
      %2486 = vmatmul.mubr.f32.gmra.mxu0 %v2296
      %v2487 = vpop.f32.mrf.mxu0
      %v2488 = vadd.f32 0.0, %v2487
      %v2489 = vpop.f32.mrf.mxu0
      %2490 = vmatprep.mubr.f32.mxu0 0.0
      %2491 = vmatmul.mubr.f32.gmra.mxu0 %v2297
      %v2492 = vpop.f32.mrf.mxu0
      %v2493 = vadd.f32 0.0, %v2492
      %v2494 = vpop.f32.mrf.mxu0
      %2495 = vmatprep.mubr.f32.mxu0 0.0
      %2496 = vmatmul.mubr.f32.gmra.mxu0 %v2298
      %v2497 = vpop.f32.mrf.mxu0
      %v2498 = vadd.f32 0.0, %v2497
      %v2499 = vpop.f32.mrf.mxu0
      %2500 = vmatprep.mubr.f32.mxu0 0.0
      %2501 = vmatmul.mubr.f32.gmra.mxu0 %v2299
      %v2502 = vpop.f32.mrf.mxu0
      %v2503 = vadd.f32 0.0, %v2502
      %v2504 = vpop.f32.mrf.mxu0
      %2505 = vmatprep.mubr.f32.mxu0 0.0
      %2506 = vmatmul.mubr.f32.gmra.mxu0 %v2300
      %v2507 = vpop.f32.mrf.mxu0
      %v2508 = vadd.f32 0.0, %v2507
      %v2509 = vpop.f32.mrf.mxu0
      %2510 = vmatprep.mubr.f32.mxu0 0.0
      %2511 = vmatmul.mubr.f32.gmra.mxu0 %v2301
      %v2512 = vpop.f32.mrf.mxu0
      %v2513 = vadd.f32 0.0, %v2512
      %v2514 = vpop.f32.mrf.mxu0
      %2515 = vmatprep.mubr.f32.mxu0 0.0
      %2516 = vmatmul.mubr.f32.gmra.mxu0 %v2302
      %v2517 = vpop.f32.mrf.mxu0
      %v2518 = vadd.f32 0.0, %v2517
      %v2519 = vpop.f32.mrf.mxu0
      %2520 = vmatprep.mubr.f32.mxu0 0.0
      %2521 = vmatmul.mubr.f32.gmra.mxu0 %v2303
      %v2522 = vpop.f32.mrf.mxu0
      %v2523 = vadd.f32 0.0, %v2522
      %v2524 = vpop.f32.mrf.mxu0
      %2525 = vmatprep.mubr.f32.mxu0 0.0
      %2526 = vmatmul.mubr.f32.gmra.mxu0 %v2304
      %v2527 = vpop.f32.mrf.mxu0
      %v2528 = vadd.f32 0.0, %v2527
      %v2529 = vpop.f32.mrf.mxu0
      %2530 = vmatprep.mubr.f32.mxu0 0.0
      %2531 = vmatmul.mubr.f32.gmra.mxu0 %v2305
      %v2532 = vpop.f32.mrf.mxu0
      %v2533 = vadd.f32 0.0, %v2532
      %v2534 = vpop.f32.mrf.mxu0
      %2535 = vmatprep.mubr.f32.mxu0 0.0
      %2536 = vmatmul.mubr.f32.gmra.mxu0 %v2306
      %v2537 = vpop.f32.mrf.mxu0
      %v2538 = vadd.f32 0.0, %v2537
      %v2539 = vpop.f32.mrf.mxu0
      %2540 = vmatprep.mubr.f32.mxu0 0.0
      %2541 = vmatmul.mubr.f32.gmra.mxu0 %v2307
      %v2542 = vpop.f32.mrf.mxu0
      %v2543 = vadd.f32 0.0, %v2542
      %v2544 = vpop.f32.mrf.mxu0
      %2545 = vmatprep.mubr.f32.mxu0 0.0
      %2546 = vmatmul.mubr.f32.gmra.mxu0 %v2308
      %v2547 = vpop.f32.mrf.mxu0
      %v2548 = vadd.f32 0.0, %v2547
      %v2549 = vpop.f32.mrf.mxu0
      %2550 = vdwg.mxu0
      %v2551 = vadd.f32 %v2245, %v2393
      %v2552 = vadd.f32 %v2246, %v2398
      %v2553 = vadd.f32 %v2247, %v2403
      %v2554 = vadd.f32 %v2248, %v2408
      %v2555 = vadd.f32 %v2249, %v2413
      %v2556 = vadd.f32 %v2250, %v2418
      %v2557 = vadd.f32 %v2251, %v2423
      %v2558 = vadd.f32 %v2252, %v2428
      %v2559 = vadd.f32 %v2253, %v2433
      %v2560 = vadd.f32 %v2254, %v2438
      %v2561 = vadd.f32 %v2255, %v2443
      %v2562 = vadd.f32 %v2256, %v2448
      %v2563 = vadd.f32 %v2257, %v2453
      %v2564 = vadd.f32 %v2258, %v2458
      %v2565 = vadd.f32 %v2259, %v2463
      %v2566 = vadd.f32 %v2260, %v2468
      %v2567 = vadd.f32 %v2261, %v2473
      %v2568 = vadd.f32 %v2262, %v2478
      %v2569 = vadd.f32 %v2263, %v2483
      %v2570 = vadd.f32 %v2264, %v2488
      %v2571 = vadd.f32 %v2265, %v2493
      %v2572 = vadd.f32 %v2266, %v2498
      %v2573 = vadd.f32 %v2267, %v2503
      %v2574 = vadd.f32 %v2268, %v2508
      %v2575 = vadd.f32 %v2269, %v2513
      %v2576 = vadd.f32 %v2270, %v2518
      %v2577 = vadd.f32 %v2271, %v2523
      %v2578 = vadd.f32 %v2272, %v2528
      %v2579 = vadd.f32 %v2273, %v2533
      %v2580 = vadd.f32 %v2274, %v2538
      %v2581 = vadd.f32 %v2275, %v2543
      %v2582 = vadd.f32 %v2276, %v2548
      %v2583 = vld [vmem:[%s1970 + $0x2] sm:$0xff]
      %v2584 = vld [vmem:[%s1970 + $0xa] sm:$0xff]
      %v2585 = vld [vmem:[%s1970 + $0x1a] sm:$0xff]
      %v2586 = vld [vmem:[%s1970 + $0x22] sm:$0xff]
      %v2587 = vld [vmem:[%s1970 + $0x32] sm:$0xff]
      %v2588 = vld [vmem:[%s1970 + $0x3a] sm:$0xff]
      %v2589 = vld [vmem:[%s1970 + $0x4a] sm:$0xff]
      %v2590 = vld [vmem:[%s1970 + $0x52] sm:$0xff]
      %v2591 = vld [vmem:[%s1970 + $0x62] sm:$0xff]
      %v2592 = vld [vmem:[%s1970 + $0x6a] sm:$0xff]
      %v2593 = vld [vmem:[%s1970 + $0x7a] sm:$0xff]
      %v2594 = vld [vmem:[%s1970 + $0x82] sm:$0xff]
      %v2595 = vld [vmem:[%s1970 + $0x92] sm:$0xff]
      %v2596 = vld [vmem:[%s1970 + $0x9a] sm:$0xff]
      %v2597 = vld [vmem:[%s1970 + $0xaa] sm:$0xff]
      %v2598 = vld [vmem:[%s1970 + $0xb2] sm:$0xff]
      %v2599 = vld [vmem:[%s1970 + $0xc2] sm:$0xff]
      %v2600 = vld [vmem:[%s1970 + $0xca] sm:$0xff]
      %v2601 = vld [vmem:[%s1970 + $0xda] sm:$0xff]
      %v2602 = vld [vmem:[%s1970 + $0xe2] sm:$0xff]
      %v2603 = vld [vmem:[%s1970 + $0xf2] sm:$0xff]
      %v2604 = vld [vmem:[%s1970 + $0xfa] sm:$0xff]
      %v2605 = vld [vmem:[%s1970 + $0x10a] sm:$0xff]
      %v2606 = vld [vmem:[%s1970 + $0x112] sm:$0xff]
      %v2607 = vld [vmem:[%s1970 + $0x122] sm:$0xff]
      %v2608 = vld [vmem:[%s1970 + $0x12a] sm:$0xff]
      %v2609 = vld [vmem:[%s1970 + $0x13a] sm:$0xff]
      %v2610 = vld [vmem:[%s1970 + $0x142] sm:$0xff]
      %v2611 = vld [vmem:[%s1970 + $0x152] sm:$0xff]
      %v2612 = vld [vmem:[%s1970 + $0x15a] sm:$0xff]
      %v2613 = vld [vmem:[%s1970 + $0x16a] sm:$0xff]
      %v2614 = vld [vmem:[%s1970 + $0x172] sm:$0xff]
      %s2615 = scalar_lea.vmem %s1, 1024
      %v2616 = vld [vmem:[%s2615] sm:$0xff]
      %v2617 = vld [vmem:[%s2615 + $0x8] sm:$0xff]
      %v2618 = vld [vmem:[%s2615 + $0x10] sm:$0xff]
      %v2619 = vld [vmem:[%s2615 + $0x18] sm:$0xff]
      %v2620 = vld [vmem:[%s2615 + $0x20] sm:$0xff]
      %v2621 = vld [vmem:[%s2615 + $0x28] sm:$0xff]
      %v2622 = vld [vmem:[%s2615 + $0x30] sm:$0xff]
      %v2623 = vld [vmem:[%s2615 + $0x38] sm:$0xff]
      %v2624 = vld [vmem:[%s2615 + $0x40] sm:$0xff]
      %v2625 = vld [vmem:[%s2615 + $0x48] sm:$0xff]
      %v2626 = vld [vmem:[%s2615 + $0x50] sm:$0xff]
      %v2627 = vld [vmem:[%s2615 + $0x58] sm:$0xff]
      %v2628 = vld [vmem:[%s2615 + $0x60] sm:$0xff]
      %v2629 = vld [vmem:[%s2615 + $0x68] sm:$0xff]
      %v2630 = vld [vmem:[%s2615 + $0x70] sm:$0xff]
      %v2631 = vld [vmem:[%s2615 + $0x78] sm:$0xff]
      %2632 = vmatprep.subr.mxu0 0.0
      %2633 = vmatpush1.msra.mxu0 %v2631
      %2634 = vmatprep.subr.mxu0 0.0
      %2635 = vmatpush1.msra.mxu0 %v2630
      %2636 = vmatprep.subr.mxu0 0.0
      %2637 = vmatpush1.msra.mxu0 %v2629
      %2638 = vmatprep.subr.mxu0 0.0
      %2639 = vmatpush1.msra.mxu0 %v2628
      %2640 = vmatprep.subr.mxu0 0.0
      %2641 = vmatpush1.msra.mxu0 %v2627
      %2642 = vmatprep.subr.mxu0 0.0
      %2643 = vmatpush1.msra.mxu0 %v2626
      %2644 = vmatprep.subr.mxu0 0.0
      %2645 = vmatpush1.msra.mxu0 %v2625
      %2646 = vmatprep.subr.mxu0 0.0
      %2647 = vmatpush1.msra.mxu0 %v2624
      %2648 = vmatprep.subr.mxu0 0.0
      %2649 = vmatpush1.msra.mxu0 %v2623
      %2650 = vmatprep.subr.mxu0 0.0
      %2651 = vmatpush1.msra.mxu0 %v2622
      %2652 = vmatprep.subr.mxu0 0.0
      %2653 = vmatpush1.msra.mxu0 %v2621
      %2654 = vmatprep.subr.mxu0 0.0
      %2655 = vmatpush1.msra.mxu0 %v2620
      %2656 = vmatprep.subr.mxu0 0.0
      %2657 = vmatpush1.msra.mxu0 %v2619
      %2658 = vmatprep.subr.mxu0 0.0
      %2659 = vmatpush1.msra.mxu0 %v2618
      %2660 = vmatprep.subr.mxu0 0.0
      %2661 = vmatpush1.msra.mxu0 %v2617
      %2662 = vmatprep.subr.mxu0 0.0
      %2663 = vmatpush1.msra.mxu0 %v2616
      %2664 = vmatprep.subr.mxu0 0.0
      %2665 = vmatpush2.msra.mxu0 0.0
      %2666 = vmatprep.subr.mxu0 0.0
      %2667 = vmatpush2.msra.mxu0 0.0
      %2668 = vmatprep.subr.mxu0 0.0
      %2669 = vmatpush2.msra.mxu0 0.0
      %2670 = vmatprep.subr.mxu0 0.0
      %2671 = vmatpush2.msra.mxu0 0.0
      %2672 = vmatprep.subr.mxu0 0.0
      %2673 = vmatpush2.msra.mxu0 0.0
      %2674 = vmatprep.subr.mxu0 0.0
      %2675 = vmatpush2.msra.mxu0 0.0
      %2676 = vmatprep.subr.mxu0 0.0
      %2677 = vmatpush2.msra.mxu0 0.0
      %2678 = vmatprep.subr.mxu0 0.0
      %2679 = vmatpush2.msra.mxu0 0.0
      %2680 = vmatprep.subr.mxu0 0.0
      %2681 = vmatpush2.msra.mxu0 0.0
      %2682 = vmatprep.subr.mxu0 0.0
      %2683 = vmatpush2.msra.mxu0 0.0
      %2684 = vmatprep.subr.mxu0 0.0
      %2685 = vmatpush2.msra.mxu0 0.0
      %2686 = vmatprep.subr.mxu0 0.0
      %2687 = vmatpush2.msra.mxu0 0.0
      %2688 = vmatprep.subr.mxu0 0.0
      %2689 = vmatpush2.msra.mxu0 0.0
      %2690 = vmatprep.subr.mxu0 0.0
      %2691 = vmatpush2.msra.mxu0 0.0
      %2692 = vmatprep.subr.mxu0 0.0
      %2693 = vmatpush2.msra.mxu0 0.0
      %2694 = vmatprep.subr.mxu0 0.0
      %2695 = vmatpush2.msra.mxu0 0.0
      %2696 = vmatprep.mubr.f32.mxu0 0.0
      %2697 = vmatmul.mubr.f32.gmra.mxu0 %v2583
      %v2698 = vpop.f32.mrf.mxu0
      %v2699 = vadd.f32 0.0, %v2698
      %v2700 = vpop.f32.mrf.mxu0
      %2701 = vmatprep.mubr.f32.mxu0 0.0
      %2702 = vmatmul.mubr.f32.gmra.mxu0 %v2584
      %v2703 = vpop.f32.mrf.mxu0
      %v2704 = vadd.f32 0.0, %v2703
      %v2705 = vpop.f32.mrf.mxu0
      %2706 = vmatprep.mubr.f32.mxu0 0.0
      %2707 = vmatmul.mubr.f32.gmra.mxu0 %v2585
      %v2708 = vpop.f32.mrf.mxu0
      %v2709 = vadd.f32 0.0, %v2708
      %v2710 = vpop.f32.mrf.mxu0
      %2711 = vmatprep.mubr.f32.mxu0 0.0
      %2712 = vmatmul.mubr.f32.gmra.mxu0 %v2586
      %v2713 = vpop.f32.mrf.mxu0
      %v2714 = vadd.f32 0.0, %v2713
      %v2715 = vpop.f32.mrf.mxu0
      %2716 = vmatprep.mubr.f32.mxu0 0.0
      %2717 = vmatmul.mubr.f32.gmra.mxu0 %v2587
      %v2718 = vpop.f32.mrf.mxu0
      %v2719 = vadd.f32 0.0, %v2718
      %v2720 = vpop.f32.mrf.mxu0
      %2721 = vmatprep.mubr.f32.mxu0 0.0
      %2722 = vmatmul.mubr.f32.gmra.mxu0 %v2588
      %v2723 = vpop.f32.mrf.mxu0
      %v2724 = vadd.f32 0.0, %v2723
      %v2725 = vpop.f32.mrf.mxu0
      %2726 = vmatprep.mubr.f32.mxu0 0.0
      %2727 = vmatmul.mubr.f32.gmra.mxu0 %v2589
      %v2728 = vpop.f32.mrf.mxu0
      %v2729 = vadd.f32 0.0, %v2728
      %v2730 = vpop.f32.mrf.mxu0
      %2731 = vmatprep.mubr.f32.mxu0 0.0
      %2732 = vmatmul.mubr.f32.gmra.mxu0 %v2590
      %v2733 = vpop.f32.mrf.mxu0
      %v2734 = vadd.f32 0.0, %v2733
      %v2735 = vpop.f32.mrf.mxu0
      %2736 = vmatprep.mubr.f32.mxu0 0.0
      %2737 = vmatmul.mubr.f32.gmra.mxu0 %v2591
      %v2738 = vpop.f32.mrf.mxu0
      %v2739 = vadd.f32 0.0, %v2738
      %v2740 = vpop.f32.mrf.mxu0
      %2741 = vmatprep.mubr.f32.mxu0 0.0
      %2742 = vmatmul.mubr.f32.gmra.mxu0 %v2592
      %v2743 = vpop.f32.mrf.mxu0
      %v2744 = vadd.f32 0.0, %v2743
      %v2745 = vpop.f32.mrf.mxu0
      %2746 = vmatprep.mubr.f32.mxu0 0.0
      %2747 = vmatmul.mubr.f32.gmra.mxu0 %v2593
      %v2748 = vpop.f32.mrf.mxu0
      %v2749 = vadd.f32 0.0, %v2748
      %v2750 = vpop.f32.mrf.mxu0
      %2751 = vmatprep.mubr.f32.mxu0 0.0
      %2752 = vmatmul.mubr.f32.gmra.mxu0 %v2594
      %v2753 = vpop.f32.mrf.mxu0
      %v2754 = vadd.f32 0.0, %v2753
      %v2755 = vpop.f32.mrf.mxu0
      %2756 = vmatprep.mubr.f32.mxu0 0.0
      %2757 = vmatmul.mubr.f32.gmra.mxu0 %v2595
      %v2758 = vpop.f32.mrf.mxu0
      %v2759 = vadd.f32 0.0, %v2758
      %v2760 = vpop.f32.mrf.mxu0
      %2761 = vmatprep.mubr.f32.mxu0 0.0
      %2762 = vmatmul.mubr.f32.gmra.mxu0 %v2596
      %v2763 = vpop.f32.mrf.mxu0
      %v2764 = vadd.f32 0.0, %v2763
      %v2765 = vpop.f32.mrf.mxu0
      %2766 = vmatprep.mubr.f32.mxu0 0.0
      %2767 = vmatmul.mubr.f32.gmra.mxu0 %v2597
      %v2768 = vpop.f32.mrf.mxu0
      %v2769 = vadd.f32 0.0, %v2768
      %v2770 = vpop.f32.mrf.mxu0
      %2771 = vmatprep.mubr.f32.mxu0 0.0
      %2772 = vmatmul.mubr.f32.gmra.mxu0 %v2598
      %v2773 = vpop.f32.mrf.mxu0
      %v2774 = vadd.f32 0.0, %v2773
      %v2775 = vpop.f32.mrf.mxu0
      %2776 = vmatprep.mubr.f32.mxu0 0.0
      %2777 = vmatmul.mubr.f32.gmra.mxu0 %v2599
      %v2778 = vpop.f32.mrf.mxu0
      %v2779 = vadd.f32 0.0, %v2778
      %v2780 = vpop.f32.mrf.mxu0
      %2781 = vmatprep.mubr.f32.mxu0 0.0
      %2782 = vmatmul.mubr.f32.gmra.mxu0 %v2600
      %v2783 = vpop.f32.mrf.mxu0
      %v2784 = vadd.f32 0.0, %v2783
      %v2785 = vpop.f32.mrf.mxu0
      %2786 = vmatprep.mubr.f32.mxu0 0.0
      %2787 = vmatmul.mubr.f32.gmra.mxu0 %v2601
      %v2788 = vpop.f32.mrf.mxu0
      %v2789 = vadd.f32 0.0, %v2788
      %v2790 = vpop.f32.mrf.mxu0
      %2791 = vmatprep.mubr.f32.mxu0 0.0
      %2792 = vmatmul.mubr.f32.gmra.mxu0 %v2602
      %v2793 = vpop.f32.mrf.mxu0
      %v2794 = vadd.f32 0.0, %v2793
      %v2795 = vpop.f32.mrf.mxu0
      %2796 = vmatprep.mubr.f32.mxu0 0.0
      %2797 = vmatmul.mubr.f32.gmra.mxu0 %v2603
      %v2798 = vpop.f32.mrf.mxu0
      %v2799 = vadd.f32 0.0, %v2798
      %v2800 = vpop.f32.mrf.mxu0
      %2801 = vmatprep.mubr.f32.mxu0 0.0
      %2802 = vmatmul.mubr.f32.gmra.mxu0 %v2604
      %v2803 = vpop.f32.mrf.mxu0
      %v2804 = vadd.f32 0.0, %v2803
      %v2805 = vpop.f32.mrf.mxu0
      %2806 = vmatprep.mubr.f32.mxu0 0.0
      %2807 = vmatmul.mubr.f32.gmra.mxu0 %v2605
      %v2808 = vpop.f32.mrf.mxu0
      %v2809 = vadd.f32 0.0, %v2808
      %v2810 = vpop.f32.mrf.mxu0
      %2811 = vmatprep.mubr.f32.mxu0 0.0
      %2812 = vmatmul.mubr.f32.gmra.mxu0 %v2606
      %v2813 = vpop.f32.mrf.mxu0
      %v2814 = vadd.f32 0.0, %v2813
      %v2815 = vpop.f32.mrf.mxu0
      %2816 = vmatprep.mubr.f32.mxu0 0.0
      %2817 = vmatmul.mubr.f32.gmra.mxu0 %v2607
      %v2818 = vpop.f32.mrf.mxu0
      %v2819 = vadd.f32 0.0, %v2818
      %v2820 = vpop.f32.mrf.mxu0
      %2821 = vmatprep.mubr.f32.mxu0 0.0
      %2822 = vmatmul.mubr.f32.gmra.mxu0 %v2608
      %v2823 = vpop.f32.mrf.mxu0
      %v2824 = vadd.f32 0.0, %v2823
      %v2825 = vpop.f32.mrf.mxu0
      %2826 = vmatprep.mubr.f32.mxu0 0.0
      %2827 = vmatmul.mubr.f32.gmra.mxu0 %v2609
      %v2828 = vpop.f32.mrf.mxu0
      %v2829 = vadd.f32 0.0, %v2828
      %v2830 = vpop.f32.mrf.mxu0
      %2831 = vmatprep.mubr.f32.mxu0 0.0
      %2832 = vmatmul.mubr.f32.gmra.mxu0 %v2610
      %v2833 = vpop.f32.mrf.mxu0
      %v2834 = vadd.f32 0.0, %v2833
      %v2835 = vpop.f32.mrf.mxu0
      %2836 = vmatprep.mubr.f32.mxu0 0.0
      %2837 = vmatmul.mubr.f32.gmra.mxu0 %v2611
      %v2838 = vpop.f32.mrf.mxu0
      %v2839 = vadd.f32 0.0, %v2838
      %v2840 = vpop.f32.mrf.mxu0
      %2841 = vmatprep.mubr.f32.mxu0 0.0
      %2842 = vmatmul.mubr.f32.gmra.mxu0 %v2612
      %v2843 = vpop.f32.mrf.mxu0
      %v2844 = vadd.f32 0.0, %v2843
      %v2845 = vpop.f32.mrf.mxu0
      %2846 = vmatprep.mubr.f32.mxu0 0.0
      %2847 = vmatmul.mubr.f32.gmra.mxu0 %v2613
      %v2848 = vpop.f32.mrf.mxu0
      %v2849 = vadd.f32 0.0, %v2848
      %v2850 = vpop.f32.mrf.mxu0
      %2851 = vmatprep.mubr.f32.mxu0 0.0
      %2852 = vmatmul.mubr.f32.gmra.mxu0 %v2614
      %v2853 = vpop.f32.mrf.mxu0
      %v2854 = vadd.f32 0.0, %v2853
      %v2855 = vpop.f32.mrf.mxu0
      %2856 = vdwg.mxu0
      %v2857 = vadd.f32 %v2551, %v2699
      %v2858 = vadd.f32 %v2552, %v2704
      %v2859 = vadd.f32 %v2553, %v2709
      %v2860 = vadd.f32 %v2554, %v2714
      %v2861 = vadd.f32 %v2555, %v2719
      %v2862 = vadd.f32 %v2556, %v2724
      %v2863 = vadd.f32 %v2557, %v2729
      %v2864 = vadd.f32 %v2558, %v2734
      %v2865 = vadd.f32 %v2559, %v2739
      %v2866 = vadd.f32 %v2560, %v2744
      %v2867 = vadd.f32 %v2561, %v2749
      %v2868 = vadd.f32 %v2562, %v2754
      %v2869 = vadd.f32 %v2563, %v2759
      %v2870 = vadd.f32 %v2564, %v2764
      %v2871 = vadd.f32 %v2565, %v2769
      %v2872 = vadd.f32 %v2566, %v2774
      %v2873 = vadd.f32 %v2567, %v2779
      %v2874 = vadd.f32 %v2568, %v2784
      %v2875 = vadd.f32 %v2569, %v2789
      %v2876 = vadd.f32 %v2570, %v2794
      %v2877 = vadd.f32 %v2571, %v2799
      %v2878 = vadd.f32 %v2572, %v2804
      %v2879 = vadd.f32 %v2573, %v2809
      %v2880 = vadd.f32 %v2574, %v2814
      %v2881 = vadd.f32 %v2575, %v2819
      %v2882 = vadd.f32 %v2576, %v2824
      %v2883 = vadd.f32 %v2577, %v2829
      %v2884 = vadd.f32 %v2578, %v2834
      %v2885 = vadd.f32 %v2579, %v2839
      %v2886 = vadd.f32 %v2580, %v2844
      %v2887 = vadd.f32 %v2581, %v2849
      %v2888 = vadd.f32 %v2582, %v2854
      %v2889 = vld [vmem:[%s2] sm:$0x1]
      %v2891 = vlaneseq
      %v2892 = vshrl.u32 %v2891, 7
      %v2893 = vsub.s32 0, %v2892
      %v2894 = vrot.slane %v2889, %v2893
      %v2896 = vmul.f32 %v2857, %v2894
      %v2897 = vmul.f32 %v2858, %v2894
      %v2898 = vmul.f32 %v2859, %v2894
      %v2899 = vmul.f32 %v2860, %v2894
      %v2900 = vmul.f32 %v2861, %v2894
      %v2901 = vmul.f32 %v2862, %v2894
      %v2902 = vmul.f32 %v2863, %v2894
      %v2903 = vmul.f32 %v2864, %v2894
      %v2904 = vmul.f32 %v2865, %v2894
      %v2905 = vmul.f32 %v2866, %v2894
      %v2906 = vmul.f32 %v2867, %v2894
      %v2907 = vmul.f32 %v2868, %v2894
      %v2908 = vmul.f32 %v2869, %v2894
      %v2909 = vmul.f32 %v2870, %v2894
      %v2910 = vmul.f32 %v2871, %v2894
      %v2911 = vmul.f32 %v2872, %v2894
      %v2912 = vmul.f32 %v2873, %v2894
      %v2913 = vmul.f32 %v2874, %v2894
      %v2914 = vmul.f32 %v2875, %v2894
      %v2915 = vmul.f32 %v2876, %v2894
      %v2916 = vmul.f32 %v2877, %v2894
      %v2917 = vmul.f32 %v2878, %v2894
      %v2918 = vmul.f32 %v2879, %v2894
      %v2919 = vmul.f32 %v2880, %v2894
      %v2920 = vmul.f32 %v2881, %v2894
      %v2921 = vmul.f32 %v2882, %v2894
      %v2922 = vmul.f32 %v2883, %v2894
      %v2923 = vmul.f32 %v2884, %v2894
      %v2924 = vmul.f32 %v2885, %v2894
      %v2925 = vmul.f32 %v2886, %v2894
      %v2926 = vmul.f32 %v2887, %v2894
      %v2927 = vmul.f32 %v2888, %v2894
      %v2928 = vld [vmem:[%s3] sm:$0x1]
      %v2930 = vlaneseq
      %v2931 = vshrl.u32 %v2930, 7
      %v2932 = vsub.s32 0, %v2931
      %v2933 = vrot.slane %v2928, %v2932
      %v2935 = vadd.f32 %v2896, %v2933
      %v2936 = vadd.f32 %v2897, %v2933
      %v2937 = vadd.f32 %v2898, %v2933
      %v2938 = vadd.f32 %v2899, %v2933
      %v2939 = vadd.f32 %v2900, %v2933
      %v2940 = vadd.f32 %v2901, %v2933
      %v2941 = vadd.f32 %v2902, %v2933
      %v2942 = vadd.f32 %v2903, %v2933
      %v2943 = vadd.f32 %v2904, %v2933
      %v2944 = vadd.f32 %v2905, %v2933
      %v2945 = vadd.f32 %v2906, %v2933
      %v2946 = vadd.f32 %v2907, %v2933
      %v2947 = vadd.f32 %v2908, %v2933
      %v2948 = vadd.f32 %v2909, %v2933
      %v2949 = vadd.f32 %v2910, %v2933
      %v2950 = vadd.f32 %v2911, %v2933
      %v2951 = vadd.f32 %v2912, %v2933
      %v2952 = vadd.f32 %v2913, %v2933
      %v2953 = vadd.f32 %v2914, %v2933
      %v2954 = vadd.f32 %v2915, %v2933
      %v2955 = vadd.f32 %v2916, %v2933
      %v2956 = vadd.f32 %v2917, %v2933
      %v2957 = vadd.f32 %v2918, %v2933
      %v2958 = vadd.f32 %v2919, %v2933
      %v2959 = vadd.f32 %v2920, %v2933
      %v2960 = vadd.f32 %v2921, %v2933
      %v2961 = vadd.f32 %v2922, %v2933
      %v2962 = vadd.f32 %v2923, %v2933
      %v2963 = vadd.f32 %v2924, %v2933
      %v2964 = vadd.f32 %v2925, %v2933
      %v2965 = vadd.f32 %v2926, %v2933
      %v2966 = vadd.f32 %v2927, %v2933
      %vm2967 = vcmp.ge.f32.partialorder %v2935, 0.0
      %vm2968 = vcmp.ge.f32.partialorder %v2936, 0.0
      %vm2969 = vcmp.ge.f32.partialorder %v2937, 0.0
      %vm2970 = vcmp.ge.f32.partialorder %v2938, 0.0
      %vm2971 = vcmp.ge.f32.partialorder %v2939, 0.0
      %vm2972 = vcmp.ge.f32.partialorder %v2940, 0.0
      %vm2973 = vcmp.ge.f32.partialorder %v2941, 0.0
      %vm2974 = vcmp.ge.f32.partialorder %v2942, 0.0
      %vm2975 = vcmp.ge.f32.partialorder %v2943, 0.0
      %vm2976 = vcmp.ge.f32.partialorder %v2944, 0.0
      %vm2977 = vcmp.ge.f32.partialorder %v2945, 0.0
      %vm2978 = vcmp.ge.f32.partialorder %v2946, 0.0
      %vm2979 = vcmp.ge.f32.partialorder %v2947, 0.0
      %vm2980 = vcmp.ge.f32.partialorder %v2948, 0.0
      %vm2981 = vcmp.ge.f32.partialorder %v2949, 0.0
      %vm2982 = vcmp.ge.f32.partialorder %v2950, 0.0
      %vm2983 = vcmp.ge.f32.partialorder %v2951, 0.0
      %vm2984 = vcmp.ge.f32.partialorder %v2952, 0.0
      %vm2985 = vcmp.ge.f32.partialorder %v2953, 0.0
      %vm2986 = vcmp.ge.f32.partialorder %v2954, 0.0
      %vm2987 = vcmp.ge.f32.partialorder %v2955, 0.0
      %vm2988 = vcmp.ge.f32.partialorder %v2956, 0.0
      %vm2989 = vcmp.ge.f32.partialorder %v2957, 0.0
      %vm2990 = vcmp.ge.f32.partialorder %v2958, 0.0
      %vm2991 = vcmp.ge.f32.partialorder %v2959, 0.0
      %vm2992 = vcmp.ge.f32.partialorder %v2960, 0.0
      %vm2993 = vcmp.ge.f32.partialorder %v2961, 0.0
      %vm2994 = vcmp.ge.f32.partialorder %v2962, 0.0
      %vm2995 = vcmp.ge.f32.partialorder %v2963, 0.0
      %vm2996 = vcmp.ge.f32.partialorder %v2964, 0.0
      %vm2997 = vcmp.ge.f32.partialorder %v2965, 0.0
      %vm2998 = vcmp.ge.f32.partialorder %v2966, 0.0
      %v2999 = vmul.f32 %v2935, 0.22916667
      %v3000 = vmul.f32 %v2936, 0.22916667
      %v3001 = vmul.f32 %v2937, 0.22916667
      %v3002 = vmul.f32 %v2938, 0.22916667
      %v3003 = vmul.f32 %v2939, 0.22916667
      %v3004 = vmul.f32 %v2940, 0.22916667
      %v3005 = vmul.f32 %v2941, 0.22916667
      %v3006 = vmul.f32 %v2942, 0.22916667
      %v3007 = vmul.f32 %v2943, 0.22916667
      %v3008 = vmul.f32 %v2944, 0.22916667
      %v3009 = vmul.f32 %v2945, 0.22916667
      %v3010 = vmul.f32 %v2946, 0.22916667
      %v3011 = vmul.f32 %v2947, 0.22916667
      %v3012 = vmul.f32 %v2948, 0.22916667
      %v3013 = vmul.f32 %v2949, 0.22916667
      %v3014 = vmul.f32 %v2950, 0.22916667
      %v3015 = vmul.f32 %v2951, 0.22916667
      %v3016 = vmul.f32 %v2952, 0.22916667
      %v3017 = vmul.f32 %v2953, 0.22916667
      %v3018 = vmul.f32 %v2954, 0.22916667
      %v3019 = vmul.f32 %v2955, 0.22916667
      %v3020 = vmul.f32 %v2956, 0.22916667
      %v3021 = vmul.f32 %v2957, 0.22916667
      %v3022 = vmul.f32 %v2958, 0.22916667
      %v3023 = vmul.f32 %v2959, 0.22916667
      %v3024 = vmul.f32 %v2960, 0.22916667
      %v3025 = vmul.f32 %v2961, 0.22916667
      %v3026 = vmul.f32 %v2962, 0.22916667
      %v3027 = vmul.f32 %v2963, 0.22916667
      %v3028 = vmul.f32 %v2964, 0.22916667
      %v3029 = vmul.f32 %v2965, 0.22916667
      %v3030 = vmul.f32 %v2966, 0.22916667
      %v3031 = vsel %vm2967, %v2935, %v2999
      %v3032 = vsel %vm2968, %v2936, %v3000
      %v3033 = vsel %vm2969, %v2937, %v3001
      %v3034 = vsel %vm2970, %v2938, %v3002
      %v3035 = vsel %vm2971, %v2939, %v3003
      %v3036 = vsel %vm2972, %v2940, %v3004
      %v3037 = vsel %vm2973, %v2941, %v3005
      %v3038 = vsel %vm2974, %v2942, %v3006
      %v3039 = vsel %vm2975, %v2943, %v3007
      %v3040 = vsel %vm2976, %v2944, %v3008
      %v3041 = vsel %vm2977, %v2945, %v3009
      %v3042 = vsel %vm2978, %v2946, %v3010
      %v3043 = vsel %vm2979, %v2947, %v3011
      %v3044 = vsel %vm2980, %v2948, %v3012
      %v3045 = vsel %vm2981, %v2949, %v3013
      %v3046 = vsel %vm2982, %v2950, %v3014
      %v3047 = vsel %vm2983, %v2951, %v3015
      %v3048 = vsel %vm2984, %v2952, %v3016
      %v3049 = vsel %vm2985, %v2953, %v3017
      %v3050 = vsel %vm2986, %v2954, %v3018
      %v3051 = vsel %vm2987, %v2955, %v3019
      %v3052 = vsel %vm2988, %v2956, %v3020
      %v3053 = vsel %vm2989, %v2957, %v3021
      %v3054 = vsel %vm2990, %v2958, %v3022
      %v3055 = vsel %vm2991, %v2959, %v3023
      %v3056 = vsel %vm2992, %v2960, %v3024
      %v3057 = vsel %vm2993, %v2961, %v3025
      %v3058 = vsel %vm2994, %v2962, %v3026
      %v3059 = vsel %vm2995, %v2963, %v3027
      %v3060 = vsel %vm2996, %v2964, %v3028
      %v3061 = vsel %vm2997, %v2965, %v3029
      %v3062 = vsel %vm2998, %v2966, %v3030
      %3063 = vst [vmem:[%s197] sm:$0xff] %v3031
      %3064 = vst [vmem:[%s197 + $0x8] sm:$0xff] %v3032
      %3065 = vst [vmem:[%s197 + $0x10] sm:$0xff] %v3033
      %3066 = vst [vmem:[%s197 + $0x18] sm:$0xff] %v3034
      %3067 = vst [vmem:[%s197 + $0x20] sm:$0xff] %v3035
      %3068 = vst [vmem:[%s197 + $0x28] sm:$0xff] %v3036
      %3069 = vst [vmem:[%s197 + $0x30] sm:$0xff] %v3037
      %3070 = vst [vmem:[%s197 + $0x38] sm:$0xff] %v3038
      %3071 = vst [vmem:[%s197 + $0x40] sm:$0xff] %v3039
      %3072 = vst [vmem:[%s197 + $0x48] sm:$0xff] %v3040
      %3073 = vst [vmem:[%s197 + $0x50] sm:$0xff] %v3041
      %3074 = vst [vmem:[%s197 + $0x58] sm:$0xff] %v3042
      %3075 = vst [vmem:[%s197 + $0x60] sm:$0xff] %v3043
      %3076 = vst [vmem:[%s197 + $0x68] sm:$0xff] %v3044
      %3077 = vst [vmem:[%s197 + $0x70] sm:$0xff] %v3045
      %3078 = vst [vmem:[%s197 + $0x78] sm:$0xff] %v3046
      %3079 = vst [vmem:[%s197 + $0x80] sm:$0xff] %v3047
      %3080 = vst [vmem:[%s197 + $0x88] sm:$0xff] %v3048
      %3081 = vst [vmem:[%s197 + $0x90] sm:$0xff] %v3049
      %3082 = vst [vmem:[%s197 + $0x98] sm:$0xff] %v3050
      %3083 = vst [vmem:[%s197 + $0xa0] sm:$0xff] %v3051
      %3084 = vst [vmem:[%s197 + $0xa8] sm:$0xff] %v3052
      %3085 = vst [vmem:[%s197 + $0xb0] sm:$0xff] %v3053
      %3086 = vst [vmem:[%s197 + $0xb8] sm:$0xff] %v3054
      %3087 = vst [vmem:[%s197 + $0xc0] sm:$0xff] %v3055
      %3088 = vst [vmem:[%s197 + $0xc8] sm:$0xff] %v3056
      %3089 = vst [vmem:[%s197 + $0xd0] sm:$0xff] %v3057
      %3090 = vst [vmem:[%s197 + $0xd8] sm:$0xff] %v3058
      %3091 = vst [vmem:[%s197 + $0xe0] sm:$0xff] %v3059
      %3092 = vst [vmem:[%s197 + $0xe8] sm:$0xff] %v3060
      %3093 = vst [vmem:[%s197 + $0xf0] sm:$0xff] %v3061
      %3094 = vst [vmem:[%s197 + $0xf8] sm:$0xff] %v3062
      %p3095 = scmp.lt.s32.totalorder %s15, 1
      %s3096 = scalar_select %p3095, %s15, 1
      %s3097 = smul.addr %s3096, 32
      %s3098 = smul.addr %s3097, 8
      %s3099 = scalar_lea.vmem %s4, %s3098
      // Predicated region
      $region37: #{conv_block_forward.3} parent=35 // pred_check
        %p3100 = pneg %p122
      $region38: #{conv_block_forward.3} parent=35 // pred_check_branch
        %3102 = sbr.rel (%p3100) target = $region40
      $region39: #{conv_block_forward.3} parent=35 // pred_region
        _
      $region40: #{conv_block_forward.3} parent=35 // pred_fallthru
        _
    $region36: #{conv_block_forward.3} parent=5 // pred_fallthru
      _
    %p3103 = scmp.le.s32.totalorder 2, %s10
    // Predicated region
    $region41: #{conv_block_forward.3} parent=5 // pred_check
      %p3104 = pneg %p3103
    $region42: #{conv_block_forward.3} parent=5 // pred_check_branch
      %3106 = sbr.rel (%p3104) target = $region44
    $region43: #{conv_block_forward.3} parent=5 // pred_region
      %s3107 = ssub.s32 %s10, 2
      // Predicated region
      $region45: #{conv_block_forward.3} parent=43 // pred_check
        %p3108 = pneg %p128
      $region46: #{conv_block_forward.3} parent=43 // pred_check_branch
        %3110 = sbr.rel (%p3108) target = $region48
      $region47: #{conv_block_forward.3} parent=43 // pred_region
        %p3111 = scmp.lt.s32.totalorder %s16, 1
        %s3112 = scalar_select %p3111, %s16, 1
        %s3113 = smul.addr %s3112, 32
        %s3114 = smul.addr %s3113, 8
        %s3115 = scalar_lea.vmem %s4, %s3114
      $region48: #{conv_block_forward.3} parent=43 // pred_fallthru
        _
    $region44: #{conv_block_forward.3} parent=5 // pred_fallthru
      _
  $region6: #{conv_block_forward.3} parent=0 // loop_footer
    %s14 = sadd.s32 1, %s10
  $region7: #{conv_block_forward.3} parent=0 // loop_footer_branch
    %9 = sbr.rel target = $region3
  $region8: #{conv_block_forward.3} parent=0 // loop_exit
    _

</llo_original>
